<compile_context>
chip_gen: v7x
topology: tpu7x:2x2x1
jax: 0.10.0
libtpu: 0.0.40
codegen_flags: <defaults>
</compile_context>

<pallas_src>
import jax
import jax.numpy as jnp
from jax.experimental import pallas as pl
from jax.experimental.pallas import tpu as pltpu


# -----------------------------------------------------------------------------
# Helpers
# -----------------------------------------------------------------------------

def _round_up(x, m):
    return (x + m - 1) // m * m


_MAP1 = lambda i: (0,)
_MAP2 = lambda i: (0, 0)
_MAP3 = lambda i: (0, 0, 0)


def _full_spec(a):
    return pl.BlockSpec(a.shape, {1: _MAP1, 2: _MAP2, 3: _MAP3}[a.ndim])


# Lane rotation used by the big conv kernel.  jnp.roll is the semantics-guaranteed
# fallback; _probe_roll() swaps in pltpu.roll (hardware XLU rotate) iff it lowers and
# matches np.roll semantics on this jax/libtpu build.
_LANE_ROLL = jnp.roll


def _probe_roll():
    global _LANE_ROLL
    try:
        def k(x_ref, o_ref):
            o_ref[...] = pltpu.roll(x_ref[...], 1, axis=1)
        x = jnp.arange(8 * 256, dtype=jnp.float32).reshape(8, 256)
        y = pl.pallas_call(k, out_shape=jax.ShapeDtypeStruct((8, 256), jnp.float32))(x)
        if bool(jnp.all(y == jnp.roll(x, 1, axis=1))):
            _LANE_ROLL = pltpu.roll
    except Exception:
        pass   # keep jnp.roll


def upsample2x_flat(x, H, W):
    """nn.Upsample(scale_factor=2, mode='nearest') on flat (N, C, H*W)."""
    N, C, _ = x.shape
    x = jnp.broadcast_to(x.reshape(N, C, H, 1, W, 1), (N, C, H, 2, W, 2))
    return x.reshape(N, C, 4 * H * W)


def _pack_conv3_weights(w, pad_to=1):
    """(Cout, Cin, 3, 3) f32 -> (Cout, 9*Cp) bf16 in (kh, kw, cin-padded) order."""
    cout, cin = w.shape[:2]
    cp = _round_up(cin, pad_to)
    wt = jnp.transpose(w, (0, 2, 3, 1))                     # (Cout, 3, 3, Cin)
    wt = jnp.pad(wt, ((0, 0), (0, 0), (0, 0), (0, cp - cin)))
    return wt.reshape(cout, 9 * cp).astype(jnp.bfloat16)


def spectral_normalize(w, dim=0, n_iter=3):
    # TODO(synk): PyTorch spectral_norm keeps a persistent random `u` and runs one
    # power iteration per forward; here u is deterministic, 3 iterations at init.
    perm = (dim,) + tuple(i for i in range(w.ndim) if i != dim)
    wm = jnp.transpose(w, perm).reshape(w.shape[dim], -1)
    u = jnp.ones((wm.shape[0],), jnp.float32) / jnp.sqrt(float(wm.shape[0]))
    v = None
    for _ in range(n_iter):
        v = wm.T @ u
        v = v / (jnp.linalg.norm(v) + 1e-12)
        u = wm @ v
        u = u / (jnp.linalg.norm(u) + 1e-12)
    sigma = u @ (wm @ v)
    return w / sigma


# -----------------------------------------------------------------------------
# Big-path tiled conv3x3 kernel (128x128 / 256x256 layers + to_big)
# -----------------------------------------------------------------------------

def _make_conv3x3_kernel(pad_rows, W, Rb, with_noise, with_stats):
    RbW = Rb * W

    def kernel(*refs):
        it = iter(refs)
        x_ref = next(it)
        w_ref = next(it)
        nz_ref = next(it) if with_noise else None
        o_ref = next(it)
        m_ref = next(it) if with_stats else None
        m2_ref = next(it) if with_stats else None

        r = pl.program_id(1)

        # W-halo edge masks (W is a power of two -> AND instead of an integer mod).
        col = jax.lax.broadcasted_iota(jnp.int32, (1, RbW), 1) & (W - 1)
        not_left = col != 0
        not_right = col != (W - 1)

        # Zero rows that pad each tap piece to the bf16 16-sublane pack.
        zpad = jnp.zeros((pad_rows, RbW), jnp.bfloat16) if pad_rows else None

        pieces = []
        for kh in range(3):
            # 128-aligned centre-tap load (flat pad is exactly one W row on each side).
            start = pl.multiple_of(r * RbW + kh * W, 128)
            c = x_ref[0, :, pl.ds(start, RbW)]                      # (Cin, RbW) bf16
            # kw = 0 / 2 taps: +-1 lane rotation of the centre tap + edge mask.
            left = jnp.where(not_left, _LANE_ROLL(c, 1, axis=1), 0)
            right = jnp.where(not_right, _LANE_ROLL(c, RbW - 1, axis=1), 0)
            for piece in (left, c, right):
                pieces.append(piece)
                if zpad is not None:
                    pieces.append(zpad)
        slab = jnp.concatenate(pieces, axis=0)                      # (9*Cp, RbW) bf16

        acc = jnp.dot(w_ref[:, :], slab, preferred_element_type=jnp.float32)

        if with_noise:                                              # NoiseInjection
            acc = acc + nz_ref[0, :, :].astype(jnp.float32)

        if with_stats:
            # Per-block BatchNorm statistics: block mean + centered sum of squares.
            m = jnp.sum(acc, axis=1, keepdims=True) * (1.0 / RbW)
            d = acc - m
            m_ref[0, 0, :, :] = m
            m2_ref[0, 0, :, :] = jnp.sum(d * d, axis=1, keepdims=True)

        o_ref[0, :, :] = acc.astype(o_ref.dtype)

    return kernel


def conv3x3_flat(x, w_flat, H, W, *, noise=None, with_stats=True,
                 out_dtype=jnp.bfloat16):
    """3x3 'same' conv on flat (N, Cin, H*W).  Returns y or (y, mean, var)."""
    N, Cin, HW = x.shape
    assert HW == H * W
    assert W >= 128 and (W & (W - 1)) == 0, "big-path conv expects lane-aligned W"
    Cp = _round_up(Cin, 16)
    Cout = w_flat.shape[0]
    assert w_flat.shape[1] == 9 * Cp

    Rb = min(H, max(1, 8192 // W))            # >=8192 lanes per row block
    if N * (H // Rb) < 2 and Rb % 2 == 0:     # keep >=2 parallel steps (v7x, batch=1)
        Rb //= 2
    assert H % Rb == 0
    RB = H // Rb
    RbW = Rb * W
    L = HW + 2 * W                            # one zero row top + bottom (H halo)

    xp = jnp.pad(x.astype(jnp.bfloat16), ((0, 0), (0, 0), (W, W)))

    with_noise = noise is not None
    in_specs = [
        pl.BlockSpec((1, Cin, L), lambda n, r: (n, 0, 0)),          # resident across r
        pl.BlockSpec((Cout, 9 * Cp), lambda n, r: (0, 0)),
    ]
    args = [xp, w_flat]
    if with_noise:
        in_specs.append(pl.BlockSpec((1, 1, RbW), lambda n, r: (n, 0, r)))
        args.append(noise.reshape(N, 1, HW).astype(jnp.bfloat16))

    if with_stats:
        out_specs = (pl.BlockSpec((1, Cout, RbW), lambda n, r: (n, 0, r)),
                     pl.BlockSpec((1, 1, Cout, 1), lambda n, r: (n, r, 0, 0)),
                     pl.BlockSpec((1, 1, Cout, 1), lambda n, r: (n, r, 0, 0)))
        out_shape = (jax.ShapeDtypeStruct((N, Cout, HW), out_dtype),
                     jax.ShapeDtypeStruct((N, RB, Cout, 1), jnp.float32),
                     jax.ShapeDtypeStruct((N, RB, Cout, 1), jnp.float32))
    else:
        out_specs = pl.BlockSpec((1, Cout, RbW), lambda n, r: (n, 0, r))
        out_shape = jax.ShapeDtypeStruct((N, Cout, HW), out_dtype)

    kernel = _make_conv3x3_kernel(Cp - Cin, W, Rb, with_noise, with_stats)
    res = pl.pallas_call(
        kernel,
        grid=(N, RB),
        in_specs=in_specs,
        out_specs=out_specs,
        out_shape=out_shape,
        compiler_params=pltpu.CompilerParams(
            dimension_semantics=("parallel", "parallel"),
            vmem_limit_bytes=32 * 1024 * 1024),
    )(*args)

    if not with_stats:
        return res

    y, mb, m2 = res
    # Chan-style merge of per-block (mean, centered sum of squares): numerically
    # stable vs the previous global E[x^2]-E[x]^2.
    gmean = jnp.mean(mb, axis=(0, 1, 3))
    dev = mb - gmean.reshape(1, 1, Cout, 1)
    m2_tot = jnp.sum(m2, axis=(0, 1, 3)) + RbW * jnp.sum(dev * dev, axis=(0, 1, 3))
    var = jnp.maximum(m2_tot / (N * HW), 0.0)
    return y, gmean, var


# -----------------------------------------------------------------------------
# Big-path fused BatchNorm-affine + GLU (+ optional SE gate) kernel
# -----------------------------------------------------------------------------

def _make_bn_glu_kernel(C, with_gate):
    if with_gate:
        def kernel(x_ref, scale_ref, shift_ref, gate_ref, o_ref):
            y = x_ref[0, :, :].astype(jnp.float32) * scale_ref[:, :] + shift_ref[:, :]
            out = y[:C, :] * jax.nn.sigmoid(y[C:, :])
            o_ref[0, :, :] = (gate_ref[0, :, :] * out).astype(o_ref.dtype)
        return kernel

    def kernel(x_ref, scale_ref, shift_ref, o_ref):
        y = x_ref[0, :, :].astype(jnp.float32) * scale_ref[:, :] + shift_ref[:, :]
        o_ref[0, :, :] = (y[:C, :] * jax.nn.sigmoid(y[C:, :])).astype(o_ref.dtype)
    return kernel


def bn_glu(y, mean, var, gamma, beta, *, gate=None, eps=1e-5, out_dtype=jnp.bfloat16):
    """Training-mode BatchNorm2d (precomputed batch stats) + GLU (+ optional SE gate)."""
    N, C2, HW = y.shape
    C = C2 // 2
    inv = gamma * jax.lax.rsqrt(var + eps)
    scale = inv.reshape(C2, 1).astype(jnp.float32)
    shift = (beta - mean * inv).reshape(C2, 1).astype(jnp.float32)

    T = min(HW, 32768)                         # big lane-dense spatial tiles
    while N * (HW // T) < 2 and T % 2 == 0 and T > 1024:
        T //= 2                                # keep >=2 parallel steps (v7x, batch=1)
    assert HW % T == 0
    RB = HW // T

    in_specs = [
        pl.BlockSpec((1, C2, T), lambda n, r: (n, 0, r)),
        pl.BlockSpec((C2, 1), lambda n, r: (0, 0)),
        pl.BlockSpec((C2, 1), lambda n, r: (0, 0)),
    ]
    args = [y, scale, shift]
    if gate is not None:
        in_specs.append(pl.BlockSpec((1, C, 1), lambda n, r: (n, 0, 0)))
        args.append(gate.reshape(N, C, 1).astype(jnp.float32))

    return pl.pallas_call(
        _make_bn_glu_kernel(C, gate is not None),
        grid=(N, RB),
        in_specs=in_specs,
        out_specs=pl.BlockSpec((1, C, T), lambda n, r: (n, 0, r)),
        out_shape=jax.ShapeDtypeStruct((N, C, HW), out_dtype),
        compiler_params=pltpu.CompilerParams(
            dimension_semantics=("parallel", "parallel"),
            vmem_limit_bytes=32 * 1024 * 1024),
    )(*args)


# -----------------------------------------------------------------------------
# Small-path: whole UpBlock / UpBlockComp fused into a single kernel
# -----------------------------------------------------------------------------

def _make_fused_block_kernel(N, W, comp, with_gate, eps):
    """Whole UpBlock/UpBlockComp (input already 2x upsampled) in one kernel.
    Ref order (matches the wrappers): x, w1, [nz1], g1, b1, [w2, nz2, g2, b2], [gate], o.
    """

    def kernel(*refs):
        it = iter(refs)
        x_ref = next(it)
        w1_ref = next(it)
        nz1_ref = next(it) if comp else None
        g1_ref = next(it)
        b1_ref = next(it)
        if comp:
            w2_ref = next(it)
            nz2_ref = next(it)
            g2_ref = next(it)
            b2_ref = next(it)
        gate_ref = next(it) if with_gate else None
        o_ref = next(it)

        HW = x_ref.shape[2]
        inv_cnt = 1.0 / (N * HW)

        col = jax.lax.broadcasted_iota(jnp.int32, (1, HW), 1) & (W - 1)
        not_left = col != 0
        not_right = col != (W - 1)

        def conv3x3(xn, w_ref_):
            """(C, HW) bf16 -> (Co, HW) f32.  H halo via in-VMEM zero pad, W halo via
            column edge masks (taps = static lane slices of the padded value)."""
            C = xn.shape[0]
            zrow = jnp.zeros((C, W + 1), jnp.bfloat16)
            xp = jnp.concatenate([zrow, xn, zrow], axis=1)          # (C, HW + 2W + 2)
            pieces = []
            for kh in range(3):
                for kw in range(3):
                    t = xp[:, kh * W + kw: kh * W + kw + HW]
                    if kw == 0:
                        t = jnp.where(not_left, t, 0)
                    elif kw == 2:
                        t = jnp.where(not_right, t, 0)
                    pieces.append(t)
            slab = jnp.concatenate(pieces, axis=0)                  # (9C, HW)
            return jnp.dot(w_ref_[:, :], slab, preferred_element_type=jnp.float32)

        def bn_glu_batch(ys, g_ref, b_ref):
            """Training-mode BatchNorm over the whole in-VMEM batch, then GLU."""
            s = jnp.sum(ys[0], axis=1, keepdims=True)
            for yn in ys[1:]:
                s = s + jnp.sum(yn, axis=1, keepdims=True)
            m = s * inv_cnt
            v = None
            for yn in ys:
                d = yn - m
                dv = jnp.sum(d * d, axis=1, keepdims=True)
                v = dv if v is None else v + dv
            v = v * inv_cnt
            scale = g_ref[:, :] * jax.lax.rsqrt(v + eps)
            shift = b_ref[:, :] - m * scale
            c = g_ref.shape[0] // 2
            outs = []
            for yn in ys:
                z = yn * scale + shift
                outs.append(z[:c, :] * jax.nn.sigmoid(z[c:, :]))
            return outs

        ys = []
        for n in range(N):
            y = conv3x3(x_ref[n, :, :], w1_ref)
            if comp:
                y = y + nz1_ref[n, :, :].astype(jnp.float32)
            ys.append(y)
        hs = bn_glu_batch(ys, g1_ref, b1_ref)

        if comp:
            ys2 = []
            for n in range(N):
                y = conv3x3(hs[n].astype(jnp.bfloat16), w2_ref)
                y = y + nz2_ref[n, :, :].astype(jnp.float32)
                ys2.append(y)
            hs = bn_glu_batch(ys2, g2_ref, b2_ref)

        for n in range(N):
            h = hs[n]
            if with_gate:
                h = h * gate_ref[n, :, :]
            o_ref[n, :, :] = h.astype(o_ref.dtype)

    return kernel


def _comp_noise(prm, key, N, HWo):
    k1, k2 = jax.random.split(key)
    nz1 = (prm['nw1'] * jax.random.normal(k1, (N, 1, HWo), jnp.float32)).astype(jnp.bfloat16)
    nz2 = (prm['nw2'] * jax.random.normal(k2, (N, 1, HWo), jnp.float32)).astype(jnp.bfloat16)
    return nz1, nz2


def _fused_call(args, in_specs, kernel, out_shape):
    return pl.pallas_call(
        kernel,
        grid=(1,),
        in_specs=in_specs,
        out_specs=pl.BlockSpec(out_shape.shape, _MAP3),
        out_shape=out_shape,
        compiler_params=pltpu.CompilerParams(
            dimension_semantics=("arbitrary",),
            vmem_limit_bytes=32 * 1024 * 1024),
    )(*args)


def fused_up_block(x, prm, H, W, *, gate=None, eps=1e-5):
    """UpBlock (upsample + conv + BN + GLU [+ SE gate]) in one kernel (small layers)."""
    N, Cin, HW = x.shape
    assert HW == H * W
    HWo = 4 * H * W
    xu = upsample2x_flat(x, H, W).astype(jnp.bfloat16)
    C1 = prm['w'].shape[0]
    Cfin = C1 // 2

    args = [xu, prm['w'],
            prm['g'].reshape(C1, 1).astype(jnp.float32),
            prm['b'].reshape(C1, 1).astype(jnp.float32)]
    if gate is not None:
        args.append(gate.reshape(N, Cfin, 1).astype(jnp.float32))
    in_specs = [_full_spec(a) for a in args]

    kernel = _make_fused_block_kernel(N, 2 * W, False, gate is not None, eps)
    return _fused_call(args, in_specs, kernel,
                       jax.ShapeDtypeStruct((N, Cfin, HWo), jnp.bfloat16))


def fused_up_block_comp(x, prm, H, W, key, *, gate=None, eps=1e-5):
    """UpBlockComp (upsample + 2x [conv + noise + BN + GLU]) in one kernel."""
    N, Cin, HW = x.shape
    assert HW == H * W
    HWo = 4 * H * W
    xu = upsample2x_flat(x, H, W).astype(jnp.bfloat16)
    nz1, nz2 = _comp_noise(prm, key, N, HWo)
    C1 = prm['w1'].shape[0]
    C2 = prm['w2'].shape[0]
    Cfin = C2 // 2

    args = [xu, prm['w1'], nz1,
            prm['g1'].reshape(C1, 1).astype(jnp.float32),
            prm['b1'].reshape(C1, 1).astype(jnp.float32),
            prm['w2'], nz2,
            prm['g2'].reshape(C2, 1).astype(jnp.float32),
            prm['b2'].reshape(C2, 1).astype(jnp.float32)]
    if gate is not None:
        args.append(gate.reshape(N, Cfin, 1).astype(jnp.float32))
    in_specs = [_full_spec(a) for a in args]

    kernel = _make_fused_block_kernel(N, 2 * W, True, gate is not None, eps)
    return _fused_call(args, in_specs, kernel,
                       jax.ShapeDtypeStruct((N, Cfin, HWo), jnp.bfloat16))


# -----------------------------------------------------------------------------
# Glue (tiny matmuls kept in XLA), big-path blocks, parameters, forward
# -----------------------------------------------------------------------------

def init_layer(noise, w_flat, gamma, beta, eps=1e-5):
    """InitLayer: ConvTranspose2d(nz, 2C, 4, 1, 0) on a 1x1 input == one tiny matmul
    (kept in XLA, M = batch), + BN + GLU, all in f32."""
    B = noise.shape[0]
    z = noise.reshape(B, -1).astype(jnp.float32)
    C2 = gamma.shape[0]
    y = jnp.dot(z, w_flat, preferred_element_type=jnp.float32).reshape(B, C2, 16)
    m = y.mean(axis=(0, 2), keepdims=True)
    v = ((y - m) ** 2).mean(axis=(0, 2), keepdims=True)
    zn = (y - m) * jax.lax.rsqrt(v + eps) * gamma.reshape(1, C2, 1) + beta.reshape(1, C2, 1)
    C = C2 // 2
    return (zn[:, :C] * jax.nn.sigmoid(zn[:, C:])).astype(jnp.bfloat16)


def se_gate(feat_small, prm, S):
    """SEBlock gate: AdaptiveAvgPool2d(4) -> conv4x4 -> Swish -> conv1x1 -> sigmoid.
    Tiny (M = batch) matmuls stay in XLA; the gate is applied inside the consumer."""
    N, Cin, _ = feat_small.shape
    x = feat_small.astype(jnp.float32).reshape(N, Cin, S, S)
    x = x.reshape(N, Cin, 4, S // 4, 4, S // 4).mean(axis=(3, 5))
    Cout = prm['w1'].shape[0]
    a = x.reshape(N, Cin * 16)
    y = a @ prm['w1'].reshape(Cout, Cin * 16).T
    y = y * jax.nn.sigmoid(y)                                       # Swish
    y = y @ prm['w2'].reshape(Cout, Cout).T
    return jax.nn.sigmoid(y)                                        # (N, Cout)


def big_up_block(x, prm, H, W, *, gate=None):
    xu = upsample2x_flat(x, H, W)
    y, mean, var = conv3x3_flat(xu, prm['w'], 2 * H, 2 * W)
    return bn_glu(y, mean, var, prm['g'], prm['b'], gate=gate)


def big_up_block_comp(x, prm, H, W, key, *, gate=None):
    N = x.shape[0]
    Ho, Wo = 2 * H, 2 * W
    HWo = Ho * Wo
    k1, k2 = jax.random.split(key)
    xu = upsample2x_flat(x, H, W)
    n1 = prm['nw1'] * jax.random.normal(k1, (N, HWo), jnp.float32)
    y, mean, var = conv3x3_flat(xu, prm['w1'], Ho, Wo, noise=n1)
    h = bn_glu(y, mean, var, prm['g1'], prm['b1'])
    n2 = prm['nw2'] * jax.random.normal(k2, (N, HWo), jnp.float32)
    y2, mean2, var2 = conv3x3_flat(h, prm['w2'], Ho, Wo, noise=n2)
    return bn_glu(y2, mean2, var2, prm['g2'], prm['b2'], gate=gate)


def init_generator_params(key, ngf=8, nz=16, nc=3, im_size=256):
    """Mirrors weights_init: conv ~ N(0, .02) + spectral norm, BN gamma ~ N(1, .02)."""
    nfc_multi = {4: 16, 8: 8, 16: 4, 32: 2, 64: 2, 128: 1,
                 256: 0.5, 512: 0.25, 1024: 0.125}
    nfc = {k: int(v * ngf) for k, v in nfc_multi.items()}
    kit = iter(jax.random.split(key, 64))

    def conv_w(cout, cin, kh, kw):
        w = 0.02 * jax.random.normal(next(kit), (cout, cin, kh, kw), jnp.float32)
        return spectral_normalize(w, dim=0)

    def conv3_flat(cout, cin, pad_to):
        return _pack_conv3_weights(conv_w(cout, cin, 3, 3), pad_to)

    def convT_w(cin, cout, kh, kw):
        w = 0.02 * jax.random.normal(next(kit), (cin, cout, kh, kw), jnp.float32)
        return spectral_normalize(w, dim=1)

    def bn(c):
        g = 1.0 + 0.02 * jax.random.normal(next(kit), (c,), jnp.float32)
        return g, jnp.zeros((c,), jnp.float32)

    def up(cin, cout, pad_to):
        g, b = bn(cout * 2)
        return dict(w=conv3_flat(cout * 2, cin, pad_to), g=g, b=b)

    def upcomp(cin, cout, pad_to):
        g1, b1 = bn(cout * 2)
        g2, b2 = bn(cout * 2)
        return dict(w1=conv3_flat(cout * 2, cin, pad_to),
                    nw1=jnp.zeros((), jnp.float32), g1=g1, b1=b1,
                    w2=conv3_flat(cout * 2, cout, pad_to),
                    nw2=jnp.zeros((), jnp.float32), g2=g2, b2=b2)

    def se(cin, cout):
        return dict(w1=conv_w(cout, cin, 4, 4), w2=conv_w(cout, cout, 1, 1))

    p = {}
    wT = convT_w(nz, nfc[4] * 2, 4, 4)
    p['init_w'] = wT.reshape(nz, nfc[4] * 2 * 16)
    p['init_g'], p['init_b'] = bn(nfc[4] * 2)
    p['feat_8'] = upcomp(nfc[4], nfc[8], 1)          # fused small path (unpadded K)
    p['feat_16'] = up(nfc[8], nfc[16], 1)
    p['feat_32'] = upcomp(nfc[16], nfc[32], 1)
    p['feat_64'] = up(nfc[32], nfc[64], 1)
    p['feat_128'] = upcomp(nfc[64], nfc[128], 16)    # tiled big path (K padded to 16)
    p['feat_256'] = up(nfc[128], nfc[256], 16)
    p['se_64'] = se(nfc[4], nfc[64])
    p['se_128'] = se(nfc[8], nfc[128])
    p['se_256'] = se(nfc[16], nfc[256])
    p['to_big'] = conv3_flat(nc, nfc[im_size], 16)
    return p


@jax.jit
def generator_forward(params, x, noise_key):
    """Matches PyTorch Generator.forward; input (N, nz, 1, 1), output (N, nc, 256, 256)."""
    N = x.shape[0]
    k8, k32, k128 = jax.random.split(noise_key, 3)

    feat_4 = init_layer(x, params['init_w'], params['init_g'], params['init_b'])
    feat_8 = fused_up_block_comp(feat_4, params['feat_8'], 4, 4, k8)
    feat_16 = fused_up_block(feat_8, params['feat_16'], 8, 8)
    feat_32 = fused_up_block_comp(feat_16, params['feat_32'], 16, 16, k32)
    feat_64 = fused_up_block(feat_32, params['feat_64'], 32, 32,
                             gate=se_gate(feat_4, params['se_64'], 4))
    feat_128 = big_up_block_comp(feat_64, params['feat_128'], 64, 64, k128,
                                 gate=se_gate(feat_8, params['se_128'], 8))
    feat_256 = big_up_block(feat_128, params['feat_256'], 128, 128,
                            gate=se_gate(feat_16, params['se_256'], 16))
    out = conv3x3_flat(feat_256, params['to_big'], 256, 256,
                       with_stats=False, out_dtype=jnp.float32)
    return out.reshape(N, -1, 256, 256)


# -----------------------------------------------------------------------------
# Self-tests (validate kernel math against pure-XLA references)
# -----------------------------------------------------------------------------

def _self_test_big_conv():
    key = jax.random.PRNGKey(42)
    kx, kw, kn = jax.random.split(key, 3)
    N, Cin, Cout, H, W = 1, 4, 8, 128, 128
    x = jax.random.normal(kx, (N, Cin, H * W), jnp.float32)
    w = 0.1 * jax.random.normal(kw, (Cout, Cin, 3, 3), jnp.float32)
    nz = 0.3 * jax.random.normal(kn, (N, H * W), jnp.float32)

    y, m, v = conv3x3_flat(x, _pack_conv3_weights(w, 16), H, W,
                           noise=nz, out_dtype=jnp.float32)

    xr = x.astype(jnp.bfloat16).astype(jnp.float32).reshape(N, Cin, H, W)
    wr = w.astype(jnp.bfloat16).astype(jnp.float32)
    yr = jax.lax.conv_general_dilated(
        xr, wr, (1, 1), "SAME", dimension_numbers=("NCHW", "OIHW", "NCHW"),
        precision=jax.lax.Precision.HIGHEST).reshape(N, Cout, H * W)
    yr = yr + nz.astype(jnp.bfloat16).astype(jnp.float32)[:, None, :]

    assert float(jnp.max(jnp.abs(y - yr))) < 1e-2, "conv3x3 kernel mismatch"
    assert float(jnp.max(jnp.abs(m - yr.mean(axis=(0, 2))))) < 1e-3, "BN mean mismatch"
    assert float(jnp.max(jnp.abs(v - yr.var(axis=(0, 2))))) < 1e-3, "BN var mismatch"


def _self_test_fused_block():
    key = jax.random.PRNGKey(7)
    ks = jax.random.split(key, 8)
    N, Cin, planes, H, W = 2, 32, 16, 8, 8
    C1 = 2 * planes
    x = jax.random.normal(ks[0], (N, Cin, H * W), jnp.float32).astype(jnp.bfloat16)
    w1 = 0.1 * jax.random.normal(ks[1], (C1, Cin, 3, 3), jnp.float32)
    w2 = 0.1 * jax.random.normal(ks[2], (C1, planes, 3, 3), jnp.float32)
    g1 = 1.0 + 0.02 * jax.random.normal(ks[3], (C1,), jnp.float32)
    g2 = 1.0 + 0.02 * jax.random.normal(ks[4], (C1,), jnp.float32)
    b1 = 0.01 * jax.random.normal(ks[5], (C1,), jnp.float32)
    b2 = 0.01 * jax.random.normal(ks[6], (C1,), jnp.float32)
    prm = dict(w1=_pack_conv3_weights(w1, 1), nw1=jnp.float32(0.1), g1=g1, b1=b1,
               w2=_pack_conv3_weights(w2, 1), nw2=jnp.float32(0.1), g2=g2, b2=b2)

    out = fused_up_block_comp(x, prm, H, W, ks[7])

    Ho, Wo, HWo = 2 * H, 2 * W, 4 * H * W
    nz1, nz2 = _comp_noise(prm, ks[7], N, HWo)
    xu = upsample2x_flat(x, H, W).astype(jnp.bfloat16)

    def conv(xf, w):
        xi = xf.astype(jnp.float32).reshape(N, -1, Ho, Wo)
        wr = w.astype(jnp.bfloat16).astype(jnp.float32)
        y = jax.lax.conv_general_dilated(
            xi, wr, (1, 1), "SAME", dimension_numbers=("NCHW", "OIHW", "NCHW"),
            precision=jax.lax.Precision.HIGHEST)
        return y.reshape(N, -1, HWo)

    def bng(y, g, b, eps=1e-5):
        m = y.mean(axis=(0, 2), keepdims=True)
        v = ((y - m) ** 2).mean(axis=(0, 2), keepdims=True)
        z = (y - m) * jax.lax.rsqrt(v + eps) * g.reshape(1, -1, 1) + b.reshape(1, -1, 1)
        C = z.shape[1] // 2
        return z[:, :C] * jax.nn.sigmoid(z[:, C:])

    y1 = conv(xu, w1) + nz1.astype(jnp.float32)
    h = bng(y1, g1, b1).astype(jnp.bfloat16)
    y2 = conv(h, w2) + nz2.astype(jnp.float32)
    ref = bng(y2, g2, b2).astype(jnp.bfloat16)

    err = float(jnp.max(jnp.abs(out.astype(jnp.float32) - ref.astype(jnp.float32))))
    assert err < 0.05, f"fused up-block mismatch: {err}"


# -----------------------------------------------------------------------------
# Demo
# -----------------------------------------------------------------------------

if __name__ == "__main__":
    _probe_roll()            # prefer pltpu.roll if it lowers & matches np.roll
    _self_test_big_conv()
    _self_test_fused_block()

    # im_size=256 so to_big's input channels (nfc[im_size]) match feat_256, as the
    # reference forward (which always ends at 256x256) requires.
    ngf, nz, nc, im_size, batch = 8, 16, 3, 256, 2
    key = jax.random.PRNGKey(0)
    pkey, xkey, nkey = jax.random.split(key, 3)
    params = init_generator_params(pkey, ngf=ngf, nz=nz, nc=nc, im_size=im_size)
    x = jax.random.normal(xkey, (batch, nz, 1, 1), jnp.float32)     # latent (NCHW)
    out = generator_forward(params, x, nkey)
    out = jax.block_until_ready(out)
    assert out.shape == (batch, nc, 256, 256), out.shape
    assert bool(jnp.all(jnp.isfinite(out)))
    print("KERNEL_OK")
</pallas_src>

<mosaic_0001>
module attributes {stable_mosaic.version = 11 : i64} {
  func.func @k(%arg0: memref<8x256xf32, #tpu.memory_space<vmem>>, %arg1: memref<8x256xf32, #tpu.memory_space<vmem>>) attributes {dimension_semantics = [], scalar_prefetch = 0 : i64, scratch_operands = 0 : i64, tpu.core_type = #tpu.core_type<tc>} {
    %c0 = arith.constant 0 : index
    %c0_0 = arith.constant 0 : index
    %0 = vector.load %arg0[%c0, %c0_0] : memref<8x256xf32, #tpu.memory_space<vmem>>, vector<8x256xf32>
    %c1_i32 = arith.constant 1 : i32
    %1 = tpu.dynamic_rotate %0 by %c1_i32 dim 1 : vector<8x256xf32>, i32 -> vector<8x256xf32>
    %c0_1 = arith.constant 0 : index
    %c0_2 = arith.constant 0 : index
    %2 = vector.load %arg1[%c0_1, %c0_2] : memref<8x256xf32, #tpu.memory_space<vmem>>, vector<8x256xf32>
    tpu.vector_store %arg1[%c0_1, %c0_2], %1 {strides = array<i32>} : memref<8x256xf32, #tpu.memory_space<vmem>>, vector<8x256xf32>,
    return
  }
}

module attributes {stable_mosaic.version = 11 : i64} {
  func.func @kernel(%arg0: i32, %arg1: i32, %arg2: memref<1x4x16640xbf16, #tpu.memory_space<vmem>>, %arg3: memref<8x144xbf16, #tpu.memory_space<vmem>>, %arg4: memref<1x1x8192xbf16, #tpu.memory_space<vmem>>, %arg5: memref<1x8x8192xf32, #tpu.memory_space<vmem>>, %arg6: memref<1x1x8x1xf32, #tpu.memory_space<vmem>>, %arg7: memref<1x1x8x1xf32, #tpu.memory_space<vmem>>) attributes {dimension_semantics = [#tpu.dimension_semantics<parallel>, #tpu.dimension_semantics<parallel>], iteration_bounds = array<i64: 1, 2>, scalar_prefetch = 0 : i64, scratch_operands = 0 : i64, tpu.core_type = #tpu.core_type<tc>, window_params = [{transform_indices = @transform_0, window_bounds = array<i64: 1, 4, 16640>}, {pipeline_mode = #tpu.pipeline_mode<synchronous>, transform_indices = @transform_1, window_bounds = array<i64: 8, 144>}, {transform_indices = @transform_2, window_bounds = array<i64: 1, 1, 8192>}, {transform_indices = @transform_3, window_bounds = array<i64: 1, 8, 8192>}, {transform_indices = @transform_4, window_bounds = array<i64: 1, 1, 8, 1>}, {transform_indices = @transform_5, window_bounds = array<i64: 1, 1, 8, 1>}]} {
    %0 = tpu.iota {dimensions = array<i32: 1>} : vector<1x8192xi32>
    %c127_i32 = arith.constant 127 : i32
    %1 = vector.broadcast %c127_i32 : i32 to vector<1x8192xi32>
    %2 = arith.andi %0, %1 : vector<1x8192xi32>
    %c0_i32 = arith.constant 0 : i32
    %3 = vector.broadcast %c0_i32 : i32 to vector<1x8192xi32>
    %4 = arith.cmpi ne, %2, %3 : vector<1x8192xi32>
    %c127_i32_0 = arith.constant 127 : i32
    %5 = vector.broadcast %c127_i32_0 : i32 to vector<1x8192xi32>
    %6 = arith.cmpi ne, %2, %5 : vector<1x8192xi32>
    %cst = arith.constant 0.000000e+00 : bf16
    %7 = vector.broadcast %cst : bf16 to vector<12x8192xbf16>
    %c8192_i32 = arith.constant 8192 : i32
    %8 = arith.muli %arg1, %c8192_i32 : i32
    %c0_i32_1 = arith.constant 0 : i32
    %9 = arith.addi %8, %c0_i32_1 : i32
    %10 = tpu.assume_multiple %9, 128 : i32
    %c0 = arith.constant 0 : index
    %c0_2 = arith.constant 0 : index
    %11 = arith.index_cast %10 : i32 to index
    %12 = vector.load %arg2[%c0, %c0_2, %11] : memref<1x4x16640xbf16, #tpu.memory_space<vmem>>, vector<1x4x8192xbf16>
    %13 = vector.shape_cast %12 : vector<1x4x8192xbf16> to vector<4x8192xbf16>
    %14 = vector.extract_strided_slice %13 {offsets = [0, 8191], sizes = [4, 1], strides = [1, 1]} : vector<4x8192xbf16> to vector<4x1xbf16>
    %15 = vector.extract_strided_slice %13 {offsets = [0, 0], sizes = [4, 8191], strides = [1, 1]} : vector<4x8192xbf16> to vector<4x8191xbf16>
    %16 = tpu.concatenate %14, %15 in 1 : vector<4x1xbf16>, vector<4x8191xbf16> -> vector<4x8192xbf16>
    %c0_i32_3 = arith.constant 0 : i32
    %17 = arith.sitofp %c0_i32_3 : i32 to bf16
    %18 = vector.shape_cast %4 : vector<1x8192xi1> to vector<1x8192xi1>
    %19 = vector.broadcast %18 : vector<1x8192xi1> to vector<4x8192xi1>
    %20 = vector.broadcast %17 : bf16 to vector<4x8192xbf16>
    %21 = arith.select %19, %16, %20 : vector<4x8192xi1>, vector<4x8192xbf16>
    %22 = vector.extract_strided_slice %13 {offsets = [0, 1], sizes = [4, 8191], strides = [1, 1]} : vector<4x8192xbf16> to vector<4x8191xbf16>
    %23 = vector.extract_strided_slice %13 {offsets = [0, 0], sizes = [4, 1], strides = [1, 1]} : vector<4x8192xbf16> to vector<4x1xbf16>
    %24 = tpu.concatenate %22, %23 in 1 : vector<4x8191xbf16>, vector<4x1xbf16> -> vector<4x8192xbf16>
    %c0_i32_4 = arith.constant 0 : i32
    %25 = arith.sitofp %c0_i32_4 : i32 to bf16
    %26 = vector.shape_cast %6 : vector<1x8192xi1> to vector<1x8192xi1>
    %27 = vector.broadcast %26 : vector<1x8192xi1> to vector<4x8192xi1>
    %28 = vector.broadcast %25 : bf16 to vector<4x8192xbf16>
    %29 = arith.select %27, %24, %28 : vector<4x8192xi1>, vector<4x8192xbf16>
    %c8192_i32_5 = arith.constant 8192 : i32
    %30 = arith.muli %arg1, %c8192_i32_5 : i32
    %c128_i32 = arith.constant 128 : i32
    %31 = arith.addi %30, %c128_i32 : i32
    %32 = tpu.assume_multiple %31, 128 : i32
    %c0_6 = arith.constant 0 : index
    %c0_7 = arith.constant 0 : index
    %33 = arith.index_cast %32 : i32 to index
    %34 = vector.load %arg2[%c0_6, %c0_7, %33] : memref<1x4x16640xbf16, #tpu.memory_space<vmem>>, vector<1x4x8192xbf16>
    %35 = vector.shape_cast %34 : vector<1x4x8192xbf16> to vector<4x8192xbf16>
    %36 = vector.extract_strided_slice %35 {offsets = [0, 8191], sizes = [4, 1], strides = [1, 1]} : vector<4x8192xbf16> to vector<4x1xbf16>
    %37 = vector.extract_strided_slice %35 {offsets = [0, 0], sizes = [4, 8191], strides = [1, 1]} : vector<4x8192xbf16> to vector<4x8191xbf16>
    %38 = tpu.concatenate %36, %37 in 1 : vector<4x1xbf16>, vector<4x8191xbf16> -> vector<4x8192xbf16>
    %c0_i32_8 = arith.constant 0 : i32
    %39 = arith.sitofp %c0_i32_8 : i32 to bf16
    %40 = vector.shape_cast %4 : vector<1x8192xi1> to vector<1x8192xi1>
    %41 = vector.broadcast %40 : vector<1x8192xi1> to vector<4x8192xi1>
    %42 = vector.broadcast %39 : bf16 to vector<4x8192xbf16>
    %43 = arith.select %41, %38, %42 : vector<4x8192xi1>, vector<4x8192xbf16>
    %44 = vector.extract_strided_slice %35 {offsets = [0, 1], sizes = [4, 8191], strides = [1, 1]} : vector<4x8192xbf16> to vector<4x8191xbf16>
    %45 = vector.extract_strided_slice %35 {offsets = [0, 0], sizes = [4, 1], strides = [1, 1]} : vector<4x8192xbf16> to vector<4x1xbf16>
    %46 = tpu.concatenate %44, %45 in 1 : vector<4x8191xbf16>, vector<4x1xbf16> -> vector<4x8192xbf16>
    %c0_i32_9 = arith.constant 0 : i32
    %47 = arith.sitofp %c0_i32_9 : i32 to bf16
    %48 = vector.shape_cast %6 : vector<1x8192xi1> to vector<1x8192xi1>
    %49 = vector.broadcast %48 : vector<1x8192xi1> to vector<4x8192xi1>
    %50 = vector.broadcast %47 : bf16 to vector<4x8192xbf16>
    %51 = arith.select %49, %46, %50 : vector<4x8192xi1>, vector<4x8192xbf16>
    %c8192_i32_10 = arith.constant 8192 : i32
    %52 = arith.muli %arg1, %c8192_i32_10 : i32
    %c256_i32 = arith.constant 256 : i32
    %53 = arith.addi %52, %c256_i32 : i32
    %54 = tpu.assume_multiple %53, 128 : i32
    %c0_11 = arith.constant 0 : index
    %c0_12 = arith.constant 0 : index
    %55 = arith.index_cast %54 : i32 to index
    %56 = vector.load %arg2[%c0_11, %c0_12, %55] : memref<1x4x16640xbf16, #tpu.memory_space<vmem>>, vector<1x4x8192xbf16>
    %57 = vector.shape_cast %56 : vector<1x4x8192xbf16> to vector<4x8192xbf16>
    %58 = vector.extract_strided_slice %57 {offsets = [0, 8191], sizes = [4, 1], strides = [1, 1]} : vector<4x8192xbf16> to vector<4x1xbf16>
    %59 = vector.extract_strided_slice %57 {offsets = [0, 0], sizes = [4, 8191], strides = [1, 1]} : vector<4x8192xbf16> to vector<4x8191xbf16>
    %60 = tpu.concatenate %58, %59 in 1 : vector<4x1xbf16>, vector<4x8191xbf16> -> vector<4x8192xbf16>
    %c0_i32_13 = arith.constant 0 : i32
    %61 = arith.sitofp %c0_i32_13 : i32 to bf16
    %62 = vector.shape_cast %4 : vector<1x8192xi1> to vector<1x8192xi1>
    %63 = vector.broadcast %62 : vector<1x8192xi1> to vector<4x8192xi1>
    %64 = vector.broadcast %61 : bf16 to vector<4x8192xbf16>
    %65 = arith.select %63, %60, %64 : vector<4x8192xi1>, vector<4x8192xbf16>
    %66 = vector.extract_strided_slice %57 {offsets = [0, 1], sizes = [4, 8191], strides = [1, 1]} : vector<4x8192xbf16> to vector<4x8191xbf16>
    %67 = vector.extract_strided_slice %57 {offsets = [0, 0], sizes = [4, 1], strides = [1, 1]} : vector<4x8192xbf16> to vector<4x1xbf16>
    %68 = tpu.concatenate %66, %67 in 1 : vector<4x8191xbf16>, vector<4x1xbf16> -> vector<4x8192xbf16>
    %c0_i32_14 = arith.constant 0 : i32
    %69 = arith.sitofp %c0_i32_14 : i32 to bf16
    %70 = vector.shape_cast %6 : vector<1x8192xi1> to vector<1x8192xi1>
    %71 = vector.broadcast %70 : vector<1x8192xi1> to vector<4x8192xi1>
    %72 = vector.broadcast %69 : bf16 to vector<4x8192xbf16>
    %73 = arith.select %71, %68, %72 : vector<4x8192xi1>, vector<4x8192xbf16>
    %74 = tpu.concatenate %21, %7, %13, %7, %29, %7, %43, %7, %35, %7, %51, %7, %65, %7, %57, %7 in 0 : vector<4x8192xbf16>, vector<12x8192xbf16>, vector<4x8192xbf16>, vector<12x8192xbf16>, vector<4x8192xbf16>, vector<12x8192xbf16>, vector<4x8192xbf16>, vector<12x8192xbf16>, vector<4x8192xbf16>, vector<12x8192xbf16>, vector<4x8192xbf16>, vector<12x8192xbf16>, vector<4x8192xbf16>, vector<12x8192xbf16>, vector<4x8192xbf16>, vector<12x8192xbf16> -> vector<128x8192xbf16>
    %75 = tpu.concatenate %73, %7 in 0 : vector<4x8192xbf16>, vector<12x8192xbf16> -> vector<16x8192xbf16>
    %76 = tpu.concatenate %74, %75 in 0 : vector<128x8192xbf16>, vector<16x8192xbf16> -> vector<144x8192xbf16>
    %c0_15 = arith.constant 0 : index
    %c0_16 = arith.constant 0 : index
    %77 = vector.load %arg3[%c0_15, %c0_16] : memref<8x144xbf16, #tpu.memory_space<vmem>>, vector<8x144xbf16>
    %cst_17 = arith.constant dense<0.000000e+00> : vector<8x8192xf32>
    %78 = tpu.matmul %77, %76, %cst_17 {dimension_numbers = #tpu.dot_dimension_numbers<[1], [0], [0], [1], [0, 0, 1, 1], [], []>} : vector<8x144xbf16>, vector<144x8192xbf16>, vector<8x8192xf32> -> vector<8x8192xf32>
    %c0_18 = arith.constant 0 : index
    %c0_19 = arith.constant 0 : index
    %c0_20 = arith.constant 0 : index
    %79 = vector.load %arg4[%c0_18, %c0_19, %c0_20] : memref<1x1x8192xbf16, #tpu.memory_space<vmem>>, vector<1x1x8192xbf16>
    %80 = vector.shape_cast %79 : vector<1x1x8192xbf16> to vector<1x8192xbf16>
    %81 = arith.extf %80 : vector<1x8192xbf16> to vector<1x8192xf32>
    %82 = vector.broadcast %81 : vector<1x8192xf32> to vector<8x8192xf32>
    %83 = arith.addf %78, %82 : vector<8x8192xf32>
    %cst_21 = arith.constant dense<0.000000e+00> : vector<8xf32>
    %84 = vector.multi_reduction <add>, %83, %cst_21 [1] : vector<8x8192xf32> to vector<8xf32>
    %85 = vector.shape_cast %84 : vector<8xf32> to vector<8x1xf32>
    %cst_22 = arith.constant 1.22070313E-4 : f32
    %86 = vector.broadcast %cst_22 : f32 to vector<8x1xf32>
    %87 = arith.mulf %85, %86 : vector<8x1xf32>
    %88 = vector.broadcast %87 : vector<8x1xf32> to vector<8x8192xf32>
    %89 = arith.subf %83, %88 : vector<8x8192xf32>
    %c0_23 = arith.constant 0 : index
    %c0_24 = arith.constant 0 : index
    %c0_25 = arith.constant 0 : index
    %c0_26 = arith.constant 0 : index
    %90 = vector.load %arg6[%c0_23, %c0_24, %c0_25, %c0_26] : memref<1x1x8x1xf32, #tpu.memory_space<vmem>>, vector<1x1x8x1xf32>
    %91 = vector.shape_cast %90 : vector<1x1x8x1xf32> to vector<8x1xf32>
    %92 = vector.shape_cast %87 : vector<8x1xf32> to vector<1x1x8x1xf32>
    tpu.vector_store %arg6[%c0_23, %c0_24, %c0_25, %c0_26], %92 {strides = array<i32>} : memref<1x1x8x1xf32, #tpu.memory_space<vmem>>, vector<1x1x8x1xf32>,
    %93 = arith.mulf %89, %89 : vector<8x8192xf32>
    %cst_27 = arith.constant dense<0.000000e+00> : vector<8xf32>
    %94 = vector.multi_reduction <add>, %93, %cst_27 [1] : vector<8x8192xf32> to vector<8xf32>
    %95 = vector.shape_cast %94 : vector<8xf32> to vector<8x1xf32>
    %c0_28 = arith.constant 0 : index
    %c0_29 = arith.constant 0 : index
    %c0_30 = arith.constant 0 : index
    %c0_31 = arith.constant 0 : index
    %96 = vector.load %arg7[%c0_28, %c0_29, %c0_30, %c0_31] : memref<1x1x8x1xf32, #tpu.memory_space<vmem>>, vector<1x1x8x1xf32>
    %97 = vector.shape_cast %96 : vector<1x1x8x1xf32> to vector<8x1xf32>
    %98 = vector.shape_cast %95 : vector<8x1xf32> to vector<1x1x8x1xf32>
    tpu.vector_store %arg7[%c0_28, %c0_29, %c0_30, %c0_31], %98 {strides = array<i32>} : memref<1x1x8x1xf32, #tpu.memory_space<vmem>>, vector<1x1x8x1xf32>,
    %c0_32 = arith.constant 0 : index
    %c0_33 = arith.constant 0 : index
    %c0_34 = arith.constant 0 : index
    %99 = vector.load %arg5[%c0_32, %c0_33, %c0_34] : memref<1x8x8192xf32, #tpu.memory_space<vmem>>, vector<1x8x8192xf32>
    %100 = vector.shape_cast %99 : vector<1x8x8192xf32> to vector<8x8192xf32>
    %101 = vector.shape_cast %83 : vector<8x8192xf32> to vector<1x8x8192xf32>
    tpu.vector_store %arg5[%c0_32, %c0_33, %c0_34], %101 {strides = array<i32>} : memref<1x8x8192xf32, #tpu.memory_space<vmem>>, vector<1x8x8192xf32>,
    return
  }
  func.func @transform_0(%arg0: i32, %arg1: i32) -> (i32, i32, i32) {
    %c0_i32 = arith.constant 0 : i32
    %c0_i32_0 = arith.constant 0 : i32
    %c0_i32_1 = arith.constant 0 : i32
    return %arg0, %c0_i32, %c0_i32_0 : i32, i32, i32
  }
  func.func @transform_1(%arg0: i32, %arg1: i32) -> (i32, i32) {
    %c0_i32 = arith.constant 0 : i32
    %c0_i32_0 = arith.constant 0 : i32
    %c0_i32_1 = arith.constant 0 : i32
    return %c0_i32, %c0_i32_0 : i32, i32
  }
  func.func @transform_2(%arg0: i32, %arg1: i32) -> (i32, i32, i32) {
    %c0_i32 = arith.constant 0 : i32
    %c0_i32_0 = arith.constant 0 : i32
    return %arg0, %c0_i32, %arg1 : i32, i32, i32
  }
  func.func @transform_3(%arg0: i32, %arg1: i32) -> (i32, i32, i32) {
    %c0_i32 = arith.constant 0 : i32
    %c0_i32_0 = arith.constant 0 : i32
    return %arg0, %c0_i32, %arg1 : i32, i32, i32
  }
  func.func @transform_4(%arg0: i32, %arg1: i32) -> (i32, i32, i32, i32) {
    %c0_i32 = arith.constant 0 : i32
    %c0_i32_0 = arith.constant 0 : i32
    %c0_i32_1 = arith.constant 0 : i32
    return %arg0, %arg1, %c0_i32, %c0_i32_0 : i32, i32, i32, i32
  }
  func.func @transform_5(%arg0: i32, %arg1: i32) -> (i32, i32, i32, i32) {
    %c0_i32 = arith.constant 0 : i32
    %c0_i32_0 = arith.constant 0 : i32
    %c0_i32_1 = arith.constant 0 : i32
    return %arg0, %arg1, %c0_i32, %c0_i32_0 : i32, i32, i32, i32
  }
}

</mosaic_0001>

<llo_original>
// kernel: tpu_custom_call.1
$region0: #{tpu_custom_call.1}
  #allocation0 [shape = 'u32[]', space=smem, size = 0x4, offset = 0x4, fixed_abs, tag = 'smem constant byte address 0x4 - core index']
  #allocation1 [shape = 'u32[144,128]{1,0:T(1,128)}', space=vmem, size = 0x12000, scoped, tag = 'internal scratch']
  %s0 = inlined_call_operand.hbm [shape: f32[8,256], index: 0, kind: input, shape index: {}]
  %s1 = inlined_call_operand.hbm [shape: f32[8,256], index: 1, kind: output, shape index: {}]
  %s2 = sld [smem:[#allocation0]]
  $region18: #{tpu_custom_call.1} parent=0
    _
  %s4 = ssub.s32 1, %s2
  %s5 = scalar_select 0, %s4, %s2
  $region1: #{tpu_custom_call.1} parent=0
    #allocation2 [shape = 'u8[8192]{0}', space=vmem, size = 0x2000, scoped, tag = 'input window, operand 0, single buffered']
    #allocation3 [shape = 's32[1]{0}', space=sflag, size = 0x4, scoped, tag = 'scoped memory for tpu_custom_call.1']
    #allocation4 [shape = 's32[1]{0}', space=sflag, size = 0x4, scoped, tag = 'scoped memory for tpu_custom_call.1']
    #allocation5 [shape = 'u8[8192]{0}', space=vmem, size = 0x2000, scoped, tag = 'output window, operand 0, single buffered']
    %6 = vsyncpa [#allocation3], 0
    %7 = vsyncpa [#allocation4], 0
    // Predicated region
    $region2: #{tpu_custom_call.1} parent=1 // pred_check
      _
    $region3: #{tpu_custom_call.1} parent=1 // pred_check_branch
      %9 = sbr.rel (0) target = $region5
    $region4: #{tpu_custom_call.1} parent=1 // pred_region
      %s11 = ssub.s32 256, 256
      %12 = vsyncadd [#allocation3], %s11
      %s14 = sshll.u32 [#allocation2], 4
      %s15 = int_to_ptr.vmem [resolvable:$true] %s14
      %17 = dma.hbm_to_vmem [thread:$0]  %s0, 256, %s15, [#allocation3]
    $region5: #{tpu_custom_call.1} parent=1 // pred_fallthru
      _
    // Predicated region
    $region6: #{tpu_custom_call.1} parent=1 // pred_check
      _
    $region7: #{tpu_custom_call.1} parent=1 // pred_check_branch
      %19 = sbr.rel (0) target = $region9
    $region8: #{tpu_custom_call.1} parent=1 // pred_region
      %20 = dma.done [#allocation3], 256
    $region9: #{tpu_custom_call.1} parent=1 // pred_fallthru
      _
    %v21 = vld [vmem:[#allocation2] sm:$0xff]
    %v22 = vld [vmem:[#allocation2 + $0x8] sm:$0xff]
    %23 = vrot.lane.b32.xlu0 %v21, 1
    %v24 = vpop.permute.xlu0 %23
    %25 = vrot.lane.b32.xlu0 %v22, 1
    %v26 = vpop.permute.xlu0 %25
    %v27 = vlaneseq
    %v28 = vand.u32 %v27, 127
    %vm29 = vcmp.lt.s32.totalorder %v28, 1
    %v30 = vsel %vm29, %v24, %v26
    %v31 = vsel %vm29, %v26, %v24
    %32 = vst [vmem:[#allocation5] sm:$0xff] %v31
    %33 = vst [vmem:[#allocation5 + $0x8] sm:$0xff] %v30
    // Predicated region
    $region10: #{tpu_custom_call.1} parent=1 // pred_check
      _
    $region11: #{tpu_custom_call.1} parent=1 // pred_check_branch
      %35 = sbr.rel (0) target = $region13
    $region12: #{tpu_custom_call.1} parent=1 // pred_region
      %s37 = ssub.s32 256, 256
      %38 = vsyncadd [#allocation4], %s37
      %s40 = sshll.u32 [#allocation5], 4
      %s41 = int_to_ptr.vmem [resolvable:$true] %s40
      %43 = dma.vmem_to_hbm [thread:$0]  %s41, 256, %s1, [#allocation4]
    $region13: #{tpu_custom_call.1} parent=1 // pred_fallthru
      _
    // Predicated region
    $region14: #{tpu_custom_call.1} parent=1 // pred_check
      _
    $region15: #{tpu_custom_call.1} parent=1 // pred_check_branch
      %45 = sbr.rel (0) target = $region17
    $region16: #{tpu_custom_call.1} parent=1 // pred_region
      %46 = dma.done [#allocation4], 256
    $region17: #{tpu_custom_call.1} parent=1 // pred_fallthru
      _
    %47 = vsyncpa [#allocation3], 1
    %48 = vsyncpa [#allocation4], 1

// kernel: tpu_custom_call.1
$region0: #{tpu_custom_call.1}
  #allocation0 [shape = 'u32[]', space=smem, size = 0x4, offset = 0x4, fixed_abs, tag = 'smem constant byte address 0x4 - core index']
  #allocation1 [shape = 'u32[144,128]{1,0:T(1,128)}', space=vmem, size = 0x12000, scoped, tag = 'internal scratch']
  %s0 = inlined_call_operand.hbm [shape: bf16[1,4,16640], index: 0, kind: input, shape index: {}]
  %s1 = inlined_call_operand.hbm [shape: bf16[8,144], index: 1, kind: input, shape index: {}]
  %s2 = inlined_call_operand.hbm [shape: bf16[1,1,16384], index: 2, kind: input, shape index: {}]
  %s3 = inlined_call_operand.hbm [shape: f32[1,8,16384], index: 3, kind: output, shape index: {0}]
  %s4 = inlined_call_operand.vmem [shape: f32[1,2,8,1], index: 4, kind: output, shape index: {1}]
  %s5 = inlined_call_operand.vmem [shape: f32[1,2,8,1], index: 5, kind: output, shape index: {2}]
  %6 = xla_tuple %s3, %s4, %s5
  %s7 = sld [smem:[#allocation0]]
  $region73: #{tpu_custom_call.1} parent=0
    _
  %s9 = ssub.s32 1, %s7
  %s10 = scalar_select 0, %s9, %s7
  $region1: #{tpu_custom_call.1} parent=0
    #allocation2 [shape = 'u8[133120]{0}', space=vmem, size = 0x20800, scoped, tag = 'input window, operand 0, single buffered']
    #allocation3 [shape = 's32[2]{0}', space=sflag, size = 0x8, scoped, tag = 'scoped memory for tpu_custom_call.1']
    #allocation4 [shape = 's32[2]{0}', space=sflag, size = 0x8, scoped, tag = 'scoped memory for tpu_custom_call.1']
    #allocation5 [shape = 'u8[4096]{0}', space=vmem, size = 0x1000, scoped, tag = 'input window, operand 1, single buffered']
    #allocation6 [shape = 's32[1]{0}', space=sflag, size = 0x4, scoped, tag = 'scoped memory for tpu_custom_call.1']
    #allocation7 [shape = 'u8[65536]{0}', space=vmem, size = 0x10000, scoped, tag = 'input window, operand 2']
    #allocation8 [shape = 'u8[524288]{0}', space=vmem, size = 0x80000, scoped, tag = 'output window, operand 0']
    %11 = vsyncpa [#allocation3], 0
    %12 = vsyncpa [#allocation6], 0
    %13 = vsyncpa [#allocation4], 0
    %s14 = scalar_lea.sflag [#allocation4], 1
    %15 = vsyncpa %s14, 0
    loop: start=0, step=1, limit=4
    $region2: #{tpu_custom_call.1} parent=1 // loop_pre_header
      _
    $region3: #{tpu_custom_call.1} parent=1 // loop_header
      %s17 = sphi 0, %s21
      %p18 = scmp.ge.s32.totalorder %s17, 4
      %s24 = sphi 0, %s36
      %s25 = sphi 0, %s32
      %s26 = sphi 0, %s24
      %s27 = sphi 0, %s25
      %s28 = sphi 0, %s26
      %s29 = sphi 0, %s27
      %s39 = sphi 0, %s41
      %s42 = sphi 0, %s39
      %s43 = sphi 0, %s42
      %s59 = sphi 0, %s43
      %s63 = sphi 0, %s63
      %s65 = sphi 0, %s63
      %s66 = sphi 0, %s65
      %s80 = sphi 0, %s66
      %s88 = sphi 0, %s90
      %s91 = sphi 0, %s88
      %s92 = sphi 0, %s91
      %s108 = sphi 0, %s92
      %s116 = sphi 0, %s118
      %s119 = sphi 0, %s116
      %s120 = sphi 0, %s119
      %s136 = sphi 0, %s120
      %s144 = sphi 0, %s146
      %s147 = sphi 0, %s144
      %s148 = sphi 0, %s147
      %s164 = sphi 0, %s148
      %s172 = sphi 0, %s174
      %s175 = sphi 0, %s172
      %s176 = sphi 0, %s175
      %s192 = sphi 0, %s176
    $region4: #{tpu_custom_call.1} parent=1 // loop_header_branch
      %20 = sbr.rel (%p18) target = $region8
    $region5: #{tpu_custom_call.1} parent=1 // loop_body
      %s22 = ssub.s32 %s17, 1
      %s23 = ssub.s32 %s17, 2
      %s30 = sadd.s32 1, %s25
      %p31 = scmp.ge.s32.totalorder %s30, 2
      %s32 = scalar_select %p31, 0, %s30
      %s33 = sadd.s32 1, %s24
      %s34 = scalar_select %p31, %s33, %s24
      %p35 = scmp.ge.s32.totalorder %s34, 1
      %s36 = scalar_select %p35, 0, %s34
      %s37 = ssub.s32 %s24, %s36
      %p38 = scmp.eq.s32.totalorder %s37, 0
      %s40 = sadd.s32 %s39, 1
      %s41 = scalar_select %p38, %s39, %s40
      %p44 = pneg %p38
      %p45 = scmp.eq.s32.totalorder %s17, 1
      %p46 = por %p44, %p45
      %p47 = scmp.ne.s32.totalorder %s39, %s42
      %p48 = scmp.eq.s32.totalorder %s17, 0
      %p49 = por %p47, %p48
      %p50 = scmp.ne.s32.totalorder %s39, %s42
      %p51 = scmp.eq.s32.totalorder %s22, 1
      %p52 = por %p50, %p51
      %p53 = scmp.ne.s32.totalorder %s42, %s43
      %p54 = scmp.eq.s32.totalorder %s22, 0
      %p55 = por %p53, %p54
      %p56 = scmp.ne.s32.totalorder %s42, %s43
      %p57 = scmp.eq.s32.totalorder %s23, 1
      %p58 = por %p56, %p57
      %p60 = scmp.ne.s32.totalorder %s43, %s59
      %p61 = scmp.eq.s32.totalorder %s23, 0
      %p62 = por %p60, %p61
      %s64 = sadd.s32 %s63, 1
      %p67 = scmp.eq.s32.totalorder %s17, 1
      %p68 = scmp.ne.s32.totalorder %s63, %s65
      %p69 = scmp.eq.s32.totalorder %s17, 0
      %p70 = por %p68, %p69
      %p71 = scmp.ne.s32.totalorder %s63, %s65
      %p72 = scmp.eq.s32.totalorder %s22, 1
      %p73 = por %p71, %p72
      %p74 = scmp.ne.s32.totalorder %s65, %s66
      %p75 = scmp.eq.s32.totalorder %s22, 0
      %p76 = por %p74, %p75
      %p77 = scmp.ne.s32.totalorder %s65, %s66
      %p78 = scmp.eq.s32.totalorder %s23, 1
      %p79 = por %p77, %p78
      %p81 = scmp.ne.s32.totalorder %s66, %s80
      %p82 = scmp.eq.s32.totalorder %s23, 0
      %p83 = por %p81, %p82
      %s84 = ssub.s32 %s24, %s36
      %s85 = ssub.s32 %s25, %s32
      %s86 = sor.u32 %s84, %s85
      %p87 = scmp.eq.s32.totalorder %s86, 0
      %s89 = sadd.s32 %s88, 1
      %s90 = scalar_select %p87, %s88, %s89
      %p93 = pneg %p87
      %p94 = scmp.eq.s32.totalorder %s17, 1
      %p95 = por %p93, %p94
      %p96 = scmp.ne.s32.totalorder %s88, %s91
      %p97 = scmp.eq.s32.totalorder %s17, 0
      %p98 = por %p96, %p97
      %p99 = scmp.ne.s32.totalorder %s88, %s91
      %p100 = scmp.eq.s32.totalorder %s22, 1
      %p101 = por %p99, %p100
      %p102 = scmp.ne.s32.totalorder %s91, %s92
      %p103 = scmp.eq.s32.totalorder %s22, 0
      %p104 = por %p102, %p103
      %p105 = scmp.ne.s32.totalorder %s91, %s92
      %p106 = scmp.eq.s32.totalorder %s23, 1
      %p107 = por %p105, %p106
      %p109 = scmp.ne.s32.totalorder %s92, %s108
      %p110 = scmp.eq.s32.totalorder %s23, 0
      %p111 = por %p109, %p110
      %s112 = ssub.s32 %s24, %s36
      %s113 = ssub.s32 %s25, %s32
      %s114 = sor.u32 %s112, %s113
      %p115 = scmp.eq.s32.totalorder %s114, 0
      %s117 = sadd.s32 %s116, 1
      %s118 = scalar_select %p115, %s116, %s117
      %p121 = pneg %p115
      %p122 = scmp.eq.s32.totalorder %s17, 1
      %p123 = por %p121, %p122
      %p124 = scmp.ne.s32.totalorder %s116, %s119
      %p125 = scmp.eq.s32.totalorder %s17, 0
      %p126 = por %p124, %p125
      %p127 = scmp.ne.s32.totalorder %s116, %s119
      %p128 = scmp.eq.s32.totalorder %s22, 1
      %p129 = por %p127, %p128
      %p130 = scmp.ne.s32.totalorder %s119, %s120
      %p131 = scmp.eq.s32.totalorder %s22, 0
      %p132 = por %p130, %p131
      %p133 = scmp.ne.s32.totalorder %s119, %s120
      %p134 = scmp.eq.s32.totalorder %s23, 1
      %p135 = por %p133, %p134
      %p137 = scmp.ne.s32.totalorder %s120, %s136
      %p138 = scmp.eq.s32.totalorder %s23, 0
      %p139 = por %p137, %p138
      %s140 = ssub.s32 %s24, %s36
      %s141 = ssub.s32 %s25, %s32
      %s142 = sor.u32 %s140, %s141
      %p143 = scmp.eq.s32.totalorder %s142, 0
      %s145 = sadd.s32 %s144, 1
      %s146 = scalar_select %p143, %s144, %s145
      %p149 = pneg %p143
      %p150 = scmp.eq.s32.totalorder %s17, 1
      %p151 = por %p149, %p150
      %p152 = scmp.ne.s32.totalorder %s144, %s147
      %p153 = scmp.eq.s32.totalorder %s17, 0
      %p154 = por %p152, %p153
      %p155 = scmp.ne.s32.totalorder %s144, %s147
      %p156 = scmp.eq.s32.totalorder %s22, 1
      %p157 = por %p155, %p156
      %p158 = scmp.ne.s32.totalorder %s147, %s148
      %p159 = scmp.eq.s32.totalorder %s22, 0
      %p160 = por %p158, %p159
      %p161 = scmp.ne.s32.totalorder %s147, %s148
      %p162 = scmp.eq.s32.totalorder %s23, 1
      %p163 = por %p161, %p162
      %p165 = scmp.ne.s32.totalorder %s148, %s164
      %p166 = scmp.eq.s32.totalorder %s23, 0
      %p167 = por %p165, %p166
      %s168 = ssub.s32 %s24, %s36
      %s169 = ssub.s32 %s25, %s32
      %s170 = sor.u32 %s168, %s169
      %p171 = scmp.eq.s32.totalorder %s170, 0
      %s173 = sadd.s32 %s172, 1
      %s174 = scalar_select %p171, %s172, %s173
      %p177 = pneg %p171
      %p178 = scmp.eq.s32.totalorder %s17, 1
      %p179 = por %p177, %p178
      %p180 = scmp.ne.s32.totalorder %s172, %s175
      %p181 = scmp.eq.s32.totalorder %s17, 0
      %p182 = por %p180, %p181
      %p183 = scmp.ne.s32.totalorder %s172, %s175
      %p184 = scmp.eq.s32.totalorder %s22, 1
      %p185 = por %p183, %p184
      %p186 = scmp.ne.s32.totalorder %s175, %s176
      %p187 = scmp.eq.s32.totalorder %s22, 0
      %p188 = por %p186, %p187
      %p189 = scmp.ne.s32.totalorder %s175, %s176
      %p190 = scmp.eq.s32.totalorder %s23, 1
      %p191 = por %p189, %p190
      %p193 = scmp.ne.s32.totalorder %s176, %s192
      %p194 = scmp.eq.s32.totalorder %s23, 0
      %p195 = por %p193, %p194
      %p196 = scmp.le.s32.totalorder 1, %s17
      %p197 = scmp.lt.s32.totalorder %s17, 3
      %p198 = pnand %p196, %p197
      %p199 = pneg %p198
      // Predicated region
      $region9: #{tpu_custom_call.1} parent=5 // pred_check
        _
      $region10: #{tpu_custom_call.1} parent=5 // pred_check_branch
        %201 = sbr.rel (%p198) target = $region12
      $region11: #{tpu_custom_call.1} parent=5 // pred_region
        %s202 = ssub.s32 %s17, 1
        // Predicated region
        $region13: #{tpu_custom_call.1} parent=11 // pred_check
          %p203 = pneg %p55
        $region14: #{tpu_custom_call.1} parent=11 // pred_check_branch
          %205 = sbr.rel (%p203) target = $region16
        $region15: #{tpu_custom_call.1} parent=11 // pred_region
          %s207 = ssub.s32 4160, 4160
          %208 = vsyncadd [#allocation3], %s207
          %s209 = smul.addr %s26, 130
          %s210 = smul.addr %s209, 32
          %s211 = scalar_lea.hbm %s0, %s210
          %s213 = sshll.u32 [#allocation2], 4
          %s214 = int_to_ptr.vmem [resolvable:$true] %s213
          %216 = dma.hbm_to_vmem [thread:$0]  %s211, 4160, %s214, [#allocation3]
        $region16: #{tpu_custom_call.1} parent=11 // pred_fallthru
          _
        // Predicated region
        $region17: #{tpu_custom_call.1} parent=11 // pred_check
          %p217 = pneg %p76
        $region18: #{tpu_custom_call.1} parent=11 // pred_check_branch
          %219 = sbr.rel (%p217) target = $region20
        $region19: #{tpu_custom_call.1} parent=11 // pred_region
          %s221 = ssub.s32 128, 128
          %222 = vsyncadd [#allocation6], %s221
          %s224 = sshll.u32 [#allocation5], 4
          %s225 = int_to_ptr.vmem [resolvable:$true] %s224
          %227 = dma.hbm_to_vmem [thread:$0]  %s1, 128, %s225, [#allocation6]
        $region20: #{tpu_custom_call.1} parent=11 // pred_fallthru
          _
      $region12: #{tpu_custom_call.1} parent=5 // pred_fallthru
        _
      %p228 = scmp.lt.s32.totalorder %s17, 2
      // Predicated region
      $region21: #{tpu_custom_call.1} parent=5 // pred_check
        %p229 = pneg %p228
      $region22: #{tpu_custom_call.1} parent=5 // pred_check_branch
        %231 = sbr.rel (%p229) target = $region24
      $region23: #{tpu_custom_call.1} parent=5 // pred_region
        // Predicated region
        $region25: #{tpu_custom_call.1} parent=23 // pred_check
          %p232 = pneg %p98
        $region26: #{tpu_custom_call.1} parent=23 // pred_check_branch
          %234 = sbr.rel (%p232) target = $region28
        $region27: #{tpu_custom_call.1} parent=23 // pred_region
          %s235 = sand.u32 %s17, 1
          %s236 = scalar_lea.sflag [#allocation3], %s235
          %s237 = sand.u32 %s88, 1
          %s238 = smul.addr %s237, 64
          %s239 = scalar_lea.vmem [#allocation7], %s238
          %s240 = smul.u32 64, %s25
          %s242 = ssub.s32 1024, 1024
          %243 = vsyncadd %s236, %s242
          %s244 = smul.addr %s24, 128
          %s245 = sadd.s32 %s240, %s244
          %s246 = smul.addr %s245, 16
          %s247 = scalar_lea.hbm %s2, %s246
          %s249 = sshll.u32 %s239, 4
          %s250 = int_to_ptr.vmem [resolvable:$true] %s249
          %252 = dma.hbm_to_vmem [thread:$0]  %s247, 1024, %s250, %s236
        $region28: #{tpu_custom_call.1} parent=23 // pred_fallthru
          _
      $region24: #{tpu_custom_call.1} parent=5 // pred_fallthru
        _
      %p253 = scmp.le.s32.totalorder 1, %s17
      %p254 = scmp.lt.s32.totalorder %s17, 3
      %p255 = pnand %p253, %p254
      %p256 = pneg %p255
      // Predicated region
      $region29: #{tpu_custom_call.1} parent=5 // pred_check
        _
      $region30: #{tpu_custom_call.1} parent=5 // pred_check_branch
        %258 = sbr.rel (%p255) target = $region32
      $region31: #{tpu_custom_call.1} parent=5 // pred_region
        %s259 = ssub.s32 %s17, 1
        // Predicated region
        $region33: #{tpu_custom_call.1} parent=31 // pred_check
          %p260 = pneg %p55
        $region34: #{tpu_custom_call.1} parent=31 // pred_check_branch
          %262 = sbr.rel (%p260) target = $region36
        $region35: #{tpu_custom_call.1} parent=31 // pred_region
          %263 = dma.done [#allocation3], 4160
        $region36: #{tpu_custom_call.1} parent=31 // pred_fallthru
          _
        // Predicated region
        $region37: #{tpu_custom_call.1} parent=31 // pred_check
          %p264 = pneg %p76
        $region38: #{tpu_custom_call.1} parent=31 // pred_check_branch
          %266 = sbr.rel (%p264) target = $region40
        $region39: #{tpu_custom_call.1} parent=31 // pred_region
          %267 = dma.done [#allocation6], 128
        $region40: #{tpu_custom_call.1} parent=31 // pred_fallthru
          _
        %s268 = sand.u32 %s22, 1
        %s269 = scalar_lea.sflag [#allocation3], %s268
        %s270 = sand.u32 %s91, 1
        %s271 = smul.addr %s270, 64
        %s272 = scalar_lea.vmem [#allocation7], %s271
        // Predicated region
        $region41: #{tpu_custom_call.1} parent=31 // pred_check
          %p273 = pneg %p104
        $region42: #{tpu_custom_call.1} parent=31 // pred_check_branch
          %275 = sbr.rel (%p273) target = $region44
        $region43: #{tpu_custom_call.1} parent=31 // pred_region
          %276 = dma.done %s269, 1024
        $region44: #{tpu_custom_call.1} parent=31 // pred_fallthru
          _
        %p277 = pneg %p55
        %p278 = pneg %p52
        %p279 = pneg %p76
        %p280 = pneg %p73
        %s281 = sand.u32 %s22, 1
        %s282 = scalar_lea.sflag [#allocation3], %s281
        %s283 = sand.u32 %s91, 1
        %s284 = smul.addr %s283, 64
        %s285 = scalar_lea.vmem [#allocation7], %s284
        %p286 = pneg %p104
        %p287 = pneg %p101
        %p288 = pneg %p132
        %p289 = pneg %p129
        %s290 = sand.u32 %s119, 1
        %s291 = scalar_lea.sflag [#allocation4], %s290
        %s292 = sand.u32 %s119, 1
        %s293 = smul.addr %s292, 512
        %s294 = scalar_lea.vmem [#allocation8], %s293
        %p295 = pneg %p160
        %p296 = pneg %p157
        %p297 = scmp.lt.s32.totalorder %s26, 0
        %s298 = scalar_select %p297, %s26, 0
        %p299 = scmp.lt.s32.totalorder %s27, 1
        %s300 = scalar_select %p299, %s27, 1
        %s301 = smul.addr %s298, 2
        %s302 = sadd.s32 %s300, %s301
        %s303 = smul.addr %s302, 8
        %s304 = scalar_lea.vmem %s4, %s303
        %p305 = pneg %p188
        %p306 = pneg %p185
        %p307 = scmp.lt.s32.totalorder %s26, 0
        %s308 = scalar_select %p307, %s26, 0
        %p309 = scmp.lt.s32.totalorder %s27, 1
        %s310 = scalar_select %p309, %s27, 1
        %s311 = smul.addr %s308, 2
        %s312 = sadd.s32 %s310, %s311
        %s313 = smul.addr %s312, 8
        %s314 = scalar_lea.vmem %s5, %s313
        %s315 = smul.u32 64, %s27
        %s316 = smul.u32 64, %s27
        %p317 = scmp.lt.s32.totalorder %s26, 0
        %s318 = scalar_select %p317, %s26, 0
        %p319 = scmp.lt.s32.totalorder %s27, 1
        %s320 = scalar_select %p319, %s27, 1
        %s321 = smul.addr %s318, 2
        %s322 = sadd.s32 %s320, %s321
        %s323 = smul.addr %s322, 8
        %s324 = scalar_lea.vmem %s4, %s323
        %p325 = scmp.lt.s32.totalorder %s26, 0
        %s326 = scalar_select %p325, %s26, 0
        %p327 = scmp.lt.s32.totalorder %s27, 1
        %s328 = scalar_select %p327, %s27, 1
        %s329 = smul.addr %s326, 2
        %s330 = sadd.s32 %s328, %s329
        %s331 = smul.addr %s330, 8
        %s332 = scalar_lea.vmem %s5, %s331
        %v336 = vlaneseq
        %v337 = vand.u32 %v336, 127
        %v338 = vadd.s32 %v337, 128
        %v339 = vadd.s32 %v337, 256
        %v340 = vadd.s32 %v337, 384
        %v341 = vadd.s32 %v337, 512
        %v342 = vadd.s32 %v337, 640
        %v343 = vadd.s32 %v337, 768
        %v344 = vadd.s32 %v337, 896
        %v345 = vadd.s32 %v337, 1024
        %v346 = vadd.s32 %v337, 1152
        %v347 = vadd.s32 %v337, 1280
        %v348 = vadd.s32 %v337, 1408
        %v349 = vadd.s32 %v337, 1536
        %v350 = vadd.s32 %v337, 1664
        %v351 = vadd.s32 %v337, 1792
        %v352 = vadd.s32 %v337, 1920
        %v353 = vadd.s32 %v337, 2048
        %v354 = vadd.s32 %v337, 2176
        %v355 = vadd.s32 %v337, 2304
        %v356 = vadd.s32 %v337, 2432
        %v357 = vadd.s32 %v337, 2560
        %v358 = vadd.s32 %v337, 2688
        %v359 = vadd.s32 %v337, 2816
        %v360 = vadd.s32 %v337, 2944
        %v361 = vadd.s32 %v337, 3072
        %v362 = vadd.s32 %v337, 3200
        %v363 = vadd.s32 %v337, 3328
        %v364 = vadd.s32 %v337, 3456
        %v365 = vadd.s32 %v337, 3584
        %v366 = vadd.s32 %v337, 3712
        %v367 = vadd.s32 %v337, 3840
        %v368 = vadd.s32 %v337, 3968
        %v369 = vadd.s32 %v337, 4096
        %v370 = vadd.s32 %v337, 4224
        %v371 = vadd.s32 %v337, 4352
        %v372 = vadd.s32 %v337, 4480
        %v373 = vadd.s32 %v337, 4608
        %v374 = vadd.s32 %v337, 4736
        %v375 = vadd.s32 %v337, 4864
        %v376 = vadd.s32 %v337, 4992
        %v377 = vadd.s32 %v337, 5120
        %v378 = vadd.s32 %v337, 5248
        %v379 = vadd.s32 %v337, 5376
        %v380 = vadd.s32 %v337, 5504
        %v381 = vadd.s32 %v337, 5632
        %v382 = vadd.s32 %v337, 5760
        %v383 = vadd.s32 %v337, 5888
        %v384 = vadd.s32 %v337, 6016
        %v385 = vadd.s32 %v337, 6144
        %v386 = vadd.s32 %v337, 6272
        %v387 = vadd.s32 %v337, 6400
        %v388 = vadd.s32 %v337, 6528
        %v389 = vadd.s32 %v337, 6656
        %v390 = vadd.s32 %v337, 6784
        %v391 = vadd.s32 %v337, 6912
        %v392 = vadd.s32 %v337, 7040
        %v393 = vadd.s32 %v337, 7168
        %v394 = vadd.s32 %v337, 7296
        %v395 = vadd.s32 %v337, 7424
        %v396 = vadd.s32 %v337, 7552
        %v397 = vadd.s32 %v337, 7680
        %v398 = vadd.s32 %v337, 7808
        %v399 = vadd.s32 %v337, 7936
        %v400 = vadd.s32 %v337, 8064
        %v401 = vand.u32 %v337, 127
        %v402 = vand.u32 %v338, 127
        %v403 = vand.u32 %v339, 127
        %v404 = vand.u32 %v340, 127
        %v405 = vand.u32 %v341, 127
        %v406 = vand.u32 %v342, 127
        %v407 = vand.u32 %v343, 127
        %v408 = vand.u32 %v344, 127
        %v409 = vand.u32 %v345, 127
        %v410 = vand.u32 %v346, 127
        %v411 = vand.u32 %v347, 127
        %v412 = vand.u32 %v348, 127
        %v413 = vand.u32 %v349, 127
        %v414 = vand.u32 %v350, 127
        %v415 = vand.u32 %v351, 127
        %v416 = vand.u32 %v352, 127
        %v417 = vand.u32 %v353, 127
        %v418 = vand.u32 %v354, 127
        %v419 = vand.u32 %v355, 127
        %v420 = vand.u32 %v356, 127
        %v421 = vand.u32 %v357, 127
        %v422 = vand.u32 %v358, 127
        %v423 = vand.u32 %v359, 127
        %v424 = vand.u32 %v360, 127
        %v425 = vand.u32 %v361, 127
        %v426 = vand.u32 %v362, 127
        %v427 = vand.u32 %v363, 127
        %v428 = vand.u32 %v364, 127
        %v429 = vand.u32 %v365, 127
        %v430 = vand.u32 %v366, 127
        %v431 = vand.u32 %v367, 127
        %v432 = vand.u32 %v368, 127
        %v433 = vand.u32 %v369, 127
        %v434 = vand.u32 %v370, 127
        %v435 = vand.u32 %v371, 127
        %v436 = vand.u32 %v372, 127
        %v437 = vand.u32 %v373, 127
        %v438 = vand.u32 %v374, 127
        %v439 = vand.u32 %v375, 127
        %v440 = vand.u32 %v376, 127
        %v441 = vand.u32 %v377, 127
        %v442 = vand.u32 %v378, 127
        %v443 = vand.u32 %v379, 127
        %v444 = vand.u32 %v380, 127
        %v445 = vand.u32 %v381, 127
        %v446 = vand.u32 %v382, 127
        %v447 = vand.u32 %v383, 127
        %v448 = vand.u32 %v384, 127
        %v449 = vand.u32 %v385, 127
        %v450 = vand.u32 %v386, 127
        %v451 = vand.u32 %v387, 127
        %v452 = vand.u32 %v388, 127
        %v453 = vand.u32 %v389, 127
        %v454 = vand.u32 %v390, 127
        %v455 = vand.u32 %v391, 127
        %v456 = vand.u32 %v392, 127
        %v457 = vand.u32 %v393, 127
        %v458 = vand.u32 %v394, 127
        %v459 = vand.u32 %v395, 127
        %v460 = vand.u32 %v396, 127
        %v461 = vand.u32 %v397, 127
        %v462 = vand.u32 %v398, 127
        %v463 = vand.u32 %v399, 127
        %v464 = vand.u32 %v400, 127
        %vm465 = vcmp.ne.s32.totalorder %v401, 0
        %vm466 = vcmp.ne.s32.totalorder %v402, 0
        %vm467 = vcmp.ne.s32.totalorder %v403, 0
        %vm468 = vcmp.ne.s32.totalorder %v404, 0
        %vm469 = vcmp.ne.s32.totalorder %v405, 0
        %vm470 = vcmp.ne.s32.totalorder %v406, 0
        %vm471 = vcmp.ne.s32.totalorder %v407, 0
        %vm472 = vcmp.ne.s32.totalorder %v408, 0
        %vm473 = vcmp.ne.s32.totalorder %v409, 0
        %vm474 = vcmp.ne.s32.totalorder %v410, 0
        %vm475 = vcmp.ne.s32.totalorder %v411, 0
        %vm476 = vcmp.ne.s32.totalorder %v412, 0
        %vm477 = vcmp.ne.s32.totalorder %v413, 0
        %vm478 = vcmp.ne.s32.totalorder %v414, 0
        %vm479 = vcmp.ne.s32.totalorder %v415, 0
        %vm480 = vcmp.ne.s32.totalorder %v416, 0
        %vm481 = vcmp.ne.s32.totalorder %v417, 0
        %vm482 = vcmp.ne.s32.totalorder %v418, 0
        %vm483 = vcmp.ne.s32.totalorder %v419, 0
        %vm484 = vcmp.ne.s32.totalorder %v420, 0
        %vm485 = vcmp.ne.s32.totalorder %v421, 0
        %vm486 = vcmp.ne.s32.totalorder %v422, 0
        %vm487 = vcmp.ne.s32.totalorder %v423, 0
        %vm488 = vcmp.ne.s32.totalorder %v424, 0
        %vm489 = vcmp.ne.s32.totalorder %v425, 0
        %vm490 = vcmp.ne.s32.totalorder %v426, 0
        %vm491 = vcmp.ne.s32.totalorder %v427, 0
        %vm492 = vcmp.ne.s32.totalorder %v428, 0
        %vm493 = vcmp.ne.s32.totalorder %v429, 0
        %vm494 = vcmp.ne.s32.totalorder %v430, 0
        %vm495 = vcmp.ne.s32.totalorder %v431, 0
        %vm496 = vcmp.ne.s32.totalorder %v432, 0
        %vm497 = vcmp.ne.s32.totalorder %v433, 0
        %vm498 = vcmp.ne.s32.totalorder %v434, 0
        %vm499 = vcmp.ne.s32.totalorder %v435, 0
        %vm500 = vcmp.ne.s32.totalorder %v436, 0
        %vm501 = vcmp.ne.s32.totalorder %v437, 0
        %vm502 = vcmp.ne.s32.totalorder %v438, 0
        %vm503 = vcmp.ne.s32.totalorder %v439, 0
        %vm504 = vcmp.ne.s32.totalorder %v440, 0
        %vm505 = vcmp.ne.s32.totalorder %v441, 0
        %vm506 = vcmp.ne.s32.totalorder %v442, 0
        %vm507 = vcmp.ne.s32.totalorder %v443, 0
        %vm508 = vcmp.ne.s32.totalorder %v444, 0
        %vm509 = vcmp.ne.s32.totalorder %v445, 0
        %vm510 = vcmp.ne.s32.totalorder %v446, 0
        %vm511 = vcmp.ne.s32.totalorder %v447, 0
        %vm512 = vcmp.ne.s32.totalorder %v448, 0
        %vm513 = vcmp.ne.s32.totalorder %v449, 0
        %vm514 = vcmp.ne.s32.totalorder %v450, 0
        %vm515 = vcmp.ne.s32.totalorder %v451, 0
        %vm516 = vcmp.ne.s32.totalorder %v452, 0
        %vm517 = vcmp.ne.s32.totalorder %v453, 0
        %vm518 = vcmp.ne.s32.totalorder %v454, 0
        %vm519 = vcmp.ne.s32.totalorder %v455, 0
        %vm520 = vcmp.ne.s32.totalorder %v456, 0
        %vm521 = vcmp.ne.s32.totalorder %v457, 0
        %vm522 = vcmp.ne.s32.totalorder %v458, 0
        %vm523 = vcmp.ne.s32.totalorder %v459, 0
        %vm524 = vcmp.ne.s32.totalorder %v460, 0
        %vm525 = vcmp.ne.s32.totalorder %v461, 0
        %vm526 = vcmp.ne.s32.totalorder %v462, 0
        %vm527 = vcmp.ne.s32.totalorder %v463, 0
        %vm528 = vcmp.ne.s32.totalorder %v464, 0
        %vm529 = vcmp.ne.s32.totalorder %v401, 127
        %vm530 = vcmp.ne.s32.totalorder %v402, 127
        %vm531 = vcmp.ne.s32.totalorder %v403, 127
        %vm532 = vcmp.ne.s32.totalorder %v404, 127
        %vm533 = vcmp.ne.s32.totalorder %v405, 127
        %vm534 = vcmp.ne.s32.totalorder %v406, 127
        %vm535 = vcmp.ne.s32.totalorder %v407, 127
        %vm536 = vcmp.ne.s32.totalorder %v408, 127
        %vm537 = vcmp.ne.s32.totalorder %v409, 127
        %vm538 = vcmp.ne.s32.totalorder %v410, 127
        %vm539 = vcmp.ne.s32.totalorder %v411, 127
        %vm540 = vcmp.ne.s32.totalorder %v412, 127
        %vm541 = vcmp.ne.s32.totalorder %v413, 127
        %vm542 = vcmp.ne.s32.totalorder %v414, 127
        %vm543 = vcmp.ne.s32.totalorder %v415, 127
        %vm544 = vcmp.ne.s32.totalorder %v416, 127
        %vm545 = vcmp.ne.s32.totalorder %v417, 127
        %vm546 = vcmp.ne.s32.totalorder %v418, 127
        %vm547 = vcmp.ne.s32.totalorder %v419, 127
        %vm548 = vcmp.ne.s32.totalorder %v420, 127
        %vm549 = vcmp.ne.s32.totalorder %v421, 127
        %vm550 = vcmp.ne.s32.totalorder %v422, 127
        %vm551 = vcmp.ne.s32.totalorder %v423, 127
        %vm552 = vcmp.ne.s32.totalorder %v424, 127
        %vm553 = vcmp.ne.s32.totalorder %v425, 127
        %vm554 = vcmp.ne.s32.totalorder %v426, 127
        %vm555 = vcmp.ne.s32.totalorder %v427, 127
        %vm556 = vcmp.ne.s32.totalorder %v428, 127
        %vm557 = vcmp.ne.s32.totalorder %v429, 127
        %vm558 = vcmp.ne.s32.totalorder %v430, 127
        %vm559 = vcmp.ne.s32.totalorder %v431, 127
        %vm560 = vcmp.ne.s32.totalorder %v432, 127
        %vm561 = vcmp.ne.s32.totalorder %v433, 127
        %vm562 = vcmp.ne.s32.totalorder %v434, 127
        %vm563 = vcmp.ne.s32.totalorder %v435, 127
        %vm564 = vcmp.ne.s32.totalorder %v436, 127
        %vm565 = vcmp.ne.s32.totalorder %v437, 127
        %vm566 = vcmp.ne.s32.totalorder %v438, 127
        %vm567 = vcmp.ne.s32.totalorder %v439, 127
        %vm568 = vcmp.ne.s32.totalorder %v440, 127
        %vm569 = vcmp.ne.s32.totalorder %v441, 127
        %vm570 = vcmp.ne.s32.totalorder %v442, 127
        %vm571 = vcmp.ne.s32.totalorder %v443, 127
        %vm572 = vcmp.ne.s32.totalorder %v444, 127
        %vm573 = vcmp.ne.s32.totalorder %v445, 127
        %vm574 = vcmp.ne.s32.totalorder %v446, 127
        %vm575 = vcmp.ne.s32.totalorder %v447, 127
        %vm576 = vcmp.ne.s32.totalorder %v448, 127
        %vm577 = vcmp.ne.s32.totalorder %v449, 127
        %vm578 = vcmp.ne.s32.totalorder %v450, 127
        %vm579 = vcmp.ne.s32.totalorder %v451, 127
        %vm580 = vcmp.ne.s32.totalorder %v452, 127
        %vm581 = vcmp.ne.s32.totalorder %v453, 127
        %vm582 = vcmp.ne.s32.totalorder %v454, 127
        %vm583 = vcmp.ne.s32.totalorder %v455, 127
        %vm584 = vcmp.ne.s32.totalorder %v456, 127
        %vm585 = vcmp.ne.s32.totalorder %v457, 127
        %vm586 = vcmp.ne.s32.totalorder %v458, 127
        %vm587 = vcmp.ne.s32.totalorder %v459, 127
        %vm588 = vcmp.ne.s32.totalorder %v460, 127
        %vm589 = vcmp.ne.s32.totalorder %v461, 127
        %vm590 = vcmp.ne.s32.totalorder %v462, 127
        %vm591 = vcmp.ne.s32.totalorder %v463, 127
        %vm592 = vcmp.ne.s32.totalorder %v464, 127
        %s593 = smul.u32 %s27, 8192
        %s594 = sshra.s32 %s593, 7
        %s595 = sand.u32 %s593, 127
        %s596 = smul.addr %s594, 2
        %s597 = scalar_lea.vmem [#allocation2], %s596
        %v598 = vld [vmem:[%s597] sm:$0xff]
        %v599 = vld [vmem:[%s597 + $0x8] sm:$0xff]
        %v600 = vld [vmem:[%s597 + $0x10] sm:$0xff]
        %v601 = vld [vmem:[%s597 + $0x18] sm:$0xff]
        %v602 = vld [vmem:[%s597 + $0x20] sm:$0xff]
        %v603 = vld [vmem:[%s597 + $0x28] sm:$0xff]
        %v604 = vld [vmem:[%s597 + $0x30] sm:$0xff]
        %v605 = vld [vmem:[%s597 + $0x38] sm:$0xff]
        %v606 = vld [vmem:[%s597 + $0x40] sm:$0xff]
        %v607 = vld [vmem:[%s597 + $0x48] sm:$0xff]
        %v608 = vld [vmem:[%s597 + $0x50] sm:$0xff]
        %v609 = vld [vmem:[%s597 + $0x58] sm:$0xff]
        %v610 = vld [vmem:[%s597 + $0x60] sm:$0xff]
        %v611 = vld [vmem:[%s597 + $0x68] sm:$0xff]
        %v612 = vld [vmem:[%s597 + $0x70] sm:$0xff]
        %v613 = vld [vmem:[%s597 + $0x78] sm:$0xff]
        %v615 = vcombine.high %v613, %v613
        %v617 = vunpack.c.l.s4 1983009808
        %v618 = vunpack.c.0.s8 %v617
        %v619 = vlaneseq
        %v620 = vshrl.u32 %v619, 7
        %v621 = vsub.s32 %v618, %v620
        %v622 = vrot.slane %v613, %v621
        %v624 = vunpack.c.l.s4 1983009808
        %v625 = vunpack.c.0.s8 %v624
        %v626 = vlaneseq
        %v627 = vshrl.u32 %v626, 7
        %v628 = vsub.s32 %v625, %v627
        %v629 = vrot.slane %v615, %v628
        %v630 = vcombine.high %v629, %v629
        %631 = vrot.lane.b32.xlu0 %v630, 1
        %v632 = vpop.permute.xlu0 %631
        %v648 = vcombine.high %v598, %v598
        %v650 = vunpack.c.l.s4 1983009808
        %v651 = vunpack.c.0.s8 %v650
        %v652 = vlaneseq
        %v653 = vshrl.u32 %v652, 7
        %v654 = vsub.s32 %v651, %v653
        %v655 = vrot.slane %v598, %v654
        %v657 = vunpack.c.l.s4 1983009808
        %v658 = vunpack.c.0.s8 %v657
        %v659 = vlaneseq
        %v660 = vshrl.u32 %v659, 7
        %v661 = vsub.s32 %v658, %v660
        %v662 = vrot.slane %v648, %v661
        %v663 = vcombine.high %v655, %v655
        %v664 = vcombine.high %v662, %v662
        %v665 = vcombine.high %v599, %v599
        %v667 = vunpack.c.l.s4 1983009808
        %v668 = vunpack.c.0.s8 %v667
        %v669 = vlaneseq
        %v670 = vshrl.u32 %v669, 7
        %v671 = vsub.s32 %v668, %v670
        %v672 = vrot.slane %v599, %v671
        %v674 = vunpack.c.l.s4 1983009808
        %v675 = vunpack.c.0.s8 %v674
        %v676 = vlaneseq
        %v677 = vshrl.u32 %v676, 7
        %v678 = vsub.s32 %v675, %v677
        %v679 = vrot.slane %v665, %v678
        %v680 = vcombine.high %v672, %v672
        %v681 = vcombine.high %v679, %v679
        %v682 = vcombine.high %v600, %v600
        %v684 = vunpack.c.l.s4 1983009808
        %v685 = vunpack.c.0.s8 %v684
        %v686 = vlaneseq
        %v687 = vshrl.u32 %v686, 7
        %v688 = vsub.s32 %v685, %v687
        %v689 = vrot.slane %v600, %v688
        %v691 = vunpack.c.l.s4 1983009808
        %v692 = vunpack.c.0.s8 %v691
        %v693 = vlaneseq
        %v694 = vshrl.u32 %v693, 7
        %v695 = vsub.s32 %v692, %v694
        %v696 = vrot.slane %v682, %v695
        %v697 = vcombine.high %v689, %v689
        %v698 = vcombine.high %v696, %v696
        %v699 = vcombine.high %v601, %v601
        %v701 = vunpack.c.l.s4 1983009808
        %v702 = vunpack.c.0.s8 %v701
        %v703 = vlaneseq
        %v704 = vshrl.u32 %v703, 7
        %v705 = vsub.s32 %v702, %v704
        %v706 = vrot.slane %v601, %v705
        %v708 = vunpack.c.l.s4 1983009808
        %v709 = vunpack.c.0.s8 %v708
        %v710 = vlaneseq
        %v711 = vshrl.u32 %v710, 7
        %v712 = vsub.s32 %v709, %v711
        %v713 = vrot.slane %v699, %v712
        %v714 = vcombine.high %v706, %v706
        %v715 = vcombine.high %v713, %v713
        %v716 = vcombine.high %v602, %v602
        %v718 = vunpack.c.l.s4 1983009808
        %v719 = vunpack.c.0.s8 %v718
        %v720 = vlaneseq
        %v721 = vshrl.u32 %v720, 7
        %v722 = vsub.s32 %v719, %v721
        %v723 = vrot.slane %v602, %v722
        %v725 = vunpack.c.l.s4 1983009808
        %v726 = vunpack.c.0.s8 %v725
        %v727 = vlaneseq
        %v728 = vshrl.u32 %v727, 7
        %v729 = vsub.s32 %v726, %v728
        %v730 = vrot.slane %v716, %v729
        %v731 = vcombine.high %v723, %v723
        %v732 = vcombine.high %v730, %v730
        %v733 = vcombine.high %v603, %v603
        %v735 = vunpack.c.l.s4 1983009808
        %v736 = vunpack.c.0.s8 %v735
        %v737 = vlaneseq
        %v738 = vshrl.u32 %v737, 7
        %v739 = vsub.s32 %v736, %v738
        %v740 = vrot.slane %v603, %v739
        %v742 = vunpack.c.l.s4 1983009808
        %v743 = vunpack.c.0.s8 %v742
        %v744 = vlaneseq
        %v745 = vshrl.u32 %v744, 7
        %v746 = vsub.s32 %v743, %v745
        %v747 = vrot.slane %v733, %v746
        %v748 = vcombine.high %v740, %v740
        %v749 = vcombine.high %v747, %v747
        %v750 = vcombine.high %v604, %v604
        %v752 = vunpack.c.l.s4 1983009808
        %v753 = vunpack.c.0.s8 %v752
        %v754 = vlaneseq
        %v755 = vshrl.u32 %v754, 7
        %v756 = vsub.s32 %v753, %v755
        %v757 = vrot.slane %v604, %v756
        %v759 = vunpack.c.l.s4 1983009808
        %v760 = vunpack.c.0.s8 %v759
        %v761 = vlaneseq
        %v762 = vshrl.u32 %v761, 7
        %v763 = vsub.s32 %v760, %v762
        %v764 = vrot.slane %v750, %v763
        %v765 = vcombine.high %v757, %v757
        %v766 = vcombine.high %v764, %v764
        %v767 = vcombine.high %v605, %v605
        %v769 = vunpack.c.l.s4 1983009808
        %v770 = vunpack.c.0.s8 %v769
        %v771 = vlaneseq
        %v772 = vshrl.u32 %v771, 7
        %v773 = vsub.s32 %v770, %v772
        %v774 = vrot.slane %v605, %v773
        %v776 = vunpack.c.l.s4 1983009808
        %v777 = vunpack.c.0.s8 %v776
        %v778 = vlaneseq
        %v779 = vshrl.u32 %v778, 7
        %v780 = vsub.s32 %v777, %v779
        %v781 = vrot.slane %v767, %v780
        %v782 = vcombine.high %v774, %v774
        %v783 = vcombine.high %v781, %v781
        %v784 = vcombine.high %v606, %v606
        %v786 = vunpack.c.l.s4 1983009808
        %v787 = vunpack.c.0.s8 %v786
        %v788 = vlaneseq
        %v789 = vshrl.u32 %v788, 7
        %v790 = vsub.s32 %v787, %v789
        %v791 = vrot.slane %v606, %v790
        %v793 = vunpack.c.l.s4 1983009808
        %v794 = vunpack.c.0.s8 %v793
        %v795 = vlaneseq
        %v796 = vshrl.u32 %v795, 7
        %v797 = vsub.s32 %v794, %v796
        %v798 = vrot.slane %v784, %v797
        %v799 = vcombine.high %v791, %v791
        %v800 = vcombine.high %v798, %v798
        %v801 = vcombine.high %v607, %v607
        %v803 = vunpack.c.l.s4 1983009808
        %v804 = vunpack.c.0.s8 %v803
        %v805 = vlaneseq
        %v806 = vshrl.u32 %v805, 7
        %v807 = vsub.s32 %v804, %v806
        %v808 = vrot.slane %v607, %v807
        %v810 = vunpack.c.l.s4 1983009808
        %v811 = vunpack.c.0.s8 %v810
        %v812 = vlaneseq
        %v813 = vshrl.u32 %v812, 7
        %v814 = vsub.s32 %v811, %v813
        %v815 = vrot.slane %v801, %v814
        %v816 = vcombine.high %v808, %v808
        %v817 = vcombine.high %v815, %v815
        %v818 = vcombine.high %v608, %v608
        %v820 = vunpack.c.l.s4 1983009808
        %v821 = vunpack.c.0.s8 %v820
        %v822 = vlaneseq
        %v823 = vshrl.u32 %v822, 7
        %v824 = vsub.s32 %v821, %v823
        %v825 = vrot.slane %v608, %v824
        %v827 = vunpack.c.l.s4 1983009808
        %v828 = vunpack.c.0.s8 %v827
        %v829 = vlaneseq
        %v830 = vshrl.u32 %v829, 7
        %v831 = vsub.s32 %v828, %v830
        %v832 = vrot.slane %v818, %v831
        %v833 = vcombine.high %v825, %v825
        %v834 = vcombine.high %v832, %v832
        %v835 = vcombine.high %v609, %v609
        %v837 = vunpack.c.l.s4 1983009808
        %v838 = vunpack.c.0.s8 %v837
        %v839 = vlaneseq
        %v840 = vshrl.u32 %v839, 7
        %v841 = vsub.s32 %v838, %v840
        %v842 = vrot.slane %v609, %v841
        %v844 = vunpack.c.l.s4 1983009808
        %v845 = vunpack.c.0.s8 %v844
        %v846 = vlaneseq
        %v847 = vshrl.u32 %v846, 7
        %v848 = vsub.s32 %v845, %v847
        %v849 = vrot.slane %v835, %v848
        %v850 = vcombine.high %v842, %v842
        %v851 = vcombine.high %v849, %v849
        %v852 = vcombine.high %v610, %v610
        %v854 = vunpack.c.l.s4 1983009808
        %v855 = vunpack.c.0.s8 %v854
        %v856 = vlaneseq
        %v857 = vshrl.u32 %v856, 7
        %v858 = vsub.s32 %v855, %v857
        %v859 = vrot.slane %v610, %v858
        %v861 = vunpack.c.l.s4 1983009808
        %v862 = vunpack.c.0.s8 %v861
        %v863 = vlaneseq
        %v864 = vshrl.u32 %v863, 7
        %v865 = vsub.s32 %v862, %v864
        %v866 = vrot.slane %v852, %v865
        %v867 = vcombine.high %v859, %v859
        %v868 = vcombine.high %v866, %v866
        %v869 = vcombine.high %v611, %v611
        %v871 = vunpack.c.l.s4 1983009808
        %v872 = vunpack.c.0.s8 %v871
        %v873 = vlaneseq
        %v874 = vshrl.u32 %v873, 7
        %v875 = vsub.s32 %v872, %v874
        %v876 = vrot.slane %v611, %v875
        %v878 = vunpack.c.l.s4 1983009808
        %v879 = vunpack.c.0.s8 %v878
        %v880 = vlaneseq
        %v881 = vshrl.u32 %v880, 7
        %v882 = vsub.s32 %v879, %v881
        %v883 = vrot.slane %v869, %v882
        %v884 = vcombine.high %v876, %v876
        %v885 = vcombine.high %v883, %v883
        %v886 = vcombine.high %v612, %v612
        %v888 = vunpack.c.l.s4 1983009808
        %v889 = vunpack.c.0.s8 %v888
        %v890 = vlaneseq
        %v891 = vshrl.u32 %v890, 7
        %v892 = vsub.s32 %v889, %v891
        %v893 = vrot.slane %v612, %v892
        %v895 = vunpack.c.l.s4 1983009808
        %v896 = vunpack.c.0.s8 %v895
        %v897 = vlaneseq
        %v898 = vshrl.u32 %v897, 7
        %v899 = vsub.s32 %v896, %v898
        %v900 = vrot.slane %v886, %v899
        %v901 = vcombine.high %v893, %v893
        %v902 = vcombine.high %v900, %v900
        %v903 = vcombine.high %v622, %v622
        %904 = vrot.lane.b32.xlu0 %v655, 1
        %v905 = vpop.permute.xlu0 %904
        %906 = vrot.lane.b32.xlu0 %v663, 1
        %v907 = vpop.permute.xlu0 %906
        %908 = vrot.lane.b32.xlu0 %v662, 1
        %v909 = vpop.permute.xlu0 %908
        %910 = vrot.lane.b32.xlu0 %v664, 1
        %v911 = vpop.permute.xlu0 %910
        %912 = vrot.lane.b32.xlu0 %v672, 1
        %v913 = vpop.permute.xlu0 %912
        %914 = vrot.lane.b32.xlu0 %v680, 1
        %v915 = vpop.permute.xlu0 %914
        %916 = vrot.lane.b32.xlu0 %v679, 1
        %v917 = vpop.permute.xlu0 %916
        %918 = vrot.lane.b32.xlu0 %v681, 1
        %v919 = vpop.permute.xlu0 %918
        %920 = vrot.lane.b32.xlu0 %v689, 1
        %v921 = vpop.permute.xlu0 %920
        %922 = vrot.lane.b32.xlu0 %v697, 1
        %v923 = vpop.permute.xlu0 %922
        %924 = vrot.lane.b32.xlu0 %v696, 1
        %v925 = vpop.permute.xlu0 %924
        %926 = vrot.lane.b32.xlu0 %v698, 1
        %v927 = vpop.permute.xlu0 %926
        %928 = vrot.lane.b32.xlu0 %v706, 1
        %v929 = vpop.permute.xlu0 %928
        %930 = vrot.lane.b32.xlu0 %v714, 1
        %v931 = vpop.permute.xlu0 %930
        %932 = vrot.lane.b32.xlu0 %v713, 1
        %v933 = vpop.permute.xlu0 %932
        %934 = vrot.lane.b32.xlu0 %v715, 1
        %v935 = vpop.permute.xlu0 %934
        %936 = vrot.lane.b32.xlu0 %v723, 1
        %v937 = vpop.permute.xlu0 %936
        %938 = vrot.lane.b32.xlu0 %v731, 1
        %v939 = vpop.permute.xlu0 %938
        %940 = vrot.lane.b32.xlu0 %v730, 1
        %v941 = vpop.permute.xlu0 %940
        %942 = vrot.lane.b32.xlu0 %v732, 1
        %v943 = vpop.permute.xlu0 %942
        %944 = vrot.lane.b32.xlu0 %v740, 1
        %v945 = vpop.permute.xlu0 %944
        %946 = vrot.lane.b32.xlu0 %v748, 1
        %v947 = vpop.permute.xlu0 %946
        %948 = vrot.lane.b32.xlu0 %v747, 1
        %v949 = vpop.permute.xlu0 %948
        %950 = vrot.lane.b32.xlu0 %v749, 1
        %v951 = vpop.permute.xlu0 %950
        %952 = vrot.lane.b32.xlu0 %v757, 1
        %v953 = vpop.permute.xlu0 %952
        %954 = vrot.lane.b32.xlu0 %v765, 1
        %v955 = vpop.permute.xlu0 %954
        %956 = vrot.lane.b32.xlu0 %v764, 1
        %v957 = vpop.permute.xlu0 %956
        %958 = vrot.lane.b32.xlu0 %v766, 1
        %v959 = vpop.permute.xlu0 %958
        %960 = vrot.lane.b32.xlu0 %v774, 1
        %v961 = vpop.permute.xlu0 %960
        %962 = vrot.lane.b32.xlu0 %v782, 1
        %v963 = vpop.permute.xlu0 %962
        %964 = vrot.lane.b32.xlu0 %v781, 1
        %v965 = vpop.permute.xlu0 %964
        %966 = vrot.lane.b32.xlu0 %v783, 1
        %v967 = vpop.permute.xlu0 %966
        %968 = vrot.lane.b32.xlu0 %v791, 1
        %v969 = vpop.permute.xlu0 %968
        %970 = vrot.lane.b32.xlu0 %v799, 1
        %v971 = vpop.permute.xlu0 %970
        %972 = vrot.lane.b32.xlu0 %v798, 1
        %v973 = vpop.permute.xlu0 %972
        %974 = vrot.lane.b32.xlu0 %v800, 1
        %v975 = vpop.permute.xlu0 %974
        %976 = vrot.lane.b32.xlu0 %v808, 1
        %v977 = vpop.permute.xlu0 %976
        %978 = vrot.lane.b32.xlu0 %v816, 1
        %v979 = vpop.permute.xlu0 %978
        %980 = vrot.lane.b32.xlu0 %v815, 1
        %v981 = vpop.permute.xlu0 %980
        %982 = vrot.lane.b32.xlu0 %v817, 1
        %v983 = vpop.permute.xlu0 %982
        %984 = vrot.lane.b32.xlu0 %v825, 1
        %v985 = vpop.permute.xlu0 %984
        %986 = vrot.lane.b32.xlu0 %v833, 1
        %v987 = vpop.permute.xlu0 %986
        %988 = vrot.lane.b32.xlu0 %v832, 1
        %v989 = vpop.permute.xlu0 %988
        %990 = vrot.lane.b32.xlu0 %v834, 1
        %v991 = vpop.permute.xlu0 %990
        %992 = vrot.lane.b32.xlu0 %v842, 1
        %v993 = vpop.permute.xlu0 %992
        %994 = vrot.lane.b32.xlu0 %v850, 1
        %v995 = vpop.permute.xlu0 %994
        %996 = vrot.lane.b32.xlu0 %v849, 1
        %v997 = vpop.permute.xlu0 %996
        %998 = vrot.lane.b32.xlu0 %v851, 1
        %v999 = vpop.permute.xlu0 %998
        %1000 = vrot.lane.b32.xlu0 %v859, 1
        %v1001 = vpop.permute.xlu0 %1000
        %1002 = vrot.lane.b32.xlu0 %v867, 1
        %v1003 = vpop.permute.xlu0 %1002
        %1004 = vrot.lane.b32.xlu0 %v866, 1
        %v1005 = vpop.permute.xlu0 %1004
        %1006 = vrot.lane.b32.xlu0 %v868, 1
        %v1007 = vpop.permute.xlu0 %1006
        %1008 = vrot.lane.b32.xlu0 %v876, 1
        %v1009 = vpop.permute.xlu0 %1008
        %1010 = vrot.lane.b32.xlu0 %v884, 1
        %v1011 = vpop.permute.xlu0 %1010
        %1012 = vrot.lane.b32.xlu0 %v883, 1
        %v1013 = vpop.permute.xlu0 %1012
        %1014 = vrot.lane.b32.xlu0 %v885, 1
        %v1015 = vpop.permute.xlu0 %1014
        %1016 = vrot.lane.b32.xlu0 %v893, 1
        %v1017 = vpop.permute.xlu0 %1016
        %1018 = vrot.lane.b32.xlu0 %v901, 1
        %v1019 = vpop.permute.xlu0 %1018
        %1020 = vrot.lane.b32.xlu0 %v900, 1
        %v1021 = vpop.permute.xlu0 %1020
        %1022 = vrot.lane.b32.xlu0 %v902, 1
        %v1023 = vpop.permute.xlu0 %1022
        %1024 = vrot.lane.b32.xlu0 %v622, 1
        %v1025 = vpop.permute.xlu0 %1024
        %1026 = vrot.lane.b32.xlu0 %v903, 1
        %v1027 = vpop.permute.xlu0 %1026
        %1028 = vrot.lane.b32.xlu0 %v629, 1
        %v1029 = vpop.permute.xlu0 %1028
        %vm1030 = vcmask 7168
        %v1031 = vsel %vm1030, %v905, %v907
        %v1032 = vsel %vm1030, %v907, %v909
        %v1033 = vsel %vm1030, %v909, %v911
        %v1034 = vsel %vm1030, %v911, %v913
        %v1035 = vsel %vm1030, %v913, %v915
        %v1036 = vsel %vm1030, %v915, %v917
        %v1037 = vsel %vm1030, %v917, %v919
        %v1038 = vsel %vm1030, %v919, %v921
        %v1039 = vsel %vm1030, %v921, %v923
        %v1040 = vsel %vm1030, %v923, %v925
        %v1041 = vsel %vm1030, %v925, %v927
        %v1042 = vsel %vm1030, %v927, %v929
        %v1043 = vsel %vm1030, %v929, %v931
        %v1044 = vsel %vm1030, %v931, %v933
        %v1045 = vsel %vm1030, %v933, %v935
        %v1046 = vsel %vm1030, %v935, %v937
        %v1047 = vsel %vm1030, %v937, %v939
        %v1048 = vsel %vm1030, %v939, %v941
        %v1049 = vsel %vm1030, %v941, %v943
        %v1050 = vsel %vm1030, %v943, %v945
        %v1051 = vsel %vm1030, %v945, %v947
        %v1052 = vsel %vm1030, %v947, %v949
        %v1053 = vsel %vm1030, %v949, %v951
        %v1054 = vsel %vm1030, %v951, %v953
        %v1055 = vsel %vm1030, %v953, %v955
        %v1056 = vsel %vm1030, %v955, %v957
        %v1057 = vsel %vm1030, %v957, %v959
        %v1058 = vsel %vm1030, %v959, %v961
        %v1059 = vsel %vm1030, %v961, %v963
        %v1060 = vsel %vm1030, %v963, %v965
        %v1061 = vsel %vm1030, %v965, %v967
        %v1062 = vsel %vm1030, %v967, %v969
        %v1063 = vsel %vm1030, %v969, %v971
        %v1064 = vsel %vm1030, %v971, %v973
        %v1065 = vsel %vm1030, %v973, %v975
        %v1066 = vsel %vm1030, %v975, %v977
        %v1067 = vsel %vm1030, %v977, %v979
        %v1068 = vsel %vm1030, %v979, %v981
        %v1069 = vsel %vm1030, %v981, %v983
        %v1070 = vsel %vm1030, %v983, %v985
        %v1071 = vsel %vm1030, %v985, %v987
        %v1072 = vsel %vm1030, %v987, %v989
        %v1073 = vsel %vm1030, %v989, %v991
        %v1074 = vsel %vm1030, %v991, %v993
        %v1075 = vsel %vm1030, %v993, %v995
        %v1076 = vsel %vm1030, %v995, %v997
        %v1077 = vsel %vm1030, %v997, %v999
        %v1078 = vsel %vm1030, %v999, %v1001
        %v1079 = vsel %vm1030, %v1001, %v1003
        %v1080 = vsel %vm1030, %v1003, %v1005
        %v1081 = vsel %vm1030, %v1005, %v1007
        %v1082 = vsel %vm1030, %v1007, %v1009
        %v1083 = vsel %vm1030, %v1009, %v1011
        %v1084 = vsel %vm1030, %v1011, %v1013
        %v1085 = vsel %vm1030, %v1013, %v1015
        %v1086 = vsel %vm1030, %v1015, %v1017
        %v1087 = vsel %vm1030, %v1017, %v1019
        %v1088 = vsel %vm1030, %v1019, %v1021
        %v1089 = vsel %vm1030, %v1021, %v1023
        %v1090 = vsel %vm1030, %v1023, %v1025
        %v1091 = vsel %vm1030, %v1025, %v1027
        %v1092 = vsel %vm1030, %v1027, %v1029
        %v1093 = vsel %vm1030, %v1029, %v632
        %vm1157 = vcmask 7168
        %v1160 = vsel %vm1157, %v632, %v905
        %v1162 = vsel %vm465, 1, 0
        %v1163 = vsel %vm466, 1, 0
        %v1164 = vsel %vm467, 1, 0
        %v1165 = vsel %vm468, 1, 0
        %v1166 = vsel %vm469, 1, 0
        %v1167 = vsel %vm470, 1, 0
        %v1168 = vsel %vm471, 1, 0
        %v1169 = vsel %vm472, 1, 0
        %v1170 = vsel %vm473, 1, 0
        %v1171 = vsel %vm474, 1, 0
        %v1172 = vsel %vm475, 1, 0
        %v1173 = vsel %vm476, 1, 0
        %v1174 = vsel %vm477, 1, 0
        %v1175 = vsel %vm478, 1, 0
        %v1176 = vsel %vm479, 1, 0
        %v1177 = vsel %vm480, 1, 0
        %v1178 = vsel %vm481, 1, 0
        %v1179 = vsel %vm482, 1, 0
        %v1180 = vsel %vm483, 1, 0
        %v1181 = vsel %vm484, 1, 0
        %v1182 = vsel %vm485, 1, 0
        %v1183 = vsel %vm486, 1, 0
        %v1184 = vsel %vm487, 1, 0
        %v1185 = vsel %vm488, 1, 0
        %v1186 = vsel %vm489, 1, 0
        %v1187 = vsel %vm490, 1, 0
        %v1188 = vsel %vm491, 1, 0
        %v1189 = vsel %vm492, 1, 0
        %v1190 = vsel %vm493, 1, 0
        %v1191 = vsel %vm494, 1, 0
        %v1192 = vsel %vm495, 1, 0
        %v1193 = vsel %vm496, 1, 0
        %v1194 = vsel %vm497, 1, 0
        %v1195 = vsel %vm498, 1, 0
        %v1196 = vsel %vm499, 1, 0
        %v1197 = vsel %vm500, 1, 0
        %v1198 = vsel %vm501, 1, 0
        %v1199 = vsel %vm502, 1, 0
        %v1200 = vsel %vm503, 1, 0
        %v1201 = vsel %vm504, 1, 0
        %v1202 = vsel %vm505, 1, 0
        %v1203 = vsel %vm506, 1, 0
        %v1204 = vsel %vm507, 1, 0
        %v1205 = vsel %vm508, 1, 0
        %v1206 = vsel %vm509, 1, 0
        %v1207 = vsel %vm510, 1, 0
        %v1208 = vsel %vm511, 1, 0
        %v1209 = vsel %vm512, 1, 0
        %v1210 = vsel %vm513, 1, 0
        %v1211 = vsel %vm514, 1, 0
        %v1212 = vsel %vm515, 1, 0
        %v1213 = vsel %vm516, 1, 0
        %v1214 = vsel %vm517, 1, 0
        %v1215 = vsel %vm518, 1, 0
        %v1216 = vsel %vm519, 1, 0
        %v1217 = vsel %vm520, 1, 0
        %v1218 = vsel %vm521, 1, 0
        %v1219 = vsel %vm522, 1, 0
        %v1220 = vsel %vm523, 1, 0
        %v1221 = vsel %vm524, 1, 0
        %v1222 = vsel %vm525, 1, 0
        %v1223 = vsel %vm526, 1, 0
        %v1224 = vsel %vm527, 1, 0
        %v1225 = vsel %vm528, 1, 0
        %vm1226 = vcmp.eq.s32.totalorder %v1162, 1
        %vm1227 = vcmp.eq.s32.totalorder %v1163, 1
        %vm1228 = vcmp.eq.s32.totalorder %v1164, 1
        %vm1229 = vcmp.eq.s32.totalorder %v1165, 1
        %vm1230 = vcmp.eq.s32.totalorder %v1166, 1
        %vm1231 = vcmp.eq.s32.totalorder %v1167, 1
        %vm1232 = vcmp.eq.s32.totalorder %v1168, 1
        %vm1233 = vcmp.eq.s32.totalorder %v1169, 1
        %vm1234 = vcmp.eq.s32.totalorder %v1170, 1
        %vm1235 = vcmp.eq.s32.totalorder %v1171, 1
        %vm1236 = vcmp.eq.s32.totalorder %v1172, 1
        %vm1237 = vcmp.eq.s32.totalorder %v1173, 1
        %vm1238 = vcmp.eq.s32.totalorder %v1174, 1
        %vm1239 = vcmp.eq.s32.totalorder %v1175, 1
        %vm1240 = vcmp.eq.s32.totalorder %v1176, 1
        %vm1241 = vcmp.eq.s32.totalorder %v1177, 1
        %vm1242 = vcmp.eq.s32.totalorder %v1178, 1
        %vm1243 = vcmp.eq.s32.totalorder %v1179, 1
        %vm1244 = vcmp.eq.s32.totalorder %v1180, 1
        %vm1245 = vcmp.eq.s32.totalorder %v1181, 1
        %vm1246 = vcmp.eq.s32.totalorder %v1182, 1
        %vm1247 = vcmp.eq.s32.totalorder %v1183, 1
        %vm1248 = vcmp.eq.s32.totalorder %v1184, 1
        %vm1249 = vcmp.eq.s32.totalorder %v1185, 1
        %vm1250 = vcmp.eq.s32.totalorder %v1186, 1
        %vm1251 = vcmp.eq.s32.totalorder %v1187, 1
        %vm1252 = vcmp.eq.s32.totalorder %v1188, 1
        %vm1253 = vcmp.eq.s32.totalorder %v1189, 1
        %vm1254 = vcmp.eq.s32.totalorder %v1190, 1
        %vm1255 = vcmp.eq.s32.totalorder %v1191, 1
        %vm1256 = vcmp.eq.s32.totalorder %v1192, 1
        %vm1257 = vcmp.eq.s32.totalorder %v1193, 1
        %vm1258 = vcmp.eq.s32.totalorder %v1194, 1
        %vm1259 = vcmp.eq.s32.totalorder %v1195, 1
        %vm1260 = vcmp.eq.s32.totalorder %v1196, 1
        %vm1261 = vcmp.eq.s32.totalorder %v1197, 1
        %vm1262 = vcmp.eq.s32.totalorder %v1198, 1
        %vm1263 = vcmp.eq.s32.totalorder %v1199, 1
        %vm1264 = vcmp.eq.s32.totalorder %v1200, 1
        %vm1265 = vcmp.eq.s32.totalorder %v1201, 1
        %vm1266 = vcmp.eq.s32.totalorder %v1202, 1
        %vm1267 = vcmp.eq.s32.totalorder %v1203, 1
        %vm1268 = vcmp.eq.s32.totalorder %v1204, 1
        %vm1269 = vcmp.eq.s32.totalorder %v1205, 1
        %vm1270 = vcmp.eq.s32.totalorder %v1206, 1
        %vm1271 = vcmp.eq.s32.totalorder %v1207, 1
        %vm1272 = vcmp.eq.s32.totalorder %v1208, 1
        %vm1273 = vcmp.eq.s32.totalorder %v1209, 1
        %vm1274 = vcmp.eq.s32.totalorder %v1210, 1
        %vm1275 = vcmp.eq.s32.totalorder %v1211, 1
        %vm1276 = vcmp.eq.s32.totalorder %v1212, 1
        %vm1277 = vcmp.eq.s32.totalorder %v1213, 1
        %vm1278 = vcmp.eq.s32.totalorder %v1214, 1
        %vm1279 = vcmp.eq.s32.totalorder %v1215, 1
        %vm1280 = vcmp.eq.s32.totalorder %v1216, 1
        %vm1281 = vcmp.eq.s32.totalorder %v1217, 1
        %vm1282 = vcmp.eq.s32.totalorder %v1218, 1
        %vm1283 = vcmp.eq.s32.totalorder %v1219, 1
        %vm1284 = vcmp.eq.s32.totalorder %v1220, 1
        %vm1285 = vcmp.eq.s32.totalorder %v1221, 1
        %vm1286 = vcmp.eq.s32.totalorder %v1222, 1
        %vm1287 = vcmp.eq.s32.totalorder %v1223, 1
        %vm1288 = vcmp.eq.s32.totalorder %v1224, 1
        %vm1289 = vcmp.eq.s32.totalorder %v1225, 1
        %vm1290 = vmpackc.low %vm1227, %vm1226
        %vm1291 = vmpackc.low %vm1229, %vm1228
        %vm1292 = vmpackc.low %vm1231, %vm1230
        %vm1293 = vmpackc.low %vm1233, %vm1232
        %vm1294 = vmpackc.low %vm1235, %vm1234
        %vm1295 = vmpackc.low %vm1237, %vm1236
        %vm1296 = vmpackc.low %vm1239, %vm1238
        %vm1297 = vmpackc.low %vm1241, %vm1240
        %vm1298 = vmpackc.low %vm1243, %vm1242
        %vm1299 = vmpackc.low %vm1245, %vm1244
        %vm1300 = vmpackc.low %vm1247, %vm1246
        %vm1301 = vmpackc.low %vm1249, %vm1248
        %vm1302 = vmpackc.low %vm1251, %vm1250
        %vm1303 = vmpackc.low %vm1253, %vm1252
        %vm1304 = vmpackc.low %vm1255, %vm1254
        %vm1305 = vmpackc.low %vm1257, %vm1256
        %vm1306 = vmpackc.low %vm1259, %vm1258
        %vm1307 = vmpackc.low %vm1261, %vm1260
        %vm1308 = vmpackc.low %vm1263, %vm1262
        %vm1309 = vmpackc.low %vm1265, %vm1264
        %vm1310 = vmpackc.low %vm1267, %vm1266
        %vm1311 = vmpackc.low %vm1269, %vm1268
        %vm1312 = vmpackc.low %vm1271, %vm1270
        %vm1313 = vmpackc.low %vm1273, %vm1272
        %vm1314 = vmpackc.low %vm1275, %vm1274
        %vm1315 = vmpackc.low %vm1277, %vm1276
        %vm1316 = vmpackc.low %vm1279, %vm1278
        %vm1317 = vmpackc.low %vm1281, %vm1280
        %vm1318 = vmpackc.low %vm1283, %vm1282
        %vm1319 = vmpackc.low %vm1285, %vm1284
        %vm1320 = vmpackc.low %vm1287, %vm1286
        %vm1321 = vmpackc.low %vm1289, %vm1288
        %v1322 = vsel %vm1290, 65537, 0
        %v1323 = vsel %vm1291, 65537, 0
        %v1324 = vsel %vm1292, 65537, 0
        %v1325 = vsel %vm1293, 65537, 0
        %v1326 = vsel %vm1294, 65537, 0
        %v1327 = vsel %vm1295, 65537, 0
        %v1328 = vsel %vm1296, 65537, 0
        %v1329 = vsel %vm1297, 65537, 0
        %v1330 = vsel %vm1298, 65537, 0
        %v1331 = vsel %vm1299, 65537, 0
        %v1332 = vsel %vm1300, 65537, 0
        %v1333 = vsel %vm1301, 65537, 0
        %v1334 = vsel %vm1302, 65537, 0
        %v1335 = vsel %vm1303, 65537, 0
        %v1336 = vsel %vm1304, 65537, 0
        %v1337 = vsel %vm1305, 65537, 0
        %v1338 = vsel %vm1306, 65537, 0
        %v1339 = vsel %vm1307, 65537, 0
        %v1340 = vsel %vm1308, 65537, 0
        %v1341 = vsel %vm1309, 65537, 0
        %v1342 = vsel %vm1310, 65537, 0
        %v1343 = vsel %vm1311, 65537, 0
        %v1344 = vsel %vm1312, 65537, 0
        %v1345 = vsel %vm1313, 65537, 0
        %v1346 = vsel %vm1314, 65537, 0
        %v1347 = vsel %vm1315, 65537, 0
        %v1348 = vsel %vm1316, 65537, 0
        %v1349 = vsel %vm1317, 65537, 0
        %v1350 = vsel %vm1318, 65537, 0
        %v1351 = vsel %vm1319, 65537, 0
        %v1352 = vsel %vm1320, 65537, 0
        %v1353 = vsel %vm1321, 65537, 0
        %v1354 = vlaneseq
        %v1355 = vshrl.u32 %v1354, 7
        %v1356 = vsub.s32 0, %v1355
        %v1357 = vrot.slane %v1322, %v1356
        %v1358 = vlaneseq
        %v1359 = vshrl.u32 %v1358, 7
        %v1360 = vsub.s32 4, %v1359
        %v1361 = vrot.slane %v1322, %v1360
        %v1362 = vlaneseq
        %v1363 = vshrl.u32 %v1362, 7
        %v1364 = vsub.s32 0, %v1363
        %v1365 = vrot.slane %v1323, %v1364
        %v1366 = vlaneseq
        %v1367 = vshrl.u32 %v1366, 7
        %v1368 = vsub.s32 4, %v1367
        %v1369 = vrot.slane %v1323, %v1368
        %v1370 = vlaneseq
        %v1371 = vshrl.u32 %v1370, 7
        %v1372 = vsub.s32 0, %v1371
        %v1373 = vrot.slane %v1324, %v1372
        %v1374 = vlaneseq
        %v1375 = vshrl.u32 %v1374, 7
        %v1376 = vsub.s32 4, %v1375
        %v1377 = vrot.slane %v1324, %v1376
        %v1378 = vlaneseq
        %v1379 = vshrl.u32 %v1378, 7
        %v1380 = vsub.s32 0, %v1379
        %v1381 = vrot.slane %v1325, %v1380
        %v1382 = vlaneseq
        %v1383 = vshrl.u32 %v1382, 7
        %v1384 = vsub.s32 4, %v1383
        %v1385 = vrot.slane %v1325, %v1384
        %v1386 = vlaneseq
        %v1387 = vshrl.u32 %v1386, 7
        %v1388 = vsub.s32 0, %v1387
        %v1389 = vrot.slane %v1326, %v1388
        %v1390 = vlaneseq
        %v1391 = vshrl.u32 %v1390, 7
        %v1392 = vsub.s32 4, %v1391
        %v1393 = vrot.slane %v1326, %v1392
        %v1394 = vlaneseq
        %v1395 = vshrl.u32 %v1394, 7
        %v1396 = vsub.s32 0, %v1395
        %v1397 = vrot.slane %v1327, %v1396
        %v1398 = vlaneseq
        %v1399 = vshrl.u32 %v1398, 7
        %v1400 = vsub.s32 4, %v1399
        %v1401 = vrot.slane %v1327, %v1400
        %v1402 = vlaneseq
        %v1403 = vshrl.u32 %v1402, 7
        %v1404 = vsub.s32 0, %v1403
        %v1405 = vrot.slane %v1328, %v1404
        %v1406 = vlaneseq
        %v1407 = vshrl.u32 %v1406, 7
        %v1408 = vsub.s32 4, %v1407
        %v1409 = vrot.slane %v1328, %v1408
        %v1410 = vlaneseq
        %v1411 = vshrl.u32 %v1410, 7
        %v1412 = vsub.s32 0, %v1411
        %v1413 = vrot.slane %v1329, %v1412
        %v1414 = vlaneseq
        %v1415 = vshrl.u32 %v1414, 7
        %v1416 = vsub.s32 4, %v1415
        %v1417 = vrot.slane %v1329, %v1416
        %v1418 = vlaneseq
        %v1419 = vshrl.u32 %v1418, 7
        %v1420 = vsub.s32 0, %v1419
        %v1421 = vrot.slane %v1330, %v1420
        %v1422 = vlaneseq
        %v1423 = vshrl.u32 %v1422, 7
        %v1424 = vsub.s32 4, %v1423
        %v1425 = vrot.slane %v1330, %v1424
        %v1426 = vlaneseq
        %v1427 = vshrl.u32 %v1426, 7
        %v1428 = vsub.s32 0, %v1427
        %v1429 = vrot.slane %v1331, %v1428
        %v1430 = vlaneseq
        %v1431 = vshrl.u32 %v1430, 7
        %v1432 = vsub.s32 4, %v1431
        %v1433 = vrot.slane %v1331, %v1432
        %v1434 = vlaneseq
        %v1435 = vshrl.u32 %v1434, 7
        %v1436 = vsub.s32 0, %v1435
        %v1437 = vrot.slane %v1332, %v1436
        %v1438 = vlaneseq
        %v1439 = vshrl.u32 %v1438, 7
        %v1440 = vsub.s32 4, %v1439
        %v1441 = vrot.slane %v1332, %v1440
        %v1442 = vlaneseq
        %v1443 = vshrl.u32 %v1442, 7
        %v1444 = vsub.s32 0, %v1443
        %v1445 = vrot.slane %v1333, %v1444
        %v1446 = vlaneseq
        %v1447 = vshrl.u32 %v1446, 7
        %v1448 = vsub.s32 4, %v1447
        %v1449 = vrot.slane %v1333, %v1448
        %v1450 = vlaneseq
        %v1451 = vshrl.u32 %v1450, 7
        %v1452 = vsub.s32 0, %v1451
        %v1453 = vrot.slane %v1334, %v1452
        %v1454 = vlaneseq
        %v1455 = vshrl.u32 %v1454, 7
        %v1456 = vsub.s32 4, %v1455
        %v1457 = vrot.slane %v1334, %v1456
        %v1458 = vlaneseq
        %v1459 = vshrl.u32 %v1458, 7
        %v1460 = vsub.s32 0, %v1459
        %v1461 = vrot.slane %v1335, %v1460
        %v1462 = vlaneseq
        %v1463 = vshrl.u32 %v1462, 7
        %v1464 = vsub.s32 4, %v1463
        %v1465 = vrot.slane %v1335, %v1464
        %v1466 = vlaneseq
        %v1467 = vshrl.u32 %v1466, 7
        %v1468 = vsub.s32 0, %v1467
        %v1469 = vrot.slane %v1336, %v1468
        %v1470 = vlaneseq
        %v1471 = vshrl.u32 %v1470, 7
        %v1472 = vsub.s32 4, %v1471
        %v1473 = vrot.slane %v1336, %v1472
        %v1474 = vlaneseq
        %v1475 = vshrl.u32 %v1474, 7
        %v1476 = vsub.s32 0, %v1475
        %v1477 = vrot.slane %v1337, %v1476
        %v1478 = vlaneseq
        %v1479 = vshrl.u32 %v1478, 7
        %v1480 = vsub.s32 4, %v1479
        %v1481 = vrot.slane %v1337, %v1480
        %v1482 = vlaneseq
        %v1483 = vshrl.u32 %v1482, 7
        %v1484 = vsub.s32 0, %v1483
        %v1485 = vrot.slane %v1338, %v1484
        %v1486 = vlaneseq
        %v1487 = vshrl.u32 %v1486, 7
        %v1488 = vsub.s32 4, %v1487
        %v1489 = vrot.slane %v1338, %v1488
        %v1490 = vlaneseq
        %v1491 = vshrl.u32 %v1490, 7
        %v1492 = vsub.s32 0, %v1491
        %v1493 = vrot.slane %v1339, %v1492
        %v1494 = vlaneseq
        %v1495 = vshrl.u32 %v1494, 7
        %v1496 = vsub.s32 4, %v1495
        %v1497 = vrot.slane %v1339, %v1496
        %v1498 = vlaneseq
        %v1499 = vshrl.u32 %v1498, 7
        %v1500 = vsub.s32 0, %v1499
        %v1501 = vrot.slane %v1340, %v1500
        %v1502 = vlaneseq
        %v1503 = vshrl.u32 %v1502, 7
        %v1504 = vsub.s32 4, %v1503
        %v1505 = vrot.slane %v1340, %v1504
        %v1506 = vlaneseq
        %v1507 = vshrl.u32 %v1506, 7
        %v1508 = vsub.s32 0, %v1507
        %v1509 = vrot.slane %v1341, %v1508
        %v1510 = vlaneseq
        %v1511 = vshrl.u32 %v1510, 7
        %v1512 = vsub.s32 4, %v1511
        %v1513 = vrot.slane %v1341, %v1512
        %v1514 = vlaneseq
        %v1515 = vshrl.u32 %v1514, 7
        %v1516 = vsub.s32 0, %v1515
        %v1517 = vrot.slane %v1342, %v1516
        %v1518 = vlaneseq
        %v1519 = vshrl.u32 %v1518, 7
        %v1520 = vsub.s32 4, %v1519
        %v1521 = vrot.slane %v1342, %v1520
        %v1522 = vlaneseq
        %v1523 = vshrl.u32 %v1522, 7
        %v1524 = vsub.s32 0, %v1523
        %v1525 = vrot.slane %v1343, %v1524
        %v1526 = vlaneseq
        %v1527 = vshrl.u32 %v1526, 7
        %v1528 = vsub.s32 4, %v1527
        %v1529 = vrot.slane %v1343, %v1528
        %v1530 = vlaneseq
        %v1531 = vshrl.u32 %v1530, 7
        %v1532 = vsub.s32 0, %v1531
        %v1533 = vrot.slane %v1344, %v1532
        %v1534 = vlaneseq
        %v1535 = vshrl.u32 %v1534, 7
        %v1536 = vsub.s32 4, %v1535
        %v1537 = vrot.slane %v1344, %v1536
        %v1538 = vlaneseq
        %v1539 = vshrl.u32 %v1538, 7
        %v1540 = vsub.s32 0, %v1539
        %v1541 = vrot.slane %v1345, %v1540
        %v1542 = vlaneseq
        %v1543 = vshrl.u32 %v1542, 7
        %v1544 = vsub.s32 4, %v1543
        %v1545 = vrot.slane %v1345, %v1544
        %v1546 = vlaneseq
        %v1547 = vshrl.u32 %v1546, 7
        %v1548 = vsub.s32 0, %v1547
        %v1549 = vrot.slane %v1346, %v1548
        %v1550 = vlaneseq
        %v1551 = vshrl.u32 %v1550, 7
        %v1552 = vsub.s32 4, %v1551
        %v1553 = vrot.slane %v1346, %v1552
        %v1554 = vlaneseq
        %v1555 = vshrl.u32 %v1554, 7
        %v1556 = vsub.s32 0, %v1555
        %v1557 = vrot.slane %v1347, %v1556
        %v1558 = vlaneseq
        %v1559 = vshrl.u32 %v1558, 7
        %v1560 = vsub.s32 4, %v1559
        %v1561 = vrot.slane %v1347, %v1560
        %v1562 = vlaneseq
        %v1563 = vshrl.u32 %v1562, 7
        %v1564 = vsub.s32 0, %v1563
        %v1565 = vrot.slane %v1348, %v1564
        %v1566 = vlaneseq
        %v1567 = vshrl.u32 %v1566, 7
        %v1568 = vsub.s32 4, %v1567
        %v1569 = vrot.slane %v1348, %v1568
        %v1570 = vlaneseq
        %v1571 = vshrl.u32 %v1570, 7
        %v1572 = vsub.s32 0, %v1571
        %v1573 = vrot.slane %v1349, %v1572
        %v1574 = vlaneseq
        %v1575 = vshrl.u32 %v1574, 7
        %v1576 = vsub.s32 4, %v1575
        %v1577 = vrot.slane %v1349, %v1576
        %v1578 = vlaneseq
        %v1579 = vshrl.u32 %v1578, 7
        %v1580 = vsub.s32 0, %v1579
        %v1581 = vrot.slane %v1350, %v1580
        %v1582 = vlaneseq
        %v1583 = vshrl.u32 %v1582, 7
        %v1584 = vsub.s32 4, %v1583
        %v1585 = vrot.slane %v1350, %v1584
        %v1586 = vlaneseq
        %v1587 = vshrl.u32 %v1586, 7
        %v1588 = vsub.s32 0, %v1587
        %v1589 = vrot.slane %v1351, %v1588
        %v1590 = vlaneseq
        %v1591 = vshrl.u32 %v1590, 7
        %v1592 = vsub.s32 4, %v1591
        %v1593 = vrot.slane %v1351, %v1592
        %v1594 = vlaneseq
        %v1595 = vshrl.u32 %v1594, 7
        %v1596 = vsub.s32 0, %v1595
        %v1597 = vrot.slane %v1352, %v1596
        %v1598 = vlaneseq
        %v1599 = vshrl.u32 %v1598, 7
        %v1600 = vsub.s32 4, %v1599
        %v1601 = vrot.slane %v1352, %v1600
        %v1602 = vlaneseq
        %v1603 = vshrl.u32 %v1602, 7
        %v1604 = vsub.s32 0, %v1603
        %v1605 = vrot.slane %v1353, %v1604
        %v1606 = vlaneseq
        %v1607 = vshrl.u32 %v1606, 7
        %v1608 = vsub.s32 4, %v1607
        %v1609 = vrot.slane %v1353, %v1608
        %vm1610 = vcmp.ne.s16.totalorder %v1357, 0
        %vm1611 = vcmp.ne.s16.totalorder %v1361, 0
        %vm1612 = vcmp.ne.s16.totalorder %v1365, 0
        %vm1613 = vcmp.ne.s16.totalorder %v1369, 0
        %vm1614 = vcmp.ne.s16.totalorder %v1373, 0
        %vm1615 = vcmp.ne.s16.totalorder %v1377, 0
        %vm1616 = vcmp.ne.s16.totalorder %v1381, 0
        %vm1617 = vcmp.ne.s16.totalorder %v1385, 0
        %vm1618 = vcmp.ne.s16.totalorder %v1389, 0
        %vm1619 = vcmp.ne.s16.totalorder %v1393, 0
        %vm1620 = vcmp.ne.s16.totalorder %v1397, 0
        %vm1621 = vcmp.ne.s16.totalorder %v1401, 0
        %vm1622 = vcmp.ne.s16.totalorder %v1405, 0
        %vm1623 = vcmp.ne.s16.totalorder %v1409, 0
        %vm1624 = vcmp.ne.s16.totalorder %v1413, 0
        %vm1625 = vcmp.ne.s16.totalorder %v1417, 0
        %vm1626 = vcmp.ne.s16.totalorder %v1421, 0
        %vm1627 = vcmp.ne.s16.totalorder %v1425, 0
        %vm1628 = vcmp.ne.s16.totalorder %v1429, 0
        %vm1629 = vcmp.ne.s16.totalorder %v1433, 0
        %vm1630 = vcmp.ne.s16.totalorder %v1437, 0
        %vm1631 = vcmp.ne.s16.totalorder %v1441, 0
        %vm1632 = vcmp.ne.s16.totalorder %v1445, 0
        %vm1633 = vcmp.ne.s16.totalorder %v1449, 0
        %vm1634 = vcmp.ne.s16.totalorder %v1453, 0
        %vm1635 = vcmp.ne.s16.totalorder %v1457, 0
        %vm1636 = vcmp.ne.s16.totalorder %v1461, 0
        %vm1637 = vcmp.ne.s16.totalorder %v1465, 0
        %vm1638 = vcmp.ne.s16.totalorder %v1469, 0
        %vm1639 = vcmp.ne.s16.totalorder %v1473, 0
        %vm1640 = vcmp.ne.s16.totalorder %v1477, 0
        %vm1641 = vcmp.ne.s16.totalorder %v1481, 0
        %vm1642 = vcmp.ne.s16.totalorder %v1485, 0
        %vm1643 = vcmp.ne.s16.totalorder %v1489, 0
        %vm1644 = vcmp.ne.s16.totalorder %v1493, 0
        %vm1645 = vcmp.ne.s16.totalorder %v1497, 0
        %vm1646 = vcmp.ne.s16.totalorder %v1501, 0
        %vm1647 = vcmp.ne.s16.totalorder %v1505, 0
        %vm1648 = vcmp.ne.s16.totalorder %v1509, 0
        %vm1649 = vcmp.ne.s16.totalorder %v1513, 0
        %vm1650 = vcmp.ne.s16.totalorder %v1517, 0
        %vm1651 = vcmp.ne.s16.totalorder %v1521, 0
        %vm1652 = vcmp.ne.s16.totalorder %v1525, 0
        %vm1653 = vcmp.ne.s16.totalorder %v1529, 0
        %vm1654 = vcmp.ne.s16.totalorder %v1533, 0
        %vm1655 = vcmp.ne.s16.totalorder %v1537, 0
        %vm1656 = vcmp.ne.s16.totalorder %v1541, 0
        %vm1657 = vcmp.ne.s16.totalorder %v1545, 0
        %vm1658 = vcmp.ne.s16.totalorder %v1549, 0
        %vm1659 = vcmp.ne.s16.totalorder %v1553, 0
        %vm1660 = vcmp.ne.s16.totalorder %v1557, 0
        %vm1661 = vcmp.ne.s16.totalorder %v1561, 0
        %vm1662 = vcmp.ne.s16.totalorder %v1565, 0
        %vm1663 = vcmp.ne.s16.totalorder %v1569, 0
        %vm1664 = vcmp.ne.s16.totalorder %v1573, 0
        %vm1665 = vcmp.ne.s16.totalorder %v1577, 0
        %vm1666 = vcmp.ne.s16.totalorder %v1581, 0
        %vm1667 = vcmp.ne.s16.totalorder %v1585, 0
        %vm1668 = vcmp.ne.s16.totalorder %v1589, 0
        %vm1669 = vcmp.ne.s16.totalorder %v1593, 0
        %vm1670 = vcmp.ne.s16.totalorder %v1597, 0
        %vm1671 = vcmp.ne.s16.totalorder %v1601, 0
        %vm1672 = vcmp.ne.s16.totalorder %v1605, 0
        %vm1673 = vcmp.ne.s16.totalorder %v1609, 0
        %v1674 = vsel %vm1610, %v1160, 0
        %v1675 = vsel %vm1611, %v1031, 0
        %v1676 = vsel %vm1612, %v1032, 0
        %v1677 = vsel %vm1613, %v1033, 0
        %v1678 = vsel %vm1614, %v1034, 0
        %v1679 = vsel %vm1615, %v1035, 0
        %v1680 = vsel %vm1616, %v1036, 0
        %v1681 = vsel %vm1617, %v1037, 0
        %v1682 = vsel %vm1618, %v1038, 0
        %v1683 = vsel %vm1619, %v1039, 0
        %v1684 = vsel %vm1620, %v1040, 0
        %v1685 = vsel %vm1621, %v1041, 0
        %v1686 = vsel %vm1622, %v1042, 0
        %v1687 = vsel %vm1623, %v1043, 0
        %v1688 = vsel %vm1624, %v1044, 0
        %v1689 = vsel %vm1625, %v1045, 0
        %v1690 = vsel %vm1626, %v1046, 0
        %v1691 = vsel %vm1627, %v1047, 0
        %v1692 = vsel %vm1628, %v1048, 0
        %v1693 = vsel %vm1629, %v1049, 0
        %v1694 = vsel %vm1630, %v1050, 0
        %v1695 = vsel %vm1631, %v1051, 0
        %v1696 = vsel %vm1632, %v1052, 0
        %v1697 = vsel %vm1633, %v1053, 0
        %v1698 = vsel %vm1634, %v1054, 0
        %v1699 = vsel %vm1635, %v1055, 0
        %v1700 = vsel %vm1636, %v1056, 0
        %v1701 = vsel %vm1637, %v1057, 0
        %v1702 = vsel %vm1638, %v1058, 0
        %v1703 = vsel %vm1639, %v1059, 0
        %v1704 = vsel %vm1640, %v1060, 0
        %v1705 = vsel %vm1641, %v1061, 0
        %v1706 = vsel %vm1642, %v1062, 0
        %v1707 = vsel %vm1643, %v1063, 0
        %v1708 = vsel %vm1644, %v1064, 0
        %v1709 = vsel %vm1645, %v1065, 0
        %v1710 = vsel %vm1646, %v1066, 0
        %v1711 = vsel %vm1647, %v1067, 0
        %v1712 = vsel %vm1648, %v1068, 0
        %v1713 = vsel %vm1649, %v1069, 0
        %v1714 = vsel %vm1650, %v1070, 0
        %v1715 = vsel %vm1651, %v1071, 0
        %v1716 = vsel %vm1652, %v1072, 0
        %v1717 = vsel %vm1653, %v1073, 0
        %v1718 = vsel %vm1654, %v1074, 0
        %v1719 = vsel %vm1655, %v1075, 0
        %v1720 = vsel %vm1656, %v1076, 0
        %v1721 = vsel %vm1657, %v1077, 0
        %v1722 = vsel %vm1658, %v1078, 0
        %v1723 = vsel %vm1659, %v1079, 0
        %v1724 = vsel %vm1660, %v1080, 0
        %v1725 = vsel %vm1661, %v1081, 0
        %v1726 = vsel %vm1662, %v1082, 0
        %v1727 = vsel %vm1663, %v1083, 0
        %v1728 = vsel %vm1664, %v1084, 0
        %v1729 = vsel %vm1665, %v1085, 0
        %v1730 = vsel %vm1666, %v1086, 0
        %v1731 = vsel %vm1667, %v1087, 0
        %v1732 = vsel %vm1668, %v1088, 0
        %v1733 = vsel %vm1669, %v1089, 0
        %v1734 = vsel %vm1670, %v1090, 0
        %v1735 = vsel %vm1671, %v1091, 0
        %v1736 = vsel %vm1672, %v1092, 0
        %v1737 = vsel %vm1673, %v1093, 0
        %1738 = vrot.lane.b32.xlu0 %v655, 127
        %v1739 = vpop.permute.xlu0 %1738
        %1740 = vrot.lane.b32.xlu0 %v663, 127
        %v1741 = vpop.permute.xlu0 %1740
        %1742 = vrot.lane.b32.xlu0 %v662, 127
        %v1743 = vpop.permute.xlu0 %1742
        %1744 = vrot.lane.b32.xlu0 %v664, 127
        %v1745 = vpop.permute.xlu0 %1744
        %1746 = vrot.lane.b32.xlu0 %v672, 127
        %v1747 = vpop.permute.xlu0 %1746
        %1748 = vrot.lane.b32.xlu0 %v680, 127
        %v1749 = vpop.permute.xlu0 %1748
        %1750 = vrot.lane.b32.xlu0 %v679, 127
        %v1751 = vpop.permute.xlu0 %1750
        %1752 = vrot.lane.b32.xlu0 %v681, 127
        %v1753 = vpop.permute.xlu0 %1752
        %1754 = vrot.lane.b32.xlu0 %v689, 127
        %v1755 = vpop.permute.xlu0 %1754
        %1756 = vrot.lane.b32.xlu0 %v697, 127
        %v1757 = vpop.permute.xlu0 %1756
        %1758 = vrot.lane.b32.xlu0 %v696, 127
        %v1759 = vpop.permute.xlu0 %1758
        %1760 = vrot.lane.b32.xlu0 %v698, 127
        %v1761 = vpop.permute.xlu0 %1760
        %1762 = vrot.lane.b32.xlu0 %v706, 127
        %v1763 = vpop.permute.xlu0 %1762
        %1764 = vrot.lane.b32.xlu0 %v714, 127
        %v1765 = vpop.permute.xlu0 %1764
        %1766 = vrot.lane.b32.xlu0 %v713, 127
        %v1767 = vpop.permute.xlu0 %1766
        %1768 = vrot.lane.b32.xlu0 %v715, 127
        %v1769 = vpop.permute.xlu0 %1768
        %1770 = vrot.lane.b32.xlu0 %v723, 127
        %v1771 = vpop.permute.xlu0 %1770
        %1772 = vrot.lane.b32.xlu0 %v731, 127
        %v1773 = vpop.permute.xlu0 %1772
        %1774 = vrot.lane.b32.xlu0 %v730, 127
        %v1775 = vpop.permute.xlu0 %1774
        %1776 = vrot.lane.b32.xlu0 %v732, 127
        %v1777 = vpop.permute.xlu0 %1776
        %1778 = vrot.lane.b32.xlu0 %v740, 127
        %v1779 = vpop.permute.xlu0 %1778
        %1780 = vrot.lane.b32.xlu0 %v748, 127
        %v1781 = vpop.permute.xlu0 %1780
        %1782 = vrot.lane.b32.xlu0 %v747, 127
        %v1783 = vpop.permute.xlu0 %1782
        %1784 = vrot.lane.b32.xlu0 %v749, 127
        %v1785 = vpop.permute.xlu0 %1784
        %1786 = vrot.lane.b32.xlu0 %v757, 127
        %v1787 = vpop.permute.xlu0 %1786
        %1788 = vrot.lane.b32.xlu0 %v765, 127
        %v1789 = vpop.permute.xlu0 %1788
        %1790 = vrot.lane.b32.xlu0 %v764, 127
        %v1791 = vpop.permute.xlu0 %1790
        %1792 = vrot.lane.b32.xlu0 %v766, 127
        %v1793 = vpop.permute.xlu0 %1792
        %1794 = vrot.lane.b32.xlu0 %v774, 127
        %v1795 = vpop.permute.xlu0 %1794
        %1796 = vrot.lane.b32.xlu0 %v782, 127
        %v1797 = vpop.permute.xlu0 %1796
        %1798 = vrot.lane.b32.xlu0 %v781, 127
        %v1799 = vpop.permute.xlu0 %1798
        %1800 = vrot.lane.b32.xlu0 %v783, 127
        %v1801 = vpop.permute.xlu0 %1800
        %1802 = vrot.lane.b32.xlu0 %v791, 127
        %v1803 = vpop.permute.xlu0 %1802
        %1804 = vrot.lane.b32.xlu0 %v799, 127
        %v1805 = vpop.permute.xlu0 %1804
        %1806 = vrot.lane.b32.xlu0 %v798, 127
        %v1807 = vpop.permute.xlu0 %1806
        %1808 = vrot.lane.b32.xlu0 %v800, 127
        %v1809 = vpop.permute.xlu0 %1808
        %1810 = vrot.lane.b32.xlu0 %v808, 127
        %v1811 = vpop.permute.xlu0 %1810
        %1812 = vrot.lane.b32.xlu0 %v816, 127
        %v1813 = vpop.permute.xlu0 %1812
        %1814 = vrot.lane.b32.xlu0 %v815, 127
        %v1815 = vpop.permute.xlu0 %1814
        %1816 = vrot.lane.b32.xlu0 %v817, 127
        %v1817 = vpop.permute.xlu0 %1816
        %1818 = vrot.lane.b32.xlu0 %v825, 127
        %v1819 = vpop.permute.xlu0 %1818
        %1820 = vrot.lane.b32.xlu0 %v833, 127
        %v1821 = vpop.permute.xlu0 %1820
        %1822 = vrot.lane.b32.xlu0 %v832, 127
        %v1823 = vpop.permute.xlu0 %1822
        %1824 = vrot.lane.b32.xlu0 %v834, 127
        %v1825 = vpop.permute.xlu0 %1824
        %1826 = vrot.lane.b32.xlu0 %v842, 127
        %v1827 = vpop.permute.xlu0 %1826
        %1828 = vrot.lane.b32.xlu0 %v850, 127
        %v1829 = vpop.permute.xlu0 %1828
        %1830 = vrot.lane.b32.xlu0 %v849, 127
        %v1831 = vpop.permute.xlu0 %1830
        %1832 = vrot.lane.b32.xlu0 %v851, 127
        %v1833 = vpop.permute.xlu0 %1832
        %1834 = vrot.lane.b32.xlu0 %v859, 127
        %v1835 = vpop.permute.xlu0 %1834
        %1836 = vrot.lane.b32.xlu0 %v867, 127
        %v1837 = vpop.permute.xlu0 %1836
        %1838 = vrot.lane.b32.xlu0 %v866, 127
        %v1839 = vpop.permute.xlu0 %1838
        %1840 = vrot.lane.b32.xlu0 %v868, 127
        %v1841 = vpop.permute.xlu0 %1840
        %1842 = vrot.lane.b32.xlu0 %v876, 127
        %v1843 = vpop.permute.xlu0 %1842
        %1844 = vrot.lane.b32.xlu0 %v884, 127
        %v1845 = vpop.permute.xlu0 %1844
        %1846 = vrot.lane.b32.xlu0 %v883, 127
        %v1847 = vpop.permute.xlu0 %1846
        %1848 = vrot.lane.b32.xlu0 %v885, 127
        %v1849 = vpop.permute.xlu0 %1848
        %1850 = vrot.lane.b32.xlu0 %v893, 127
        %v1851 = vpop.permute.xlu0 %1850
        %1852 = vrot.lane.b32.xlu0 %v901, 127
        %v1853 = vpop.permute.xlu0 %1852
        %1854 = vrot.lane.b32.xlu0 %v900, 127
        %v1855 = vpop.permute.xlu0 %1854
        %1856 = vrot.lane.b32.xlu0 %v902, 127
        %v1857 = vpop.permute.xlu0 %1856
        %1858 = vrot.lane.b32.xlu0 %v622, 127
        %v1859 = vpop.permute.xlu0 %1858
        %1860 = vrot.lane.b32.xlu0 %v903, 127
        %v1861 = vpop.permute.xlu0 %1860
        %1862 = vrot.lane.b32.xlu0 %v629, 127
        %v1863 = vpop.permute.xlu0 %1862
        %1864 = vrot.lane.b32.xlu0 %v630, 127
        %v1865 = vpop.permute.xlu0 %1864
        %vm1866 = vcmask 1039360
        %v1867 = vsel %vm1866, %v1739, %v1741
        %v1868 = vsel %vm1866, %v1741, %v1743
        %v1869 = vsel %vm1866, %v1743, %v1745
        %v1870 = vsel %vm1866, %v1745, %v1747
        %v1871 = vsel %vm1866, %v1747, %v1749
        %v1872 = vsel %vm1866, %v1749, %v1751
        %v1873 = vsel %vm1866, %v1751, %v1753
        %v1874 = vsel %vm1866, %v1753, %v1755
        %v1875 = vsel %vm1866, %v1755, %v1757
        %v1876 = vsel %vm1866, %v1757, %v1759
        %v1877 = vsel %vm1866, %v1759, %v1761
        %v1878 = vsel %vm1866, %v1761, %v1763
        %v1879 = vsel %vm1866, %v1763, %v1765
        %v1880 = vsel %vm1866, %v1765, %v1767
        %v1881 = vsel %vm1866, %v1767, %v1769
        %v1882 = vsel %vm1866, %v1769, %v1771
        %v1883 = vsel %vm1866, %v1771, %v1773
        %v1884 = vsel %vm1866, %v1773, %v1775
        %v1885 = vsel %vm1866, %v1775, %v1777
        %v1886 = vsel %vm1866, %v1777, %v1779
        %v1887 = vsel %vm1866, %v1779, %v1781
        %v1888 = vsel %vm1866, %v1781, %v1783
        %v1889 = vsel %vm1866, %v1783, %v1785
        %v1890 = vsel %vm1866, %v1785, %v1787
        %v1891 = vsel %vm1866, %v1787, %v1789
        %v1892 = vsel %vm1866, %v1789, %v1791
        %v1893 = vsel %vm1866, %v1791, %v1793
        %v1894 = vsel %vm1866, %v1793, %v1795
        %v1895 = vsel %vm1866, %v1795, %v1797
        %v1896 = vsel %vm1866, %v1797, %v1799
        %v1897 = vsel %vm1866, %v1799, %v1801
        %v1898 = vsel %vm1866, %v1801, %v1803
        %v1899 = vsel %vm1866, %v1803, %v1805
        %v1900 = vsel %vm1866, %v1805, %v1807
        %v1901 = vsel %vm1866, %v1807, %v1809
        %v1902 = vsel %vm1866, %v1809, %v1811
        %v1903 = vsel %vm1866, %v1811, %v1813
        %v1904 = vsel %vm1866, %v1813, %v1815
        %v1905 = vsel %vm1866, %v1815, %v1817
        %v1906 = vsel %vm1866, %v1817, %v1819
        %v1907 = vsel %vm1866, %v1819, %v1821
        %v1908 = vsel %vm1866, %v1821, %v1823
        %v1909 = vsel %vm1866, %v1823, %v1825
        %v1910 = vsel %vm1866, %v1825, %v1827
        %v1911 = vsel %vm1866, %v1827, %v1829
        %v1912 = vsel %vm1866, %v1829, %v1831
        %v1913 = vsel %vm1866, %v1831, %v1833
        %v1914 = vsel %vm1866, %v1833, %v1835
        %v1915 = vsel %vm1866, %v1835, %v1837
        %v1916 = vsel %vm1866, %v1837, %v1839
        %v1917 = vsel %vm1866, %v1839, %v1841
        %v1918 = vsel %vm1866, %v1841, %v1843
        %v1919 = vsel %vm1866, %v1843, %v1845
        %v1920 = vsel %vm1866, %v1845, %v1847
        %v1921 = vsel %vm1866, %v1847, %v1849
        %v1922 = vsel %vm1866, %v1849, %v1851
        %v1923 = vsel %vm1866, %v1851, %v1853
        %v1924 = vsel %vm1866, %v1853, %v1855
        %v1925 = vsel %vm1866, %v1855, %v1857
        %v1926 = vsel %vm1866, %v1857, %v1859
        %v1927 = vsel %vm1866, %v1859, %v1861
        %v1928 = vsel %vm1866, %v1861, %v1863
        %v1929 = vsel %vm1866, %v1863, %v1865
        %vm1993 = vcmask 1039360
        %v1996 = vsel %vm1993, %v1865, %v1739
        %v1998 = vsel %vm529, 1, 0
        %v1999 = vsel %vm530, 1, 0
        %v2000 = vsel %vm531, 1, 0
        %v2001 = vsel %vm532, 1, 0
        %v2002 = vsel %vm533, 1, 0
        %v2003 = vsel %vm534, 1, 0
        %v2004 = vsel %vm535, 1, 0
        %v2005 = vsel %vm536, 1, 0
        %v2006 = vsel %vm537, 1, 0
        %v2007 = vsel %vm538, 1, 0
        %v2008 = vsel %vm539, 1, 0
        %v2009 = vsel %vm540, 1, 0
        %v2010 = vsel %vm541, 1, 0
        %v2011 = vsel %vm542, 1, 0
        %v2012 = vsel %vm543, 1, 0
        %v2013 = vsel %vm544, 1, 0
        %v2014 = vsel %vm545, 1, 0
        %v2015 = vsel %vm546, 1, 0
        %v2016 = vsel %vm547, 1, 0
        %v2017 = vsel %vm548, 1, 0
        %v2018 = vsel %vm549, 1, 0
        %v2019 = vsel %vm550, 1, 0
        %v2020 = vsel %vm551, 1, 0
        %v2021 = vsel %vm552, 1, 0
        %v2022 = vsel %vm553, 1, 0
        %v2023 = vsel %vm554, 1, 0
        %v2024 = vsel %vm555, 1, 0
        %v2025 = vsel %vm556, 1, 0
        %v2026 = vsel %vm557, 1, 0
        %v2027 = vsel %vm558, 1, 0
        %v2028 = vsel %vm559, 1, 0
        %v2029 = vsel %vm560, 1, 0
        %v2030 = vsel %vm561, 1, 0
        %v2031 = vsel %vm562, 1, 0
        %v2032 = vsel %vm563, 1, 0
        %v2033 = vsel %vm564, 1, 0
        %v2034 = vsel %vm565, 1, 0
        %v2035 = vsel %vm566, 1, 0
        %v2036 = vsel %vm567, 1, 0
        %v2037 = vsel %vm568, 1, 0
        %v2038 = vsel %vm569, 1, 0
        %v2039 = vsel %vm570, 1, 0
        %v2040 = vsel %vm571, 1, 0
        %v2041 = vsel %vm572, 1, 0
        %v2042 = vsel %vm573, 1, 0
        %v2043 = vsel %vm574, 1, 0
        %v2044 = vsel %vm575, 1, 0
        %v2045 = vsel %vm576, 1, 0
        %v2046 = vsel %vm577, 1, 0
        %v2047 = vsel %vm578, 1, 0
        %v2048 = vsel %vm579, 1, 0
        %v2049 = vsel %vm580, 1, 0
        %v2050 = vsel %vm581, 1, 0
        %v2051 = vsel %vm582, 1, 0
        %v2052 = vsel %vm583, 1, 0
        %v2053 = vsel %vm584, 1, 0
        %v2054 = vsel %vm585, 1, 0
        %v2055 = vsel %vm586, 1, 0
        %v2056 = vsel %vm587, 1, 0
        %v2057 = vsel %vm588, 1, 0
        %v2058 = vsel %vm589, 1, 0
        %v2059 = vsel %vm590, 1, 0
        %v2060 = vsel %vm591, 1, 0
        %v2061 = vsel %vm592, 1, 0
        %vm2062 = vcmp.eq.s32.totalorder %v1998, 1
        %vm2063 = vcmp.eq.s32.totalorder %v1999, 1
        %vm2064 = vcmp.eq.s32.totalorder %v2000, 1
        %vm2065 = vcmp.eq.s32.totalorder %v2001, 1
        %vm2066 = vcmp.eq.s32.totalorder %v2002, 1
        %vm2067 = vcmp.eq.s32.totalorder %v2003, 1
        %vm2068 = vcmp.eq.s32.totalorder %v2004, 1
        %vm2069 = vcmp.eq.s32.totalorder %v2005, 1
        %vm2070 = vcmp.eq.s32.totalorder %v2006, 1
        %vm2071 = vcmp.eq.s32.totalorder %v2007, 1
        %vm2072 = vcmp.eq.s32.totalorder %v2008, 1
        %vm2073 = vcmp.eq.s32.totalorder %v2009, 1
        %vm2074 = vcmp.eq.s32.totalorder %v2010, 1
        %vm2075 = vcmp.eq.s32.totalorder %v2011, 1
        %vm2076 = vcmp.eq.s32.totalorder %v2012, 1
        %vm2077 = vcmp.eq.s32.totalorder %v2013, 1
        %vm2078 = vcmp.eq.s32.totalorder %v2014, 1
        %vm2079 = vcmp.eq.s32.totalorder %v2015, 1
        %vm2080 = vcmp.eq.s32.totalorder %v2016, 1
        %vm2081 = vcmp.eq.s32.totalorder %v2017, 1
        %vm2082 = vcmp.eq.s32.totalorder %v2018, 1
        %vm2083 = vcmp.eq.s32.totalorder %v2019, 1
        %vm2084 = vcmp.eq.s32.totalorder %v2020, 1
        %vm2085 = vcmp.eq.s32.totalorder %v2021, 1
        %vm2086 = vcmp.eq.s32.totalorder %v2022, 1
        %vm2087 = vcmp.eq.s32.totalorder %v2023, 1
        %vm2088 = vcmp.eq.s32.totalorder %v2024, 1
        %vm2089 = vcmp.eq.s32.totalorder %v2025, 1
        %vm2090 = vcmp.eq.s32.totalorder %v2026, 1
        %vm2091 = vcmp.eq.s32.totalorder %v2027, 1
        %vm2092 = vcmp.eq.s32.totalorder %v2028, 1
        %vm2093 = vcmp.eq.s32.totalorder %v2029, 1
        %vm2094 = vcmp.eq.s32.totalorder %v2030, 1
        %vm2095 = vcmp.eq.s32.totalorder %v2031, 1
        %vm2096 = vcmp.eq.s32.totalorder %v2032, 1
        %vm2097 = vcmp.eq.s32.totalorder %v2033, 1
        %vm2098 = vcmp.eq.s32.totalorder %v2034, 1
        %vm2099 = vcmp.eq.s32.totalorder %v2035, 1
        %vm2100 = vcmp.eq.s32.totalorder %v2036, 1
        %vm2101 = vcmp.eq.s32.totalorder %v2037, 1
        %vm2102 = vcmp.eq.s32.totalorder %v2038, 1
        %vm2103 = vcmp.eq.s32.totalorder %v2039, 1
        %vm2104 = vcmp.eq.s32.totalorder %v2040, 1
        %vm2105 = vcmp.eq.s32.totalorder %v2041, 1
        %vm2106 = vcmp.eq.s32.totalorder %v2042, 1
        %vm2107 = vcmp.eq.s32.totalorder %v2043, 1
        %vm2108 = vcmp.eq.s32.totalorder %v2044, 1
        %vm2109 = vcmp.eq.s32.totalorder %v2045, 1
        %vm2110 = vcmp.eq.s32.totalorder %v2046, 1
        %vm2111 = vcmp.eq.s32.totalorder %v2047, 1
        %vm2112 = vcmp.eq.s32.totalorder %v2048, 1
        %vm2113 = vcmp.eq.s32.totalorder %v2049, 1
        %vm2114 = vcmp.eq.s32.totalorder %v2050, 1
        %vm2115 = vcmp.eq.s32.totalorder %v2051, 1
        %vm2116 = vcmp.eq.s32.totalorder %v2052, 1
        %vm2117 = vcmp.eq.s32.totalorder %v2053, 1
        %vm2118 = vcmp.eq.s32.totalorder %v2054, 1
        %vm2119 = vcmp.eq.s32.totalorder %v2055, 1
        %vm2120 = vcmp.eq.s32.totalorder %v2056, 1
        %vm2121 = vcmp.eq.s32.totalorder %v2057, 1
        %vm2122 = vcmp.eq.s32.totalorder %v2058, 1
        %vm2123 = vcmp.eq.s32.totalorder %v2059, 1
        %vm2124 = vcmp.eq.s32.totalorder %v2060, 1
        %vm2125 = vcmp.eq.s32.totalorder %v2061, 1
        %vm2126 = vmpackc.low %vm2063, %vm2062
        %vm2127 = vmpackc.low %vm2065, %vm2064
        %vm2128 = vmpackc.low %vm2067, %vm2066
        %vm2129 = vmpackc.low %vm2069, %vm2068
        %vm2130 = vmpackc.low %vm2071, %vm2070
        %vm2131 = vmpackc.low %vm2073, %vm2072
        %vm2132 = vmpackc.low %vm2075, %vm2074
        %vm2133 = vmpackc.low %vm2077, %vm2076
        %vm2134 = vmpackc.low %vm2079, %vm2078
        %vm2135 = vmpackc.low %vm2081, %vm2080
        %vm2136 = vmpackc.low %vm2083, %vm2082
        %vm2137 = vmpackc.low %vm2085, %vm2084
        %vm2138 = vmpackc.low %vm2087, %vm2086
        %vm2139 = vmpackc.low %vm2089, %vm2088
        %vm2140 = vmpackc.low %vm2091, %vm2090
        %vm2141 = vmpackc.low %vm2093, %vm2092
        %vm2142 = vmpackc.low %vm2095, %vm2094
        %vm2143 = vmpackc.low %vm2097, %vm2096
        %vm2144 = vmpackc.low %vm2099, %vm2098
        %vm2145 = vmpackc.low %vm2101, %vm2100
        %vm2146 = vmpackc.low %vm2103, %vm2102
        %vm2147 = vmpackc.low %vm2105, %vm2104
        %vm2148 = vmpackc.low %vm2107, %vm2106
        %vm2149 = vmpackc.low %vm2109, %vm2108
        %vm2150 = vmpackc.low %vm2111, %vm2110
        %vm2151 = vmpackc.low %vm2113, %vm2112
        %vm2152 = vmpackc.low %vm2115, %vm2114
        %vm2153 = vmpackc.low %vm2117, %vm2116
        %vm2154 = vmpackc.low %vm2119, %vm2118
        %vm2155 = vmpackc.low %vm2121, %vm2120
        %vm2156 = vmpackc.low %vm2123, %vm2122
        %vm2157 = vmpackc.low %vm2125, %vm2124
        %v2158 = vsel %vm2126, 65537, 0
        %v2159 = vsel %vm2127, 65537, 0
        %v2160 = vsel %vm2128, 65537, 0
        %v2161 = vsel %vm2129, 65537, 0
        %v2162 = vsel %vm2130, 65537, 0
        %v2163 = vsel %vm2131, 65537, 0
        %v2164 = vsel %vm2132, 65537, 0
        %v2165 = vsel %vm2133, 65537, 0
        %v2166 = vsel %vm2134, 65537, 0
        %v2167 = vsel %vm2135, 65537, 0
        %v2168 = vsel %vm2136, 65537, 0
        %v2169 = vsel %vm2137, 65537, 0
        %v2170 = vsel %vm2138, 65537, 0
        %v2171 = vsel %vm2139, 65537, 0
        %v2172 = vsel %vm2140, 65537, 0
        %v2173 = vsel %vm2141, 65537, 0
        %v2174 = vsel %vm2142, 65537, 0
        %v2175 = vsel %vm2143, 65537, 0
        %v2176 = vsel %vm2144, 65537, 0
        %v2177 = vsel %vm2145, 65537, 0
        %v2178 = vsel %vm2146, 65537, 0
        %v2179 = vsel %vm2147, 65537, 0
        %v2180 = vsel %vm2148, 65537, 0
        %v2181 = vsel %vm2149, 65537, 0
        %v2182 = vsel %vm2150, 65537, 0
        %v2183 = vsel %vm2151, 65537, 0
        %v2184 = vsel %vm2152, 65537, 0
        %v2185 = vsel %vm2153, 65537, 0
        %v2186 = vsel %vm2154, 65537, 0
        %v2187 = vsel %vm2155, 65537, 0
        %v2188 = vsel %vm2156, 65537, 0
        %v2189 = vsel %vm2157, 65537, 0
        %v2190 = vlaneseq
        %v2191 = vshrl.u32 %v2190, 7
        %v2192 = vsub.s32 0, %v2191
        %v2193 = vrot.slane %v2158, %v2192
        %v2194 = vlaneseq
        %v2195 = vshrl.u32 %v2194, 7
        %v2196 = vsub.s32 4, %v2195
        %v2197 = vrot.slane %v2158, %v2196
        %v2198 = vlaneseq
        %v2199 = vshrl.u32 %v2198, 7
        %v2200 = vsub.s32 0, %v2199
        %v2201 = vrot.slane %v2159, %v2200
        %v2202 = vlaneseq
        %v2203 = vshrl.u32 %v2202, 7
        %v2204 = vsub.s32 4, %v2203
        %v2205 = vrot.slane %v2159, %v2204
        %v2206 = vlaneseq
        %v2207 = vshrl.u32 %v2206, 7
        %v2208 = vsub.s32 0, %v2207
        %v2209 = vrot.slane %v2160, %v2208
        %v2210 = vlaneseq
        %v2211 = vshrl.u32 %v2210, 7
        %v2212 = vsub.s32 4, %v2211
        %v2213 = vrot.slane %v2160, %v2212
        %v2214 = vlaneseq
        %v2215 = vshrl.u32 %v2214, 7
        %v2216 = vsub.s32 0, %v2215
        %v2217 = vrot.slane %v2161, %v2216
        %v2218 = vlaneseq
        %v2219 = vshrl.u32 %v2218, 7
        %v2220 = vsub.s32 4, %v2219
        %v2221 = vrot.slane %v2161, %v2220
        %v2222 = vlaneseq
        %v2223 = vshrl.u32 %v2222, 7
        %v2224 = vsub.s32 0, %v2223
        %v2225 = vrot.slane %v2162, %v2224
        %v2226 = vlaneseq
        %v2227 = vshrl.u32 %v2226, 7
        %v2228 = vsub.s32 4, %v2227
        %v2229 = vrot.slane %v2162, %v2228
        %v2230 = vlaneseq
        %v2231 = vshrl.u32 %v2230, 7
        %v2232 = vsub.s32 0, %v2231
        %v2233 = vrot.slane %v2163, %v2232
        %v2234 = vlaneseq
        %v2235 = vshrl.u32 %v2234, 7
        %v2236 = vsub.s32 4, %v2235
        %v2237 = vrot.slane %v2163, %v2236
        %v2238 = vlaneseq
        %v2239 = vshrl.u32 %v2238, 7
        %v2240 = vsub.s32 0, %v2239
        %v2241 = vrot.slane %v2164, %v2240
        %v2242 = vlaneseq
        %v2243 = vshrl.u32 %v2242, 7
        %v2244 = vsub.s32 4, %v2243
        %v2245 = vrot.slane %v2164, %v2244
        %v2246 = vlaneseq
        %v2247 = vshrl.u32 %v2246, 7
        %v2248 = vsub.s32 0, %v2247
        %v2249 = vrot.slane %v2165, %v2248
        %v2250 = vlaneseq
        %v2251 = vshrl.u32 %v2250, 7
        %v2252 = vsub.s32 4, %v2251
        %v2253 = vrot.slane %v2165, %v2252
        %v2254 = vlaneseq
        %v2255 = vshrl.u32 %v2254, 7
        %v2256 = vsub.s32 0, %v2255
        %v2257 = vrot.slane %v2166, %v2256
        %v2258 = vlaneseq
        %v2259 = vshrl.u32 %v2258, 7
        %v2260 = vsub.s32 4, %v2259
        %v2261 = vrot.slane %v2166, %v2260
        %v2262 = vlaneseq
        %v2263 = vshrl.u32 %v2262, 7
        %v2264 = vsub.s32 0, %v2263
        %v2265 = vrot.slane %v2167, %v2264
        %v2266 = vlaneseq
        %v2267 = vshrl.u32 %v2266, 7
        %v2268 = vsub.s32 4, %v2267
        %v2269 = vrot.slane %v2167, %v2268
        %v2270 = vlaneseq
        %v2271 = vshrl.u32 %v2270, 7
        %v2272 = vsub.s32 0, %v2271
        %v2273 = vrot.slane %v2168, %v2272
        %v2274 = vlaneseq
        %v2275 = vshrl.u32 %v2274, 7
        %v2276 = vsub.s32 4, %v2275
        %v2277 = vrot.slane %v2168, %v2276
        %v2278 = vlaneseq
        %v2279 = vshrl.u32 %v2278, 7
        %v2280 = vsub.s32 0, %v2279
        %v2281 = vrot.slane %v2169, %v2280
        %v2282 = vlaneseq
        %v2283 = vshrl.u32 %v2282, 7
        %v2284 = vsub.s32 4, %v2283
        %v2285 = vrot.slane %v2169, %v2284
        %v2286 = vlaneseq
        %v2287 = vshrl.u32 %v2286, 7
        %v2288 = vsub.s32 0, %v2287
        %v2289 = vrot.slane %v2170, %v2288
        %v2290 = vlaneseq
        %v2291 = vshrl.u32 %v2290, 7
        %v2292 = vsub.s32 4, %v2291
        %v2293 = vrot.slane %v2170, %v2292
        %v2294 = vlaneseq
        %v2295 = vshrl.u32 %v2294, 7
        %v2296 = vsub.s32 0, %v2295
        %v2297 = vrot.slane %v2171, %v2296
        %v2298 = vlaneseq
        %v2299 = vshrl.u32 %v2298, 7
        %v2300 = vsub.s32 4, %v2299
        %v2301 = vrot.slane %v2171, %v2300
        %v2302 = vlaneseq
        %v2303 = vshrl.u32 %v2302, 7
        %v2304 = vsub.s32 0, %v2303
        %v2305 = vrot.slane %v2172, %v2304
        %v2306 = vlaneseq
        %v2307 = vshrl.u32 %v2306, 7
        %v2308 = vsub.s32 4, %v2307
        %v2309 = vrot.slane %v2172, %v2308
        %v2310 = vlaneseq
        %v2311 = vshrl.u32 %v2310, 7
        %v2312 = vsub.s32 0, %v2311
        %v2313 = vrot.slane %v2173, %v2312
        %v2314 = vlaneseq
        %v2315 = vshrl.u32 %v2314, 7
        %v2316 = vsub.s32 4, %v2315
        %v2317 = vrot.slane %v2173, %v2316
        %v2318 = vlaneseq
        %v2319 = vshrl.u32 %v2318, 7
        %v2320 = vsub.s32 0, %v2319
        %v2321 = vrot.slane %v2174, %v2320
        %v2322 = vlaneseq
        %v2323 = vshrl.u32 %v2322, 7
        %v2324 = vsub.s32 4, %v2323
        %v2325 = vrot.slane %v2174, %v2324
        %v2326 = vlaneseq
        %v2327 = vshrl.u32 %v2326, 7
        %v2328 = vsub.s32 0, %v2327
        %v2329 = vrot.slane %v2175, %v2328
        %v2330 = vlaneseq
        %v2331 = vshrl.u32 %v2330, 7
        %v2332 = vsub.s32 4, %v2331
        %v2333 = vrot.slane %v2175, %v2332
        %v2334 = vlaneseq
        %v2335 = vshrl.u32 %v2334, 7
        %v2336 = vsub.s32 0, %v2335
        %v2337 = vrot.slane %v2176, %v2336
        %v2338 = vlaneseq
        %v2339 = vshrl.u32 %v2338, 7
        %v2340 = vsub.s32 4, %v2339
        %v2341 = vrot.slane %v2176, %v2340
        %v2342 = vlaneseq
        %v2343 = vshrl.u32 %v2342, 7
        %v2344 = vsub.s32 0, %v2343
        %v2345 = vrot.slane %v2177, %v2344
        %v2346 = vlaneseq
        %v2347 = vshrl.u32 %v2346, 7
        %v2348 = vsub.s32 4, %v2347
        %v2349 = vrot.slane %v2177, %v2348
        %v2350 = vlaneseq
        %v2351 = vshrl.u32 %v2350, 7
        %v2352 = vsub.s32 0, %v2351
        %v2353 = vrot.slane %v2178, %v2352
        %v2354 = vlaneseq
        %v2355 = vshrl.u32 %v2354, 7
        %v2356 = vsub.s32 4, %v2355
        %v2357 = vrot.slane %v2178, %v2356
        %v2358 = vlaneseq
        %v2359 = vshrl.u32 %v2358, 7
        %v2360 = vsub.s32 0, %v2359
        %v2361 = vrot.slane %v2179, %v2360
        %v2362 = vlaneseq
        %v2363 = vshrl.u32 %v2362, 7
        %v2364 = vsub.s32 4, %v2363
        %v2365 = vrot.slane %v2179, %v2364
        %v2366 = vlaneseq
        %v2367 = vshrl.u32 %v2366, 7
        %v2368 = vsub.s32 0, %v2367
        %v2369 = vrot.slane %v2180, %v2368
        %v2370 = vlaneseq
        %v2371 = vshrl.u32 %v2370, 7
        %v2372 = vsub.s32 4, %v2371
        %v2373 = vrot.slane %v2180, %v2372
        %v2374 = vlaneseq
        %v2375 = vshrl.u32 %v2374, 7
        %v2376 = vsub.s32 0, %v2375
        %v2377 = vrot.slane %v2181, %v2376
        %v2378 = vlaneseq
        %v2379 = vshrl.u32 %v2378, 7
        %v2380 = vsub.s32 4, %v2379
        %v2381 = vrot.slane %v2181, %v2380
        %v2382 = vlaneseq
        %v2383 = vshrl.u32 %v2382, 7
        %v2384 = vsub.s32 0, %v2383
        %v2385 = vrot.slane %v2182, %v2384
        %v2386 = vlaneseq
        %v2387 = vshrl.u32 %v2386, 7
        %v2388 = vsub.s32 4, %v2387
        %v2389 = vrot.slane %v2182, %v2388
        %v2390 = vlaneseq
        %v2391 = vshrl.u32 %v2390, 7
        %v2392 = vsub.s32 0, %v2391
        %v2393 = vrot.slane %v2183, %v2392
        %v2394 = vlaneseq
        %v2395 = vshrl.u32 %v2394, 7
        %v2396 = vsub.s32 4, %v2395
        %v2397 = vrot.slane %v2183, %v2396
        %v2398 = vlaneseq
        %v2399 = vshrl.u32 %v2398, 7
        %v2400 = vsub.s32 0, %v2399
        %v2401 = vrot.slane %v2184, %v2400
        %v2402 = vlaneseq
        %v2403 = vshrl.u32 %v2402, 7
        %v2404 = vsub.s32 4, %v2403
        %v2405 = vrot.slane %v2184, %v2404
        %v2406 = vlaneseq
        %v2407 = vshrl.u32 %v2406, 7
        %v2408 = vsub.s32 0, %v2407
        %v2409 = vrot.slane %v2185, %v2408
        %v2410 = vlaneseq
        %v2411 = vshrl.u32 %v2410, 7
        %v2412 = vsub.s32 4, %v2411
        %v2413 = vrot.slane %v2185, %v2412
        %v2414 = vlaneseq
        %v2415 = vshrl.u32 %v2414, 7
        %v2416 = vsub.s32 0, %v2415
        %v2417 = vrot.slane %v2186, %v2416
        %v2418 = vlaneseq
        %v2419 = vshrl.u32 %v2418, 7
        %v2420 = vsub.s32 4, %v2419
        %v2421 = vrot.slane %v2186, %v2420
        %v2422 = vlaneseq
        %v2423 = vshrl.u32 %v2422, 7
        %v2424 = vsub.s32 0, %v2423
        %v2425 = vrot.slane %v2187, %v2424
        %v2426 = vlaneseq
        %v2427 = vshrl.u32 %v2426, 7
        %v2428 = vsub.s32 4, %v2427
        %v2429 = vrot.slane %v2187, %v2428
        %v2430 = vlaneseq
        %v2431 = vshrl.u32 %v2430, 7
        %v2432 = vsub.s32 0, %v2431
        %v2433 = vrot.slane %v2188, %v2432
        %v2434 = vlaneseq
        %v2435 = vshrl.u32 %v2434, 7
        %v2436 = vsub.s32 4, %v2435
        %v2437 = vrot.slane %v2188, %v2436
        %v2438 = vlaneseq
        %v2439 = vshrl.u32 %v2438, 7
        %v2440 = vsub.s32 0, %v2439
        %v2441 = vrot.slane %v2189, %v2440
        %v2442 = vlaneseq
        %v2443 = vshrl.u32 %v2442, 7
        %v2444 = vsub.s32 4, %v2443
        %v2445 = vrot.slane %v2189, %v2444
        %vm2446 = vcmp.ne.s16.totalorder %v2193, 0
        %vm2447 = vcmp.ne.s16.totalorder %v2197, 0
        %vm2448 = vcmp.ne.s16.totalorder %v2201, 0
        %vm2449 = vcmp.ne.s16.totalorder %v2205, 0
        %vm2450 = vcmp.ne.s16.totalorder %v2209, 0
        %vm2451 = vcmp.ne.s16.totalorder %v2213, 0
        %vm2452 = vcmp.ne.s16.totalorder %v2217, 0
        %vm2453 = vcmp.ne.s16.totalorder %v2221, 0
        %vm2454 = vcmp.ne.s16.totalorder %v2225, 0
        %vm2455 = vcmp.ne.s16.totalorder %v2229, 0
        %vm2456 = vcmp.ne.s16.totalorder %v2233, 0
        %vm2457 = vcmp.ne.s16.totalorder %v2237, 0
        %vm2458 = vcmp.ne.s16.totalorder %v2241, 0
        %vm2459 = vcmp.ne.s16.totalorder %v2245, 0
        %vm2460 = vcmp.ne.s16.totalorder %v2249, 0
        %vm2461 = vcmp.ne.s16.totalorder %v2253, 0
        %vm2462 = vcmp.ne.s16.totalorder %v2257, 0
        %vm2463 = vcmp.ne.s16.totalorder %v2261, 0
        %vm2464 = vcmp.ne.s16.totalorder %v2265, 0
        %vm2465 = vcmp.ne.s16.totalorder %v2269, 0
        %vm2466 = vcmp.ne.s16.totalorder %v2273, 0
        %vm2467 = vcmp.ne.s16.totalorder %v2277, 0
        %vm2468 = vcmp.ne.s16.totalorder %v2281, 0
        %vm2469 = vcmp.ne.s16.totalorder %v2285, 0
        %vm2470 = vcmp.ne.s16.totalorder %v2289, 0
        %vm2471 = vcmp.ne.s16.totalorder %v2293, 0
        %vm2472 = vcmp.ne.s16.totalorder %v2297, 0
        %vm2473 = vcmp.ne.s16.totalorder %v2301, 0
        %vm2474 = vcmp.ne.s16.totalorder %v2305, 0
        %vm2475 = vcmp.ne.s16.totalorder %v2309, 0
        %vm2476 = vcmp.ne.s16.totalorder %v2313, 0
        %vm2477 = vcmp.ne.s16.totalorder %v2317, 0
        %vm2478 = vcmp.ne.s16.totalorder %v2321, 0
        %vm2479 = vcmp.ne.s16.totalorder %v2325, 0
        %vm2480 = vcmp.ne.s16.totalorder %v2329, 0
        %vm2481 = vcmp.ne.s16.totalorder %v2333, 0
        %vm2482 = vcmp.ne.s16.totalorder %v2337, 0
        %vm2483 = vcmp.ne.s16.totalorder %v2341, 0
        %vm2484 = vcmp.ne.s16.totalorder %v2345, 0
        %vm2485 = vcmp.ne.s16.totalorder %v2349, 0
        %vm2486 = vcmp.ne.s16.totalorder %v2353, 0
        %vm2487 = vcmp.ne.s16.totalorder %v2357, 0
        %vm2488 = vcmp.ne.s16.totalorder %v2361, 0
        %vm2489 = vcmp.ne.s16.totalorder %v2365, 0
        %vm2490 = vcmp.ne.s16.totalorder %v2369, 0
        %vm2491 = vcmp.ne.s16.totalorder %v2373, 0
        %vm2492 = vcmp.ne.s16.totalorder %v2377, 0
        %vm2493 = vcmp.ne.s16.totalorder %v2381, 0
        %vm2494 = vcmp.ne.s16.totalorder %v2385, 0
        %vm2495 = vcmp.ne.s16.totalorder %v2389, 0
        %vm2496 = vcmp.ne.s16.totalorder %v2393, 0
        %vm2497 = vcmp.ne.s16.totalorder %v2397, 0
        %vm2498 = vcmp.ne.s16.totalorder %v2401, 0
        %vm2499 = vcmp.ne.s16.totalorder %v2405, 0
        %vm2500 = vcmp.ne.s16.totalorder %v2409, 0
        %vm2501 = vcmp.ne.s16.totalorder %v2413, 0
        %vm2502 = vcmp.ne.s16.totalorder %v2417, 0
        %vm2503 = vcmp.ne.s16.totalorder %v2421, 0
        %vm2504 = vcmp.ne.s16.totalorder %v2425, 0
        %vm2505 = vcmp.ne.s16.totalorder %v2429, 0
        %vm2506 = vcmp.ne.s16.totalorder %v2433, 0
        %vm2507 = vcmp.ne.s16.totalorder %v2437, 0
        %vm2508 = vcmp.ne.s16.totalorder %v2441, 0
        %vm2509 = vcmp.ne.s16.totalorder %v2445, 0
        %v2510 = vsel %vm2446, %v1867, 0
        %v2511 = vsel %vm2447, %v1868, 0
        %v2512 = vsel %vm2448, %v1869, 0
        %v2513 = vsel %vm2449, %v1870, 0
        %v2514 = vsel %vm2450, %v1871, 0
        %v2515 = vsel %vm2451, %v1872, 0
        %v2516 = vsel %vm2452, %v1873, 0
        %v2517 = vsel %vm2453, %v1874, 0
        %v2518 = vsel %vm2454, %v1875, 0
        %v2519 = vsel %vm2455, %v1876, 0
        %v2520 = vsel %vm2456, %v1877, 0
        %v2521 = vsel %vm2457, %v1878, 0
        %v2522 = vsel %vm2458, %v1879, 0
        %v2523 = vsel %vm2459, %v1880, 0
        %v2524 = vsel %vm2460, %v1881, 0
        %v2525 = vsel %vm2461, %v1882, 0
        %v2526 = vsel %vm2462, %v1883, 0
        %v2527 = vsel %vm2463, %v1884, 0
        %v2528 = vsel %vm2464, %v1885, 0
        %v2529 = vsel %vm2465, %v1886, 0
        %v2530 = vsel %vm2466, %v1887, 0
        %v2531 = vsel %vm2467, %v1888, 0
        %v2532 = vsel %vm2468, %v1889, 0
        %v2533 = vsel %vm2469, %v1890, 0
        %v2534 = vsel %vm2470, %v1891, 0
        %v2535 = vsel %vm2471, %v1892, 0
        %v2536 = vsel %vm2472, %v1893, 0
        %v2537 = vsel %vm2473, %v1894, 0
        %v2538 = vsel %vm2474, %v1895, 0
        %v2539 = vsel %vm2475, %v1896, 0
        %v2540 = vsel %vm2476, %v1897, 0
        %v2541 = vsel %vm2477, %v1898, 0
        %v2542 = vsel %vm2478, %v1899, 0
        %v2543 = vsel %vm2479, %v1900, 0
        %v2544 = vsel %vm2480, %v1901, 0
        %v2545 = vsel %vm2481, %v1902, 0
        %v2546 = vsel %vm2482, %v1903, 0
        %v2547 = vsel %vm2483, %v1904, 0
        %v2548 = vsel %vm2484, %v1905, 0
        %v2549 = vsel %vm2485, %v1906, 0
        %v2550 = vsel %vm2486, %v1907, 0
        %v2551 = vsel %vm2487, %v1908, 0
        %v2552 = vsel %vm2488, %v1909, 0
        %v2553 = vsel %vm2489, %v1910, 0
        %v2554 = vsel %vm2490, %v1911, 0
        %v2555 = vsel %vm2491, %v1912, 0
        %v2556 = vsel %vm2492, %v1913, 0
        %v2557 = vsel %vm2493, %v1914, 0
        %v2558 = vsel %vm2494, %v1915, 0
        %v2559 = vsel %vm2495, %v1916, 0
        %v2560 = vsel %vm2496, %v1917, 0
        %v2561 = vsel %vm2497, %v1918, 0
        %v2562 = vsel %vm2498, %v1919, 0
        %v2563 = vsel %vm2499, %v1920, 0
        %v2564 = vsel %vm2500, %v1921, 0
        %v2565 = vsel %vm2501, %v1922, 0
        %v2566 = vsel %vm2502, %v1923, 0
        %v2567 = vsel %vm2503, %v1924, 0
        %v2568 = vsel %vm2504, %v1925, 0
        %v2569 = vsel %vm2505, %v1926, 0
        %v2570 = vsel %vm2506, %v1927, 0
        %v2571 = vsel %vm2507, %v1928, 0
        %v2572 = vsel %vm2508, %v1929, 0
        %v2573 = vsel %vm2509, %v1996, 0
        %s2574 = sadd.s32 %s593, 128
        %s2575 = sshra.s32 %s2574, 7
        %s2576 = sand.u32 %s2574, 127
        %s2577 = smul.addr %s2575, 2
        %s2578 = scalar_lea.vmem [#allocation2], %s2577
        %v2579 = vld [vmem:[%s2578] sm:$0xff]
        %v2580 = vld [vmem:[%s2578 + $0x8] sm:$0xff]
        %v2581 = vld [vmem:[%s2578 + $0x10] sm:$0xff]
        %v2582 = vld [vmem:[%s2578 + $0x18] sm:$0xff]
        %v2583 = vld [vmem:[%s2578 + $0x20] sm:$0xff]
        %v2584 = vld [vmem:[%s2578 + $0x28] sm:$0xff]
        %v2585 = vld [vmem:[%s2578 + $0x30] sm:$0xff]
        %v2586 = vld [vmem:[%s2578 + $0x38] sm:$0xff]
        %v2587 = vld [vmem:[%s2578 + $0x40] sm:$0xff]
        %v2588 = vld [vmem:[%s2578 + $0x48] sm:$0xff]
        %v2589 = vld [vmem:[%s2578 + $0x50] sm:$0xff]
        %v2590 = vld [vmem:[%s2578 + $0x58] sm:$0xff]
        %v2591 = vld [vmem:[%s2578 + $0x60] sm:$0xff]
        %v2592 = vld [vmem:[%s2578 + $0x68] sm:$0xff]
        %v2593 = vld [vmem:[%s2578 + $0x70] sm:$0xff]
        %v2594 = vld [vmem:[%s2578 + $0x78] sm:$0xff]
        %v2596 = vcombine.high %v2594, %v2594
        %v2598 = vunpack.c.l.s4 1983009808
        %v2599 = vunpack.c.0.s8 %v2598
        %v2600 = vlaneseq
        %v2601 = vshrl.u32 %v2600, 7
        %v2602 = vsub.s32 %v2599, %v2601
        %v2603 = vrot.slane %v2594, %v2602
        %v2605 = vunpack.c.l.s4 1983009808
        %v2606 = vunpack.c.0.s8 %v2605
        %v2607 = vlaneseq
        %v2608 = vshrl.u32 %v2607, 7
        %v2609 = vsub.s32 %v2606, %v2608
        %v2610 = vrot.slane %v2596, %v2609
        %v2611 = vcombine.high %v2610, %v2610
        %2612 = vrot.lane.b32.xlu0 %v2611, 1
        %v2613 = vpop.permute.xlu0 %2612
        %v2629 = vcombine.high %v2579, %v2579
        %v2631 = vunpack.c.l.s4 1983009808
        %v2632 = vunpack.c.0.s8 %v2631
        %v2633 = vlaneseq
        %v2634 = vshrl.u32 %v2633, 7
        %v2635 = vsub.s32 %v2632, %v2634
        %v2636 = vrot.slane %v2579, %v2635
        %v2638 = vunpack.c.l.s4 1983009808
        %v2639 = vunpack.c.0.s8 %v2638
        %v2640 = vlaneseq
        %v2641 = vshrl.u32 %v2640, 7
        %v2642 = vsub.s32 %v2639, %v2641
        %v2643 = vrot.slane %v2629, %v2642
        %v2644 = vcombine.high %v2636, %v2636
        %v2645 = vcombine.high %v2643, %v2643
        %v2646 = vcombine.high %v2580, %v2580
        %v2648 = vunpack.c.l.s4 1983009808
        %v2649 = vunpack.c.0.s8 %v2648
        %v2650 = vlaneseq
        %v2651 = vshrl.u32 %v2650, 7
        %v2652 = vsub.s32 %v2649, %v2651
        %v2653 = vrot.slane %v2580, %v2652
        %v2655 = vunpack.c.l.s4 1983009808
        %v2656 = vunpack.c.0.s8 %v2655
        %v2657 = vlaneseq
        %v2658 = vshrl.u32 %v2657, 7
        %v2659 = vsub.s32 %v2656, %v2658
        %v2660 = vrot.slane %v2646, %v2659
        %v2661 = vcombine.high %v2653, %v2653
        %v2662 = vcombine.high %v2660, %v2660
        %v2663 = vcombine.high %v2581, %v2581
        %v2665 = vunpack.c.l.s4 1983009808
        %v2666 = vunpack.c.0.s8 %v2665
        %v2667 = vlaneseq
        %v2668 = vshrl.u32 %v2667, 7
        %v2669 = vsub.s32 %v2666, %v2668
        %v2670 = vrot.slane %v2581, %v2669
        %v2672 = vunpack.c.l.s4 1983009808
        %v2673 = vunpack.c.0.s8 %v2672
        %v2674 = vlaneseq
        %v2675 = vshrl.u32 %v2674, 7
        %v2676 = vsub.s32 %v2673, %v2675
        %v2677 = vrot.slane %v2663, %v2676
        %v2678 = vcombine.high %v2670, %v2670
        %v2679 = vcombine.high %v2677, %v2677
        %v2680 = vcombine.high %v2582, %v2582
        %v2682 = vunpack.c.l.s4 1983009808
        %v2683 = vunpack.c.0.s8 %v2682
        %v2684 = vlaneseq
        %v2685 = vshrl.u32 %v2684, 7
        %v2686 = vsub.s32 %v2683, %v2685
        %v2687 = vrot.slane %v2582, %v2686
        %v2689 = vunpack.c.l.s4 1983009808
        %v2690 = vunpack.c.0.s8 %v2689
        %v2691 = vlaneseq
        %v2692 = vshrl.u32 %v2691, 7
        %v2693 = vsub.s32 %v2690, %v2692
        %v2694 = vrot.slane %v2680, %v2693
        %v2695 = vcombine.high %v2687, %v2687
        %v2696 = vcombine.high %v2694, %v2694
        %v2697 = vcombine.high %v2583, %v2583
        %v2699 = vunpack.c.l.s4 1983009808
        %v2700 = vunpack.c.0.s8 %v2699
        %v2701 = vlaneseq
        %v2702 = vshrl.u32 %v2701, 7
        %v2703 = vsub.s32 %v2700, %v2702
        %v2704 = vrot.slane %v2583, %v2703
        %v2706 = vunpack.c.l.s4 1983009808
        %v2707 = vunpack.c.0.s8 %v2706
        %v2708 = vlaneseq
        %v2709 = vshrl.u32 %v2708, 7
        %v2710 = vsub.s32 %v2707, %v2709
        %v2711 = vrot.slane %v2697, %v2710
        %v2712 = vcombine.high %v2704, %v2704
        %v2713 = vcombine.high %v2711, %v2711
        %v2714 = vcombine.high %v2584, %v2584
        %v2716 = vunpack.c.l.s4 1983009808
        %v2717 = vunpack.c.0.s8 %v2716
        %v2718 = vlaneseq
        %v2719 = vshrl.u32 %v2718, 7
        %v2720 = vsub.s32 %v2717, %v2719
        %v2721 = vrot.slane %v2584, %v2720
        %v2723 = vunpack.c.l.s4 1983009808
        %v2724 = vunpack.c.0.s8 %v2723
        %v2725 = vlaneseq
        %v2726 = vshrl.u32 %v2725, 7
        %v2727 = vsub.s32 %v2724, %v2726
        %v2728 = vrot.slane %v2714, %v2727
        %v2729 = vcombine.high %v2721, %v2721
        %v2730 = vcombine.high %v2728, %v2728
        %v2731 = vcombine.high %v2585, %v2585
        %v2733 = vunpack.c.l.s4 1983009808
        %v2734 = vunpack.c.0.s8 %v2733
        %v2735 = vlaneseq
        %v2736 = vshrl.u32 %v2735, 7
        %v2737 = vsub.s32 %v2734, %v2736
        %v2738 = vrot.slane %v2585, %v2737
        %v2740 = vunpack.c.l.s4 1983009808
        %v2741 = vunpack.c.0.s8 %v2740
        %v2742 = vlaneseq
        %v2743 = vshrl.u32 %v2742, 7
        %v2744 = vsub.s32 %v2741, %v2743
        %v2745 = vrot.slane %v2731, %v2744
        %v2746 = vcombine.high %v2738, %v2738
        %v2747 = vcombine.high %v2745, %v2745
        %v2748 = vcombine.high %v2586, %v2586
        %v2750 = vunpack.c.l.s4 1983009808
        %v2751 = vunpack.c.0.s8 %v2750
        %v2752 = vlaneseq
        %v2753 = vshrl.u32 %v2752, 7
        %v2754 = vsub.s32 %v2751, %v2753
        %v2755 = vrot.slane %v2586, %v2754
        %v2757 = vunpack.c.l.s4 1983009808
        %v2758 = vunpack.c.0.s8 %v2757
        %v2759 = vlaneseq
        %v2760 = vshrl.u32 %v2759, 7
        %v2761 = vsub.s32 %v2758, %v2760
        %v2762 = vrot.slane %v2748, %v2761
        %v2763 = vcombine.high %v2755, %v2755
        %v2764 = vcombine.high %v2762, %v2762
        %v2765 = vcombine.high %v2587, %v2587
        %v2767 = vunpack.c.l.s4 1983009808
        %v2768 = vunpack.c.0.s8 %v2767
        %v2769 = vlaneseq
        %v2770 = vshrl.u32 %v2769, 7
        %v2771 = vsub.s32 %v2768, %v2770
        %v2772 = vrot.slane %v2587, %v2771
        %v2774 = vunpack.c.l.s4 1983009808
        %v2775 = vunpack.c.0.s8 %v2774
        %v2776 = vlaneseq
        %v2777 = vshrl.u32 %v2776, 7
        %v2778 = vsub.s32 %v2775, %v2777
        %v2779 = vrot.slane %v2765, %v2778
        %v2780 = vcombine.high %v2772, %v2772
        %v2781 = vcombine.high %v2779, %v2779
        %v2782 = vcombine.high %v2588, %v2588
        %v2784 = vunpack.c.l.s4 1983009808
        %v2785 = vunpack.c.0.s8 %v2784
        %v2786 = vlaneseq
        %v2787 = vshrl.u32 %v2786, 7
        %v2788 = vsub.s32 %v2785, %v2787
        %v2789 = vrot.slane %v2588, %v2788
        %v2791 = vunpack.c.l.s4 1983009808
        %v2792 = vunpack.c.0.s8 %v2791
        %v2793 = vlaneseq
        %v2794 = vshrl.u32 %v2793, 7
        %v2795 = vsub.s32 %v2792, %v2794
        %v2796 = vrot.slane %v2782, %v2795
        %v2797 = vcombine.high %v2789, %v2789
        %v2798 = vcombine.high %v2796, %v2796
        %v2799 = vcombine.high %v2589, %v2589
        %v2801 = vunpack.c.l.s4 1983009808
        %v2802 = vunpack.c.0.s8 %v2801
        %v2803 = vlaneseq
        %v2804 = vshrl.u32 %v2803, 7
        %v2805 = vsub.s32 %v2802, %v2804
        %v2806 = vrot.slane %v2589, %v2805
        %v2808 = vunpack.c.l.s4 1983009808
        %v2809 = vunpack.c.0.s8 %v2808
        %v2810 = vlaneseq
        %v2811 = vshrl.u32 %v2810, 7
        %v2812 = vsub.s32 %v2809, %v2811
        %v2813 = vrot.slane %v2799, %v2812
        %v2814 = vcombine.high %v2806, %v2806
        %v2815 = vcombine.high %v2813, %v2813
        %v2816 = vcombine.high %v2590, %v2590
        %v2818 = vunpack.c.l.s4 1983009808
        %v2819 = vunpack.c.0.s8 %v2818
        %v2820 = vlaneseq
        %v2821 = vshrl.u32 %v2820, 7
        %v2822 = vsub.s32 %v2819, %v2821
        %v2823 = vrot.slane %v2590, %v2822
        %v2825 = vunpack.c.l.s4 1983009808
        %v2826 = vunpack.c.0.s8 %v2825
        %v2827 = vlaneseq
        %v2828 = vshrl.u32 %v2827, 7
        %v2829 = vsub.s32 %v2826, %v2828
        %v2830 = vrot.slane %v2816, %v2829
        %v2831 = vcombine.high %v2823, %v2823
        %v2832 = vcombine.high %v2830, %v2830
        %v2833 = vcombine.high %v2591, %v2591
        %v2835 = vunpack.c.l.s4 1983009808
        %v2836 = vunpack.c.0.s8 %v2835
        %v2837 = vlaneseq
        %v2838 = vshrl.u32 %v2837, 7
        %v2839 = vsub.s32 %v2836, %v2838
        %v2840 = vrot.slane %v2591, %v2839
        %v2842 = vunpack.c.l.s4 1983009808
        %v2843 = vunpack.c.0.s8 %v2842
        %v2844 = vlaneseq
        %v2845 = vshrl.u32 %v2844, 7
        %v2846 = vsub.s32 %v2843, %v2845
        %v2847 = vrot.slane %v2833, %v2846
        %v2848 = vcombine.high %v2840, %v2840
        %v2849 = vcombine.high %v2847, %v2847
        %v2850 = vcombine.high %v2592, %v2592
        %v2852 = vunpack.c.l.s4 1983009808
        %v2853 = vunpack.c.0.s8 %v2852
        %v2854 = vlaneseq
        %v2855 = vshrl.u32 %v2854, 7
        %v2856 = vsub.s32 %v2853, %v2855
        %v2857 = vrot.slane %v2592, %v2856
        %v2859 = vunpack.c.l.s4 1983009808
        %v2860 = vunpack.c.0.s8 %v2859
        %v2861 = vlaneseq
        %v2862 = vshrl.u32 %v2861, 7
        %v2863 = vsub.s32 %v2860, %v2862
        %v2864 = vrot.slane %v2850, %v2863
        %v2865 = vcombine.high %v2857, %v2857
        %v2866 = vcombine.high %v2864, %v2864
        %v2867 = vcombine.high %v2593, %v2593
        %v2869 = vunpack.c.l.s4 1983009808
        %v2870 = vunpack.c.0.s8 %v2869
        %v2871 = vlaneseq
        %v2872 = vshrl.u32 %v2871, 7
        %v2873 = vsub.s32 %v2870, %v2872
        %v2874 = vrot.slane %v2593, %v2873
        %v2876 = vunpack.c.l.s4 1983009808
        %v2877 = vunpack.c.0.s8 %v2876
        %v2878 = vlaneseq
        %v2879 = vshrl.u32 %v2878, 7
        %v2880 = vsub.s32 %v2877, %v2879
        %v2881 = vrot.slane %v2867, %v2880
        %v2882 = vcombine.high %v2874, %v2874
        %v2883 = vcombine.high %v2881, %v2881
        %v2884 = vcombine.high %v2603, %v2603
        %2885 = vrot.lane.b32.xlu0 %v2636, 1
        %v2886 = vpop.permute.xlu0 %2885
        %2887 = vrot.lane.b32.xlu0 %v2644, 1
        %v2888 = vpop.permute.xlu0 %2887
        %2889 = vrot.lane.b32.xlu0 %v2643, 1
        %v2890 = vpop.permute.xlu0 %2889
        %2891 = vrot.lane.b32.xlu0 %v2645, 1
        %v2892 = vpop.permute.xlu0 %2891
        %2893 = vrot.lane.b32.xlu0 %v2653, 1
        %v2894 = vpop.permute.xlu0 %2893
        %2895 = vrot.lane.b32.xlu0 %v2661, 1
        %v2896 = vpop.permute.xlu0 %2895
        %2897 = vrot.lane.b32.xlu0 %v2660, 1
        %v2898 = vpop.permute.xlu0 %2897
        %2899 = vrot.lane.b32.xlu0 %v2662, 1
        %v2900 = vpop.permute.xlu0 %2899
        %2901 = vrot.lane.b32.xlu0 %v2670, 1
        %v2902 = vpop.permute.xlu0 %2901
        %2903 = vrot.lane.b32.xlu0 %v2678, 1
        %v2904 = vpop.permute.xlu0 %2903
        %2905 = vrot.lane.b32.xlu0 %v2677, 1
        %v2906 = vpop.permute.xlu0 %2905
        %2907 = vrot.lane.b32.xlu0 %v2679, 1
        %v2908 = vpop.permute.xlu0 %2907
        %2909 = vrot.lane.b32.xlu0 %v2687, 1
        %v2910 = vpop.permute.xlu0 %2909
        %2911 = vrot.lane.b32.xlu0 %v2695, 1
        %v2912 = vpop.permute.xlu0 %2911
        %2913 = vrot.lane.b32.xlu0 %v2694, 1
        %v2914 = vpop.permute.xlu0 %2913
        %2915 = vrot.lane.b32.xlu0 %v2696, 1
        %v2916 = vpop.permute.xlu0 %2915
        %2917 = vrot.lane.b32.xlu0 %v2704, 1
        %v2918 = vpop.permute.xlu0 %2917
        %2919 = vrot.lane.b32.xlu0 %v2712, 1
        %v2920 = vpop.permute.xlu0 %2919
        %2921 = vrot.lane.b32.xlu0 %v2711, 1
        %v2922 = vpop.permute.xlu0 %2921
        %2923 = vrot.lane.b32.xlu0 %v2713, 1
        %v2924 = vpop.permute.xlu0 %2923
        %2925 = vrot.lane.b32.xlu0 %v2721, 1
        %v2926 = vpop.permute.xlu0 %2925
        %2927 = vrot.lane.b32.xlu0 %v2729, 1
        %v2928 = vpop.permute.xlu0 %2927
        %2929 = vrot.lane.b32.xlu0 %v2728, 1
        %v2930 = vpop.permute.xlu0 %2929
        %2931 = vrot.lane.b32.xlu0 %v2730, 1
        %v2932 = vpop.permute.xlu0 %2931
        %2933 = vrot.lane.b32.xlu0 %v2738, 1
        %v2934 = vpop.permute.xlu0 %2933
        %2935 = vrot.lane.b32.xlu0 %v2746, 1
        %v2936 = vpop.permute.xlu0 %2935
        %2937 = vrot.lane.b32.xlu0 %v2745, 1
        %v2938 = vpop.permute.xlu0 %2937
        %2939 = vrot.lane.b32.xlu0 %v2747, 1
        %v2940 = vpop.permute.xlu0 %2939
        %2941 = vrot.lane.b32.xlu0 %v2755, 1
        %v2942 = vpop.permute.xlu0 %2941
        %2943 = vrot.lane.b32.xlu0 %v2763, 1
        %v2944 = vpop.permute.xlu0 %2943
        %2945 = vrot.lane.b32.xlu0 %v2762, 1
        %v2946 = vpop.permute.xlu0 %2945
        %2947 = vrot.lane.b32.xlu0 %v2764, 1
        %v2948 = vpop.permute.xlu0 %2947
        %2949 = vrot.lane.b32.xlu0 %v2772, 1
        %v2950 = vpop.permute.xlu0 %2949
        %2951 = vrot.lane.b32.xlu0 %v2780, 1
        %v2952 = vpop.permute.xlu0 %2951
        %2953 = vrot.lane.b32.xlu0 %v2779, 1
        %v2954 = vpop.permute.xlu0 %2953
        %2955 = vrot.lane.b32.xlu0 %v2781, 1
        %v2956 = vpop.permute.xlu0 %2955
        %2957 = vrot.lane.b32.xlu0 %v2789, 1
        %v2958 = vpop.permute.xlu0 %2957
        %2959 = vrot.lane.b32.xlu0 %v2797, 1
        %v2960 = vpop.permute.xlu0 %2959
        %2961 = vrot.lane.b32.xlu0 %v2796, 1
        %v2962 = vpop.permute.xlu0 %2961
        %2963 = vrot.lane.b32.xlu0 %v2798, 1
        %v2964 = vpop.permute.xlu0 %2963
        %2965 = vrot.lane.b32.xlu0 %v2806, 1
        %v2966 = vpop.permute.xlu0 %2965
        %2967 = vrot.lane.b32.xlu0 %v2814, 1
        %v2968 = vpop.permute.xlu0 %2967
        %2969 = vrot.lane.b32.xlu0 %v2813, 1
        %v2970 = vpop.permute.xlu0 %2969
        %2971 = vrot.lane.b32.xlu0 %v2815, 1
        %v2972 = vpop.permute.xlu0 %2971
        %2973 = vrot.lane.b32.xlu0 %v2823, 1
        %v2974 = vpop.permute.xlu0 %2973
        %2975 = vrot.lane.b32.xlu0 %v2831, 1
        %v2976 = vpop.permute.xlu0 %2975
        %2977 = vrot.lane.b32.xlu0 %v2830, 1
        %v2978 = vpop.permute.xlu0 %2977
        %2979 = vrot.lane.b32.xlu0 %v2832, 1
        %v2980 = vpop.permute.xlu0 %2979
        %2981 = vrot.lane.b32.xlu0 %v2840, 1
        %v2982 = vpop.permute.xlu0 %2981
        %2983 = vrot.lane.b32.xlu0 %v2848, 1
        %v2984 = vpop.permute.xlu0 %2983
        %2985 = vrot.lane.b32.xlu0 %v2847, 1
        %v2986 = vpop.permute.xlu0 %2985
        %2987 = vrot.lane.b32.xlu0 %v2849, 1
        %v2988 = vpop.permute.xlu0 %2987
        %2989 = vrot.lane.b32.xlu0 %v2857, 1
        %v2990 = vpop.permute.xlu0 %2989
        %2991 = vrot.lane.b32.xlu0 %v2865, 1
        %v2992 = vpop.permute.xlu0 %2991
        %2993 = vrot.lane.b32.xlu0 %v2864, 1
        %v2994 = vpop.permute.xlu0 %2993
        %2995 = vrot.lane.b32.xlu0 %v2866, 1
        %v2996 = vpop.permute.xlu0 %2995
        %2997 = vrot.lane.b32.xlu0 %v2874, 1
        %v2998 = vpop.permute.xlu0 %2997
        %2999 = vrot.lane.b32.xlu0 %v2882, 1
        %v3000 = vpop.permute.xlu0 %2999
        %3001 = vrot.lane.b32.xlu0 %v2881, 1
        %v3002 = vpop.permute.xlu0 %3001
        %3003 = vrot.lane.b32.xlu0 %v2883, 1
        %v3004 = vpop.permute.xlu0 %3003
        %3005 = vrot.lane.b32.xlu0 %v2603, 1
        %v3006 = vpop.permute.xlu0 %3005
        %3007 = vrot.lane.b32.xlu0 %v2884, 1
        %v3008 = vpop.permute.xlu0 %3007
        %3009 = vrot.lane.b32.xlu0 %v2610, 1
        %v3010 = vpop.permute.xlu0 %3009
        %v3011 = vsel %vm1030, %v2886, %v2888
        %v3012 = vsel %vm1030, %v2888, %v2890
        %v3013 = vsel %vm1030, %v2890, %v2892
        %v3014 = vsel %vm1030, %v2892, %v2894
        %v3015 = vsel %vm1030, %v2894, %v2896
        %v3016 = vsel %vm1030, %v2896, %v2898
        %v3017 = vsel %vm1030, %v2898, %v2900
        %v3018 = vsel %vm1030, %v2900, %v2902
        %v3019 = vsel %vm1030, %v2902, %v2904
        %v3020 = vsel %vm1030, %v2904, %v2906
        %v3021 = vsel %vm1030, %v2906, %v2908
        %v3022 = vsel %vm1030, %v2908, %v2910
        %v3023 = vsel %vm1030, %v2910, %v2912
        %v3024 = vsel %vm1030, %v2912, %v2914
        %v3025 = vsel %vm1030, %v2914, %v2916
        %v3026 = vsel %vm1030, %v2916, %v2918
        %v3027 = vsel %vm1030, %v2918, %v2920
        %v3028 = vsel %vm1030, %v2920, %v2922
        %v3029 = vsel %vm1030, %v2922, %v2924
        %v3030 = vsel %vm1030, %v2924, %v2926
        %v3031 = vsel %vm1030, %v2926, %v2928
        %v3032 = vsel %vm1030, %v2928, %v2930
        %v3033 = vsel %vm1030, %v2930, %v2932
        %v3034 = vsel %vm1030, %v2932, %v2934
        %v3035 = vsel %vm1030, %v2934, %v2936
        %v3036 = vsel %vm1030, %v2936, %v2938
        %v3037 = vsel %vm1030, %v2938, %v2940
        %v3038 = vsel %vm1030, %v2940, %v2942
        %v3039 = vsel %vm1030, %v2942, %v2944
        %v3040 = vsel %vm1030, %v2944, %v2946
        %v3041 = vsel %vm1030, %v2946, %v2948
        %v3042 = vsel %vm1030, %v2948, %v2950
        %v3043 = vsel %vm1030, %v2950, %v2952
        %v3044 = vsel %vm1030, %v2952, %v2954
        %v3045 = vsel %vm1030, %v2954, %v2956
        %v3046 = vsel %vm1030, %v2956, %v2958
        %v3047 = vsel %vm1030, %v2958, %v2960
        %v3048 = vsel %vm1030, %v2960, %v2962
        %v3049 = vsel %vm1030, %v2962, %v2964
        %v3050 = vsel %vm1030, %v2964, %v2966
        %v3051 = vsel %vm1030, %v2966, %v2968
        %v3052 = vsel %vm1030, %v2968, %v2970
        %v3053 = vsel %vm1030, %v2970, %v2972
        %v3054 = vsel %vm1030, %v2972, %v2974
        %v3055 = vsel %vm1030, %v2974, %v2976
        %v3056 = vsel %vm1030, %v2976, %v2978
        %v3057 = vsel %vm1030, %v2978, %v2980
        %v3058 = vsel %vm1030, %v2980, %v2982
        %v3059 = vsel %vm1030, %v2982, %v2984
        %v3060 = vsel %vm1030, %v2984, %v2986
        %v3061 = vsel %vm1030, %v2986, %v2988
        %v3062 = vsel %vm1030, %v2988, %v2990
        %v3063 = vsel %vm1030, %v2990, %v2992
        %v3064 = vsel %vm1030, %v2992, %v2994
        %v3065 = vsel %vm1030, %v2994, %v2996
        %v3066 = vsel %vm1030, %v2996, %v2998
        %v3067 = vsel %vm1030, %v2998, %v3000
        %v3068 = vsel %vm1030, %v3000, %v3002
        %v3069 = vsel %vm1030, %v3002, %v3004
        %v3070 = vsel %vm1030, %v3004, %v3006
        %v3071 = vsel %vm1030, %v3006, %v3008
        %v3072 = vsel %vm1030, %v3008, %v3010
        %v3073 = vsel %vm1030, %v3010, %v2613
        %v3139 = vsel %vm1157, %v2613, %v2886
        %v3141 = vsel %vm1610, %v3139, 0
        %v3142 = vsel %vm1611, %v3011, 0
        %v3143 = vsel %vm1612, %v3012, 0
        %v3144 = vsel %vm1613, %v3013, 0
        %v3145 = vsel %vm1614, %v3014, 0
        %v3146 = vsel %vm1615, %v3015, 0
        %v3147 = vsel %vm1616, %v3016, 0
        %v3148 = vsel %vm1617, %v3017, 0
        %v3149 = vsel %vm1618, %v3018, 0
        %v3150 = vsel %vm1619, %v3019, 0
        %v3151 = vsel %vm1620, %v3020, 0
        %v3152 = vsel %vm1621, %v3021, 0
        %v3153 = vsel %vm1622, %v3022, 0
        %v3154 = vsel %vm1623, %v3023, 0
        %v3155 = vsel %vm1624, %v3024, 0
        %v3156 = vsel %vm1625, %v3025, 0
        %v3157 = vsel %vm1626, %v3026, 0
        %v3158 = vsel %vm1627, %v3027, 0
        %v3159 = vsel %vm1628, %v3028, 0
        %v3160 = vsel %vm1629, %v3029, 0
        %v3161 = vsel %vm1630, %v3030, 0
        %v3162 = vsel %vm1631, %v3031, 0
        %v3163 = vsel %vm1632, %v3032, 0
        %v3164 = vsel %vm1633, %v3033, 0
        %v3165 = vsel %vm1634, %v3034, 0
        %v3166 = vsel %vm1635, %v3035, 0
        %v3167 = vsel %vm1636, %v3036, 0
        %v3168 = vsel %vm1637, %v3037, 0
        %v3169 = vsel %vm1638, %v3038, 0
        %v3170 = vsel %vm1639, %v3039, 0
        %v3171 = vsel %vm1640, %v3040, 0
        %v3172 = vsel %vm1641, %v3041, 0
        %v3173 = vsel %vm1642, %v3042, 0
        %v3174 = vsel %vm1643, %v3043, 0
        %v3175 = vsel %vm1644, %v3044, 0
        %v3176 = vsel %vm1645, %v3045, 0
        %v3177 = vsel %vm1646, %v3046, 0
        %v3178 = vsel %vm1647, %v3047, 0
        %v3179 = vsel %vm1648, %v3048, 0
        %v3180 = vsel %vm1649, %v3049, 0
        %v3181 = vsel %vm1650, %v3050, 0
        %v3182 = vsel %vm1651, %v3051, 0
        %v3183 = vsel %vm1652, %v3052, 0
        %v3184 = vsel %vm1653, %v3053, 0
        %v3185 = vsel %vm1654, %v3054, 0
        %v3186 = vsel %vm1655, %v3055, 0
        %v3187 = vsel %vm1656, %v3056, 0
        %v3188 = vsel %vm1657, %v3057, 0
        %v3189 = vsel %vm1658, %v3058, 0
        %v3190 = vsel %vm1659, %v3059, 0
        %v3191 = vsel %vm1660, %v3060, 0
        %v3192 = vsel %vm1661, %v3061, 0
        %v3193 = vsel %vm1662, %v3062, 0
        %v3194 = vsel %vm1663, %v3063, 0
        %v3195 = vsel %vm1664, %v3064, 0
        %v3196 = vsel %vm1665, %v3065, 0
        %v3197 = vsel %vm1666, %v3066, 0
        %v3198 = vsel %vm1667, %v3067, 0
        %v3199 = vsel %vm1668, %v3068, 0
        %v3200 = vsel %vm1669, %v3069, 0
        %v3201 = vsel %vm1670, %v3070, 0
        %v3202 = vsel %vm1671, %v3071, 0
        %v3203 = vsel %vm1672, %v3072, 0
        %v3204 = vsel %vm1673, %v3073, 0
        %3205 = vrot.lane.b32.xlu0 %v2636, 127
        %v3206 = vpop.permute.xlu0 %3205
        %3207 = vrot.lane.b32.xlu0 %v2644, 127
        %v3208 = vpop.permute.xlu0 %3207
        %3209 = vrot.lane.b32.xlu0 %v2643, 127
        %v3210 = vpop.permute.xlu0 %3209
        %3211 = vrot.lane.b32.xlu0 %v2645, 127
        %v3212 = vpop.permute.xlu0 %3211
        %3213 = vrot.lane.b32.xlu0 %v2653, 127
        %v3214 = vpop.permute.xlu0 %3213
        %3215 = vrot.lane.b32.xlu0 %v2661, 127
        %v3216 = vpop.permute.xlu0 %3215
        %3217 = vrot.lane.b32.xlu0 %v2660, 127
        %v3218 = vpop.permute.xlu0 %3217
        %3219 = vrot.lane.b32.xlu0 %v2662, 127
        %v3220 = vpop.permute.xlu0 %3219
        %3221 = vrot.lane.b32.xlu0 %v2670, 127
        %v3222 = vpop.permute.xlu0 %3221
        %3223 = vrot.lane.b32.xlu0 %v2678, 127
        %v3224 = vpop.permute.xlu0 %3223
        %3225 = vrot.lane.b32.xlu0 %v2677, 127
        %v3226 = vpop.permute.xlu0 %3225
        %3227 = vrot.lane.b32.xlu0 %v2679, 127
        %v3228 = vpop.permute.xlu0 %3227
        %3229 = vrot.lane.b32.xlu0 %v2687, 127
        %v3230 = vpop.permute.xlu0 %3229
        %3231 = vrot.lane.b32.xlu0 %v2695, 127
        %v3232 = vpop.permute.xlu0 %3231
        %3233 = vrot.lane.b32.xlu0 %v2694, 127
        %v3234 = vpop.permute.xlu0 %3233
        %3235 = vrot.lane.b32.xlu0 %v2696, 127
        %v3236 = vpop.permute.xlu0 %3235
        %3237 = vrot.lane.b32.xlu0 %v2704, 127
        %v3238 = vpop.permute.xlu0 %3237
        %3239 = vrot.lane.b32.xlu0 %v2712, 127
        %v3240 = vpop.permute.xlu0 %3239
        %3241 = vrot.lane.b32.xlu0 %v2711, 127
        %v3242 = vpop.permute.xlu0 %3241
        %3243 = vrot.lane.b32.xlu0 %v2713, 127
        %v3244 = vpop.permute.xlu0 %3243
        %3245 = vrot.lane.b32.xlu0 %v2721, 127
        %v3246 = vpop.permute.xlu0 %3245
        %3247 = vrot.lane.b32.xlu0 %v2729, 127
        %v3248 = vpop.permute.xlu0 %3247
        %3249 = vrot.lane.b32.xlu0 %v2728, 127
        %v3250 = vpop.permute.xlu0 %3249
        %3251 = vrot.lane.b32.xlu0 %v2730, 127
        %v3252 = vpop.permute.xlu0 %3251
        %3253 = vrot.lane.b32.xlu0 %v2738, 127
        %v3254 = vpop.permute.xlu0 %3253
        %3255 = vrot.lane.b32.xlu0 %v2746, 127
        %v3256 = vpop.permute.xlu0 %3255
        %3257 = vrot.lane.b32.xlu0 %v2745, 127
        %v3258 = vpop.permute.xlu0 %3257
        %3259 = vrot.lane.b32.xlu0 %v2747, 127
        %v3260 = vpop.permute.xlu0 %3259
        %3261 = vrot.lane.b32.xlu0 %v2755, 127
        %v3262 = vpop.permute.xlu0 %3261
        %3263 = vrot.lane.b32.xlu0 %v2763, 127
        %v3264 = vpop.permute.xlu0 %3263
        %3265 = vrot.lane.b32.xlu0 %v2762, 127
        %v3266 = vpop.permute.xlu0 %3265
        %3267 = vrot.lane.b32.xlu0 %v2764, 127
        %v3268 = vpop.permute.xlu0 %3267
        %3269 = vrot.lane.b32.xlu0 %v2772, 127
        %v3270 = vpop.permute.xlu0 %3269
        %3271 = vrot.lane.b32.xlu0 %v2780, 127
        %v3272 = vpop.permute.xlu0 %3271
        %3273 = vrot.lane.b32.xlu0 %v2779, 127
        %v3274 = vpop.permute.xlu0 %3273
        %3275 = vrot.lane.b32.xlu0 %v2781, 127
        %v3276 = vpop.permute.xlu0 %3275
        %3277 = vrot.lane.b32.xlu0 %v2789, 127
        %v3278 = vpop.permute.xlu0 %3277
        %3279 = vrot.lane.b32.xlu0 %v2797, 127
        %v3280 = vpop.permute.xlu0 %3279
        %3281 = vrot.lane.b32.xlu0 %v2796, 127
        %v3282 = vpop.permute.xlu0 %3281
        %3283 = vrot.lane.b32.xlu0 %v2798, 127
        %v3284 = vpop.permute.xlu0 %3283
        %3285 = vrot.lane.b32.xlu0 %v2806, 127
        %v3286 = vpop.permute.xlu0 %3285
        %3287 = vrot.lane.b32.xlu0 %v2814, 127
        %v3288 = vpop.permute.xlu0 %3287
        %3289 = vrot.lane.b32.xlu0 %v2813, 127
        %v3290 = vpop.permute.xlu0 %3289
        %3291 = vrot.lane.b32.xlu0 %v2815, 127
        %v3292 = vpop.permute.xlu0 %3291
        %3293 = vrot.lane.b32.xlu0 %v2823, 127
        %v3294 = vpop.permute.xlu0 %3293
        %3295 = vrot.lane.b32.xlu0 %v2831, 127
        %v3296 = vpop.permute.xlu0 %3295
        %3297 = vrot.lane.b32.xlu0 %v2830, 127
        %v3298 = vpop.permute.xlu0 %3297
        %3299 = vrot.lane.b32.xlu0 %v2832, 127
        %v3300 = vpop.permute.xlu0 %3299
        %3301 = vrot.lane.b32.xlu0 %v2840, 127
        %v3302 = vpop.permute.xlu0 %3301
        %3303 = vrot.lane.b32.xlu0 %v2848, 127
        %v3304 = vpop.permute.xlu0 %3303
        %3305 = vrot.lane.b32.xlu0 %v2847, 127
        %v3306 = vpop.permute.xlu0 %3305
        %3307 = vrot.lane.b32.xlu0 %v2849, 127
        %v3308 = vpop.permute.xlu0 %3307
        %3309 = vrot.lane.b32.xlu0 %v2857, 127
        %v3310 = vpop.permute.xlu0 %3309
        %3311 = vrot.lane.b32.xlu0 %v2865, 127
        %v3312 = vpop.permute.xlu0 %3311
        %3313 = vrot.lane.b32.xlu0 %v2864, 127
        %v3314 = vpop.permute.xlu0 %3313
        %3315 = vrot.lane.b32.xlu0 %v2866, 127
        %v3316 = vpop.permute.xlu0 %3315
        %3317 = vrot.lane.b32.xlu0 %v2874, 127
        %v3318 = vpop.permute.xlu0 %3317
        %3319 = vrot.lane.b32.xlu0 %v2882, 127
        %v3320 = vpop.permute.xlu0 %3319
        %3321 = vrot.lane.b32.xlu0 %v2881, 127
        %v3322 = vpop.permute.xlu0 %3321
        %3323 = vrot.lane.b32.xlu0 %v2883, 127
        %v3324 = vpop.permute.xlu0 %3323
        %3325 = vrot.lane.b32.xlu0 %v2603, 127
        %v3326 = vpop.permute.xlu0 %3325
        %3327 = vrot.lane.b32.xlu0 %v2884, 127
        %v3328 = vpop.permute.xlu0 %3327
        %3329 = vrot.lane.b32.xlu0 %v2610, 127
        %v3330 = vpop.permute.xlu0 %3329
        %3331 = vrot.lane.b32.xlu0 %v2611, 127
        %v3332 = vpop.permute.xlu0 %3331
        %v3333 = vsel %vm1866, %v3206, %v3208
        %v3334 = vsel %vm1866, %v3208, %v3210
        %v3335 = vsel %vm1866, %v3210, %v3212
        %v3336 = vsel %vm1866, %v3212, %v3214
        %v3337 = vsel %vm1866, %v3214, %v3216
        %v3338 = vsel %vm1866, %v3216, %v3218
        %v3339 = vsel %vm1866, %v3218, %v3220
        %v3340 = vsel %vm1866, %v3220, %v3222
        %v3341 = vsel %vm1866, %v3222, %v3224
        %v3342 = vsel %vm1866, %v3224, %v3226
        %v3343 = vsel %vm1866, %v3226, %v3228
        %v3344 = vsel %vm1866, %v3228, %v3230
        %v3345 = vsel %vm1866, %v3230, %v3232
        %v3346 = vsel %vm1866, %v3232, %v3234
        %v3347 = vsel %vm1866, %v3234, %v3236
        %v3348 = vsel %vm1866, %v3236, %v3238
        %v3349 = vsel %vm1866, %v3238, %v3240
        %v3350 = vsel %vm1866, %v3240, %v3242
        %v3351 = vsel %vm1866, %v3242, %v3244
        %v3352 = vsel %vm1866, %v3244, %v3246
        %v3353 = vsel %vm1866, %v3246, %v3248
        %v3354 = vsel %vm1866, %v3248, %v3250
        %v3355 = vsel %vm1866, %v3250, %v3252
        %v3356 = vsel %vm1866, %v3252, %v3254
        %v3357 = vsel %vm1866, %v3254, %v3256
        %v3358 = vsel %vm1866, %v3256, %v3258
        %v3359 = vsel %vm1866, %v3258, %v3260
        %v3360 = vsel %vm1866, %v3260, %v3262
        %v3361 = vsel %vm1866, %v3262, %v3264
        %v3362 = vsel %vm1866, %v3264, %v3266
        %v3363 = vsel %vm1866, %v3266, %v3268
        %v3364 = vsel %vm1866, %v3268, %v3270
        %v3365 = vsel %vm1866, %v3270, %v3272
        %v3366 = vsel %vm1866, %v3272, %v3274
        %v3367 = vsel %vm1866, %v3274, %v3276
        %v3368 = vsel %vm1866, %v3276, %v3278
        %v3369 = vsel %vm1866, %v3278, %v3280
        %v3370 = vsel %vm1866, %v3280, %v3282
        %v3371 = vsel %vm1866, %v3282, %v3284
        %v3372 = vsel %vm1866, %v3284, %v3286
        %v3373 = vsel %vm1866, %v3286, %v3288
        %v3374 = vsel %vm1866, %v3288, %v3290
        %v3375 = vsel %vm1866, %v3290, %v3292
        %v3376 = vsel %vm1866, %v3292, %v3294
        %v3377 = vsel %vm1866, %v3294, %v3296
        %v3378 = vsel %vm1866, %v3296, %v3298
        %v3379 = vsel %vm1866, %v3298, %v3300
        %v3380 = vsel %vm1866, %v3300, %v3302
        %v3381 = vsel %vm1866, %v3302, %v3304
        %v3382 = vsel %vm1866, %v3304, %v3306
        %v3383 = vsel %vm1866, %v3306, %v3308
        %v3384 = vsel %vm1866, %v3308, %v3310
        %v3385 = vsel %vm1866, %v3310, %v3312
        %v3386 = vsel %vm1866, %v3312, %v3314
        %v3387 = vsel %vm1866, %v3314, %v3316
        %v3388 = vsel %vm1866, %v3316, %v3318
        %v3389 = vsel %vm1866, %v3318, %v3320
        %v3390 = vsel %vm1866, %v3320, %v3322
        %v3391 = vsel %vm1866, %v3322, %v3324
        %v3392 = vsel %vm1866, %v3324, %v3326
        %v3393 = vsel %vm1866, %v3326, %v3328
        %v3394 = vsel %vm1866, %v3328, %v3330
        %v3395 = vsel %vm1866, %v3330, %v3332
        %v3461 = vsel %vm1993, %v3332, %v3206
        %v3463 = vsel %vm2446, %v3333, 0
        %v3464 = vsel %vm2447, %v3334, 0
        %v3465 = vsel %vm2448, %v3335, 0
        %v3466 = vsel %vm2449, %v3336, 0
        %v3467 = vsel %vm2450, %v3337, 0
        %v3468 = vsel %vm2451, %v3338, 0
        %v3469 = vsel %vm2452, %v3339, 0
        %v3470 = vsel %vm2453, %v3340, 0
        %v3471 = vsel %vm2454, %v3341, 0
        %v3472 = vsel %vm2455, %v3342, 0
        %v3473 = vsel %vm2456, %v3343, 0
        %v3474 = vsel %vm2457, %v3344, 0
        %v3475 = vsel %vm2458, %v3345, 0
        %v3476 = vsel %vm2459, %v3346, 0
        %v3477 = vsel %vm2460, %v3347, 0
        %v3478 = vsel %vm2461, %v3348, 0
        %v3479 = vsel %vm2462, %v3349, 0
        %v3480 = vsel %vm2463, %v3350, 0
        %v3481 = vsel %vm2464, %v3351, 0
        %v3482 = vsel %vm2465, %v3352, 0
        %v3483 = vsel %vm2466, %v3353, 0
        %v3484 = vsel %vm2467, %v3354, 0
        %v3485 = vsel %vm2468, %v3355, 0
        %v3486 = vsel %vm2469, %v3356, 0
        %v3487 = vsel %vm2470, %v3357, 0
        %v3488 = vsel %vm2471, %v3358, 0
        %v3489 = vsel %vm2472, %v3359, 0
        %v3490 = vsel %vm2473, %v3360, 0
        %v3491 = vsel %vm2474, %v3361, 0
        %v3492 = vsel %vm2475, %v3362, 0
        %v3493 = vsel %vm2476, %v3363, 0
        %v3494 = vsel %vm2477, %v3364, 0
        %v3495 = vsel %vm2478, %v3365, 0
        %v3496 = vsel %vm2479, %v3366, 0
        %v3497 = vsel %vm2480, %v3367, 0
        %v3498 = vsel %vm2481, %v3368, 0
        %v3499 = vsel %vm2482, %v3369, 0
        %v3500 = vsel %vm2483, %v3370, 0
        %v3501 = vsel %vm2484, %v3371, 0
        %v3502 = vsel %vm2485, %v3372, 0
        %v3503 = vsel %vm2486, %v3373, 0
        %v3504 = vsel %vm2487, %v3374, 0
        %v3505 = vsel %vm2488, %v3375, 0
        %v3506 = vsel %vm2489, %v3376, 0
        %v3507 = vsel %vm2490, %v3377, 0
        %v3508 = vsel %vm2491, %v3378, 0
        %v3509 = vsel %vm2492, %v3379, 0
        %v3510 = vsel %vm2493, %v3380, 0
        %v3511 = vsel %vm2494, %v3381, 0
        %v3512 = vsel %vm2495, %v3382, 0
        %v3513 = vsel %vm2496, %v3383, 0
        %v3514 = vsel %vm2497, %v3384, 0
        %v3515 = vsel %vm2498, %v3385, 0
        %v3516 = vsel %vm2499, %v3386, 0
        %v3517 = vsel %vm2500, %v3387, 0
        %v3518 = vsel %vm2501, %v3388, 0
        %v3519 = vsel %vm2502, %v3389, 0
        %v3520 = vsel %vm2503, %v3390, 0
        %v3521 = vsel %vm2504, %v3391, 0
        %v3522 = vsel %vm2505, %v3392, 0
        %v3523 = vsel %vm2506, %v3393, 0
        %v3524 = vsel %vm2507, %v3394, 0
        %v3525 = vsel %vm2508, %v3395, 0
        %v3526 = vsel %vm2509, %v3461, 0
        %s3527 = sadd.s32 %s593, 256
        %s3528 = sshra.s32 %s3527, 7
        %s3529 = sand.u32 %s3527, 127
        %s3530 = smul.addr %s3528, 2
        %s3531 = scalar_lea.vmem [#allocation2], %s3530
        %v3532 = vld [vmem:[%s3531] sm:$0xff]
        %v3533 = vld [vmem:[%s3531 + $0x8] sm:$0xff]
        %v3534 = vld [vmem:[%s3531 + $0x10] sm:$0xff]
        %v3535 = vld [vmem:[%s3531 + $0x18] sm:$0xff]
        %v3536 = vld [vmem:[%s3531 + $0x20] sm:$0xff]
        %v3537 = vld [vmem:[%s3531 + $0x28] sm:$0xff]
        %v3538 = vld [vmem:[%s3531 + $0x30] sm:$0xff]
        %v3539 = vld [vmem:[%s3531 + $0x38] sm:$0xff]
        %v3540 = vld [vmem:[%s3531 + $0x40] sm:$0xff]
        %v3541 = vld [vmem:[%s3531 + $0x48] sm:$0xff]
        %v3542 = vld [vmem:[%s3531 + $0x50] sm:$0xff]
        %v3543 = vld [vmem:[%s3531 + $0x58] sm:$0xff]
        %v3544 = vld [vmem:[%s3531 + $0x60] sm:$0xff]
        %v3545 = vld [vmem:[%s3531 + $0x68] sm:$0xff]
        %v3546 = vld [vmem:[%s3531 + $0x70] sm:$0xff]
        %v3547 = vld [vmem:[%s3531 + $0x78] sm:$0xff]
        %v3549 = vcombine.high %v3547, %v3547
        %v3551 = vunpack.c.l.s4 1983009808
        %v3552 = vunpack.c.0.s8 %v3551
        %v3553 = vlaneseq
        %v3554 = vshrl.u32 %v3553, 7
        %v3555 = vsub.s32 %v3552, %v3554
        %v3556 = vrot.slane %v3547, %v3555
        %v3558 = vunpack.c.l.s4 1983009808
        %v3559 = vunpack.c.0.s8 %v3558
        %v3560 = vlaneseq
        %v3561 = vshrl.u32 %v3560, 7
        %v3562 = vsub.s32 %v3559, %v3561
        %v3563 = vrot.slane %v3549, %v3562
        %v3564 = vcombine.high %v3563, %v3563
        %3565 = vrot.lane.b32.xlu0 %v3564, 1
        %v3566 = vpop.permute.xlu0 %3565
        %v3582 = vcombine.high %v3532, %v3532
        %v3584 = vunpack.c.l.s4 1983009808
        %v3585 = vunpack.c.0.s8 %v3584
        %v3586 = vlaneseq
        %v3587 = vshrl.u32 %v3586, 7
        %v3588 = vsub.s32 %v3585, %v3587
        %v3589 = vrot.slane %v3532, %v3588
        %v3591 = vunpack.c.l.s4 1983009808
        %v3592 = vunpack.c.0.s8 %v3591
        %v3593 = vlaneseq
        %v3594 = vshrl.u32 %v3593, 7
        %v3595 = vsub.s32 %v3592, %v3594
        %v3596 = vrot.slane %v3582, %v3595
        %v3597 = vcombine.high %v3589, %v3589
        %v3598 = vcombine.high %v3596, %v3596
        %v3599 = vcombine.high %v3533, %v3533
        %v3601 = vunpack.c.l.s4 1983009808
        %v3602 = vunpack.c.0.s8 %v3601
        %v3603 = vlaneseq
        %v3604 = vshrl.u32 %v3603, 7
        %v3605 = vsub.s32 %v3602, %v3604
        %v3606 = vrot.slane %v3533, %v3605
        %v3608 = vunpack.c.l.s4 1983009808
        %v3609 = vunpack.c.0.s8 %v3608
        %v3610 = vlaneseq
        %v3611 = vshrl.u32 %v3610, 7
        %v3612 = vsub.s32 %v3609, %v3611
        %v3613 = vrot.slane %v3599, %v3612
        %v3614 = vcombine.high %v3606, %v3606
        %v3615 = vcombine.high %v3613, %v3613
        %v3616 = vcombine.high %v3534, %v3534
        %v3618 = vunpack.c.l.s4 1983009808
        %v3619 = vunpack.c.0.s8 %v3618
        %v3620 = vlaneseq
        %v3621 = vshrl.u32 %v3620, 7
        %v3622 = vsub.s32 %v3619, %v3621
        %v3623 = vrot.slane %v3534, %v3622
        %v3625 = vunpack.c.l.s4 1983009808
        %v3626 = vunpack.c.0.s8 %v3625
        %v3627 = vlaneseq
        %v3628 = vshrl.u32 %v3627, 7
        %v3629 = vsub.s32 %v3626, %v3628
        %v3630 = vrot.slane %v3616, %v3629
        %v3631 = vcombine.high %v3623, %v3623
        %v3632 = vcombine.high %v3630, %v3630
        %v3633 = vcombine.high %v3535, %v3535
        %v3635 = vunpack.c.l.s4 1983009808
        %v3636 = vunpack.c.0.s8 %v3635
        %v3637 = vlaneseq
        %v3638 = vshrl.u32 %v3637, 7
        %v3639 = vsub.s32 %v3636, %v3638
        %v3640 = vrot.slane %v3535, %v3639
        %v3642 = vunpack.c.l.s4 1983009808
        %v3643 = vunpack.c.0.s8 %v3642
        %v3644 = vlaneseq
        %v3645 = vshrl.u32 %v3644, 7
        %v3646 = vsub.s32 %v3643, %v3645
        %v3647 = vrot.slane %v3633, %v3646
        %v3648 = vcombine.high %v3640, %v3640
        %v3649 = vcombine.high %v3647, %v3647
        %v3650 = vcombine.high %v3536, %v3536
        %v3652 = vunpack.c.l.s4 1983009808
        %v3653 = vunpack.c.0.s8 %v3652
        %v3654 = vlaneseq
        %v3655 = vshrl.u32 %v3654, 7
        %v3656 = vsub.s32 %v3653, %v3655
        %v3657 = vrot.slane %v3536, %v3656
        %v3659 = vunpack.c.l.s4 1983009808
        %v3660 = vunpack.c.0.s8 %v3659
        %v3661 = vlaneseq
        %v3662 = vshrl.u32 %v3661, 7
        %v3663 = vsub.s32 %v3660, %v3662
        %v3664 = vrot.slane %v3650, %v3663
        %v3665 = vcombine.high %v3657, %v3657
        %v3666 = vcombine.high %v3664, %v3664
        %v3667 = vcombine.high %v3537, %v3537
        %v3669 = vunpack.c.l.s4 1983009808
        %v3670 = vunpack.c.0.s8 %v3669
        %v3671 = vlaneseq
        %v3672 = vshrl.u32 %v3671, 7
        %v3673 = vsub.s32 %v3670, %v3672
        %v3674 = vrot.slane %v3537, %v3673
        %v3676 = vunpack.c.l.s4 1983009808
        %v3677 = vunpack.c.0.s8 %v3676
        %v3678 = vlaneseq
        %v3679 = vshrl.u32 %v3678, 7
        %v3680 = vsub.s32 %v3677, %v3679
        %v3681 = vrot.slane %v3667, %v3680
        %v3682 = vcombine.high %v3674, %v3674
        %v3683 = vcombine.high %v3681, %v3681
        %v3684 = vcombine.high %v3538, %v3538
        %v3686 = vunpack.c.l.s4 1983009808
        %v3687 = vunpack.c.0.s8 %v3686
        %v3688 = vlaneseq
        %v3689 = vshrl.u32 %v3688, 7
        %v3690 = vsub.s32 %v3687, %v3689
        %v3691 = vrot.slane %v3538, %v3690
        %v3693 = vunpack.c.l.s4 1983009808
        %v3694 = vunpack.c.0.s8 %v3693
        %v3695 = vlaneseq
        %v3696 = vshrl.u32 %v3695, 7
        %v3697 = vsub.s32 %v3694, %v3696
        %v3698 = vrot.slane %v3684, %v3697
        %v3699 = vcombine.high %v3691, %v3691
        %v3700 = vcombine.high %v3698, %v3698
        %v3701 = vcombine.high %v3539, %v3539
        %v3703 = vunpack.c.l.s4 1983009808
        %v3704 = vunpack.c.0.s8 %v3703
        %v3705 = vlaneseq
        %v3706 = vshrl.u32 %v3705, 7
        %v3707 = vsub.s32 %v3704, %v3706
        %v3708 = vrot.slane %v3539, %v3707
        %v3710 = vunpack.c.l.s4 1983009808
        %v3711 = vunpack.c.0.s8 %v3710
        %v3712 = vlaneseq
        %v3713 = vshrl.u32 %v3712, 7
        %v3714 = vsub.s32 %v3711, %v3713
        %v3715 = vrot.slane %v3701, %v3714
        %v3716 = vcombine.high %v3708, %v3708
        %v3717 = vcombine.high %v3715, %v3715
        %v3718 = vcombine.high %v3540, %v3540
        %v3720 = vunpack.c.l.s4 1983009808
        %v3721 = vunpack.c.0.s8 %v3720
        %v3722 = vlaneseq
        %v3723 = vshrl.u32 %v3722, 7
        %v3724 = vsub.s32 %v3721, %v3723
        %v3725 = vrot.slane %v3540, %v3724
        %v3727 = vunpack.c.l.s4 1983009808
        %v3728 = vunpack.c.0.s8 %v3727
        %v3729 = vlaneseq
        %v3730 = vshrl.u32 %v3729, 7
        %v3731 = vsub.s32 %v3728, %v3730
        %v3732 = vrot.slane %v3718, %v3731
        %v3733 = vcombine.high %v3725, %v3725
        %v3734 = vcombine.high %v3732, %v3732
        %v3735 = vcombine.high %v3541, %v3541
        %v3737 = vunpack.c.l.s4 1983009808
        %v3738 = vunpack.c.0.s8 %v3737
        %v3739 = vlaneseq
        %v3740 = vshrl.u32 %v3739, 7
        %v3741 = vsub.s32 %v3738, %v3740
        %v3742 = vrot.slane %v3541, %v3741
        %v3744 = vunpack.c.l.s4 1983009808
        %v3745 = vunpack.c.0.s8 %v3744
        %v3746 = vlaneseq
        %v3747 = vshrl.u32 %v3746, 7
        %v3748 = vsub.s32 %v3745, %v3747
        %v3749 = vrot.slane %v3735, %v3748
        %v3750 = vcombine.high %v3742, %v3742
        %v3751 = vcombine.high %v3749, %v3749
        %v3752 = vcombine.high %v3542, %v3542
        %v3754 = vunpack.c.l.s4 1983009808
        %v3755 = vunpack.c.0.s8 %v3754
        %v3756 = vlaneseq
        %v3757 = vshrl.u32 %v3756, 7
        %v3758 = vsub.s32 %v3755, %v3757
        %v3759 = vrot.slane %v3542, %v3758
        %v3761 = vunpack.c.l.s4 1983009808
        %v3762 = vunpack.c.0.s8 %v3761
        %v3763 = vlaneseq
        %v3764 = vshrl.u32 %v3763, 7
        %v3765 = vsub.s32 %v3762, %v3764
        %v3766 = vrot.slane %v3752, %v3765
        %v3767 = vcombine.high %v3759, %v3759
        %v3768 = vcombine.high %v3766, %v3766
        %v3769 = vcombine.high %v3543, %v3543
        %v3771 = vunpack.c.l.s4 1983009808
        %v3772 = vunpack.c.0.s8 %v3771
        %v3773 = vlaneseq
        %v3774 = vshrl.u32 %v3773, 7
        %v3775 = vsub.s32 %v3772, %v3774
        %v3776 = vrot.slane %v3543, %v3775
        %v3778 = vunpack.c.l.s4 1983009808
        %v3779 = vunpack.c.0.s8 %v3778
        %v3780 = vlaneseq
        %v3781 = vshrl.u32 %v3780, 7
        %v3782 = vsub.s32 %v3779, %v3781
        %v3783 = vrot.slane %v3769, %v3782
        %v3784 = vcombine.high %v3776, %v3776
        %v3785 = vcombine.high %v3783, %v3783
        %v3786 = vcombine.high %v3544, %v3544
        %v3788 = vunpack.c.l.s4 1983009808
        %v3789 = vunpack.c.0.s8 %v3788
        %v3790 = vlaneseq
        %v3791 = vshrl.u32 %v3790, 7
        %v3792 = vsub.s32 %v3789, %v3791
        %v3793 = vrot.slane %v3544, %v3792
        %v3795 = vunpack.c.l.s4 1983009808
        %v3796 = vunpack.c.0.s8 %v3795
        %v3797 = vlaneseq
        %v3798 = vshrl.u32 %v3797, 7
        %v3799 = vsub.s32 %v3796, %v3798
        %v3800 = vrot.slane %v3786, %v3799
        %v3801 = vcombine.high %v3793, %v3793
        %v3802 = vcombine.high %v3800, %v3800
        %v3803 = vcombine.high %v3545, %v3545
        %v3805 = vunpack.c.l.s4 1983009808
        %v3806 = vunpack.c.0.s8 %v3805
        %v3807 = vlaneseq
        %v3808 = vshrl.u32 %v3807, 7
        %v3809 = vsub.s32 %v3806, %v3808
        %v3810 = vrot.slane %v3545, %v3809
        %v3812 = vunpack.c.l.s4 1983009808
        %v3813 = vunpack.c.0.s8 %v3812
        %v3814 = vlaneseq
        %v3815 = vshrl.u32 %v3814, 7
        %v3816 = vsub.s32 %v3813, %v3815
        %v3817 = vrot.slane %v3803, %v3816
        %v3818 = vcombine.high %v3810, %v3810
        %v3819 = vcombine.high %v3817, %v3817
        %v3820 = vcombine.high %v3546, %v3546
        %v3822 = vunpack.c.l.s4 1983009808
        %v3823 = vunpack.c.0.s8 %v3822
        %v3824 = vlaneseq
        %v3825 = vshrl.u32 %v3824, 7
        %v3826 = vsub.s32 %v3823, %v3825
        %v3827 = vrot.slane %v3546, %v3826
        %v3829 = vunpack.c.l.s4 1983009808
        %v3830 = vunpack.c.0.s8 %v3829
        %v3831 = vlaneseq
        %v3832 = vshrl.u32 %v3831, 7
        %v3833 = vsub.s32 %v3830, %v3832
        %v3834 = vrot.slane %v3820, %v3833
        %v3835 = vcombine.high %v3827, %v3827
        %v3836 = vcombine.high %v3834, %v3834
        %v3837 = vcombine.high %v3556, %v3556
        %3838 = vrot.lane.b32.xlu0 %v3589, 1
        %v3839 = vpop.permute.xlu0 %3838
        %3840 = vrot.lane.b32.xlu0 %v3597, 1
        %v3841 = vpop.permute.xlu0 %3840
        %3842 = vrot.lane.b32.xlu0 %v3596, 1
        %v3843 = vpop.permute.xlu0 %3842
        %3844 = vrot.lane.b32.xlu0 %v3598, 1
        %v3845 = vpop.permute.xlu0 %3844
        %3846 = vrot.lane.b32.xlu0 %v3606, 1
        %v3847 = vpop.permute.xlu0 %3846
        %3848 = vrot.lane.b32.xlu0 %v3614, 1
        %v3849 = vpop.permute.xlu0 %3848
        %3850 = vrot.lane.b32.xlu0 %v3613, 1
        %v3851 = vpop.permute.xlu0 %3850
        %3852 = vrot.lane.b32.xlu0 %v3615, 1
        %v3853 = vpop.permute.xlu0 %3852
        %3854 = vrot.lane.b32.xlu0 %v3623, 1
        %v3855 = vpop.permute.xlu0 %3854
        %3856 = vrot.lane.b32.xlu0 %v3631, 1
        %v3857 = vpop.permute.xlu0 %3856
        %3858 = vrot.lane.b32.xlu0 %v3630, 1
        %v3859 = vpop.permute.xlu0 %3858
        %3860 = vrot.lane.b32.xlu0 %v3632, 1
        %v3861 = vpop.permute.xlu0 %3860
        %3862 = vrot.lane.b32.xlu0 %v3640, 1
        %v3863 = vpop.permute.xlu0 %3862
        %3864 = vrot.lane.b32.xlu0 %v3648, 1
        %v3865 = vpop.permute.xlu0 %3864
        %3866 = vrot.lane.b32.xlu0 %v3647, 1
        %v3867 = vpop.permute.xlu0 %3866
        %3868 = vrot.lane.b32.xlu0 %v3649, 1
        %v3869 = vpop.permute.xlu0 %3868
        %3870 = vrot.lane.b32.xlu0 %v3657, 1
        %v3871 = vpop.permute.xlu0 %3870
        %3872 = vrot.lane.b32.xlu0 %v3665, 1
        %v3873 = vpop.permute.xlu0 %3872
        %3874 = vrot.lane.b32.xlu0 %v3664, 1
        %v3875 = vpop.permute.xlu0 %3874
        %3876 = vrot.lane.b32.xlu0 %v3666, 1
        %v3877 = vpop.permute.xlu0 %3876
        %3878 = vrot.lane.b32.xlu0 %v3674, 1
        %v3879 = vpop.permute.xlu0 %3878
        %3880 = vrot.lane.b32.xlu0 %v3682, 1
        %v3881 = vpop.permute.xlu0 %3880
        %3882 = vrot.lane.b32.xlu0 %v3681, 1
        %v3883 = vpop.permute.xlu0 %3882
        %3884 = vrot.lane.b32.xlu0 %v3683, 1
        %v3885 = vpop.permute.xlu0 %3884
        %3886 = vrot.lane.b32.xlu0 %v3691, 1
        %v3887 = vpop.permute.xlu0 %3886
        %3888 = vrot.lane.b32.xlu0 %v3699, 1
        %v3889 = vpop.permute.xlu0 %3888
        %3890 = vrot.lane.b32.xlu0 %v3698, 1
        %v3891 = vpop.permute.xlu0 %3890
        %3892 = vrot.lane.b32.xlu0 %v3700, 1
        %v3893 = vpop.permute.xlu0 %3892
        %3894 = vrot.lane.b32.xlu0 %v3708, 1
        %v3895 = vpop.permute.xlu0 %3894
        %3896 = vrot.lane.b32.xlu0 %v3716, 1
        %v3897 = vpop.permute.xlu0 %3896
        %3898 = vrot.lane.b32.xlu0 %v3715, 1
        %v3899 = vpop.permute.xlu0 %3898
        %3900 = vrot.lane.b32.xlu0 %v3717, 1
        %v3901 = vpop.permute.xlu0 %3900
        %3902 = vrot.lane.b32.xlu0 %v3725, 1
        %v3903 = vpop.permute.xlu0 %3902
        %3904 = vrot.lane.b32.xlu0 %v3733, 1
        %v3905 = vpop.permute.xlu0 %3904
        %3906 = vrot.lane.b32.xlu0 %v3732, 1
        %v3907 = vpop.permute.xlu0 %3906
        %3908 = vrot.lane.b32.xlu0 %v3734, 1
        %v3909 = vpop.permute.xlu0 %3908
        %3910 = vrot.lane.b32.xlu0 %v3742, 1
        %v3911 = vpop.permute.xlu0 %3910
        %3912 = vrot.lane.b32.xlu0 %v3750, 1
        %v3913 = vpop.permute.xlu0 %3912
        %3914 = vrot.lane.b32.xlu0 %v3749, 1
        %v3915 = vpop.permute.xlu0 %3914
        %3916 = vrot.lane.b32.xlu0 %v3751, 1
        %v3917 = vpop.permute.xlu0 %3916
        %3918 = vrot.lane.b32.xlu0 %v3759, 1
        %v3919 = vpop.permute.xlu0 %3918
        %3920 = vrot.lane.b32.xlu0 %v3767, 1
        %v3921 = vpop.permute.xlu0 %3920
        %3922 = vrot.lane.b32.xlu0 %v3766, 1
        %v3923 = vpop.permute.xlu0 %3922
        %3924 = vrot.lane.b32.xlu0 %v3768, 1
        %v3925 = vpop.permute.xlu0 %3924
        %3926 = vrot.lane.b32.xlu0 %v3776, 1
        %v3927 = vpop.permute.xlu0 %3926
        %3928 = vrot.lane.b32.xlu0 %v3784, 1
        %v3929 = vpop.permute.xlu0 %3928
        %3930 = vrot.lane.b32.xlu0 %v3783, 1
        %v3931 = vpop.permute.xlu0 %3930
        %3932 = vrot.lane.b32.xlu0 %v3785, 1
        %v3933 = vpop.permute.xlu0 %3932
        %3934 = vrot.lane.b32.xlu0 %v3793, 1
        %v3935 = vpop.permute.xlu0 %3934
        %3936 = vrot.lane.b32.xlu0 %v3801, 1
        %v3937 = vpop.permute.xlu0 %3936
        %3938 = vrot.lane.b32.xlu0 %v3800, 1
        %v3939 = vpop.permute.xlu0 %3938
        %3940 = vrot.lane.b32.xlu0 %v3802, 1
        %v3941 = vpop.permute.xlu0 %3940
        %3942 = vrot.lane.b32.xlu0 %v3810, 1
        %v3943 = vpop.permute.xlu0 %3942
        %3944 = vrot.lane.b32.xlu0 %v3818, 1
        %v3945 = vpop.permute.xlu0 %3944
        %3946 = vrot.lane.b32.xlu0 %v3817, 1
        %v3947 = vpop.permute.xlu0 %3946
        %3948 = vrot.lane.b32.xlu0 %v3819, 1
        %v3949 = vpop.permute.xlu0 %3948
        %3950 = vrot.lane.b32.xlu0 %v3827, 1
        %v3951 = vpop.permute.xlu0 %3950
        %3952 = vrot.lane.b32.xlu0 %v3835, 1
        %v3953 = vpop.permute.xlu0 %3952
        %3954 = vrot.lane.b32.xlu0 %v3834, 1
        %v3955 = vpop.permute.xlu0 %3954
        %3956 = vrot.lane.b32.xlu0 %v3836, 1
        %v3957 = vpop.permute.xlu0 %3956
        %3958 = vrot.lane.b32.xlu0 %v3556, 1
        %v3959 = vpop.permute.xlu0 %3958
        %3960 = vrot.lane.b32.xlu0 %v3837, 1
        %v3961 = vpop.permute.xlu0 %3960
        %3962 = vrot.lane.b32.xlu0 %v3563, 1
        %v3963 = vpop.permute.xlu0 %3962
        %v3964 = vsel %vm1030, %v3839, %v3841
        %v3965 = vsel %vm1030, %v3841, %v3843
        %v3966 = vsel %vm1030, %v3843, %v3845
        %v3967 = vsel %vm1030, %v3845, %v3847
        %v3968 = vsel %vm1030, %v3847, %v3849
        %v3969 = vsel %vm1030, %v3849, %v3851
        %v3970 = vsel %vm1030, %v3851, %v3853
        %v3971 = vsel %vm1030, %v3853, %v3855
        %v3972 = vsel %vm1030, %v3855, %v3857
        %v3973 = vsel %vm1030, %v3857, %v3859
        %v3974 = vsel %vm1030, %v3859, %v3861
        %v3975 = vsel %vm1030, %v3861, %v3863
        %v3976 = vsel %vm1030, %v3863, %v3865
        %v3977 = vsel %vm1030, %v3865, %v3867
        %v3978 = vsel %vm1030, %v3867, %v3869
        %v3979 = vsel %vm1030, %v3869, %v3871
        %v3980 = vsel %vm1030, %v3871, %v3873
        %v3981 = vsel %vm1030, %v3873, %v3875
        %v3982 = vsel %vm1030, %v3875, %v3877
        %v3983 = vsel %vm1030, %v3877, %v3879
        %v3984 = vsel %vm1030, %v3879, %v3881
        %v3985 = vsel %vm1030, %v3881, %v3883
        %v3986 = vsel %vm1030, %v3883, %v3885
        %v3987 = vsel %vm1030, %v3885, %v3887
        %v3988 = vsel %vm1030, %v3887, %v3889
        %v3989 = vsel %vm1030, %v3889, %v3891
        %v3990 = vsel %vm1030, %v3891, %v3893
        %v3991 = vsel %vm1030, %v3893, %v3895
        %v3992 = vsel %vm1030, %v3895, %v3897
        %v3993 = vsel %vm1030, %v3897, %v3899
        %v3994 = vsel %vm1030, %v3899, %v3901
        %v3995 = vsel %vm1030, %v3901, %v3903
        %v3996 = vsel %vm1030, %v3903, %v3905
        %v3997 = vsel %vm1030, %v3905, %v3907
        %v3998 = vsel %vm1030, %v3907, %v3909
        %v3999 = vsel %vm1030, %v3909, %v3911
        %v4000 = vsel %vm1030, %v3911, %v3913
        %v4001 = vsel %vm1030, %v3913, %v3915
        %v4002 = vsel %vm1030, %v3915, %v3917
        %v4003 = vsel %vm1030, %v3917, %v3919
        %v4004 = vsel %vm1030, %v3919, %v3921
        %v4005 = vsel %vm1030, %v3921, %v3923
        %v4006 = vsel %vm1030, %v3923, %v3925
        %v4007 = vsel %vm1030, %v3925, %v3927
        %v4008 = vsel %vm1030, %v3927, %v3929
        %v4009 = vsel %vm1030, %v3929, %v3931
        %v4010 = vsel %vm1030, %v3931, %v3933
        %v4011 = vsel %vm1030, %v3933, %v3935
        %v4012 = vsel %vm1030, %v3935, %v3937
        %v4013 = vsel %vm1030, %v3937, %v3939
        %v4014 = vsel %vm1030, %v3939, %v3941
        %v4015 = vsel %vm1030, %v3941, %v3943
        %v4016 = vsel %vm1030, %v3943, %v3945
        %v4017 = vsel %vm1030, %v3945, %v3947
        %v4018 = vsel %vm1030, %v3947, %v3949
        %v4019 = vsel %vm1030, %v3949, %v3951
        %v4020 = vsel %vm1030, %v3951, %v3953
        %v4021 = vsel %vm1030, %v3953, %v3955
        %v4022 = vsel %vm1030, %v3955, %v3957
        %v4023 = vsel %vm1030, %v3957, %v3959
        %v4024 = vsel %vm1030, %v3959, %v3961
        %v4025 = vsel %vm1030, %v3961, %v3963
        %v4026 = vsel %vm1030, %v3963, %v3566
        %v4092 = vsel %vm1157, %v3566, %v3839
        %v4094 = vsel %vm1610, %v4092, 0
        %v4095 = vsel %vm1611, %v3964, 0
        %v4096 = vsel %vm1612, %v3965, 0
        %v4097 = vsel %vm1613, %v3966, 0
        %v4098 = vsel %vm1614, %v3967, 0
        %v4099 = vsel %vm1615, %v3968, 0
        %v4100 = vsel %vm1616, %v3969, 0
        %v4101 = vsel %vm1617, %v3970, 0
        %v4102 = vsel %vm1618, %v3971, 0
        %v4103 = vsel %vm1619, %v3972, 0
        %v4104 = vsel %vm1620, %v3973, 0
        %v4105 = vsel %vm1621, %v3974, 0
        %v4106 = vsel %vm1622, %v3975, 0
        %v4107 = vsel %vm1623, %v3976, 0
        %v4108 = vsel %vm1624, %v3977, 0
        %v4109 = vsel %vm1625, %v3978, 0
        %v4110 = vsel %vm1626, %v3979, 0
        %v4111 = vsel %vm1627, %v3980, 0
        %v4112 = vsel %vm1628, %v3981, 0
        %v4113 = vsel %vm1629, %v3982, 0
        %v4114 = vsel %vm1630, %v3983, 0
        %v4115 = vsel %vm1631, %v3984, 0
        %v4116 = vsel %vm1632, %v3985, 0
        %v4117 = vsel %vm1633, %v3986, 0
        %v4118 = vsel %vm1634, %v3987, 0
        %v4119 = vsel %vm1635, %v3988, 0
        %v4120 = vsel %vm1636, %v3989, 0
        %v4121 = vsel %vm1637, %v3990, 0
        %v4122 = vsel %vm1638, %v3991, 0
        %v4123 = vsel %vm1639, %v3992, 0
        %v4124 = vsel %vm1640, %v3993, 0
        %v4125 = vsel %vm1641, %v3994, 0
        %v4126 = vsel %vm1642, %v3995, 0
        %v4127 = vsel %vm1643, %v3996, 0
        %v4128 = vsel %vm1644, %v3997, 0
        %v4129 = vsel %vm1645, %v3998, 0
        %v4130 = vsel %vm1646, %v3999, 0
        %v4131 = vsel %vm1647, %v4000, 0
        %v4132 = vsel %vm1648, %v4001, 0
        %v4133 = vsel %vm1649, %v4002, 0
        %v4134 = vsel %vm1650, %v4003, 0
        %v4135 = vsel %vm1651, %v4004, 0
        %v4136 = vsel %vm1652, %v4005, 0
        %v4137 = vsel %vm1653, %v4006, 0
        %v4138 = vsel %vm1654, %v4007, 0
        %v4139 = vsel %vm1655, %v4008, 0
        %v4140 = vsel %vm1656, %v4009, 0
        %v4141 = vsel %vm1657, %v4010, 0
        %v4142 = vsel %vm1658, %v4011, 0
        %v4143 = vsel %vm1659, %v4012, 0
        %v4144 = vsel %vm1660, %v4013, 0
        %v4145 = vsel %vm1661, %v4014, 0
        %v4146 = vsel %vm1662, %v4015, 0
        %v4147 = vsel %vm1663, %v4016, 0
        %v4148 = vsel %vm1664, %v4017, 0
        %v4149 = vsel %vm1665, %v4018, 0
        %v4150 = vsel %vm1666, %v4019, 0
        %v4151 = vsel %vm1667, %v4020, 0
        %v4152 = vsel %vm1668, %v4021, 0
        %v4153 = vsel %vm1669, %v4022, 0
        %v4154 = vsel %vm1670, %v4023, 0
        %v4155 = vsel %vm1671, %v4024, 0
        %v4156 = vsel %vm1672, %v4025, 0
        %v4157 = vsel %vm1673, %v4026, 0
        %4158 = vrot.lane.b32.xlu0 %v3589, 127
        %v4159 = vpop.permute.xlu0 %4158
        %4160 = vrot.lane.b32.xlu0 %v3597, 127
        %v4161 = vpop.permute.xlu0 %4160
        %4162 = vrot.lane.b32.xlu0 %v3596, 127
        %v4163 = vpop.permute.xlu0 %4162
        %4164 = vrot.lane.b32.xlu0 %v3598, 127
        %v4165 = vpop.permute.xlu0 %4164
        %4166 = vrot.lane.b32.xlu0 %v3606, 127
        %v4167 = vpop.permute.xlu0 %4166
        %4168 = vrot.lane.b32.xlu0 %v3614, 127
        %v4169 = vpop.permute.xlu0 %4168
        %4170 = vrot.lane.b32.xlu0 %v3613, 127
        %v4171 = vpop.permute.xlu0 %4170
        %4172 = vrot.lane.b32.xlu0 %v3615, 127
        %v4173 = vpop.permute.xlu0 %4172
        %4174 = vrot.lane.b32.xlu0 %v3623, 127
        %v4175 = vpop.permute.xlu0 %4174
        %4176 = vrot.lane.b32.xlu0 %v3631, 127
        %v4177 = vpop.permute.xlu0 %4176
        %4178 = vrot.lane.b32.xlu0 %v3630, 127
        %v4179 = vpop.permute.xlu0 %4178
        %4180 = vrot.lane.b32.xlu0 %v3632, 127
        %v4181 = vpop.permute.xlu0 %4180
        %4182 = vrot.lane.b32.xlu0 %v3640, 127
        %v4183 = vpop.permute.xlu0 %4182
        %4184 = vrot.lane.b32.xlu0 %v3648, 127
        %v4185 = vpop.permute.xlu0 %4184
        %4186 = vrot.lane.b32.xlu0 %v3647, 127
        %v4187 = vpop.permute.xlu0 %4186
        %4188 = vrot.lane.b32.xlu0 %v3649, 127
        %v4189 = vpop.permute.xlu0 %4188
        %4190 = vrot.lane.b32.xlu0 %v3657, 127
        %v4191 = vpop.permute.xlu0 %4190
        %4192 = vrot.lane.b32.xlu0 %v3665, 127
        %v4193 = vpop.permute.xlu0 %4192
        %4194 = vrot.lane.b32.xlu0 %v3664, 127
        %v4195 = vpop.permute.xlu0 %4194
        %4196 = vrot.lane.b32.xlu0 %v3666, 127
        %v4197 = vpop.permute.xlu0 %4196
        %4198 = vrot.lane.b32.xlu0 %v3674, 127
        %v4199 = vpop.permute.xlu0 %4198
        %4200 = vrot.lane.b32.xlu0 %v3682, 127
        %v4201 = vpop.permute.xlu0 %4200
        %4202 = vrot.lane.b32.xlu0 %v3681, 127
        %v4203 = vpop.permute.xlu0 %4202
        %4204 = vrot.lane.b32.xlu0 %v3683, 127
        %v4205 = vpop.permute.xlu0 %4204
        %4206 = vrot.lane.b32.xlu0 %v3691, 127
        %v4207 = vpop.permute.xlu0 %4206
        %4208 = vrot.lane.b32.xlu0 %v3699, 127
        %v4209 = vpop.permute.xlu0 %4208
        %4210 = vrot.lane.b32.xlu0 %v3698, 127
        %v4211 = vpop.permute.xlu0 %4210
        %4212 = vrot.lane.b32.xlu0 %v3700, 127
        %v4213 = vpop.permute.xlu0 %4212
        %4214 = vrot.lane.b32.xlu0 %v3708, 127
        %v4215 = vpop.permute.xlu0 %4214
        %4216 = vrot.lane.b32.xlu0 %v3716, 127
        %v4217 = vpop.permute.xlu0 %4216
        %4218 = vrot.lane.b32.xlu0 %v3715, 127
        %v4219 = vpop.permute.xlu0 %4218
        %4220 = vrot.lane.b32.xlu0 %v3717, 127
        %v4221 = vpop.permute.xlu0 %4220
        %4222 = vrot.lane.b32.xlu0 %v3725, 127
        %v4223 = vpop.permute.xlu0 %4222
        %4224 = vrot.lane.b32.xlu0 %v3733, 127
        %v4225 = vpop.permute.xlu0 %4224
        %4226 = vrot.lane.b32.xlu0 %v3732, 127
        %v4227 = vpop.permute.xlu0 %4226
        %4228 = vrot.lane.b32.xlu0 %v3734, 127
        %v4229 = vpop.permute.xlu0 %4228
        %4230 = vrot.lane.b32.xlu0 %v3742, 127
        %v4231 = vpop.permute.xlu0 %4230
        %4232 = vrot.lane.b32.xlu0 %v3750, 127
        %v4233 = vpop.permute.xlu0 %4232
        %4234 = vrot.lane.b32.xlu0 %v3749, 127
        %v4235 = vpop.permute.xlu0 %4234
        %4236 = vrot.lane.b32.xlu0 %v3751, 127
        %v4237 = vpop.permute.xlu0 %4236
        %4238 = vrot.lane.b32.xlu0 %v3759, 127
        %v4239 = vpop.permute.xlu0 %4238
        %4240 = vrot.lane.b32.xlu0 %v3767, 127
        %v4241 = vpop.permute.xlu0 %4240
        %4242 = vrot.lane.b32.xlu0 %v3766, 127
        %v4243 = vpop.permute.xlu0 %4242
        %4244 = vrot.lane.b32.xlu0 %v3768, 127
        %v4245 = vpop.permute.xlu0 %4244
        %4246 = vrot.lane.b32.xlu0 %v3776, 127
        %v4247 = vpop.permute.xlu0 %4246
        %4248 = vrot.lane.b32.xlu0 %v3784, 127
        %v4249 = vpop.permute.xlu0 %4248
        %4250 = vrot.lane.b32.xlu0 %v3783, 127
        %v4251 = vpop.permute.xlu0 %4250
        %4252 = vrot.lane.b32.xlu0 %v3785, 127
        %v4253 = vpop.permute.xlu0 %4252
        %4254 = vrot.lane.b32.xlu0 %v3793, 127
        %v4255 = vpop.permute.xlu0 %4254
        %4256 = vrot.lane.b32.xlu0 %v3801, 127
        %v4257 = vpop.permute.xlu0 %4256
        %4258 = vrot.lane.b32.xlu0 %v3800, 127
        %v4259 = vpop.permute.xlu0 %4258
        %4260 = vrot.lane.b32.xlu0 %v3802, 127
        %v4261 = vpop.permute.xlu0 %4260
        %4262 = vrot.lane.b32.xlu0 %v3810, 127
        %v4263 = vpop.permute.xlu0 %4262
        %4264 = vrot.lane.b32.xlu0 %v3818, 127
        %v4265 = vpop.permute.xlu0 %4264
        %4266 = vrot.lane.b32.xlu0 %v3817, 127
        %v4267 = vpop.permute.xlu0 %4266
        %4268 = vrot.lane.b32.xlu0 %v3819, 127
        %v4269 = vpop.permute.xlu0 %4268
        %4270 = vrot.lane.b32.xlu0 %v3827, 127
        %v4271 = vpop.permute.xlu0 %4270
        %4272 = vrot.lane.b32.xlu0 %v3835, 127
        %v4273 = vpop.permute.xlu0 %4272
        %4274 = vrot.lane.b32.xlu0 %v3834, 127
        %v4275 = vpop.permute.xlu0 %4274
        %4276 = vrot.lane.b32.xlu0 %v3836, 127
        %v4277 = vpop.permute.xlu0 %4276
        %4278 = vrot.lane.b32.xlu0 %v3556, 127
        %v4279 = vpop.permute.xlu0 %4278
        %4280 = vrot.lane.b32.xlu0 %v3837, 127
        %v4281 = vpop.permute.xlu0 %4280
        %4282 = vrot.lane.b32.xlu0 %v3563, 127
        %v4283 = vpop.permute.xlu0 %4282
        %4284 = vrot.lane.b32.xlu0 %v3564, 127
        %v4285 = vpop.permute.xlu0 %4284
        %v4286 = vsel %vm1866, %v4159, %v4161
        %v4287 = vsel %vm1866, %v4161, %v4163
        %v4288 = vsel %vm1866, %v4163, %v4165
        %v4289 = vsel %vm1866, %v4165, %v4167
        %v4290 = vsel %vm1866, %v4167, %v4169
        %v4291 = vsel %vm1866, %v4169, %v4171
        %v4292 = vsel %vm1866, %v4171, %v4173
        %v4293 = vsel %vm1866, %v4173, %v4175
        %v4294 = vsel %vm1866, %v4175, %v4177
        %v4295 = vsel %vm1866, %v4177, %v4179
        %v4296 = vsel %vm1866, %v4179, %v4181
        %v4297 = vsel %vm1866, %v4181, %v4183
        %v4298 = vsel %vm1866, %v4183, %v4185
        %v4299 = vsel %vm1866, %v4185, %v4187
        %v4300 = vsel %vm1866, %v4187, %v4189
        %v4301 = vsel %vm1866, %v4189, %v4191
        %v4302 = vsel %vm1866, %v4191, %v4193
        %v4303 = vsel %vm1866, %v4193, %v4195
        %v4304 = vsel %vm1866, %v4195, %v4197
        %v4305 = vsel %vm1866, %v4197, %v4199
        %v4306 = vsel %vm1866, %v4199, %v4201
        %v4307 = vsel %vm1866, %v4201, %v4203
        %v4308 = vsel %vm1866, %v4203, %v4205
        %v4309 = vsel %vm1866, %v4205, %v4207
        %v4310 = vsel %vm1866, %v4207, %v4209
        %v4311 = vsel %vm1866, %v4209, %v4211
        %v4312 = vsel %vm1866, %v4211, %v4213
        %v4313 = vsel %vm1866, %v4213, %v4215
        %v4314 = vsel %vm1866, %v4215, %v4217
        %v4315 = vsel %vm1866, %v4217, %v4219
        %v4316 = vsel %vm1866, %v4219, %v4221
        %v4317 = vsel %vm1866, %v4221, %v4223
        %v4318 = vsel %vm1866, %v4223, %v4225
        %v4319 = vsel %vm1866, %v4225, %v4227
        %v4320 = vsel %vm1866, %v4227, %v4229
        %v4321 = vsel %vm1866, %v4229, %v4231
        %v4322 = vsel %vm1866, %v4231, %v4233
        %v4323 = vsel %vm1866, %v4233, %v4235
        %v4324 = vsel %vm1866, %v4235, %v4237
        %v4325 = vsel %vm1866, %v4237, %v4239
        %v4326 = vsel %vm1866, %v4239, %v4241
        %v4327 = vsel %vm1866, %v4241, %v4243
        %v4328 = vsel %vm1866, %v4243, %v4245
        %v4329 = vsel %vm1866, %v4245, %v4247
        %v4330 = vsel %vm1866, %v4247, %v4249
        %v4331 = vsel %vm1866, %v4249, %v4251
        %v4332 = vsel %vm1866, %v4251, %v4253
        %v4333 = vsel %vm1866, %v4253, %v4255
        %v4334 = vsel %vm1866, %v4255, %v4257
        %v4335 = vsel %vm1866, %v4257, %v4259
        %v4336 = vsel %vm1866, %v4259, %v4261
        %v4337 = vsel %vm1866, %v4261, %v4263
        %v4338 = vsel %vm1866, %v4263, %v4265
        %v4339 = vsel %vm1866, %v4265, %v4267
        %v4340 = vsel %vm1866, %v4267, %v4269
        %v4341 = vsel %vm1866, %v4269, %v4271
        %v4342 = vsel %vm1866, %v4271, %v4273
        %v4343 = vsel %vm1866, %v4273, %v4275
        %v4344 = vsel %vm1866, %v4275, %v4277
        %v4345 = vsel %vm1866, %v4277, %v4279
        %v4346 = vsel %vm1866, %v4279, %v4281
        %v4347 = vsel %vm1866, %v4281, %v4283
        %v4348 = vsel %vm1866, %v4283, %v4285
        %v4414 = vsel %vm1993, %v4285, %v4159
        %v4416 = vsel %vm2446, %v4286, 0
        %v4417 = vsel %vm2447, %v4287, 0
        %v4418 = vsel %vm2448, %v4288, 0
        %v4419 = vsel %vm2449, %v4289, 0
        %v4420 = vsel %vm2450, %v4290, 0
        %v4421 = vsel %vm2451, %v4291, 0
        %v4422 = vsel %vm2452, %v4292, 0
        %v4423 = vsel %vm2453, %v4293, 0
        %v4424 = vsel %vm2454, %v4294, 0
        %v4425 = vsel %vm2455, %v4295, 0
        %v4426 = vsel %vm2456, %v4296, 0
        %v4427 = vsel %vm2457, %v4297, 0
        %v4428 = vsel %vm2458, %v4298, 0
        %v4429 = vsel %vm2459, %v4299, 0
        %v4430 = vsel %vm2460, %v4300, 0
        %v4431 = vsel %vm2461, %v4301, 0
        %v4432 = vsel %vm2462, %v4302, 0
        %v4433 = vsel %vm2463, %v4303, 0
        %v4434 = vsel %vm2464, %v4304, 0
        %v4435 = vsel %vm2465, %v4305, 0
        %v4436 = vsel %vm2466, %v4306, 0
        %v4437 = vsel %vm2467, %v4307, 0
        %v4438 = vsel %vm2468, %v4308, 0
        %v4439 = vsel %vm2469, %v4309, 0
        %v4440 = vsel %vm2470, %v4310, 0
        %v4441 = vsel %vm2471, %v4311, 0
        %v4442 = vsel %vm2472, %v4312, 0
        %v4443 = vsel %vm2473, %v4313, 0
        %v4444 = vsel %vm2474, %v4314, 0
        %v4445 = vsel %vm2475, %v4315, 0
        %v4446 = vsel %vm2476, %v4316, 0
        %v4447 = vsel %vm2477, %v4317, 0
        %v4448 = vsel %vm2478, %v4318, 0
        %v4449 = vsel %vm2479, %v4319, 0
        %v4450 = vsel %vm2480, %v4320, 0
        %v4451 = vsel %vm2481, %v4321, 0
        %v4452 = vsel %vm2482, %v4322, 0
        %v4453 = vsel %vm2483, %v4323, 0
        %v4454 = vsel %vm2484, %v4324, 0
        %v4455 = vsel %vm2485, %v4325, 0
        %v4456 = vsel %vm2486, %v4326, 0
        %v4457 = vsel %vm2487, %v4327, 0
        %v4458 = vsel %vm2488, %v4328, 0
        %v4459 = vsel %vm2489, %v4329, 0
        %v4460 = vsel %vm2490, %v4330, 0
        %v4461 = vsel %vm2491, %v4331, 0
        %v4462 = vsel %vm2492, %v4332, 0
        %v4463 = vsel %vm2493, %v4333, 0
        %v4464 = vsel %vm2494, %v4334, 0
        %v4465 = vsel %vm2495, %v4335, 0
        %v4466 = vsel %vm2496, %v4336, 0
        %v4467 = vsel %vm2497, %v4337, 0
        %v4468 = vsel %vm2498, %v4338, 0
        %v4469 = vsel %vm2499, %v4339, 0
        %v4470 = vsel %vm2500, %v4340, 0
        %v4471 = vsel %vm2501, %v4341, 0
        %v4472 = vsel %vm2502, %v4342, 0
        %v4473 = vsel %vm2503, %v4343, 0
        %v4474 = vsel %vm2504, %v4344, 0
        %v4475 = vsel %vm2505, %v4345, 0
        %v4476 = vsel %vm2506, %v4346, 0
        %v4477 = vsel %vm2507, %v4347, 0
        %v4478 = vsel %vm2508, %v4348, 0
        %v4479 = vsel %vm2509, %v4414, 0
        %vm4480 = vcmask 1041408
        %v4483 = vsel %vm4480, %v1674, 0
        %v4486 = vsel %vm4480, %v1675, 0
        %v4489 = vsel %vm4480, %v1676, 0
        %v4492 = vsel %vm4480, %v1677, 0
        %v4495 = vsel %vm4480, %v1678, 0
        %v4498 = vsel %vm4480, %v1679, 0
        %v4501 = vsel %vm4480, %v1680, 0
        %v4504 = vsel %vm4480, %v1681, 0
        %v4507 = vsel %vm4480, %v1682, 0
        %v4510 = vsel %vm4480, %v1683, 0
        %v4513 = vsel %vm4480, %v1684, 0
        %v4516 = vsel %vm4480, %v1685, 0
        %v4519 = vsel %vm4480, %v1686, 0
        %v4522 = vsel %vm4480, %v1687, 0
        %v4525 = vsel %vm4480, %v1688, 0
        %v4528 = vsel %vm4480, %v1689, 0
        %v4531 = vsel %vm4480, %v1690, 0
        %v4534 = vsel %vm4480, %v1691, 0
        %v4537 = vsel %vm4480, %v1692, 0
        %v4540 = vsel %vm4480, %v1693, 0
        %v4543 = vsel %vm4480, %v1694, 0
        %v4546 = vsel %vm4480, %v1695, 0
        %v4549 = vsel %vm4480, %v1696, 0
        %v4552 = vsel %vm4480, %v1697, 0
        %v4555 = vsel %vm4480, %v1698, 0
        %v4558 = vsel %vm4480, %v1699, 0
        %v4561 = vsel %vm4480, %v1700, 0
        %v4564 = vsel %vm4480, %v1701, 0
        %v4567 = vsel %vm4480, %v1702, 0
        %v4570 = vsel %vm4480, %v1703, 0
        %v4573 = vsel %vm4480, %v1704, 0
        %v4576 = vsel %vm4480, %v1705, 0
        %v4579 = vsel %vm4480, %v1706, 0
        %v4582 = vsel %vm4480, %v1707, 0
        %v4585 = vsel %vm4480, %v1708, 0
        %v4588 = vsel %vm4480, %v1709, 0
        %v4591 = vsel %vm4480, %v1710, 0
        %v4594 = vsel %vm4480, %v1711, 0
        %v4597 = vsel %vm4480, %v1712, 0
        %v4600 = vsel %vm4480, %v1713, 0
        %v4603 = vsel %vm4480, %v1714, 0
        %v4606 = vsel %vm4480, %v1715, 0
        %v4609 = vsel %vm4480, %v1716, 0
        %v4612 = vsel %vm4480, %v1717, 0
        %v4615 = vsel %vm4480, %v1718, 0
        %v4618 = vsel %vm4480, %v1719, 0
        %v4621 = vsel %vm4480, %v1720, 0
        %v4624 = vsel %vm4480, %v1721, 0
        %v4627 = vsel %vm4480, %v1722, 0
        %v4630 = vsel %vm4480, %v1723, 0
        %v4633 = vsel %vm4480, %v1724, 0
        %v4636 = vsel %vm4480, %v1725, 0
        %v4639 = vsel %vm4480, %v1726, 0
        %v4642 = vsel %vm4480, %v1727, 0
        %v4645 = vsel %vm4480, %v1728, 0
        %v4648 = vsel %vm4480, %v1729, 0
        %v4651 = vsel %vm4480, %v1730, 0
        %v4654 = vsel %vm4480, %v1731, 0
        %v4657 = vsel %vm4480, %v1732, 0
        %v4660 = vsel %vm4480, %v1733, 0
        %v4663 = vsel %vm4480, %v1734, 0
        %v4666 = vsel %vm4480, %v1735, 0
        %v4669 = vsel %vm4480, %v1736, 0
        %v4672 = vsel %vm4480, %v1737, 0
        %v4675 = vsel %vm4480, %v655, 0
        %v4678 = vsel %vm4480, %v663, 0
        %v4681 = vsel %vm4480, %v662, 0
        %v4684 = vsel %vm4480, %v664, 0
        %v4687 = vsel %vm4480, %v672, 0
        %v4690 = vsel %vm4480, %v680, 0
        %v4693 = vsel %vm4480, %v679, 0
        %v4696 = vsel %vm4480, %v681, 0
        %v4699 = vsel %vm4480, %v689, 0
        %v4702 = vsel %vm4480, %v697, 0
        %v4705 = vsel %vm4480, %v696, 0
        %v4708 = vsel %vm4480, %v698, 0
        %v4711 = vsel %vm4480, %v706, 0
        %v4714 = vsel %vm4480, %v714, 0
        %v4717 = vsel %vm4480, %v713, 0
        %v4720 = vsel %vm4480, %v715, 0
        %v4723 = vsel %vm4480, %v723, 0
        %v4726 = vsel %vm4480, %v731, 0
        %v4729 = vsel %vm4480, %v730, 0
        %v4732 = vsel %vm4480, %v732, 0
        %v4735 = vsel %vm4480, %v740, 0
        %v4738 = vsel %vm4480, %v748, 0
        %v4741 = vsel %vm4480, %v747, 0
        %v4744 = vsel %vm4480, %v749, 0
        %v4747 = vsel %vm4480, %v757, 0
        %v4750 = vsel %vm4480, %v765, 0
        %v4753 = vsel %vm4480, %v764, 0
        %v4756 = vsel %vm4480, %v766, 0
        %v4759 = vsel %vm4480, %v774, 0
        %v4762 = vsel %vm4480, %v782, 0
        %v4765 = vsel %vm4480, %v781, 0
        %v4768 = vsel %vm4480, %v783, 0
        %v4771 = vsel %vm4480, %v791, 0
        %v4774 = vsel %vm4480, %v799, 0
        %v4777 = vsel %vm4480, %v798, 0
        %v4780 = vsel %vm4480, %v800, 0
        %v4783 = vsel %vm4480, %v808, 0
        %v4786 = vsel %vm4480, %v816, 0
        %v4789 = vsel %vm4480, %v815, 0
        %v4792 = vsel %vm4480, %v817, 0
        %v4795 = vsel %vm4480, %v825, 0
        %v4798 = vsel %vm4480, %v833, 0
        %v4801 = vsel %vm4480, %v832, 0
        %v4804 = vsel %vm4480, %v834, 0
        %v4807 = vsel %vm4480, %v842, 0
        %v4810 = vsel %vm4480, %v850, 0
        %v4813 = vsel %vm4480, %v849, 0
        %v4816 = vsel %vm4480, %v851, 0
        %v4819 = vsel %vm4480, %v859, 0
        %v4822 = vsel %vm4480, %v867, 0
        %v4825 = vsel %vm4480, %v866, 0
        %v4828 = vsel %vm4480, %v868, 0
        %v4831 = vsel %vm4480, %v876, 0
        %v4834 = vsel %vm4480, %v884, 0
        %v4837 = vsel %vm4480, %v883, 0
        %v4840 = vsel %vm4480, %v885, 0
        %v4843 = vsel %vm4480, %v893, 0
        %v4846 = vsel %vm4480, %v901, 0
        %v4849 = vsel %vm4480, %v900, 0
        %v4852 = vsel %vm4480, %v902, 0
        %v4855 = vsel %vm4480, %v622, 0
        %v4858 = vsel %vm4480, %v903, 0
        %v4861 = vsel %vm4480, %v629, 0
        %v4864 = vsel %vm4480, %v630, 0
        %v4867 = vsel %vm4480, %v2510, 0
        %v4870 = vsel %vm4480, %v2511, 0
        %v4873 = vsel %vm4480, %v2512, 0
        %v4876 = vsel %vm4480, %v2513, 0
        %v4879 = vsel %vm4480, %v2514, 0
        %v4882 = vsel %vm4480, %v2515, 0
        %v4885 = vsel %vm4480, %v2516, 0
        %v4888 = vsel %vm4480, %v2517, 0
        %v4891 = vsel %vm4480, %v2518, 0
        %v4894 = vsel %vm4480, %v2519, 0
        %v4897 = vsel %vm4480, %v2520, 0
        %v4900 = vsel %vm4480, %v2521, 0
        %v4903 = vsel %vm4480, %v2522, 0
        %v4906 = vsel %vm4480, %v2523, 0
        %v4909 = vsel %vm4480, %v2524, 0
        %v4912 = vsel %vm4480, %v2525, 0
        %v4915 = vsel %vm4480, %v2526, 0
        %v4918 = vsel %vm4480, %v2527, 0
        %v4921 = vsel %vm4480, %v2528, 0
        %v4924 = vsel %vm4480, %v2529, 0
        %v4927 = vsel %vm4480, %v2530, 0
        %v4930 = vsel %vm4480, %v2531, 0
        %v4933 = vsel %vm4480, %v2532, 0
        %v4936 = vsel %vm4480, %v2533, 0
        %v4939 = vsel %vm4480, %v2534, 0
        %v4942 = vsel %vm4480, %v2535, 0
        %v4945 = vsel %vm4480, %v2536, 0
        %v4948 = vsel %vm4480, %v2537, 0
        %v4951 = vsel %vm4480, %v2538, 0
        %v4954 = vsel %vm4480, %v2539, 0
        %v4957 = vsel %vm4480, %v2540, 0
        %v4960 = vsel %vm4480, %v2541, 0
        %v4963 = vsel %vm4480, %v2542, 0
        %v4966 = vsel %vm4480, %v2543, 0
        %v4969 = vsel %vm4480, %v2544, 0
        %v4972 = vsel %vm4480, %v2545, 0
        %v4975 = vsel %vm4480, %v2546, 0
        %v4978 = vsel %vm4480, %v2547, 0
        %v4981 = vsel %vm4480, %v2548, 0
        %v4984 = vsel %vm4480, %v2549, 0
        %v4987 = vsel %vm4480, %v2550, 0
        %v4990 = vsel %vm4480, %v2551, 0
        %v4993 = vsel %vm4480, %v2552, 0
        %v4996 = vsel %vm4480, %v2553, 0
        %v4999 = vsel %vm4480, %v2554, 0
        %v5002 = vsel %vm4480, %v2555, 0
        %v5005 = vsel %vm4480, %v2556, 0
        %v5008 = vsel %vm4480, %v2557, 0
        %v5011 = vsel %vm4480, %v2558, 0
        %v5014 = vsel %vm4480, %v2559, 0
        %v5017 = vsel %vm4480, %v2560, 0
        %v5020 = vsel %vm4480, %v2561, 0
        %v5023 = vsel %vm4480, %v2562, 0
        %v5026 = vsel %vm4480, %v2563, 0
        %v5029 = vsel %vm4480, %v2564, 0
        %v5032 = vsel %vm4480, %v2565, 0
        %v5035 = vsel %vm4480, %v2566, 0
        %v5038 = vsel %vm4480, %v2567, 0
        %v5041 = vsel %vm4480, %v2568, 0
        %v5044 = vsel %vm4480, %v2569, 0
        %v5047 = vsel %vm4480, %v2570, 0
        %v5050 = vsel %vm4480, %v2571, 0
        %v5053 = vsel %vm4480, %v2572, 0
        %v5056 = vsel %vm4480, %v2573, 0
        %v5059 = vsel %vm4480, %v3141, 0
        %v5062 = vsel %vm4480, %v3142, 0
        %v5065 = vsel %vm4480, %v3143, 0
        %v5068 = vsel %vm4480, %v3144, 0
        %v5071 = vsel %vm4480, %v3145, 0
        %v5074 = vsel %vm4480, %v3146, 0
        %v5077 = vsel %vm4480, %v3147, 0
        %v5080 = vsel %vm4480, %v3148, 0
        %v5083 = vsel %vm4480, %v3149, 0
        %v5086 = vsel %vm4480, %v3150, 0
        %v5089 = vsel %vm4480, %v3151, 0
        %v5092 = vsel %vm4480, %v3152, 0
        %v5095 = vsel %vm4480, %v3153, 0
        %v5098 = vsel %vm4480, %v3154, 0
        %v5101 = vsel %vm4480, %v3155, 0
        %v5104 = vsel %vm4480, %v3156, 0
        %v5107 = vsel %vm4480, %v3157, 0
        %v5110 = vsel %vm4480, %v3158, 0
        %v5113 = vsel %vm4480, %v3159, 0
        %v5116 = vsel %vm4480, %v3160, 0
        %v5119 = vsel %vm4480, %v3161, 0
        %v5122 = vsel %vm4480, %v3162, 0
        %v5125 = vsel %vm4480, %v3163, 0
        %v5128 = vsel %vm4480, %v3164, 0
        %v5131 = vsel %vm4480, %v3165, 0
        %v5134 = vsel %vm4480, %v3166, 0
        %v5137 = vsel %vm4480, %v3167, 0
        %v5140 = vsel %vm4480, %v3168, 0
        %v5143 = vsel %vm4480, %v3169, 0
        %v5146 = vsel %vm4480, %v3170, 0
        %v5149 = vsel %vm4480, %v3171, 0
        %v5152 = vsel %vm4480, %v3172, 0
        %v5155 = vsel %vm4480, %v3173, 0
        %v5158 = vsel %vm4480, %v3174, 0
        %v5161 = vsel %vm4480, %v3175, 0
        %v5164 = vsel %vm4480, %v3176, 0
        %v5167 = vsel %vm4480, %v3177, 0
        %v5170 = vsel %vm4480, %v3178, 0
        %v5173 = vsel %vm4480, %v3179, 0
        %v5176 = vsel %vm4480, %v3180, 0
        %v5179 = vsel %vm4480, %v3181, 0
        %v5182 = vsel %vm4480, %v3182, 0
        %v5185 = vsel %vm4480, %v3183, 0
        %v5188 = vsel %vm4480, %v3184, 0
        %v5191 = vsel %vm4480, %v3185, 0
        %v5194 = vsel %vm4480, %v3186, 0
        %v5197 = vsel %vm4480, %v3187, 0
        %v5200 = vsel %vm4480, %v3188, 0
        %v5203 = vsel %vm4480, %v3189, 0
        %v5206 = vsel %vm4480, %v3190, 0
        %v5209 = vsel %vm4480, %v3191, 0
        %v5212 = vsel %vm4480, %v3192, 0
        %v5215 = vsel %vm4480, %v3193, 0
        %v5218 = vsel %vm4480, %v3194, 0
        %v5221 = vsel %vm4480, %v3195, 0
        %v5224 = vsel %vm4480, %v3196, 0
        %v5227 = vsel %vm4480, %v3197, 0
        %v5230 = vsel %vm4480, %v3198, 0
        %v5233 = vsel %vm4480, %v3199, 0
        %v5236 = vsel %vm4480, %v3200, 0
        %v5239 = vsel %vm4480, %v3201, 0
        %v5242 = vsel %vm4480, %v3202, 0
        %v5245 = vsel %vm4480, %v3203, 0
        %v5248 = vsel %vm4480, %v3204, 0
        %v5251 = vsel %vm4480, %v2636, 0
        %v5254 = vsel %vm4480, %v2644, 0
        %v5257 = vsel %vm4480, %v2643, 0
        %v5260 = vsel %vm4480, %v2645, 0
        %v5263 = vsel %vm4480, %v2653, 0
        %v5266 = vsel %vm4480, %v2661, 0
        %v5269 = vsel %vm4480, %v2660, 0
        %v5272 = vsel %vm4480, %v2662, 0
        %v5275 = vsel %vm4480, %v2670, 0
        %v5278 = vsel %vm4480, %v2678, 0
        %v5281 = vsel %vm4480, %v2677, 0
        %v5284 = vsel %vm4480, %v2679, 0
        %v5287 = vsel %vm4480, %v2687, 0
        %v5290 = vsel %vm4480, %v2695, 0
        %v5293 = vsel %vm4480, %v2694, 0
        %v5296 = vsel %vm4480, %v2696, 0
        %v5299 = vsel %vm4480, %v2704, 0
        %v5302 = vsel %vm4480, %v2712, 0
        %v5305 = vsel %vm4480, %v2711, 0
        %v5308 = vsel %vm4480, %v2713, 0
        %v5311 = vsel %vm4480, %v2721, 0
        %v5314 = vsel %vm4480, %v2729, 0
        %v5317 = vsel %vm4480, %v2728, 0
        %v5320 = vsel %vm4480, %v2730, 0
        %v5323 = vsel %vm4480, %v2738, 0
        %v5326 = vsel %vm4480, %v2746, 0
        %v5329 = vsel %vm4480, %v2745, 0
        %v5332 = vsel %vm4480, %v2747, 0
        %v5335 = vsel %vm4480, %v2755, 0
        %v5338 = vsel %vm4480, %v2763, 0
        %v5341 = vsel %vm4480, %v2762, 0
        %v5344 = vsel %vm4480, %v2764, 0
        %v5347 = vsel %vm4480, %v2772, 0
        %v5350 = vsel %vm4480, %v2780, 0
        %v5353 = vsel %vm4480, %v2779, 0
        %v5356 = vsel %vm4480, %v2781, 0
        %v5359 = vsel %vm4480, %v2789, 0
        %v5362 = vsel %vm4480, %v2797, 0
        %v5365 = vsel %vm4480, %v2796, 0
        %v5368 = vsel %vm4480, %v2798, 0
        %v5371 = vsel %vm4480, %v2806, 0
        %v5374 = vsel %vm4480, %v2814, 0
        %v5377 = vsel %vm4480, %v2813, 0
        %v5380 = vsel %vm4480, %v2815, 0
        %v5383 = vsel %vm4480, %v2823, 0
        %v5386 = vsel %vm4480, %v2831, 0
        %v5389 = vsel %vm4480, %v2830, 0
        %v5392 = vsel %vm4480, %v2832, 0
        %v5395 = vsel %vm4480, %v2840, 0
        %v5398 = vsel %vm4480, %v2848, 0
        %v5401 = vsel %vm4480, %v2847, 0
        %v5404 = vsel %vm4480, %v2849, 0
        %v5407 = vsel %vm4480, %v2857, 0
        %v5410 = vsel %vm4480, %v2865, 0
        %v5413 = vsel %vm4480, %v2864, 0
        %v5416 = vsel %vm4480, %v2866, 0
        %v5419 = vsel %vm4480, %v2874, 0
        %v5422 = vsel %vm4480, %v2882, 0
        %v5425 = vsel %vm4480, %v2881, 0
        %v5428 = vsel %vm4480, %v2883, 0
        %v5431 = vsel %vm4480, %v2603, 0
        %v5434 = vsel %vm4480, %v2884, 0
        %v5437 = vsel %vm4480, %v2610, 0
        %v5440 = vsel %vm4480, %v2611, 0
        %v5443 = vsel %vm4480, %v3463, 0
        %v5446 = vsel %vm4480, %v3464, 0
        %v5449 = vsel %vm4480, %v3465, 0
        %v5452 = vsel %vm4480, %v3466, 0
        %v5455 = vsel %vm4480, %v3467, 0
        %v5458 = vsel %vm4480, %v3468, 0
        %v5461 = vsel %vm4480, %v3469, 0
        %v5464 = vsel %vm4480, %v3470, 0
        %v5467 = vsel %vm4480, %v3471, 0
        %v5470 = vsel %vm4480, %v3472, 0
        %v5473 = vsel %vm4480, %v3473, 0
        %v5476 = vsel %vm4480, %v3474, 0
        %v5479 = vsel %vm4480, %v3475, 0
        %v5482 = vsel %vm4480, %v3476, 0
        %v5485 = vsel %vm4480, %v3477, 0
        %v5488 = vsel %vm4480, %v3478, 0
        %v5491 = vsel %vm4480, %v3479, 0
        %v5494 = vsel %vm4480, %v3480, 0
        %v5497 = vsel %vm4480, %v3481, 0
        %v5500 = vsel %vm4480, %v3482, 0
        %v5503 = vsel %vm4480, %v3483, 0
        %v5506 = vsel %vm4480, %v3484, 0
        %v5509 = vsel %vm4480, %v3485, 0
        %v5512 = vsel %vm4480, %v3486, 0
        %v5515 = vsel %vm4480, %v3487, 0
        %v5518 = vsel %vm4480, %v3488, 0
        %v5521 = vsel %vm4480, %v3489, 0
        %v5524 = vsel %vm4480, %v3490, 0
        %v5527 = vsel %vm4480, %v3491, 0
        %v5530 = vsel %vm4480, %v3492, 0
        %v5533 = vsel %vm4480, %v3493, 0
        %v5536 = vsel %vm4480, %v3494, 0
        %v5539 = vsel %vm4480, %v3495, 0
        %v5542 = vsel %vm4480, %v3496, 0
        %v5545 = vsel %vm4480, %v3497, 0
        %v5548 = vsel %vm4480, %v3498, 0
        %v5551 = vsel %vm4480, %v3499, 0
        %v5554 = vsel %vm4480, %v3500, 0
        %v5557 = vsel %vm4480, %v3501, 0
        %v5560 = vsel %vm4480, %v3502, 0
        %v5563 = vsel %vm4480, %v3503, 0
        %v5566 = vsel %vm4480, %v3504, 0
        %v5569 = vsel %vm4480, %v3505, 0
        %v5572 = vsel %vm4480, %v3506, 0
        %v5575 = vsel %vm4480, %v3507, 0
        %v5578 = vsel %vm4480, %v3508, 0
        %v5581 = vsel %vm4480, %v3509, 0
        %v5584 = vsel %vm4480, %v3510, 0
        %v5587 = vsel %vm4480, %v3511, 0
        %v5590 = vsel %vm4480, %v3512, 0
        %v5593 = vsel %vm4480, %v3513, 0
        %v5596 = vsel %vm4480, %v3514, 0
        %v5599 = vsel %vm4480, %v3515, 0
        %v5602 = vsel %vm4480, %v3516, 0
        %v5605 = vsel %vm4480, %v3517, 0
        %v5608 = vsel %vm4480, %v3518, 0
        %v5611 = vsel %vm4480, %v3519, 0
        %v5614 = vsel %vm4480, %v3520, 0
        %v5617 = vsel %vm4480, %v3521, 0
        %v5620 = vsel %vm4480, %v3522, 0
        %v5623 = vsel %vm4480, %v3523, 0
        %v5626 = vsel %vm4480, %v3524, 0
        %v5629 = vsel %vm4480, %v3525, 0
        %v5632 = vsel %vm4480, %v3526, 0
        %v5635 = vsel %vm4480, %v4094, 0
        %v5638 = vsel %vm4480, %v4095, 0
        %v5641 = vsel %vm4480, %v4096, 0
        %v5644 = vsel %vm4480, %v4097, 0
        %v5647 = vsel %vm4480, %v4098, 0
        %v5650 = vsel %vm4480, %v4099, 0
        %v5653 = vsel %vm4480, %v4100, 0
        %v5656 = vsel %vm4480, %v4101, 0
        %v5659 = vsel %vm4480, %v4102, 0
        %v5662 = vsel %vm4480, %v4103, 0
        %v5665 = vsel %vm4480, %v4104, 0
        %v5668 = vsel %vm4480, %v4105, 0
        %v5671 = vsel %vm4480, %v4106, 0
        %v5674 = vsel %vm4480, %v4107, 0
        %v5677 = vsel %vm4480, %v4108, 0
        %v5680 = vsel %vm4480, %v4109, 0
        %v5683 = vsel %vm4480, %v4110, 0
        %v5686 = vsel %vm4480, %v4111, 0
        %v5689 = vsel %vm4480, %v4112, 0
        %v5692 = vsel %vm4480, %v4113, 0
        %v5695 = vsel %vm4480, %v4114, 0
        %v5698 = vsel %vm4480, %v4115, 0
        %v5701 = vsel %vm4480, %v4116, 0
        %v5704 = vsel %vm4480, %v4117, 0
        %v5707 = vsel %vm4480, %v4118, 0
        %v5710 = vsel %vm4480, %v4119, 0
        %v5713 = vsel %vm4480, %v4120, 0
        %v5716 = vsel %vm4480, %v4121, 0
        %v5719 = vsel %vm4480, %v4122, 0
        %v5722 = vsel %vm4480, %v4123, 0
        %v5725 = vsel %vm4480, %v4124, 0
        %v5728 = vsel %vm4480, %v4125, 0
        %v5731 = vsel %vm4480, %v4126, 0
        %v5734 = vsel %vm4480, %v4127, 0
        %v5737 = vsel %vm4480, %v4128, 0
        %v5740 = vsel %vm4480, %v4129, 0
        %v5743 = vsel %vm4480, %v4130, 0
        %v5746 = vsel %vm4480, %v4131, 0
        %v5749 = vsel %vm4480, %v4132, 0
        %v5752 = vsel %vm4480, %v4133, 0
        %v5755 = vsel %vm4480, %v4134, 0
        %v5758 = vsel %vm4480, %v4135, 0
        %v5761 = vsel %vm4480, %v4136, 0
        %v5764 = vsel %vm4480, %v4137, 0
        %v5767 = vsel %vm4480, %v4138, 0
        %v5770 = vsel %vm4480, %v4139, 0
        %v5773 = vsel %vm4480, %v4140, 0
        %v5776 = vsel %vm4480, %v4141, 0
        %v5779 = vsel %vm4480, %v4142, 0
        %v5782 = vsel %vm4480, %v4143, 0
        %v5785 = vsel %vm4480, %v4144, 0
        %v5788 = vsel %vm4480, %v4145, 0
        %v5791 = vsel %vm4480, %v4146, 0
        %v5794 = vsel %vm4480, %v4147, 0
        %v5797 = vsel %vm4480, %v4148, 0
        %v5800 = vsel %vm4480, %v4149, 0
        %v5803 = vsel %vm4480, %v4150, 0
        %v5806 = vsel %vm4480, %v4151, 0
        %v5809 = vsel %vm4480, %v4152, 0
        %v5812 = vsel %vm4480, %v4153, 0
        %v5815 = vsel %vm4480, %v4154, 0
        %v5818 = vsel %vm4480, %v4155, 0
        %v5821 = vsel %vm4480, %v4156, 0
        %v5824 = vsel %vm4480, %v4157, 0
        %v5827 = vsel %vm4480, %v3589, 0
        %v5830 = vsel %vm4480, %v3597, 0
        %v5833 = vsel %vm4480, %v3596, 0
        %v5836 = vsel %vm4480, %v3598, 0
        %v5839 = vsel %vm4480, %v3606, 0
        %v5842 = vsel %vm4480, %v3614, 0
        %v5845 = vsel %vm4480, %v3613, 0
        %v5848 = vsel %vm4480, %v3615, 0
        %v5851 = vsel %vm4480, %v3623, 0
        %v5854 = vsel %vm4480, %v3631, 0
        %v5857 = vsel %vm4480, %v3630, 0
        %v5860 = vsel %vm4480, %v3632, 0
        %v5863 = vsel %vm4480, %v3640, 0
        %v5866 = vsel %vm4480, %v3648, 0
        %v5869 = vsel %vm4480, %v3647, 0
        %v5872 = vsel %vm4480, %v3649, 0
        %v5875 = vsel %vm4480, %v3657, 0
        %v5878 = vsel %vm4480, %v3665, 0
        %v5881 = vsel %vm4480, %v3664, 0
        %v5884 = vsel %vm4480, %v3666, 0
        %v5887 = vsel %vm4480, %v3674, 0
        %v5890 = vsel %vm4480, %v3682, 0
        %v5893 = vsel %vm4480, %v3681, 0
        %v5896 = vsel %vm4480, %v3683, 0
        %v5899 = vsel %vm4480, %v3691, 0
        %v5902 = vsel %vm4480, %v3699, 0
        %v5905 = vsel %vm4480, %v3698, 0
        %v5908 = vsel %vm4480, %v3700, 0
        %v5911 = vsel %vm4480, %v3708, 0
        %v5914 = vsel %vm4480, %v3716, 0
        %v5917 = vsel %vm4480, %v3715, 0
        %v5920 = vsel %vm4480, %v3717, 0
        %v5923 = vsel %vm4480, %v3725, 0
        %v5926 = vsel %vm4480, %v3733, 0
        %v5929 = vsel %vm4480, %v3732, 0
        %v5932 = vsel %vm4480, %v3734, 0
        %v5935 = vsel %vm4480, %v3742, 0
        %v5938 = vsel %vm4480, %v3750, 0
        %v5941 = vsel %vm4480, %v3749, 0
        %v5944 = vsel %vm4480, %v3751, 0
        %v5947 = vsel %vm4480, %v3759, 0
        %v5950 = vsel %vm4480, %v3767, 0
        %v5953 = vsel %vm4480, %v3766, 0
        %v5956 = vsel %vm4480, %v3768, 0
        %v5959 = vsel %vm4480, %v3776, 0
        %v5962 = vsel %vm4480, %v3784, 0
        %v5965 = vsel %vm4480, %v3783, 0
        %v5968 = vsel %vm4480, %v3785, 0
        %v5971 = vsel %vm4480, %v3793, 0
        %v5974 = vsel %vm4480, %v3801, 0
        %v5977 = vsel %vm4480, %v3800, 0
        %v5980 = vsel %vm4480, %v3802, 0
        %v5983 = vsel %vm4480, %v3810, 0
        %v5986 = vsel %vm4480, %v3818, 0
        %v5989 = vsel %vm4480, %v3817, 0
        %v5992 = vsel %vm4480, %v3819, 0
        %v5995 = vsel %vm4480, %v3827, 0
        %v5998 = vsel %vm4480, %v3835, 0
        %v6001 = vsel %vm4480, %v3834, 0
        %v6004 = vsel %vm4480, %v3836, 0
        %v6007 = vsel %vm4480, %v3556, 0
        %v6010 = vsel %vm4480, %v3837, 0
        %v6013 = vsel %vm4480, %v3563, 0
        %v6016 = vsel %vm4480, %v3564, 0
        %v6019 = vsel %vm4480, %v4416, 0
        %v6022 = vsel %vm4480, %v4417, 0
        %v6025 = vsel %vm4480, %v4418, 0
        %v6028 = vsel %vm4480, %v4419, 0
        %v6031 = vsel %vm4480, %v4420, 0
        %v6034 = vsel %vm4480, %v4421, 0
        %v6037 = vsel %vm4480, %v4422, 0
        %v6040 = vsel %vm4480, %v4423, 0
        %v6043 = vsel %vm4480, %v4424, 0
        %v6046 = vsel %vm4480, %v4425, 0
        %v6049 = vsel %vm4480, %v4426, 0
        %v6052 = vsel %vm4480, %v4427, 0
        %v6055 = vsel %vm4480, %v4428, 0
        %v6058 = vsel %vm4480, %v4429, 0
        %v6061 = vsel %vm4480, %v4430, 0
        %v6064 = vsel %vm4480, %v4431, 0
        %v6067 = vsel %vm4480, %v4432, 0
        %v6070 = vsel %vm4480, %v4433, 0
        %v6073 = vsel %vm4480, %v4434, 0
        %v6076 = vsel %vm4480, %v4435, 0
        %v6079 = vsel %vm4480, %v4436, 0
        %v6082 = vsel %vm4480, %v4437, 0
        %v6085 = vsel %vm4480, %v4438, 0
        %v6088 = vsel %vm4480, %v4439, 0
        %v6091 = vsel %vm4480, %v4440, 0
        %v6094 = vsel %vm4480, %v4441, 0
        %v6097 = vsel %vm4480, %v4442, 0
        %v6100 = vsel %vm4480, %v4443, 0
        %v6103 = vsel %vm4480, %v4444, 0
        %v6106 = vsel %vm4480, %v4445, 0
        %v6109 = vsel %vm4480, %v4446, 0
        %v6112 = vsel %vm4480, %v4447, 0
        %v6115 = vsel %vm4480, %v4448, 0
        %v6118 = vsel %vm4480, %v4449, 0
        %v6121 = vsel %vm4480, %v4450, 0
        %v6124 = vsel %vm4480, %v4451, 0
        %v6127 = vsel %vm4480, %v4452, 0
        %v6130 = vsel %vm4480, %v4453, 0
        %v6133 = vsel %vm4480, %v4454, 0
        %v6136 = vsel %vm4480, %v4455, 0
        %v6139 = vsel %vm4480, %v4456, 0
        %v6142 = vsel %vm4480, %v4457, 0
        %v6145 = vsel %vm4480, %v4458, 0
        %v6148 = vsel %vm4480, %v4459, 0
        %v6151 = vsel %vm4480, %v4460, 0
        %v6154 = vsel %vm4480, %v4461, 0
        %v6157 = vsel %vm4480, %v4462, 0
        %v6160 = vsel %vm4480, %v4463, 0
        %v6163 = vsel %vm4480, %v4464, 0
        %v6166 = vsel %vm4480, %v4465, 0
        %v6169 = vsel %vm4480, %v4466, 0
        %v6172 = vsel %vm4480, %v4467, 0
        %v6175 = vsel %vm4480, %v4468, 0
        %v6178 = vsel %vm4480, %v4469, 0
        %v6181 = vsel %vm4480, %v4470, 0
        %v6184 = vsel %vm4480, %v4471, 0
        %v6187 = vsel %vm4480, %v4472, 0
        %v6190 = vsel %vm4480, %v4473, 0
        %v6193 = vsel %vm4480, %v4474, 0
        %v6196 = vsel %vm4480, %v4475, 0
        %v6199 = vsel %vm4480, %v4476, 0
        %v6202 = vsel %vm4480, %v4477, 0
        %v6205 = vsel %vm4480, %v4478, 0
        %v6208 = vsel %vm4480, %v4479, 0
        %v6210 = vld [vmem:[#allocation5] sm:$0xff]
        %v6211 = vld [vmem:[%s272] sm:$0xff]
        %v6212 = vld [vmem:[%s272 + $0x8] sm:$0xff]
        %v6213 = vld [vmem:[%s272 + $0x10] sm:$0xff]
        %v6214 = vld [vmem:[%s272 + $0x18] sm:$0xff]
        %v6215 = vld [vmem:[%s272 + $0x20] sm:$0xff]
        %v6216 = vld [vmem:[%s272 + $0x28] sm:$0xff]
        %v6217 = vld [vmem:[%s272 + $0x30] sm:$0xff]
        %v6218 = vld [vmem:[%s272 + $0x38] sm:$0xff]
        %v6219 = vunpack.c.l.bf16 %v6211
        %v6220 = vunpack.c.h.bf16 %v6211
        %v6221 = vunpack.c.l.bf16 %v6212
        %v6222 = vunpack.c.h.bf16 %v6212
        %v6223 = vunpack.c.l.bf16 %v6213
        %v6224 = vunpack.c.h.bf16 %v6213
        %v6225 = vunpack.c.l.bf16 %v6214
        %v6226 = vunpack.c.h.bf16 %v6214
        %v6227 = vunpack.c.l.bf16 %v6215
        %v6228 = vunpack.c.h.bf16 %v6215
        %v6229 = vunpack.c.l.bf16 %v6216
        %v6230 = vunpack.c.h.bf16 %v6216
        %v6231 = vunpack.c.l.bf16 %v6217
        %v6232 = vunpack.c.h.bf16 %v6217
        %v6233 = vunpack.c.l.bf16 %v6218
        %v6234 = vunpack.c.h.bf16 %v6218
        %v6251 = vlaneseq
        %v6252 = vshrl.u32 %v6251, 7
        %v6253 = vsub.s32 0, %v6252
        %v6254 = vrot.slane %v6219, %v6253
        %v6255 = vlaneseq
        %v6256 = vshrl.u32 %v6255, 7
        %v6257 = vsub.s32 2, %v6256
        %v6258 = vrot.slane %v6219, %v6257
        %v6259 = vlaneseq
        %v6260 = vshrl.u32 %v6259, 7
        %v6261 = vsub.s32 4, %v6260
        %v6262 = vrot.slane %v6219, %v6261
        %v6263 = vlaneseq
        %v6264 = vshrl.u32 %v6263, 7
        %v6265 = vsub.s32 6, %v6264
        %v6266 = vrot.slane %v6219, %v6265
        %v6267 = vlaneseq
        %v6268 = vshrl.u32 %v6267, 7
        %v6269 = vsub.s32 0, %v6268
        %v6270 = vrot.slane %v6220, %v6269
        %v6271 = vlaneseq
        %v6272 = vshrl.u32 %v6271, 7
        %v6273 = vsub.s32 2, %v6272
        %v6274 = vrot.slane %v6220, %v6273
        %v6275 = vlaneseq
        %v6276 = vshrl.u32 %v6275, 7
        %v6277 = vsub.s32 4, %v6276
        %v6278 = vrot.slane %v6220, %v6277
        %v6279 = vlaneseq
        %v6280 = vshrl.u32 %v6279, 7
        %v6281 = vsub.s32 6, %v6280
        %v6282 = vrot.slane %v6220, %v6281
        %v6283 = vlaneseq
        %v6284 = vshrl.u32 %v6283, 7
        %v6285 = vsub.s32 0, %v6284
        %v6286 = vrot.slane %v6221, %v6285
        %v6287 = vlaneseq
        %v6288 = vshrl.u32 %v6287, 7
        %v6289 = vsub.s32 2, %v6288
        %v6290 = vrot.slane %v6221, %v6289
        %v6291 = vlaneseq
        %v6292 = vshrl.u32 %v6291, 7
        %v6293 = vsub.s32 4, %v6292
        %v6294 = vrot.slane %v6221, %v6293
        %v6295 = vlaneseq
        %v6296 = vshrl.u32 %v6295, 7
        %v6297 = vsub.s32 6, %v6296
        %v6298 = vrot.slane %v6221, %v6297
        %v6299 = vlaneseq
        %v6300 = vshrl.u32 %v6299, 7
        %v6301 = vsub.s32 0, %v6300
        %v6302 = vrot.slane %v6222, %v6301
        %v6303 = vlaneseq
        %v6304 = vshrl.u32 %v6303, 7
        %v6305 = vsub.s32 2, %v6304
        %v6306 = vrot.slane %v6222, %v6305
        %v6307 = vlaneseq
        %v6308 = vshrl.u32 %v6307, 7
        %v6309 = vsub.s32 4, %v6308
        %v6310 = vrot.slane %v6222, %v6309
        %v6311 = vlaneseq
        %v6312 = vshrl.u32 %v6311, 7
        %v6313 = vsub.s32 6, %v6312
        %v6314 = vrot.slane %v6222, %v6313
        %v6315 = vlaneseq
        %v6316 = vshrl.u32 %v6315, 7
        %v6317 = vsub.s32 0, %v6316
        %v6318 = vrot.slane %v6223, %v6317
        %v6319 = vlaneseq
        %v6320 = vshrl.u32 %v6319, 7
        %v6321 = vsub.s32 2, %v6320
        %v6322 = vrot.slane %v6223, %v6321
        %v6323 = vlaneseq
        %v6324 = vshrl.u32 %v6323, 7
        %v6325 = vsub.s32 4, %v6324
        %v6326 = vrot.slane %v6223, %v6325
        %v6327 = vlaneseq
        %v6328 = vshrl.u32 %v6327, 7
        %v6329 = vsub.s32 6, %v6328
        %v6330 = vrot.slane %v6223, %v6329
        %v6331 = vlaneseq
        %v6332 = vshrl.u32 %v6331, 7
        %v6333 = vsub.s32 0, %v6332
        %v6334 = vrot.slane %v6224, %v6333
        %v6335 = vlaneseq
        %v6336 = vshrl.u32 %v6335, 7
        %v6337 = vsub.s32 2, %v6336
        %v6338 = vrot.slane %v6224, %v6337
        %v6339 = vlaneseq
        %v6340 = vshrl.u32 %v6339, 7
        %v6341 = vsub.s32 4, %v6340
        %v6342 = vrot.slane %v6224, %v6341
        %v6343 = vlaneseq
        %v6344 = vshrl.u32 %v6343, 7
        %v6345 = vsub.s32 6, %v6344
        %v6346 = vrot.slane %v6224, %v6345
        %v6347 = vlaneseq
        %v6348 = vshrl.u32 %v6347, 7
        %v6349 = vsub.s32 0, %v6348
        %v6350 = vrot.slane %v6225, %v6349
        %v6351 = vlaneseq
        %v6352 = vshrl.u32 %v6351, 7
        %v6353 = vsub.s32 2, %v6352
        %v6354 = vrot.slane %v6225, %v6353
        %v6355 = vlaneseq
        %v6356 = vshrl.u32 %v6355, 7
        %v6357 = vsub.s32 4, %v6356
        %v6358 = vrot.slane %v6225, %v6357
        %v6359 = vlaneseq
        %v6360 = vshrl.u32 %v6359, 7
        %v6361 = vsub.s32 6, %v6360
        %v6362 = vrot.slane %v6225, %v6361
        %v6363 = vlaneseq
        %v6364 = vshrl.u32 %v6363, 7
        %v6365 = vsub.s32 0, %v6364
        %v6366 = vrot.slane %v6226, %v6365
        %v6367 = vlaneseq
        %v6368 = vshrl.u32 %v6367, 7
        %v6369 = vsub.s32 2, %v6368
        %v6370 = vrot.slane %v6226, %v6369
        %v6371 = vlaneseq
        %v6372 = vshrl.u32 %v6371, 7
        %v6373 = vsub.s32 4, %v6372
        %v6374 = vrot.slane %v6226, %v6373
        %v6375 = vlaneseq
        %v6376 = vshrl.u32 %v6375, 7
        %v6377 = vsub.s32 6, %v6376
        %v6378 = vrot.slane %v6226, %v6377
        %v6379 = vlaneseq
        %v6380 = vshrl.u32 %v6379, 7
        %v6381 = vsub.s32 0, %v6380
        %v6382 = vrot.slane %v6227, %v6381
        %v6383 = vlaneseq
        %v6384 = vshrl.u32 %v6383, 7
        %v6385 = vsub.s32 2, %v6384
        %v6386 = vrot.slane %v6227, %v6385
        %v6387 = vlaneseq
        %v6388 = vshrl.u32 %v6387, 7
        %v6389 = vsub.s32 4, %v6388
        %v6390 = vrot.slane %v6227, %v6389
        %v6391 = vlaneseq
        %v6392 = vshrl.u32 %v6391, 7
        %v6393 = vsub.s32 6, %v6392
        %v6394 = vrot.slane %v6227, %v6393
        %v6395 = vlaneseq
        %v6396 = vshrl.u32 %v6395, 7
        %v6397 = vsub.s32 0, %v6396
        %v6398 = vrot.slane %v6228, %v6397
        %v6399 = vlaneseq
        %v6400 = vshrl.u32 %v6399, 7
        %v6401 = vsub.s32 2, %v6400
        %v6402 = vrot.slane %v6228, %v6401
        %v6403 = vlaneseq
        %v6404 = vshrl.u32 %v6403, 7
        %v6405 = vsub.s32 4, %v6404
        %v6406 = vrot.slane %v6228, %v6405
        %v6407 = vlaneseq
        %v6408 = vshrl.u32 %v6407, 7
        %v6409 = vsub.s32 6, %v6408
        %v6410 = vrot.slane %v6228, %v6409
        %v6411 = vlaneseq
        %v6412 = vshrl.u32 %v6411, 7
        %v6413 = vsub.s32 0, %v6412
        %v6414 = vrot.slane %v6229, %v6413
        %v6415 = vlaneseq
        %v6416 = vshrl.u32 %v6415, 7
        %v6417 = vsub.s32 2, %v6416
        %v6418 = vrot.slane %v6229, %v6417
        %v6419 = vlaneseq
        %v6420 = vshrl.u32 %v6419, 7
        %v6421 = vsub.s32 4, %v6420
        %v6422 = vrot.slane %v6229, %v6421
        %v6423 = vlaneseq
        %v6424 = vshrl.u32 %v6423, 7
        %v6425 = vsub.s32 6, %v6424
        %v6426 = vrot.slane %v6229, %v6425
        %v6427 = vlaneseq
        %v6428 = vshrl.u32 %v6427, 7
        %v6429 = vsub.s32 0, %v6428
        %v6430 = vrot.slane %v6230, %v6429
        %v6431 = vlaneseq
        %v6432 = vshrl.u32 %v6431, 7
        %v6433 = vsub.s32 2, %v6432
        %v6434 = vrot.slane %v6230, %v6433
        %v6435 = vlaneseq
        %v6436 = vshrl.u32 %v6435, 7
        %v6437 = vsub.s32 4, %v6436
        %v6438 = vrot.slane %v6230, %v6437
        %v6439 = vlaneseq
        %v6440 = vshrl.u32 %v6439, 7
        %v6441 = vsub.s32 6, %v6440
        %v6442 = vrot.slane %v6230, %v6441
        %v6443 = vlaneseq
        %v6444 = vshrl.u32 %v6443, 7
        %v6445 = vsub.s32 0, %v6444
        %v6446 = vrot.slane %v6231, %v6445
        %v6447 = vlaneseq
        %v6448 = vshrl.u32 %v6447, 7
        %v6449 = vsub.s32 2, %v6448
        %v6450 = vrot.slane %v6231, %v6449
        %v6451 = vlaneseq
        %v6452 = vshrl.u32 %v6451, 7
        %v6453 = vsub.s32 4, %v6452
        %v6454 = vrot.slane %v6231, %v6453
        %v6455 = vlaneseq
        %v6456 = vshrl.u32 %v6455, 7
        %v6457 = vsub.s32 6, %v6456
        %v6458 = vrot.slane %v6231, %v6457
        %v6459 = vlaneseq
        %v6460 = vshrl.u32 %v6459, 7
        %v6461 = vsub.s32 0, %v6460
        %v6462 = vrot.slane %v6232, %v6461
        %v6463 = vlaneseq
        %v6464 = vshrl.u32 %v6463, 7
        %v6465 = vsub.s32 2, %v6464
        %v6466 = vrot.slane %v6232, %v6465
        %v6467 = vlaneseq
        %v6468 = vshrl.u32 %v6467, 7
        %v6469 = vsub.s32 4, %v6468
        %v6470 = vrot.slane %v6232, %v6469
        %v6471 = vlaneseq
        %v6472 = vshrl.u32 %v6471, 7
        %v6473 = vsub.s32 6, %v6472
        %v6474 = vrot.slane %v6232, %v6473
        %v6475 = vlaneseq
        %v6476 = vshrl.u32 %v6475, 7
        %v6477 = vsub.s32 0, %v6476
        %v6478 = vrot.slane %v6233, %v6477
        %v6479 = vlaneseq
        %v6480 = vshrl.u32 %v6479, 7
        %v6481 = vsub.s32 2, %v6480
        %v6482 = vrot.slane %v6233, %v6481
        %v6483 = vlaneseq
        %v6484 = vshrl.u32 %v6483, 7
        %v6485 = vsub.s32 4, %v6484
        %v6486 = vrot.slane %v6233, %v6485
        %v6487 = vlaneseq
        %v6488 = vshrl.u32 %v6487, 7
        %v6489 = vsub.s32 6, %v6488
        %v6490 = vrot.slane %v6233, %v6489
        %v6491 = vlaneseq
        %v6492 = vshrl.u32 %v6491, 7
        %v6493 = vsub.s32 0, %v6492
        %v6494 = vrot.slane %v6234, %v6493
        %v6495 = vlaneseq
        %v6496 = vshrl.u32 %v6495, 7
        %v6497 = vsub.s32 2, %v6496
        %v6498 = vrot.slane %v6234, %v6497
        %v6499 = vlaneseq
        %v6500 = vshrl.u32 %v6499, 7
        %v6501 = vsub.s32 4, %v6500
        %v6502 = vrot.slane %v6234, %v6501
        %v6503 = vlaneseq
        %v6504 = vshrl.u32 %v6503, 7
        %v6505 = vsub.s32 6, %v6504
        %v6506 = vrot.slane %v6234, %v6505
        %v6571 = vlaneseq
        %v6572 = vshrl.u32 %v6571, 7
        %v6573 = vsub.s32 0, %v6572
        %v6574 = vrot.slane %v6254, %v6573
        %v6575 = vlaneseq
        %v6576 = vshrl.u32 %v6575, 7
        %v6577 = vsub.s32 0, %v6576
        %v6578 = vrot.slane %v6258, %v6577
        %v6579 = vlaneseq
        %v6580 = vshrl.u32 %v6579, 7
        %v6581 = vsub.s32 0, %v6580
        %v6582 = vrot.slane %v6262, %v6581
        %v6583 = vlaneseq
        %v6584 = vshrl.u32 %v6583, 7
        %v6585 = vsub.s32 0, %v6584
        %v6586 = vrot.slane %v6266, %v6585
        %v6587 = vlaneseq
        %v6588 = vshrl.u32 %v6587, 7
        %v6589 = vsub.s32 0, %v6588
        %v6590 = vrot.slane %v6270, %v6589
        %v6591 = vlaneseq
        %v6592 = vshrl.u32 %v6591, 7
        %v6593 = vsub.s32 0, %v6592
        %v6594 = vrot.slane %v6274, %v6593
        %v6595 = vlaneseq
        %v6596 = vshrl.u32 %v6595, 7
        %v6597 = vsub.s32 0, %v6596
        %v6598 = vrot.slane %v6278, %v6597
        %v6599 = vlaneseq
        %v6600 = vshrl.u32 %v6599, 7
        %v6601 = vsub.s32 0, %v6600
        %v6602 = vrot.slane %v6282, %v6601
        %v6603 = vlaneseq
        %v6604 = vshrl.u32 %v6603, 7
        %v6605 = vsub.s32 0, %v6604
        %v6606 = vrot.slane %v6286, %v6605
        %v6607 = vlaneseq
        %v6608 = vshrl.u32 %v6607, 7
        %v6609 = vsub.s32 0, %v6608
        %v6610 = vrot.slane %v6290, %v6609
        %v6611 = vlaneseq
        %v6612 = vshrl.u32 %v6611, 7
        %v6613 = vsub.s32 0, %v6612
        %v6614 = vrot.slane %v6294, %v6613
        %v6615 = vlaneseq
        %v6616 = vshrl.u32 %v6615, 7
        %v6617 = vsub.s32 0, %v6616
        %v6618 = vrot.slane %v6298, %v6617
        %v6619 = vlaneseq
        %v6620 = vshrl.u32 %v6619, 7
        %v6621 = vsub.s32 0, %v6620
        %v6622 = vrot.slane %v6302, %v6621
        %v6623 = vlaneseq
        %v6624 = vshrl.u32 %v6623, 7
        %v6625 = vsub.s32 0, %v6624
        %v6626 = vrot.slane %v6306, %v6625
        %v6627 = vlaneseq
        %v6628 = vshrl.u32 %v6627, 7
        %v6629 = vsub.s32 0, %v6628
        %v6630 = vrot.slane %v6310, %v6629
        %v6631 = vlaneseq
        %v6632 = vshrl.u32 %v6631, 7
        %v6633 = vsub.s32 0, %v6632
        %v6634 = vrot.slane %v6314, %v6633
        %v6635 = vlaneseq
        %v6636 = vshrl.u32 %v6635, 7
        %v6637 = vsub.s32 0, %v6636
        %v6638 = vrot.slane %v6318, %v6637
        %v6639 = vlaneseq
        %v6640 = vshrl.u32 %v6639, 7
        %v6641 = vsub.s32 0, %v6640
        %v6642 = vrot.slane %v6322, %v6641
        %v6643 = vlaneseq
        %v6644 = vshrl.u32 %v6643, 7
        %v6645 = vsub.s32 0, %v6644
        %v6646 = vrot.slane %v6326, %v6645
        %v6647 = vlaneseq
        %v6648 = vshrl.u32 %v6647, 7
        %v6649 = vsub.s32 0, %v6648
        %v6650 = vrot.slane %v6330, %v6649
        %v6651 = vlaneseq
        %v6652 = vshrl.u32 %v6651, 7
        %v6653 = vsub.s32 0, %v6652
        %v6654 = vrot.slane %v6334, %v6653
        %v6655 = vlaneseq
        %v6656 = vshrl.u32 %v6655, 7
        %v6657 = vsub.s32 0, %v6656
        %v6658 = vrot.slane %v6338, %v6657
        %v6659 = vlaneseq
        %v6660 = vshrl.u32 %v6659, 7
        %v6661 = vsub.s32 0, %v6660
        %v6662 = vrot.slane %v6342, %v6661
        %v6663 = vlaneseq
        %v6664 = vshrl.u32 %v6663, 7
        %v6665 = vsub.s32 0, %v6664
        %v6666 = vrot.slane %v6346, %v6665
        %v6667 = vlaneseq
        %v6668 = vshrl.u32 %v6667, 7
        %v6669 = vsub.s32 0, %v6668
        %v6670 = vrot.slane %v6350, %v6669
        %v6671 = vlaneseq
        %v6672 = vshrl.u32 %v6671, 7
        %v6673 = vsub.s32 0, %v6672
        %v6674 = vrot.slane %v6354, %v6673
        %v6675 = vlaneseq
        %v6676 = vshrl.u32 %v6675, 7
        %v6677 = vsub.s32 0, %v6676
        %v6678 = vrot.slane %v6358, %v6677
        %v6679 = vlaneseq
        %v6680 = vshrl.u32 %v6679, 7
        %v6681 = vsub.s32 0, %v6680
        %v6682 = vrot.slane %v6362, %v6681
        %v6683 = vlaneseq
        %v6684 = vshrl.u32 %v6683, 7
        %v6685 = vsub.s32 0, %v6684
        %v6686 = vrot.slane %v6366, %v6685
        %v6687 = vlaneseq
        %v6688 = vshrl.u32 %v6687, 7
        %v6689 = vsub.s32 0, %v6688
        %v6690 = vrot.slane %v6370, %v6689
        %v6691 = vlaneseq
        %v6692 = vshrl.u32 %v6691, 7
        %v6693 = vsub.s32 0, %v6692
        %v6694 = vrot.slane %v6374, %v6693
        %v6695 = vlaneseq
        %v6696 = vshrl.u32 %v6695, 7
        %v6697 = vsub.s32 0, %v6696
        %v6698 = vrot.slane %v6378, %v6697
        %v6699 = vlaneseq
        %v6700 = vshrl.u32 %v6699, 7
        %v6701 = vsub.s32 0, %v6700
        %v6702 = vrot.slane %v6382, %v6701
        %v6703 = vlaneseq
        %v6704 = vshrl.u32 %v6703, 7
        %v6705 = vsub.s32 0, %v6704
        %v6706 = vrot.slane %v6386, %v6705
        %v6707 = vlaneseq
        %v6708 = vshrl.u32 %v6707, 7
        %v6709 = vsub.s32 0, %v6708
        %v6710 = vrot.slane %v6390, %v6709
        %v6711 = vlaneseq
        %v6712 = vshrl.u32 %v6711, 7
        %v6713 = vsub.s32 0, %v6712
        %v6714 = vrot.slane %v6394, %v6713
        %v6715 = vlaneseq
        %v6716 = vshrl.u32 %v6715, 7
        %v6717 = vsub.s32 0, %v6716
        %v6718 = vrot.slane %v6398, %v6717
        %v6719 = vlaneseq
        %v6720 = vshrl.u32 %v6719, 7
        %v6721 = vsub.s32 0, %v6720
        %v6722 = vrot.slane %v6402, %v6721
        %v6723 = vlaneseq
        %v6724 = vshrl.u32 %v6723, 7
        %v6725 = vsub.s32 0, %v6724
        %v6726 = vrot.slane %v6406, %v6725
        %v6727 = vlaneseq
        %v6728 = vshrl.u32 %v6727, 7
        %v6729 = vsub.s32 0, %v6728
        %v6730 = vrot.slane %v6410, %v6729
        %v6731 = vlaneseq
        %v6732 = vshrl.u32 %v6731, 7
        %v6733 = vsub.s32 0, %v6732
        %v6734 = vrot.slane %v6414, %v6733
        %v6735 = vlaneseq
        %v6736 = vshrl.u32 %v6735, 7
        %v6737 = vsub.s32 0, %v6736
        %v6738 = vrot.slane %v6418, %v6737
        %v6739 = vlaneseq
        %v6740 = vshrl.u32 %v6739, 7
        %v6741 = vsub.s32 0, %v6740
        %v6742 = vrot.slane %v6422, %v6741
        %v6743 = vlaneseq
        %v6744 = vshrl.u32 %v6743, 7
        %v6745 = vsub.s32 0, %v6744
        %v6746 = vrot.slane %v6426, %v6745
        %v6747 = vlaneseq
        %v6748 = vshrl.u32 %v6747, 7
        %v6749 = vsub.s32 0, %v6748
        %v6750 = vrot.slane %v6430, %v6749
        %v6751 = vlaneseq
        %v6752 = vshrl.u32 %v6751, 7
        %v6753 = vsub.s32 0, %v6752
        %v6754 = vrot.slane %v6434, %v6753
        %v6755 = vlaneseq
        %v6756 = vshrl.u32 %v6755, 7
        %v6757 = vsub.s32 0, %v6756
        %v6758 = vrot.slane %v6438, %v6757
        %v6759 = vlaneseq
        %v6760 = vshrl.u32 %v6759, 7
        %v6761 = vsub.s32 0, %v6760
        %v6762 = vrot.slane %v6442, %v6761
        %v6763 = vlaneseq
        %v6764 = vshrl.u32 %v6763, 7
        %v6765 = vsub.s32 0, %v6764
        %v6766 = vrot.slane %v6446, %v6765
        %v6767 = vlaneseq
        %v6768 = vshrl.u32 %v6767, 7
        %v6769 = vsub.s32 0, %v6768
        %v6770 = vrot.slane %v6450, %v6769
        %v6771 = vlaneseq
        %v6772 = vshrl.u32 %v6771, 7
        %v6773 = vsub.s32 0, %v6772
        %v6774 = vrot.slane %v6454, %v6773
        %v6775 = vlaneseq
        %v6776 = vshrl.u32 %v6775, 7
        %v6777 = vsub.s32 0, %v6776
        %v6778 = vrot.slane %v6458, %v6777
        %v6779 = vlaneseq
        %v6780 = vshrl.u32 %v6779, 7
        %v6781 = vsub.s32 0, %v6780
        %v6782 = vrot.slane %v6462, %v6781
        %v6783 = vlaneseq
        %v6784 = vshrl.u32 %v6783, 7
        %v6785 = vsub.s32 0, %v6784
        %v6786 = vrot.slane %v6466, %v6785
        %v6787 = vlaneseq
        %v6788 = vshrl.u32 %v6787, 7
        %v6789 = vsub.s32 0, %v6788
        %v6790 = vrot.slane %v6470, %v6789
        %v6791 = vlaneseq
        %v6792 = vshrl.u32 %v6791, 7
        %v6793 = vsub.s32 0, %v6792
        %v6794 = vrot.slane %v6474, %v6793
        %v6795 = vlaneseq
        %v6796 = vshrl.u32 %v6795, 7
        %v6797 = vsub.s32 0, %v6796
        %v6798 = vrot.slane %v6478, %v6797
        %v6799 = vlaneseq
        %v6800 = vshrl.u32 %v6799, 7
        %v6801 = vsub.s32 0, %v6800
        %v6802 = vrot.slane %v6482, %v6801
        %v6803 = vlaneseq
        %v6804 = vshrl.u32 %v6803, 7
        %v6805 = vsub.s32 0, %v6804
        %v6806 = vrot.slane %v6486, %v6805
        %v6807 = vlaneseq
        %v6808 = vshrl.u32 %v6807, 7
        %v6809 = vsub.s32 0, %v6808
        %v6810 = vrot.slane %v6490, %v6809
        %v6811 = vlaneseq
        %v6812 = vshrl.u32 %v6811, 7
        %v6813 = vsub.s32 0, %v6812
        %v6814 = vrot.slane %v6494, %v6813
        %v6815 = vlaneseq
        %v6816 = vshrl.u32 %v6815, 7
        %v6817 = vsub.s32 0, %v6816
        %v6818 = vrot.slane %v6498, %v6817
        %v6819 = vlaneseq
        %v6820 = vshrl.u32 %v6819, 7
        %v6821 = vsub.s32 0, %v6820
        %v6822 = vrot.slane %v6502, %v6821
        %v6823 = vlaneseq
        %v6824 = vshrl.u32 %v6823, 7
        %v6825 = vsub.s32 0, %v6824
        %v6826 = vrot.slane %v6506, %v6825
        %v6828 = vunpack.c.l.b16 %v6210
        %v6829 = vunpack.c.h.b16 %v6210
        %v6830 = vpack.c.b16 %v6828, %v6828
        %v6831 = vpack.c.b16 %v6829, %v6829
        %vm6833 = vcmask 130048
        %v6835 = vsel %vm6833, %v6831, 0
        %6837 = vmatprep.subr.bf16.mxu0 %v4486
        %6838 = vmatpush1.bf16.msra.mxu0 %v4483
        %6839 = vmatprep.subr.bf16.mxu0 %v4678
        %6840 = vmatpush1.bf16.msra.mxu0 %v4675
        %6841 = vmatprep.subr.bf16.mxu0 %v4870
        %6842 = vmatpush1.bf16.msra.mxu0 %v4867
        %6843 = vmatprep.subr.bf16.mxu0 %v5062
        %6844 = vmatpush1.bf16.msra.mxu0 %v5059
        %6845 = vmatprep.subr.bf16.mxu0 %v5254
        %6846 = vmatpush1.bf16.msra.mxu0 %v5251
        %6847 = vmatprep.subr.bf16.mxu0 %v5446
        %6848 = vmatpush1.bf16.msra.mxu0 %v5443
        %6849 = vmatprep.subr.bf16.mxu0 %v5638
        %6850 = vmatpush1.bf16.msra.mxu0 %v5635
        %6851 = vmatprep.subr.bf16.mxu0 %v5830
        %6852 = vmatpush1.bf16.msra.mxu0 %v5827
        %6853 = vmatprep.subr.bf16.mxu0 %v6022
        %6854 = vmatpush1.bf16.msra.mxu0 %v6019
        %6855 = vmatprep.subr.bf16.mxu0 0
        %6856 = vmatpush1.bf16.msra.mxu0 0
        %6857 = vmatprep.subr.bf16.mxu0 0
        %6858 = vmatpush1.bf16.msra.mxu0 0
        %6859 = vmatprep.subr.bf16.mxu0 0
        %6860 = vmatpush1.bf16.msra.mxu0 0
        %6861 = vmatprep.subr.bf16.mxu0 0
        %6862 = vmatpush1.bf16.msra.mxu0 0
        %6863 = vmatprep.subr.bf16.mxu0 0
        %6864 = vmatpush1.bf16.msra.mxu0 0
        %6865 = vmatprep.subr.bf16.mxu0 0
        %6866 = vmatpush1.bf16.msra.mxu0 0
        %6867 = vmatprep.subr.bf16.mxu0 0
        %6868 = vmatpush1.bf16.msra.mxu0 0
        %6869 = vmatprep.mubr.bf16.mxu0 %v6835
        %6870 = vmatmul.mubr.bf16.gmra.mrb[0].mxu0 %v6830
        %v6871 = vpop.f32.mrb[0].mxu0
        %v6872 = vadd.f32 %v6574, %v6871
        %v6873 = vpop.f32.mrb[0].mxu0
        %v6874 = vadd.f32 %v6578, %v6873
        %v6875 = vpop.f32.mrb[0].mxu0
        %v6876 = vpop.f32.mrb[0].mxu0
        %6877 = vdwg.mxu0
        %6878 = vmatprep.subr.bf16.mxu0 %v4492
        %6879 = vmatpush1.bf16.msra.mxu0 %v4489
        %6880 = vmatprep.subr.bf16.mxu0 %v4684
        %6881 = vmatpush1.bf16.msra.mxu0 %v4681
        %6882 = vmatprep.subr.bf16.mxu0 %v4876
        %6883 = vmatpush1.bf16.msra.mxu0 %v4873
        %6884 = vmatprep.subr.bf16.mxu0 %v5068
        %6885 = vmatpush1.bf16.msra.mxu0 %v5065
        %6886 = vmatprep.subr.bf16.mxu0 %v5260
        %6887 = vmatpush1.bf16.msra.mxu0 %v5257
        %6888 = vmatprep.subr.bf16.mxu0 %v5452
        %6889 = vmatpush1.bf16.msra.mxu0 %v5449
        %6890 = vmatprep.subr.bf16.mxu0 %v5644
        %6891 = vmatpush1.bf16.msra.mxu0 %v5641
        %6892 = vmatprep.subr.bf16.mxu0 %v5836
        %6893 = vmatpush1.bf16.msra.mxu0 %v5833
        %6894 = vmatprep.subr.bf16.mxu0 %v6028
        %6895 = vmatpush1.bf16.msra.mxu0 %v6025
        %6896 = vmatprep.subr.bf16.mxu0 0
        %6897 = vmatpush1.bf16.msra.mxu0 0
        %6898 = vmatprep.subr.bf16.mxu0 0
        %6899 = vmatpush1.bf16.msra.mxu0 0
        %6900 = vmatprep.subr.bf16.mxu0 0
        %6901 = vmatpush1.bf16.msra.mxu0 0
        %6902 = vmatprep.subr.bf16.mxu0 0
        %6903 = vmatpush1.bf16.msra.mxu0 0
        %6904 = vmatprep.subr.bf16.mxu0 0
        %6905 = vmatpush1.bf16.msra.mxu0 0
        %6906 = vmatprep.subr.bf16.mxu0 0
        %6907 = vmatpush1.bf16.msra.mxu0 0
        %6908 = vmatprep.subr.bf16.mxu0 0
        %6909 = vmatpush1.bf16.msra.mxu0 0
        %6910 = vmatprep.mubr.bf16.mxu0 %v6835
        %6911 = vmatmul.mubr.bf16.gmra.mrb[0].mxu0 %v6830
        %v6912 = vpop.f32.mrb[0].mxu0
        %v6913 = vadd.f32 %v6582, %v6912
        %v6914 = vpop.f32.mrb[0].mxu0
        %v6915 = vadd.f32 %v6586, %v6914
        %v6916 = vpop.f32.mrb[0].mxu0
        %v6917 = vpop.f32.mrb[0].mxu0
        %6918 = vdwg.mxu0
        %6919 = vmatprep.subr.bf16.mxu0 %v4498
        %6920 = vmatpush1.bf16.msra.mxu0 %v4495
        %6921 = vmatprep.subr.bf16.mxu0 %v4690
        %6922 = vmatpush1.bf16.msra.mxu0 %v4687
        %6923 = vmatprep.subr.bf16.mxu0 %v4882
        %6924 = vmatpush1.bf16.msra.mxu0 %v4879
        %6925 = vmatprep.subr.bf16.mxu0 %v5074
        %6926 = vmatpush1.bf16.msra.mxu0 %v5071
        %6927 = vmatprep.subr.bf16.mxu0 %v5266
        %6928 = vmatpush1.bf16.msra.mxu0 %v5263
        %6929 = vmatprep.subr.bf16.mxu0 %v5458
        %6930 = vmatpush1.bf16.msra.mxu0 %v5455
        %6931 = vmatprep.subr.bf16.mxu0 %v5650
        %6932 = vmatpush1.bf16.msra.mxu0 %v5647
        %6933 = vmatprep.subr.bf16.mxu0 %v5842
        %6934 = vmatpush1.bf16.msra.mxu0 %v5839
        %6935 = vmatprep.subr.bf16.mxu0 %v6034
        %6936 = vmatpush1.bf16.msra.mxu0 %v6031
        %6937 = vmatprep.subr.bf16.mxu0 0
        %6938 = vmatpush1.bf16.msra.mxu0 0
        %6939 = vmatprep.subr.bf16.mxu0 0
        %6940 = vmatpush1.bf16.msra.mxu0 0
        %6941 = vmatprep.subr.bf16.mxu0 0
        %6942 = vmatpush1.bf16.msra.mxu0 0
        %6943 = vmatprep.subr.bf16.mxu0 0
        %6944 = vmatpush1.bf16.msra.mxu0 0
        %6945 = vmatprep.subr.bf16.mxu0 0
        %6946 = vmatpush1.bf16.msra.mxu0 0
        %6947 = vmatprep.subr.bf16.mxu0 0
        %6948 = vmatpush1.bf16.msra.mxu0 0
        %6949 = vmatprep.subr.bf16.mxu0 0
        %6950 = vmatpush1.bf16.msra.mxu0 0
        %6951 = vmatprep.mubr.bf16.mxu0 %v6835
        %6952 = vmatmul.mubr.bf16.gmra.mrb[0].mxu0 %v6830
        %v6953 = vpop.f32.mrb[0].mxu0
        %v6954 = vadd.f32 %v6590, %v6953
        %v6955 = vpop.f32.mrb[0].mxu0
        %v6956 = vadd.f32 %v6594, %v6955
        %v6957 = vpop.f32.mrb[0].mxu0
        %v6958 = vpop.f32.mrb[0].mxu0
        %6959 = vdwg.mxu0
        %6960 = vmatprep.subr.bf16.mxu0 %v4504
        %6961 = vmatpush1.bf16.msra.mxu0 %v4501
        %6962 = vmatprep.subr.bf16.mxu0 %v4696
        %6963 = vmatpush1.bf16.msra.mxu0 %v4693
        %6964 = vmatprep.subr.bf16.mxu0 %v4888
        %6965 = vmatpush1.bf16.msra.mxu0 %v4885
        %6966 = vmatprep.subr.bf16.mxu0 %v5080
        %6967 = vmatpush1.bf16.msra.mxu0 %v5077
        %6968 = vmatprep.subr.bf16.mxu0 %v5272
        %6969 = vmatpush1.bf16.msra.mxu0 %v5269
        %6970 = vmatprep.subr.bf16.mxu0 %v5464
        %6971 = vmatpush1.bf16.msra.mxu0 %v5461
        %6972 = vmatprep.subr.bf16.mxu0 %v5656
        %6973 = vmatpush1.bf16.msra.mxu0 %v5653
        %6974 = vmatprep.subr.bf16.mxu0 %v5848
        %6975 = vmatpush1.bf16.msra.mxu0 %v5845
        %6976 = vmatprep.subr.bf16.mxu0 %v6040
        %6977 = vmatpush1.bf16.msra.mxu0 %v6037
        %6978 = vmatprep.subr.bf16.mxu0 0
        %6979 = vmatpush1.bf16.msra.mxu0 0
        %6980 = vmatprep.subr.bf16.mxu0 0
        %6981 = vmatpush1.bf16.msra.mxu0 0
        %6982 = vmatprep.subr.bf16.mxu0 0
        %6983 = vmatpush1.bf16.msra.mxu0 0
        %6984 = vmatprep.subr.bf16.mxu0 0
        %6985 = vmatpush1.bf16.msra.mxu0 0
        %6986 = vmatprep.subr.bf16.mxu0 0
        %6987 = vmatpush1.bf16.msra.mxu0 0
        %6988 = vmatprep.subr.bf16.mxu0 0
        %6989 = vmatpush1.bf16.msra.mxu0 0
        %6990 = vmatprep.subr.bf16.mxu0 0
        %6991 = vmatpush1.bf16.msra.mxu0 0
        %6992 = vmatprep.mubr.bf16.mxu0 %v6835
        %6993 = vmatmul.mubr.bf16.gmra.mrb[0].mxu0 %v6830
        %v6994 = vpop.f32.mrb[0].mxu0
        %v6995 = vadd.f32 %v6598, %v6994
        %v6996 = vpop.f32.mrb[0].mxu0
        %v6997 = vadd.f32 %v6602, %v6996
        %v6998 = vpop.f32.mrb[0].mxu0
        %v6999 = vpop.f32.mrb[0].mxu0
        %7000 = vdwg.mxu0
        %7001 = vmatprep.subr.bf16.mxu0 %v4510
        %7002 = vmatpush1.bf16.msra.mxu0 %v4507
        %7003 = vmatprep.subr.bf16.mxu0 %v4702
        %7004 = vmatpush1.bf16.msra.mxu0 %v4699
        %7005 = vmatprep.subr.bf16.mxu0 %v4894
        %7006 = vmatpush1.bf16.msra.mxu0 %v4891
        %7007 = vmatprep.subr.bf16.mxu0 %v5086
        %7008 = vmatpush1.bf16.msra.mxu0 %v5083
        %7009 = vmatprep.subr.bf16.mxu0 %v5278
        %7010 = vmatpush1.bf16.msra.mxu0 %v5275
        %7011 = vmatprep.subr.bf16.mxu0 %v5470
        %7012 = vmatpush1.bf16.msra.mxu0 %v5467
        %7013 = vmatprep.subr.bf16.mxu0 %v5662
        %7014 = vmatpush1.bf16.msra.mxu0 %v5659
        %7015 = vmatprep.subr.bf16.mxu0 %v5854
        %7016 = vmatpush1.bf16.msra.mxu0 %v5851
        %7017 = vmatprep.subr.bf16.mxu0 %v6046
        %7018 = vmatpush1.bf16.msra.mxu0 %v6043
        %7019 = vmatprep.subr.bf16.mxu0 0
        %7020 = vmatpush1.bf16.msra.mxu0 0
        %7021 = vmatprep.subr.bf16.mxu0 0
        %7022 = vmatpush1.bf16.msra.mxu0 0
        %7023 = vmatprep.subr.bf16.mxu0 0
        %7024 = vmatpush1.bf16.msra.mxu0 0
        %7025 = vmatprep.subr.bf16.mxu0 0
        %7026 = vmatpush1.bf16.msra.mxu0 0
        %7027 = vmatprep.subr.bf16.mxu0 0
        %7028 = vmatpush1.bf16.msra.mxu0 0
        %7029 = vmatprep.subr.bf16.mxu0 0
        %7030 = vmatpush1.bf16.msra.mxu0 0
        %7031 = vmatprep.subr.bf16.mxu0 0
        %7032 = vmatpush1.bf16.msra.mxu0 0
        %7033 = vmatprep.mubr.bf16.mxu0 %v6835
        %7034 = vmatmul.mubr.bf16.gmra.mrb[0].mxu0 %v6830
        %v7035 = vpop.f32.mrb[0].mxu0
        %v7036 = vadd.f32 %v6606, %v7035
        %v7037 = vpop.f32.mrb[0].mxu0
        %v7038 = vadd.f32 %v6610, %v7037
        %v7039 = vpop.f32.mrb[0].mxu0
        %v7040 = vpop.f32.mrb[0].mxu0
        %7041 = vdwg.mxu0
        %7042 = vmatprep.subr.bf16.mxu0 %v4516
        %7043 = vmatpush1.bf16.msra.mxu0 %v4513
        %7044 = vmatprep.subr.bf16.mxu0 %v4708
        %7045 = vmatpush1.bf16.msra.mxu0 %v4705
        %7046 = vmatprep.subr.bf16.mxu0 %v4900
        %7047 = vmatpush1.bf16.msra.mxu0 %v4897
        %7048 = vmatprep.subr.bf16.mxu0 %v5092
        %7049 = vmatpush1.bf16.msra.mxu0 %v5089
        %7050 = vmatprep.subr.bf16.mxu0 %v5284
        %7051 = vmatpush1.bf16.msra.mxu0 %v5281
        %7052 = vmatprep.subr.bf16.mxu0 %v5476
        %7053 = vmatpush1.bf16.msra.mxu0 %v5473
        %7054 = vmatprep.subr.bf16.mxu0 %v5668
        %7055 = vmatpush1.bf16.msra.mxu0 %v5665
        %7056 = vmatprep.subr.bf16.mxu0 %v5860
        %7057 = vmatpush1.bf16.msra.mxu0 %v5857
        %7058 = vmatprep.subr.bf16.mxu0 %v6052
        %7059 = vmatpush1.bf16.msra.mxu0 %v6049
        %7060 = vmatprep.subr.bf16.mxu0 0
        %7061 = vmatpush1.bf16.msra.mxu0 0
        %7062 = vmatprep.subr.bf16.mxu0 0
        %7063 = vmatpush1.bf16.msra.mxu0 0
        %7064 = vmatprep.subr.bf16.mxu0 0
        %7065 = vmatpush1.bf16.msra.mxu0 0
        %7066 = vmatprep.subr.bf16.mxu0 0
        %7067 = vmatpush1.bf16.msra.mxu0 0
        %7068 = vmatprep.subr.bf16.mxu0 0
        %7069 = vmatpush1.bf16.msra.mxu0 0
        %7070 = vmatprep.subr.bf16.mxu0 0
        %7071 = vmatpush1.bf16.msra.mxu0 0
        %7072 = vmatprep.subr.bf16.mxu0 0
        %7073 = vmatpush1.bf16.msra.mxu0 0
        %7074 = vmatprep.mubr.bf16.mxu0 %v6835
        %7075 = vmatmul.mubr.bf16.gmra.mrb[0].mxu0 %v6830
        %v7076 = vpop.f32.mrb[0].mxu0
        %v7077 = vadd.f32 %v6614, %v7076
        %v7078 = vpop.f32.mrb[0].mxu0
        %v7079 = vadd.f32 %v6618, %v7078
        %v7080 = vpop.f32.mrb[0].mxu0
        %v7081 = vpop.f32.mrb[0].mxu0
        %7082 = vdwg.mxu0
        %7083 = vmatprep.subr.bf16.mxu0 %v4522
        %7084 = vmatpush1.bf16.msra.mxu0 %v4519
        %7085 = vmatprep.subr.bf16.mxu0 %v4714
        %7086 = vmatpush1.bf16.msra.mxu0 %v4711
        %7087 = vmatprep.subr.bf16.mxu0 %v4906
        %7088 = vmatpush1.bf16.msra.mxu0 %v4903
        %7089 = vmatprep.subr.bf16.mxu0 %v5098
        %7090 = vmatpush1.bf16.msra.mxu0 %v5095
        %7091 = vmatprep.subr.bf16.mxu0 %v5290
        %7092 = vmatpush1.bf16.msra.mxu0 %v5287
        %7093 = vmatprep.subr.bf16.mxu0 %v5482
        %7094 = vmatpush1.bf16.msra.mxu0 %v5479
        %7095 = vmatprep.subr.bf16.mxu0 %v5674
        %7096 = vmatpush1.bf16.msra.mxu0 %v5671
        %7097 = vmatprep.subr.bf16.mxu0 %v5866
        %7098 = vmatpush1.bf16.msra.mxu0 %v5863
        %7099 = vmatprep.subr.bf16.mxu0 %v6058
        %7100 = vmatpush1.bf16.msra.mxu0 %v6055
        %7101 = vmatprep.subr.bf16.mxu0 0
        %7102 = vmatpush1.bf16.msra.mxu0 0
        %7103 = vmatprep.subr.bf16.mxu0 0
        %7104 = vmatpush1.bf16.msra.mxu0 0
        %7105 = vmatprep.subr.bf16.mxu0 0
        %7106 = vmatpush1.bf16.msra.mxu0 0
        %7107 = vmatprep.subr.bf16.mxu0 0
        %7108 = vmatpush1.bf16.msra.mxu0 0
        %7109 = vmatprep.subr.bf16.mxu0 0
        %7110 = vmatpush1.bf16.msra.mxu0 0
        %7111 = vmatprep.subr.bf16.mxu0 0
        %7112 = vmatpush1.bf16.msra.mxu0 0
        %7113 = vmatprep.subr.bf16.mxu0 0
        %7114 = vmatpush1.bf16.msra.mxu0 0
        %7115 = vmatprep.mubr.bf16.mxu0 %v6835
        %7116 = vmatmul.mubr.bf16.gmra.mrb[0].mxu0 %v6830
        %v7117 = vpop.f32.mrb[0].mxu0
        %v7118 = vadd.f32 %v6622, %v7117
        %v7119 = vpop.f32.mrb[0].mxu0
        %v7120 = vadd.f32 %v6626, %v7119
        %v7121 = vpop.f32.mrb[0].mxu0
        %v7122 = vpop.f32.mrb[0].mxu0
        %7123 = vdwg.mxu0
        %7124 = vmatprep.subr.bf16.mxu0 %v4528
        %7125 = vmatpush1.bf16.msra.mxu0 %v4525
        %7126 = vmatprep.subr.bf16.mxu0 %v4720
        %7127 = vmatpush1.bf16.msra.mxu0 %v4717
        %7128 = vmatprep.subr.bf16.mxu0 %v4912
        %7129 = vmatpush1.bf16.msra.mxu0 %v4909
        %7130 = vmatprep.subr.bf16.mxu0 %v5104
        %7131 = vmatpush1.bf16.msra.mxu0 %v5101
        %7132 = vmatprep.subr.bf16.mxu0 %v5296
        %7133 = vmatpush1.bf16.msra.mxu0 %v5293
        %7134 = vmatprep.subr.bf16.mxu0 %v5488
        %7135 = vmatpush1.bf16.msra.mxu0 %v5485
        %7136 = vmatprep.subr.bf16.mxu0 %v5680
        %7137 = vmatpush1.bf16.msra.mxu0 %v5677
        %7138 = vmatprep.subr.bf16.mxu0 %v5872
        %7139 = vmatpush1.bf16.msra.mxu0 %v5869
        %7140 = vmatprep.subr.bf16.mxu0 %v6064
        %7141 = vmatpush1.bf16.msra.mxu0 %v6061
        %7142 = vmatprep.subr.bf16.mxu0 0
        %7143 = vmatpush1.bf16.msra.mxu0 0
        %7144 = vmatprep.subr.bf16.mxu0 0
        %7145 = vmatpush1.bf16.msra.mxu0 0
        %7146 = vmatprep.subr.bf16.mxu0 0
        %7147 = vmatpush1.bf16.msra.mxu0 0
        %7148 = vmatprep.subr.bf16.mxu0 0
        %7149 = vmatpush1.bf16.msra.mxu0 0
        %7150 = vmatprep.subr.bf16.mxu0 0
        %7151 = vmatpush1.bf16.msra.mxu0 0
        %7152 = vmatprep.subr.bf16.mxu0 0
        %7153 = vmatpush1.bf16.msra.mxu0 0
        %7154 = vmatprep.subr.bf16.mxu0 0
        %7155 = vmatpush1.bf16.msra.mxu0 0
        %7156 = vmatprep.mubr.bf16.mxu0 %v6835
        %7157 = vmatmul.mubr.bf16.gmra.mrb[0].mxu0 %v6830
        %v7158 = vpop.f32.mrb[0].mxu0
        %v7159 = vadd.f32 %v6630, %v7158
        %v7160 = vpop.f32.mrb[0].mxu0
        %v7161 = vadd.f32 %v6634, %v7160
        %v7162 = vpop.f32.mrb[0].mxu0
        %v7163 = vpop.f32.mrb[0].mxu0
        %7164 = vdwg.mxu0
        %7165 = vmatprep.subr.bf16.mxu0 %v4534
        %7166 = vmatpush1.bf16.msra.mxu0 %v4531
        %7167 = vmatprep.subr.bf16.mxu0 %v4726
        %7168 = vmatpush1.bf16.msra.mxu0 %v4723
        %7169 = vmatprep.subr.bf16.mxu0 %v4918
        %7170 = vmatpush1.bf16.msra.mxu0 %v4915
        %7171 = vmatprep.subr.bf16.mxu0 %v5110
        %7172 = vmatpush1.bf16.msra.mxu0 %v5107
        %7173 = vmatprep.subr.bf16.mxu0 %v5302
        %7174 = vmatpush1.bf16.msra.mxu0 %v5299
        %7175 = vmatprep.subr.bf16.mxu0 %v5494
        %7176 = vmatpush1.bf16.msra.mxu0 %v5491
        %7177 = vmatprep.subr.bf16.mxu0 %v5686
        %7178 = vmatpush1.bf16.msra.mxu0 %v5683
        %7179 = vmatprep.subr.bf16.mxu0 %v5878
        %7180 = vmatpush1.bf16.msra.mxu0 %v5875
        %7181 = vmatprep.subr.bf16.mxu0 %v6070
        %7182 = vmatpush1.bf16.msra.mxu0 %v6067
        %7183 = vmatprep.subr.bf16.mxu0 0
        %7184 = vmatpush1.bf16.msra.mxu0 0
        %7185 = vmatprep.subr.bf16.mxu0 0
        %7186 = vmatpush1.bf16.msra.mxu0 0
        %7187 = vmatprep.subr.bf16.mxu0 0
        %7188 = vmatpush1.bf16.msra.mxu0 0
        %7189 = vmatprep.subr.bf16.mxu0 0
        %7190 = vmatpush1.bf16.msra.mxu0 0
        %7191 = vmatprep.subr.bf16.mxu0 0
        %7192 = vmatpush1.bf16.msra.mxu0 0
        %7193 = vmatprep.subr.bf16.mxu0 0
        %7194 = vmatpush1.bf16.msra.mxu0 0
        %7195 = vmatprep.subr.bf16.mxu0 0
        %7196 = vmatpush1.bf16.msra.mxu0 0
        %7197 = vmatprep.mubr.bf16.mxu0 %v6835
        %7198 = vmatmul.mubr.bf16.gmra.mrb[0].mxu0 %v6830
        %v7199 = vpop.f32.mrb[0].mxu0
        %v7200 = vadd.f32 %v6638, %v7199
        %v7201 = vpop.f32.mrb[0].mxu0
        %v7202 = vadd.f32 %v6642, %v7201
        %v7203 = vpop.f32.mrb[0].mxu0
        %v7204 = vpop.f32.mrb[0].mxu0
        %7205 = vdwg.mxu0
        %7206 = vmatprep.subr.bf16.mxu0 %v4540
        %7207 = vmatpush1.bf16.msra.mxu0 %v4537
        %7208 = vmatprep.subr.bf16.mxu0 %v4732
        %7209 = vmatpush1.bf16.msra.mxu0 %v4729
        %7210 = vmatprep.subr.bf16.mxu0 %v4924
        %7211 = vmatpush1.bf16.msra.mxu0 %v4921
        %7212 = vmatprep.subr.bf16.mxu0 %v5116
        %7213 = vmatpush1.bf16.msra.mxu0 %v5113
        %7214 = vmatprep.subr.bf16.mxu0 %v5308
        %7215 = vmatpush1.bf16.msra.mxu0 %v5305
        %7216 = vmatprep.subr.bf16.mxu0 %v5500
        %7217 = vmatpush1.bf16.msra.mxu0 %v5497
        %7218 = vmatprep.subr.bf16.mxu0 %v5692
        %7219 = vmatpush1.bf16.msra.mxu0 %v5689
        %7220 = vmatprep.subr.bf16.mxu0 %v5884
        %7221 = vmatpush1.bf16.msra.mxu0 %v5881
        %7222 = vmatprep.subr.bf16.mxu0 %v6076
        %7223 = vmatpush1.bf16.msra.mxu0 %v6073
        %7224 = vmatprep.subr.bf16.mxu0 0
        %7225 = vmatpush1.bf16.msra.mxu0 0
        %7226 = vmatprep.subr.bf16.mxu0 0
        %7227 = vmatpush1.bf16.msra.mxu0 0
        %7228 = vmatprep.subr.bf16.mxu0 0
        %7229 = vmatpush1.bf16.msra.mxu0 0
        %7230 = vmatprep.subr.bf16.mxu0 0
        %7231 = vmatpush1.bf16.msra.mxu0 0
        %7232 = vmatprep.subr.bf16.mxu0 0
        %7233 = vmatpush1.bf16.msra.mxu0 0
        %7234 = vmatprep.subr.bf16.mxu0 0
        %7235 = vmatpush1.bf16.msra.mxu0 0
        %7236 = vmatprep.subr.bf16.mxu0 0
        %7237 = vmatpush1.bf16.msra.mxu0 0
        %7238 = vmatprep.mubr.bf16.mxu0 %v6835
        %7239 = vmatmul.mubr.bf16.gmra.mrb[0].mxu0 %v6830
        %v7240 = vpop.f32.mrb[0].mxu0
        %v7241 = vadd.f32 %v6646, %v7240
        %v7242 = vpop.f32.mrb[0].mxu0
        %v7243 = vadd.f32 %v6650, %v7242
        %v7244 = vpop.f32.mrb[0].mxu0
        %v7245 = vpop.f32.mrb[0].mxu0
        %7246 = vdwg.mxu0
        %7247 = vmatprep.subr.bf16.mxu0 %v4546
        %7248 = vmatpush1.bf16.msra.mxu0 %v4543
        %7249 = vmatprep.subr.bf16.mxu0 %v4738
        %7250 = vmatpush1.bf16.msra.mxu0 %v4735
        %7251 = vmatprep.subr.bf16.mxu0 %v4930
        %7252 = vmatpush1.bf16.msra.mxu0 %v4927
        %7253 = vmatprep.subr.bf16.mxu0 %v5122
        %7254 = vmatpush1.bf16.msra.mxu0 %v5119
        %7255 = vmatprep.subr.bf16.mxu0 %v5314
        %7256 = vmatpush1.bf16.msra.mxu0 %v5311
        %7257 = vmatprep.subr.bf16.mxu0 %v5506
        %7258 = vmatpush1.bf16.msra.mxu0 %v5503
        %7259 = vmatprep.subr.bf16.mxu0 %v5698
        %7260 = vmatpush1.bf16.msra.mxu0 %v5695
        %7261 = vmatprep.subr.bf16.mxu0 %v5890
        %7262 = vmatpush1.bf16.msra.mxu0 %v5887
        %7263 = vmatprep.subr.bf16.mxu0 %v6082
        %7264 = vmatpush1.bf16.msra.mxu0 %v6079
        %7265 = vmatprep.subr.bf16.mxu0 0
        %7266 = vmatpush1.bf16.msra.mxu0 0
        %7267 = vmatprep.subr.bf16.mxu0 0
        %7268 = vmatpush1.bf16.msra.mxu0 0
        %7269 = vmatprep.subr.bf16.mxu0 0
        %7270 = vmatpush1.bf16.msra.mxu0 0
        %7271 = vmatprep.subr.bf16.mxu0 0
        %7272 = vmatpush1.bf16.msra.mxu0 0
        %7273 = vmatprep.subr.bf16.mxu0 0
        %7274 = vmatpush1.bf16.msra.mxu0 0
        %7275 = vmatprep.subr.bf16.mxu0 0
        %7276 = vmatpush1.bf16.msra.mxu0 0
        %7277 = vmatprep.subr.bf16.mxu0 0
        %7278 = vmatpush1.bf16.msra.mxu0 0
        %7279 = vmatprep.mubr.bf16.mxu0 %v6835
        %7280 = vmatmul.mubr.bf16.gmra.mrb[0].mxu0 %v6830
        %v7281 = vpop.f32.mrb[0].mxu0
        %v7282 = vadd.f32 %v6654, %v7281
        %v7283 = vpop.f32.mrb[0].mxu0
        %v7284 = vadd.f32 %v6658, %v7283
        %v7285 = vpop.f32.mrb[0].mxu0
        %v7286 = vpop.f32.mrb[0].mxu0
        %7287 = vdwg.mxu0
        %7288 = vmatprep.subr.bf16.mxu0 %v4552
        %7289 = vmatpush1.bf16.msra.mxu0 %v4549
        %7290 = vmatprep.subr.bf16.mxu0 %v4744
        %7291 = vmatpush1.bf16.msra.mxu0 %v4741
        %7292 = vmatprep.subr.bf16.mxu0 %v4936
        %7293 = vmatpush1.bf16.msra.mxu0 %v4933
        %7294 = vmatprep.subr.bf16.mxu0 %v5128
        %7295 = vmatpush1.bf16.msra.mxu0 %v5125
        %7296 = vmatprep.subr.bf16.mxu0 %v5320
        %7297 = vmatpush1.bf16.msra.mxu0 %v5317
        %7298 = vmatprep.subr.bf16.mxu0 %v5512
        %7299 = vmatpush1.bf16.msra.mxu0 %v5509
        %7300 = vmatprep.subr.bf16.mxu0 %v5704
        %7301 = vmatpush1.bf16.msra.mxu0 %v5701
        %7302 = vmatprep.subr.bf16.mxu0 %v5896
        %7303 = vmatpush1.bf16.msra.mxu0 %v5893
        %7304 = vmatprep.subr.bf16.mxu0 %v6088
        %7305 = vmatpush1.bf16.msra.mxu0 %v6085
        %7306 = vmatprep.subr.bf16.mxu0 0
        %7307 = vmatpush1.bf16.msra.mxu0 0
        %7308 = vmatprep.subr.bf16.mxu0 0
        %7309 = vmatpush1.bf16.msra.mxu0 0
        %7310 = vmatprep.subr.bf16.mxu0 0
        %7311 = vmatpush1.bf16.msra.mxu0 0
        %7312 = vmatprep.subr.bf16.mxu0 0
        %7313 = vmatpush1.bf16.msra.mxu0 0
        %7314 = vmatprep.subr.bf16.mxu0 0
        %7315 = vmatpush1.bf16.msra.mxu0 0
        %7316 = vmatprep.subr.bf16.mxu0 0
        %7317 = vmatpush1.bf16.msra.mxu0 0
        %7318 = vmatprep.subr.bf16.mxu0 0
        %7319 = vmatpush1.bf16.msra.mxu0 0
        %7320 = vmatprep.mubr.bf16.mxu0 %v6835
        %7321 = vmatmul.mubr.bf16.gmra.mrb[0].mxu0 %v6830
        %v7322 = vpop.f32.mrb[0].mxu0
        %v7323 = vadd.f32 %v6662, %v7322
        %v7324 = vpop.f32.mrb[0].mxu0
        %v7325 = vadd.f32 %v6666, %v7324
        %v7326 = vpop.f32.mrb[0].mxu0
        %v7327 = vpop.f32.mrb[0].mxu0
        %7328 = vdwg.mxu0
        %7329 = vmatprep.subr.bf16.mxu0 %v4558
        %7330 = vmatpush1.bf16.msra.mxu0 %v4555
        %7331 = vmatprep.subr.bf16.mxu0 %v4750
        %7332 = vmatpush1.bf16.msra.mxu0 %v4747
        %7333 = vmatprep.subr.bf16.mxu0 %v4942
        %7334 = vmatpush1.bf16.msra.mxu0 %v4939
        %7335 = vmatprep.subr.bf16.mxu0 %v5134
        %7336 = vmatpush1.bf16.msra.mxu0 %v5131
        %7337 = vmatprep.subr.bf16.mxu0 %v5326
        %7338 = vmatpush1.bf16.msra.mxu0 %v5323
        %7339 = vmatprep.subr.bf16.mxu0 %v5518
        %7340 = vmatpush1.bf16.msra.mxu0 %v5515
        %7341 = vmatprep.subr.bf16.mxu0 %v5710
        %7342 = vmatpush1.bf16.msra.mxu0 %v5707
        %7343 = vmatprep.subr.bf16.mxu0 %v5902
        %7344 = vmatpush1.bf16.msra.mxu0 %v5899
        %7345 = vmatprep.subr.bf16.mxu0 %v6094
        %7346 = vmatpush1.bf16.msra.mxu0 %v6091
        %7347 = vmatprep.subr.bf16.mxu0 0
        %7348 = vmatpush1.bf16.msra.mxu0 0
        %7349 = vmatprep.subr.bf16.mxu0 0
        %7350 = vmatpush1.bf16.msra.mxu0 0
        %7351 = vmatprep.subr.bf16.mxu0 0
        %7352 = vmatpush1.bf16.msra.mxu0 0
        %7353 = vmatprep.subr.bf16.mxu0 0
        %7354 = vmatpush1.bf16.msra.mxu0 0
        %7355 = vmatprep.subr.bf16.mxu0 0
        %7356 = vmatpush1.bf16.msra.mxu0 0
        %7357 = vmatprep.subr.bf16.mxu0 0
        %7358 = vmatpush1.bf16.msra.mxu0 0
        %7359 = vmatprep.subr.bf16.mxu0 0
        %7360 = vmatpush1.bf16.msra.mxu0 0
        %7361 = vmatprep.mubr.bf16.mxu0 %v6835
        %7362 = vmatmul.mubr.bf16.gmra.mrb[0].mxu0 %v6830
        %v7363 = vpop.f32.mrb[0].mxu0
        %v7364 = vadd.f32 %v6670, %v7363
        %v7365 = vpop.f32.mrb[0].mxu0
        %v7366 = vadd.f32 %v6674, %v7365
        %v7367 = vpop.f32.mrb[0].mxu0
        %v7368 = vpop.f32.mrb[0].mxu0
        %7369 = vdwg.mxu0
        %7370 = vmatprep.subr.bf16.mxu0 %v4564
        %7371 = vmatpush1.bf16.msra.mxu0 %v4561
        %7372 = vmatprep.subr.bf16.mxu0 %v4756
        %7373 = vmatpush1.bf16.msra.mxu0 %v4753
        %7374 = vmatprep.subr.bf16.mxu0 %v4948
        %7375 = vmatpush1.bf16.msra.mxu0 %v4945
        %7376 = vmatprep.subr.bf16.mxu0 %v5140
        %7377 = vmatpush1.bf16.msra.mxu0 %v5137
        %7378 = vmatprep.subr.bf16.mxu0 %v5332
        %7379 = vmatpush1.bf16.msra.mxu0 %v5329
        %7380 = vmatprep.subr.bf16.mxu0 %v5524
        %7381 = vmatpush1.bf16.msra.mxu0 %v5521
        %7382 = vmatprep.subr.bf16.mxu0 %v5716
        %7383 = vmatpush1.bf16.msra.mxu0 %v5713
        %7384 = vmatprep.subr.bf16.mxu0 %v5908
        %7385 = vmatpush1.bf16.msra.mxu0 %v5905
        %7386 = vmatprep.subr.bf16.mxu0 %v6100
        %7387 = vmatpush1.bf16.msra.mxu0 %v6097
        %7388 = vmatprep.subr.bf16.mxu0 0
        %7389 = vmatpush1.bf16.msra.mxu0 0
        %7390 = vmatprep.subr.bf16.mxu0 0
        %7391 = vmatpush1.bf16.msra.mxu0 0
        %7392 = vmatprep.subr.bf16.mxu0 0
        %7393 = vmatpush1.bf16.msra.mxu0 0
        %7394 = vmatprep.subr.bf16.mxu0 0
        %7395 = vmatpush1.bf16.msra.mxu0 0
        %7396 = vmatprep.subr.bf16.mxu0 0
        %7397 = vmatpush1.bf16.msra.mxu0 0
        %7398 = vmatprep.subr.bf16.mxu0 0
        %7399 = vmatpush1.bf16.msra.mxu0 0
        %7400 = vmatprep.subr.bf16.mxu0 0
        %7401 = vmatpush1.bf16.msra.mxu0 0
        %7402 = vmatprep.mubr.bf16.mxu0 %v6835
        %7403 = vmatmul.mubr.bf16.gmra.mrb[0].mxu0 %v6830
        %v7404 = vpop.f32.mrb[0].mxu0
        %v7405 = vadd.f32 %v6678, %v7404
        %v7406 = vpop.f32.mrb[0].mxu0
        %v7407 = vadd.f32 %v6682, %v7406
        %v7408 = vpop.f32.mrb[0].mxu0
        %v7409 = vpop.f32.mrb[0].mxu0
        %7410 = vdwg.mxu0
        %7411 = vmatprep.subr.bf16.mxu0 %v4570
        %7412 = vmatpush1.bf16.msra.mxu0 %v4567
        %7413 = vmatprep.subr.bf16.mxu0 %v4762
        %7414 = vmatpush1.bf16.msra.mxu0 %v4759
        %7415 = vmatprep.subr.bf16.mxu0 %v4954
        %7416 = vmatpush1.bf16.msra.mxu0 %v4951
        %7417 = vmatprep.subr.bf16.mxu0 %v5146
        %7418 = vmatpush1.bf16.msra.mxu0 %v5143
        %7419 = vmatprep.subr.bf16.mxu0 %v5338
        %7420 = vmatpush1.bf16.msra.mxu0 %v5335
        %7421 = vmatprep.subr.bf16.mxu0 %v5530
        %7422 = vmatpush1.bf16.msra.mxu0 %v5527
        %7423 = vmatprep.subr.bf16.mxu0 %v5722
        %7424 = vmatpush1.bf16.msra.mxu0 %v5719
        %7425 = vmatprep.subr.bf16.mxu0 %v5914
        %7426 = vmatpush1.bf16.msra.mxu0 %v5911
        %7427 = vmatprep.subr.bf16.mxu0 %v6106
        %7428 = vmatpush1.bf16.msra.mxu0 %v6103
        %7429 = vmatprep.subr.bf16.mxu0 0
        %7430 = vmatpush1.bf16.msra.mxu0 0
        %7431 = vmatprep.subr.bf16.mxu0 0
        %7432 = vmatpush1.bf16.msra.mxu0 0
        %7433 = vmatprep.subr.bf16.mxu0 0
        %7434 = vmatpush1.bf16.msra.mxu0 0
        %7435 = vmatprep.subr.bf16.mxu0 0
        %7436 = vmatpush1.bf16.msra.mxu0 0
        %7437 = vmatprep.subr.bf16.mxu0 0
        %7438 = vmatpush1.bf16.msra.mxu0 0
        %7439 = vmatprep.subr.bf16.mxu0 0
        %7440 = vmatpush1.bf16.msra.mxu0 0
        %7441 = vmatprep.subr.bf16.mxu0 0
        %7442 = vmatpush1.bf16.msra.mxu0 0
        %7443 = vmatprep.mubr.bf16.mxu0 %v6835
        %7444 = vmatmul.mubr.bf16.gmra.mrb[0].mxu0 %v6830
        %v7445 = vpop.f32.mrb[0].mxu0
        %v7446 = vadd.f32 %v6686, %v7445
        %v7447 = vpop.f32.mrb[0].mxu0
        %v7448 = vadd.f32 %v6690, %v7447
        %v7449 = vpop.f32.mrb[0].mxu0
        %v7450 = vpop.f32.mrb[0].mxu0
        %7451 = vdwg.mxu0
        %7452 = vmatprep.subr.bf16.mxu0 %v4576
        %7453 = vmatpush1.bf16.msra.mxu0 %v4573
        %7454 = vmatprep.subr.bf16.mxu0 %v4768
        %7455 = vmatpush1.bf16.msra.mxu0 %v4765
        %7456 = vmatprep.subr.bf16.mxu0 %v4960
        %7457 = vmatpush1.bf16.msra.mxu0 %v4957
        %7458 = vmatprep.subr.bf16.mxu0 %v5152
        %7459 = vmatpush1.bf16.msra.mxu0 %v5149
        %7460 = vmatprep.subr.bf16.mxu0 %v5344
        %7461 = vmatpush1.bf16.msra.mxu0 %v5341
        %7462 = vmatprep.subr.bf16.mxu0 %v5536
        %7463 = vmatpush1.bf16.msra.mxu0 %v5533
        %7464 = vmatprep.subr.bf16.mxu0 %v5728
        %7465 = vmatpush1.bf16.msra.mxu0 %v5725
        %7466 = vmatprep.subr.bf16.mxu0 %v5920
        %7467 = vmatpush1.bf16.msra.mxu0 %v5917
        %7468 = vmatprep.subr.bf16.mxu0 %v6112
        %7469 = vmatpush1.bf16.msra.mxu0 %v6109
        %7470 = vmatprep.subr.bf16.mxu0 0
        %7471 = vmatpush1.bf16.msra.mxu0 0
        %7472 = vmatprep.subr.bf16.mxu0 0
        %7473 = vmatpush1.bf16.msra.mxu0 0
        %7474 = vmatprep.subr.bf16.mxu0 0
        %7475 = vmatpush1.bf16.msra.mxu0 0
        %7476 = vmatprep.subr.bf16.mxu0 0
        %7477 = vmatpush1.bf16.msra.mxu0 0
        %7478 = vmatprep.subr.bf16.mxu0 0
        %7479 = vmatpush1.bf16.msra.mxu0 0
        %7480 = vmatprep.subr.bf16.mxu0 0
        %7481 = vmatpush1.bf16.msra.mxu0 0
        %7482 = vmatprep.subr.bf16.mxu0 0
        %7483 = vmatpush1.bf16.msra.mxu0 0
        %7484 = vmatprep.mubr.bf16.mxu0 %v6835
        %7485 = vmatmul.mubr.bf16.gmra.mrb[0].mxu0 %v6830
        %v7486 = vpop.f32.mrb[0].mxu0
        %v7487 = vadd.f32 %v6694, %v7486
        %v7488 = vpop.f32.mrb[0].mxu0
        %v7489 = vadd.f32 %v6698, %v7488
        %v7490 = vpop.f32.mrb[0].mxu0
        %v7491 = vpop.f32.mrb[0].mxu0
        %7492 = vdwg.mxu0
        %7493 = vmatprep.subr.bf16.mxu0 %v4582
        %7494 = vmatpush1.bf16.msra.mxu0 %v4579
        %7495 = vmatprep.subr.bf16.mxu0 %v4774
        %7496 = vmatpush1.bf16.msra.mxu0 %v4771
        %7497 = vmatprep.subr.bf16.mxu0 %v4966
        %7498 = vmatpush1.bf16.msra.mxu0 %v4963
        %7499 = vmatprep.subr.bf16.mxu0 %v5158
        %7500 = vmatpush1.bf16.msra.mxu0 %v5155
        %7501 = vmatprep.subr.bf16.mxu0 %v5350
        %7502 = vmatpush1.bf16.msra.mxu0 %v5347
        %7503 = vmatprep.subr.bf16.mxu0 %v5542
        %7504 = vmatpush1.bf16.msra.mxu0 %v5539
        %7505 = vmatprep.subr.bf16.mxu0 %v5734
        %7506 = vmatpush1.bf16.msra.mxu0 %v5731
        %7507 = vmatprep.subr.bf16.mxu0 %v5926
        %7508 = vmatpush1.bf16.msra.mxu0 %v5923
        %7509 = vmatprep.subr.bf16.mxu0 %v6118
        %7510 = vmatpush1.bf16.msra.mxu0 %v6115
        %7511 = vmatprep.subr.bf16.mxu0 0
        %7512 = vmatpush1.bf16.msra.mxu0 0
        %7513 = vmatprep.subr.bf16.mxu0 0
        %7514 = vmatpush1.bf16.msra.mxu0 0
        %7515 = vmatprep.subr.bf16.mxu0 0
        %7516 = vmatpush1.bf16.msra.mxu0 0
        %7517 = vmatprep.subr.bf16.mxu0 0
        %7518 = vmatpush1.bf16.msra.mxu0 0
        %7519 = vmatprep.subr.bf16.mxu0 0
        %7520 = vmatpush1.bf16.msra.mxu0 0
        %7521 = vmatprep.subr.bf16.mxu0 0
        %7522 = vmatpush1.bf16.msra.mxu0 0
        %7523 = vmatprep.subr.bf16.mxu0 0
        %7524 = vmatpush1.bf16.msra.mxu0 0
        %7525 = vmatprep.mubr.bf16.mxu0 %v6835
        %7526 = vmatmul.mubr.bf16.gmra.mrb[0].mxu0 %v6830
        %v7527 = vpop.f32.mrb[0].mxu0
        %v7528 = vadd.f32 %v6702, %v7527
        %v7529 = vpop.f32.mrb[0].mxu0
        %v7530 = vadd.f32 %v6706, %v7529
        %v7531 = vpop.f32.mrb[0].mxu0
        %v7532 = vpop.f32.mrb[0].mxu0
        %7533 = vdwg.mxu0
        %7534 = vmatprep.subr.bf16.mxu0 %v4588
        %7535 = vmatpush1.bf16.msra.mxu0 %v4585
        %7536 = vmatprep.subr.bf16.mxu0 %v4780
        %7537 = vmatpush1.bf16.msra.mxu0 %v4777
        %7538 = vmatprep.subr.bf16.mxu0 %v4972
        %7539 = vmatpush1.bf16.msra.mxu0 %v4969
        %7540 = vmatprep.subr.bf16.mxu0 %v5164
        %7541 = vmatpush1.bf16.msra.mxu0 %v5161
        %7542 = vmatprep.subr.bf16.mxu0 %v5356
        %7543 = vmatpush1.bf16.msra.mxu0 %v5353
        %7544 = vmatprep.subr.bf16.mxu0 %v5548
        %7545 = vmatpush1.bf16.msra.mxu0 %v5545
        %7546 = vmatprep.subr.bf16.mxu0 %v5740
        %7547 = vmatpush1.bf16.msra.mxu0 %v5737
        %7548 = vmatprep.subr.bf16.mxu0 %v5932
        %7549 = vmatpush1.bf16.msra.mxu0 %v5929
        %7550 = vmatprep.subr.bf16.mxu0 %v6124
        %7551 = vmatpush1.bf16.msra.mxu0 %v6121
        %7552 = vmatprep.subr.bf16.mxu0 0
        %7553 = vmatpush1.bf16.msra.mxu0 0
        %7554 = vmatprep.subr.bf16.mxu0 0
        %7555 = vmatpush1.bf16.msra.mxu0 0
        %7556 = vmatprep.subr.bf16.mxu0 0
        %7557 = vmatpush1.bf16.msra.mxu0 0
        %7558 = vmatprep.subr.bf16.mxu0 0
        %7559 = vmatpush1.bf16.msra.mxu0 0
        %7560 = vmatprep.subr.bf16.mxu0 0
        %7561 = vmatpush1.bf16.msra.mxu0 0
        %7562 = vmatprep.subr.bf16.mxu0 0
        %7563 = vmatpush1.bf16.msra.mxu0 0
        %7564 = vmatprep.subr.bf16.mxu0 0
        %7565 = vmatpush1.bf16.msra.mxu0 0
        %7566 = vmatprep.mubr.bf16.mxu0 %v6835
        %7567 = vmatmul.mubr.bf16.gmra.mrb[0].mxu0 %v6830
        %v7568 = vpop.f32.mrb[0].mxu0
        %v7569 = vadd.f32 %v6710, %v7568
        %v7570 = vpop.f32.mrb[0].mxu0
        %v7571 = vadd.f32 %v6714, %v7570
        %v7572 = vpop.f32.mrb[0].mxu0
        %v7573 = vpop.f32.mrb[0].mxu0
        %7574 = vdwg.mxu0
        %7575 = vmatprep.subr.bf16.mxu0 %v4594
        %7576 = vmatpush1.bf16.msra.mxu0 %v4591
        %7577 = vmatprep.subr.bf16.mxu0 %v4786
        %7578 = vmatpush1.bf16.msra.mxu0 %v4783
        %7579 = vmatprep.subr.bf16.mxu0 %v4978
        %7580 = vmatpush1.bf16.msra.mxu0 %v4975
        %7581 = vmatprep.subr.bf16.mxu0 %v5170
        %7582 = vmatpush1.bf16.msra.mxu0 %v5167
        %7583 = vmatprep.subr.bf16.mxu0 %v5362
        %7584 = vmatpush1.bf16.msra.mxu0 %v5359
        %7585 = vmatprep.subr.bf16.mxu0 %v5554
        %7586 = vmatpush1.bf16.msra.mxu0 %v5551
        %7587 = vmatprep.subr.bf16.mxu0 %v5746
        %7588 = vmatpush1.bf16.msra.mxu0 %v5743
        %7589 = vmatprep.subr.bf16.mxu0 %v5938
        %7590 = vmatpush1.bf16.msra.mxu0 %v5935
        %7591 = vmatprep.subr.bf16.mxu0 %v6130
        %7592 = vmatpush1.bf16.msra.mxu0 %v6127
        %7593 = vmatprep.subr.bf16.mxu0 0
        %7594 = vmatpush1.bf16.msra.mxu0 0
        %7595 = vmatprep.subr.bf16.mxu0 0
        %7596 = vmatpush1.bf16.msra.mxu0 0
        %7597 = vmatprep.subr.bf16.mxu0 0
        %7598 = vmatpush1.bf16.msra.mxu0 0
        %7599 = vmatprep.subr.bf16.mxu0 0
        %7600 = vmatpush1.bf16.msra.mxu0 0
        %7601 = vmatprep.subr.bf16.mxu0 0
        %7602 = vmatpush1.bf16.msra.mxu0 0
        %7603 = vmatprep.subr.bf16.mxu0 0
        %7604 = vmatpush1.bf16.msra.mxu0 0
        %7605 = vmatprep.subr.bf16.mxu0 0
        %7606 = vmatpush1.bf16.msra.mxu0 0
        %7607 = vmatprep.mubr.bf16.mxu0 %v6835
        %7608 = vmatmul.mubr.bf16.gmra.mrb[0].mxu0 %v6830
        %v7609 = vpop.f32.mrb[0].mxu0
        %v7610 = vadd.f32 %v6718, %v7609
        %v7611 = vpop.f32.mrb[0].mxu0
        %v7612 = vadd.f32 %v6722, %v7611
        %v7613 = vpop.f32.mrb[0].mxu0
        %v7614 = vpop.f32.mrb[0].mxu0
        %7615 = vdwg.mxu0
        %7616 = vmatprep.subr.bf16.mxu0 %v4600
        %7617 = vmatpush1.bf16.msra.mxu0 %v4597
        %7618 = vmatprep.subr.bf16.mxu0 %v4792
        %7619 = vmatpush1.bf16.msra.mxu0 %v4789
        %7620 = vmatprep.subr.bf16.mxu0 %v4984
        %7621 = vmatpush1.bf16.msra.mxu0 %v4981
        %7622 = vmatprep.subr.bf16.mxu0 %v5176
        %7623 = vmatpush1.bf16.msra.mxu0 %v5173
        %7624 = vmatprep.subr.bf16.mxu0 %v5368
        %7625 = vmatpush1.bf16.msra.mxu0 %v5365
        %7626 = vmatprep.subr.bf16.mxu0 %v5560
        %7627 = vmatpush1.bf16.msra.mxu0 %v5557
        %7628 = vmatprep.subr.bf16.mxu0 %v5752
        %7629 = vmatpush1.bf16.msra.mxu0 %v5749
        %7630 = vmatprep.subr.bf16.mxu0 %v5944
        %7631 = vmatpush1.bf16.msra.mxu0 %v5941
        %7632 = vmatprep.subr.bf16.mxu0 %v6136
        %7633 = vmatpush1.bf16.msra.mxu0 %v6133
        %7634 = vmatprep.subr.bf16.mxu0 0
        %7635 = vmatpush1.bf16.msra.mxu0 0
        %7636 = vmatprep.subr.bf16.mxu0 0
        %7637 = vmatpush1.bf16.msra.mxu0 0
        %7638 = vmatprep.subr.bf16.mxu0 0
        %7639 = vmatpush1.bf16.msra.mxu0 0
        %7640 = vmatprep.subr.bf16.mxu0 0
        %7641 = vmatpush1.bf16.msra.mxu0 0
        %7642 = vmatprep.subr.bf16.mxu0 0
        %7643 = vmatpush1.bf16.msra.mxu0 0
        %7644 = vmatprep.subr.bf16.mxu0 0
        %7645 = vmatpush1.bf16.msra.mxu0 0
        %7646 = vmatprep.subr.bf16.mxu0 0
        %7647 = vmatpush1.bf16.msra.mxu0 0
        %7648 = vmatprep.mubr.bf16.mxu0 %v6835
        %7649 = vmatmul.mubr.bf16.gmra.mrb[0].mxu0 %v6830
        %v7650 = vpop.f32.mrb[0].mxu0
        %v7651 = vadd.f32 %v6726, %v7650
        %v7652 = vpop.f32.mrb[0].mxu0
        %v7653 = vadd.f32 %v6730, %v7652
        %v7654 = vpop.f32.mrb[0].mxu0
        %v7655 = vpop.f32.mrb[0].mxu0
        %7656 = vdwg.mxu0
        %7657 = vmatprep.subr.bf16.mxu0 %v4606
        %7658 = vmatpush1.bf16.msra.mxu0 %v4603
        %7659 = vmatprep.subr.bf16.mxu0 %v4798
        %7660 = vmatpush1.bf16.msra.mxu0 %v4795
        %7661 = vmatprep.subr.bf16.mxu0 %v4990
        %7662 = vmatpush1.bf16.msra.mxu0 %v4987
        %7663 = vmatprep.subr.bf16.mxu0 %v5182
        %7664 = vmatpush1.bf16.msra.mxu0 %v5179
        %7665 = vmatprep.subr.bf16.mxu0 %v5374
        %7666 = vmatpush1.bf16.msra.mxu0 %v5371
        %7667 = vmatprep.subr.bf16.mxu0 %v5566
        %7668 = vmatpush1.bf16.msra.mxu0 %v5563
        %7669 = vmatprep.subr.bf16.mxu0 %v5758
        %7670 = vmatpush1.bf16.msra.mxu0 %v5755
        %7671 = vmatprep.subr.bf16.mxu0 %v5950
        %7672 = vmatpush1.bf16.msra.mxu0 %v5947
        %7673 = vmatprep.subr.bf16.mxu0 %v6142
        %7674 = vmatpush1.bf16.msra.mxu0 %v6139
        %7675 = vmatprep.subr.bf16.mxu0 0
        %7676 = vmatpush1.bf16.msra.mxu0 0
        %7677 = vmatprep.subr.bf16.mxu0 0
        %7678 = vmatpush1.bf16.msra.mxu0 0
        %7679 = vmatprep.subr.bf16.mxu0 0
        %7680 = vmatpush1.bf16.msra.mxu0 0
        %7681 = vmatprep.subr.bf16.mxu0 0
        %7682 = vmatpush1.bf16.msra.mxu0 0
        %7683 = vmatprep.subr.bf16.mxu0 0
        %7684 = vmatpush1.bf16.msra.mxu0 0
        %7685 = vmatprep.subr.bf16.mxu0 0
        %7686 = vmatpush1.bf16.msra.mxu0 0
        %7687 = vmatprep.subr.bf16.mxu0 0
        %7688 = vmatpush1.bf16.msra.mxu0 0
        %7689 = vmatprep.mubr.bf16.mxu0 %v6835
        %7690 = vmatmul.mubr.bf16.gmra.mrb[0].mxu0 %v6830
        %v7691 = vpop.f32.mrb[0].mxu0
        %v7692 = vadd.f32 %v6734, %v7691
        %v7693 = vpop.f32.mrb[0].mxu0
        %v7694 = vadd.f32 %v6738, %v7693
        %v7695 = vpop.f32.mrb[0].mxu0
        %v7696 = vpop.f32.mrb[0].mxu0
        %7697 = vdwg.mxu0
        %7698 = vmatprep.subr.bf16.mxu0 %v4612
        %7699 = vmatpush1.bf16.msra.mxu0 %v4609
        %7700 = vmatprep.subr.bf16.mxu0 %v4804
        %7701 = vmatpush1.bf16.msra.mxu0 %v4801
        %7702 = vmatprep.subr.bf16.mxu0 %v4996
        %7703 = vmatpush1.bf16.msra.mxu0 %v4993
        %7704 = vmatprep.subr.bf16.mxu0 %v5188
        %7705 = vmatpush1.bf16.msra.mxu0 %v5185
        %7706 = vmatprep.subr.bf16.mxu0 %v5380
        %7707 = vmatpush1.bf16.msra.mxu0 %v5377
        %7708 = vmatprep.subr.bf16.mxu0 %v5572
        %7709 = vmatpush1.bf16.msra.mxu0 %v5569
        %7710 = vmatprep.subr.bf16.mxu0 %v5764
        %7711 = vmatpush1.bf16.msra.mxu0 %v5761
        %7712 = vmatprep.subr.bf16.mxu0 %v5956
        %7713 = vmatpush1.bf16.msra.mxu0 %v5953
        %7714 = vmatprep.subr.bf16.mxu0 %v6148
        %7715 = vmatpush1.bf16.msra.mxu0 %v6145
        %7716 = vmatprep.subr.bf16.mxu0 0
        %7717 = vmatpush1.bf16.msra.mxu0 0
        %7718 = vmatprep.subr.bf16.mxu0 0
        %7719 = vmatpush1.bf16.msra.mxu0 0
        %7720 = vmatprep.subr.bf16.mxu0 0
        %7721 = vmatpush1.bf16.msra.mxu0 0
        %7722 = vmatprep.subr.bf16.mxu0 0
        %7723 = vmatpush1.bf16.msra.mxu0 0
        %7724 = vmatprep.subr.bf16.mxu0 0
        %7725 = vmatpush1.bf16.msra.mxu0 0
        %7726 = vmatprep.subr.bf16.mxu0 0
        %7727 = vmatpush1.bf16.msra.mxu0 0
        %7728 = vmatprep.subr.bf16.mxu0 0
        %7729 = vmatpush1.bf16.msra.mxu0 0
        %7730 = vmatprep.mubr.bf16.mxu0 %v6835
        %7731 = vmatmul.mubr.bf16.gmra.mrb[0].mxu0 %v6830
        %v7732 = vpop.f32.mrb[0].mxu0
        %v7733 = vadd.f32 %v6742, %v7732
        %v7734 = vpop.f32.mrb[0].mxu0
        %v7735 = vadd.f32 %v6746, %v7734
        %v7736 = vpop.f32.mrb[0].mxu0
        %v7737 = vpop.f32.mrb[0].mxu0
        %7738 = vdwg.mxu0
        %7739 = vmatprep.subr.bf16.mxu0 %v4618
        %7740 = vmatpush1.bf16.msra.mxu0 %v4615
        %7741 = vmatprep.subr.bf16.mxu0 %v4810
        %7742 = vmatpush1.bf16.msra.mxu0 %v4807
        %7743 = vmatprep.subr.bf16.mxu0 %v5002
        %7744 = vmatpush1.bf16.msra.mxu0 %v4999
        %7745 = vmatprep.subr.bf16.mxu0 %v5194
        %7746 = vmatpush1.bf16.msra.mxu0 %v5191
        %7747 = vmatprep.subr.bf16.mxu0 %v5386
        %7748 = vmatpush1.bf16.msra.mxu0 %v5383
        %7749 = vmatprep.subr.bf16.mxu0 %v5578
        %7750 = vmatpush1.bf16.msra.mxu0 %v5575
        %7751 = vmatprep.subr.bf16.mxu0 %v5770
        %7752 = vmatpush1.bf16.msra.mxu0 %v5767
        %7753 = vmatprep.subr.bf16.mxu0 %v5962
        %7754 = vmatpush1.bf16.msra.mxu0 %v5959
        %7755 = vmatprep.subr.bf16.mxu0 %v6154
        %7756 = vmatpush1.bf16.msra.mxu0 %v6151
        %7757 = vmatprep.subr.bf16.mxu0 0
        %7758 = vmatpush1.bf16.msra.mxu0 0
        %7759 = vmatprep.subr.bf16.mxu0 0
        %7760 = vmatpush1.bf16.msra.mxu0 0
        %7761 = vmatprep.subr.bf16.mxu0 0
        %7762 = vmatpush1.bf16.msra.mxu0 0
        %7763 = vmatprep.subr.bf16.mxu0 0
        %7764 = vmatpush1.bf16.msra.mxu0 0
        %7765 = vmatprep.subr.bf16.mxu0 0
        %7766 = vmatpush1.bf16.msra.mxu0 0
        %7767 = vmatprep.subr.bf16.mxu0 0
        %7768 = vmatpush1.bf16.msra.mxu0 0
        %7769 = vmatprep.subr.bf16.mxu0 0
        %7770 = vmatpush1.bf16.msra.mxu0 0
        %7771 = vmatprep.mubr.bf16.mxu0 %v6835
        %7772 = vmatmul.mubr.bf16.gmra.mrb[0].mxu0 %v6830
        %v7773 = vpop.f32.mrb[0].mxu0
        %v7774 = vadd.f32 %v6750, %v7773
        %v7775 = vpop.f32.mrb[0].mxu0
        %v7776 = vadd.f32 %v6754, %v7775
        %v7777 = vpop.f32.mrb[0].mxu0
        %v7778 = vpop.f32.mrb[0].mxu0
        %7779 = vdwg.mxu0
        %7780 = vmatprep.subr.bf16.mxu0 %v4624
        %7781 = vmatpush1.bf16.msra.mxu0 %v4621
        %7782 = vmatprep.subr.bf16.mxu0 %v4816
        %7783 = vmatpush1.bf16.msra.mxu0 %v4813
        %7784 = vmatprep.subr.bf16.mxu0 %v5008
        %7785 = vmatpush1.bf16.msra.mxu0 %v5005
        %7786 = vmatprep.subr.bf16.mxu0 %v5200
        %7787 = vmatpush1.bf16.msra.mxu0 %v5197
        %7788 = vmatprep.subr.bf16.mxu0 %v5392
        %7789 = vmatpush1.bf16.msra.mxu0 %v5389
        %7790 = vmatprep.subr.bf16.mxu0 %v5584
        %7791 = vmatpush1.bf16.msra.mxu0 %v5581
        %7792 = vmatprep.subr.bf16.mxu0 %v5776
        %7793 = vmatpush1.bf16.msra.mxu0 %v5773
        %7794 = vmatprep.subr.bf16.mxu0 %v5968
        %7795 = vmatpush1.bf16.msra.mxu0 %v5965
        %7796 = vmatprep.subr.bf16.mxu0 %v6160
        %7797 = vmatpush1.bf16.msra.mxu0 %v6157
        %7798 = vmatprep.subr.bf16.mxu0 0
        %7799 = vmatpush1.bf16.msra.mxu0 0
        %7800 = vmatprep.subr.bf16.mxu0 0
        %7801 = vmatpush1.bf16.msra.mxu0 0
        %7802 = vmatprep.subr.bf16.mxu0 0
        %7803 = vmatpush1.bf16.msra.mxu0 0
        %7804 = vmatprep.subr.bf16.mxu0 0
        %7805 = vmatpush1.bf16.msra.mxu0 0
        %7806 = vmatprep.subr.bf16.mxu0 0
        %7807 = vmatpush1.bf16.msra.mxu0 0
        %7808 = vmatprep.subr.bf16.mxu0 0
        %7809 = vmatpush1.bf16.msra.mxu0 0
        %7810 = vmatprep.subr.bf16.mxu0 0
        %7811 = vmatpush1.bf16.msra.mxu0 0
        %7812 = vmatprep.mubr.bf16.mxu0 %v6835
        %7813 = vmatmul.mubr.bf16.gmra.mrb[0].mxu0 %v6830
        %v7814 = vpop.f32.mrb[0].mxu0
        %v7815 = vadd.f32 %v6758, %v7814
        %v7816 = vpop.f32.mrb[0].mxu0
        %v7817 = vadd.f32 %v6762, %v7816
        %v7818 = vpop.f32.mrb[0].mxu0
        %v7819 = vpop.f32.mrb[0].mxu0
        %7820 = vdwg.mxu0
        %7821 = vmatprep.subr.bf16.mxu0 %v4630
        %7822 = vmatpush1.bf16.msra.mxu0 %v4627
        %7823 = vmatprep.subr.bf16.mxu0 %v4822
        %7824 = vmatpush1.bf16.msra.mxu0 %v4819
        %7825 = vmatprep.subr.bf16.mxu0 %v5014
        %7826 = vmatpush1.bf16.msra.mxu0 %v5011
        %7827 = vmatprep.subr.bf16.mxu0 %v5206
        %7828 = vmatpush1.bf16.msra.mxu0 %v5203
        %7829 = vmatprep.subr.bf16.mxu0 %v5398
        %7830 = vmatpush1.bf16.msra.mxu0 %v5395
        %7831 = vmatprep.subr.bf16.mxu0 %v5590
        %7832 = vmatpush1.bf16.msra.mxu0 %v5587
        %7833 = vmatprep.subr.bf16.mxu0 %v5782
        %7834 = vmatpush1.bf16.msra.mxu0 %v5779
        %7835 = vmatprep.subr.bf16.mxu0 %v5974
        %7836 = vmatpush1.bf16.msra.mxu0 %v5971
        %7837 = vmatprep.subr.bf16.mxu0 %v6166
        %7838 = vmatpush1.bf16.msra.mxu0 %v6163
        %7839 = vmatprep.subr.bf16.mxu0 0
        %7840 = vmatpush1.bf16.msra.mxu0 0
        %7841 = vmatprep.subr.bf16.mxu0 0
        %7842 = vmatpush1.bf16.msra.mxu0 0
        %7843 = vmatprep.subr.bf16.mxu0 0
        %7844 = vmatpush1.bf16.msra.mxu0 0
        %7845 = vmatprep.subr.bf16.mxu0 0
        %7846 = vmatpush1.bf16.msra.mxu0 0
        %7847 = vmatprep.subr.bf16.mxu0 0
        %7848 = vmatpush1.bf16.msra.mxu0 0
        %7849 = vmatprep.subr.bf16.mxu0 0
        %7850 = vmatpush1.bf16.msra.mxu0 0
        %7851 = vmatprep.subr.bf16.mxu0 0
        %7852 = vmatpush1.bf16.msra.mxu0 0
        %7853 = vmatprep.mubr.bf16.mxu0 %v6835
        %7854 = vmatmul.mubr.bf16.gmra.mrb[0].mxu0 %v6830
        %v7855 = vpop.f32.mrb[0].mxu0
        %v7856 = vadd.f32 %v6766, %v7855
        %v7857 = vpop.f32.mrb[0].mxu0
        %v7858 = vadd.f32 %v6770, %v7857
        %v7859 = vpop.f32.mrb[0].mxu0
        %v7860 = vpop.f32.mrb[0].mxu0
        %7861 = vdwg.mxu0
        %7862 = vmatprep.subr.bf16.mxu0 %v4636
        %7863 = vmatpush1.bf16.msra.mxu0 %v4633
        %7864 = vmatprep.subr.bf16.mxu0 %v4828
        %7865 = vmatpush1.bf16.msra.mxu0 %v4825
        %7866 = vmatprep.subr.bf16.mxu0 %v5020
        %7867 = vmatpush1.bf16.msra.mxu0 %v5017
        %7868 = vmatprep.subr.bf16.mxu0 %v5212
        %7869 = vmatpush1.bf16.msra.mxu0 %v5209
        %7870 = vmatprep.subr.bf16.mxu0 %v5404
        %7871 = vmatpush1.bf16.msra.mxu0 %v5401
        %7872 = vmatprep.subr.bf16.mxu0 %v5596
        %7873 = vmatpush1.bf16.msra.mxu0 %v5593
        %7874 = vmatprep.subr.bf16.mxu0 %v5788
        %7875 = vmatpush1.bf16.msra.mxu0 %v5785
        %7876 = vmatprep.subr.bf16.mxu0 %v5980
        %7877 = vmatpush1.bf16.msra.mxu0 %v5977
        %7878 = vmatprep.subr.bf16.mxu0 %v6172
        %7879 = vmatpush1.bf16.msra.mxu0 %v6169
        %7880 = vmatprep.subr.bf16.mxu0 0
        %7881 = vmatpush1.bf16.msra.mxu0 0
        %7882 = vmatprep.subr.bf16.mxu0 0
        %7883 = vmatpush1.bf16.msra.mxu0 0
        %7884 = vmatprep.subr.bf16.mxu0 0
        %7885 = vmatpush1.bf16.msra.mxu0 0
        %7886 = vmatprep.subr.bf16.mxu0 0
        %7887 = vmatpush1.bf16.msra.mxu0 0
        %7888 = vmatprep.subr.bf16.mxu0 0
        %7889 = vmatpush1.bf16.msra.mxu0 0
        %7890 = vmatprep.subr.bf16.mxu0 0
        %7891 = vmatpush1.bf16.msra.mxu0 0
        %7892 = vmatprep.subr.bf16.mxu0 0
        %7893 = vmatpush1.bf16.msra.mxu0 0
        %7894 = vmatprep.mubr.bf16.mxu0 %v6835
        %7895 = vmatmul.mubr.bf16.gmra.mrb[0].mxu0 %v6830
        %v7896 = vpop.f32.mrb[0].mxu0
        %v7897 = vadd.f32 %v6774, %v7896
        %v7898 = vpop.f32.mrb[0].mxu0
        %v7899 = vadd.f32 %v6778, %v7898
        %v7900 = vpop.f32.mrb[0].mxu0
        %v7901 = vpop.f32.mrb[0].mxu0
        %7902 = vdwg.mxu0
        %7903 = vmatprep.subr.bf16.mxu0 %v4642
        %7904 = vmatpush1.bf16.msra.mxu0 %v4639
        %7905 = vmatprep.subr.bf16.mxu0 %v4834
        %7906 = vmatpush1.bf16.msra.mxu0 %v4831
        %7907 = vmatprep.subr.bf16.mxu0 %v5026
        %7908 = vmatpush1.bf16.msra.mxu0 %v5023
        %7909 = vmatprep.subr.bf16.mxu0 %v5218
        %7910 = vmatpush1.bf16.msra.mxu0 %v5215
        %7911 = vmatprep.subr.bf16.mxu0 %v5410
        %7912 = vmatpush1.bf16.msra.mxu0 %v5407
        %7913 = vmatprep.subr.bf16.mxu0 %v5602
        %7914 = vmatpush1.bf16.msra.mxu0 %v5599
        %7915 = vmatprep.subr.bf16.mxu0 %v5794
        %7916 = vmatpush1.bf16.msra.mxu0 %v5791
        %7917 = vmatprep.subr.bf16.mxu0 %v5986
        %7918 = vmatpush1.bf16.msra.mxu0 %v5983
        %7919 = vmatprep.subr.bf16.mxu0 %v6178
        %7920 = vmatpush1.bf16.msra.mxu0 %v6175
        %7921 = vmatprep.subr.bf16.mxu0 0
        %7922 = vmatpush1.bf16.msra.mxu0 0
        %7923 = vmatprep.subr.bf16.mxu0 0
        %7924 = vmatpush1.bf16.msra.mxu0 0
        %7925 = vmatprep.subr.bf16.mxu0 0
        %7926 = vmatpush1.bf16.msra.mxu0 0
        %7927 = vmatprep.subr.bf16.mxu0 0
        %7928 = vmatpush1.bf16.msra.mxu0 0
        %7929 = vmatprep.subr.bf16.mxu0 0
        %7930 = vmatpush1.bf16.msra.mxu0 0
        %7931 = vmatprep.subr.bf16.mxu0 0
        %7932 = vmatpush1.bf16.msra.mxu0 0
        %7933 = vmatprep.subr.bf16.mxu0 0
        %7934 = vmatpush1.bf16.msra.mxu0 0
        %7935 = vmatprep.mubr.bf16.mxu0 %v6835
        %7936 = vmatmul.mubr.bf16.gmra.mrb[0].mxu0 %v6830
        %v7937 = vpop.f32.mrb[0].mxu0
        %v7938 = vadd.f32 %v6782, %v7937
        %v7939 = vpop.f32.mrb[0].mxu0
        %v7940 = vadd.f32 %v6786, %v7939
        %v7941 = vpop.f32.mrb[0].mxu0
        %v7942 = vpop.f32.mrb[0].mxu0
        %7943 = vdwg.mxu0
        %7944 = vmatprep.subr.bf16.mxu0 %v4648
        %7945 = vmatpush1.bf16.msra.mxu0 %v4645
        %7946 = vmatprep.subr.bf16.mxu0 %v4840
        %7947 = vmatpush1.bf16.msra.mxu0 %v4837
        %7948 = vmatprep.subr.bf16.mxu0 %v5032
        %7949 = vmatpush1.bf16.msra.mxu0 %v5029
        %7950 = vmatprep.subr.bf16.mxu0 %v5224
        %7951 = vmatpush1.bf16.msra.mxu0 %v5221
        %7952 = vmatprep.subr.bf16.mxu0 %v5416
        %7953 = vmatpush1.bf16.msra.mxu0 %v5413
        %7954 = vmatprep.subr.bf16.mxu0 %v5608
        %7955 = vmatpush1.bf16.msra.mxu0 %v5605
        %7956 = vmatprep.subr.bf16.mxu0 %v5800
        %7957 = vmatpush1.bf16.msra.mxu0 %v5797
        %7958 = vmatprep.subr.bf16.mxu0 %v5992
        %7959 = vmatpush1.bf16.msra.mxu0 %v5989
        %7960 = vmatprep.subr.bf16.mxu0 %v6184
        %7961 = vmatpush1.bf16.msra.mxu0 %v6181
        %7962 = vmatprep.subr.bf16.mxu0 0
        %7963 = vmatpush1.bf16.msra.mxu0 0
        %7964 = vmatprep.subr.bf16.mxu0 0
        %7965 = vmatpush1.bf16.msra.mxu0 0
        %7966 = vmatprep.subr.bf16.mxu0 0
        %7967 = vmatpush1.bf16.msra.mxu0 0
        %7968 = vmatprep.subr.bf16.mxu0 0
        %7969 = vmatpush1.bf16.msra.mxu0 0
        %7970 = vmatprep.subr.bf16.mxu0 0
        %7971 = vmatpush1.bf16.msra.mxu0 0
        %7972 = vmatprep.subr.bf16.mxu0 0
        %7973 = vmatpush1.bf16.msra.mxu0 0
        %7974 = vmatprep.subr.bf16.mxu0 0
        %7975 = vmatpush1.bf16.msra.mxu0 0
        %7976 = vmatprep.mubr.bf16.mxu0 %v6835
        %7977 = vmatmul.mubr.bf16.gmra.mrb[0].mxu0 %v6830
        %v7978 = vpop.f32.mrb[0].mxu0
        %v7979 = vadd.f32 %v6790, %v7978
        %v7980 = vpop.f32.mrb[0].mxu0
        %v7981 = vadd.f32 %v6794, %v7980
        %v7982 = vpop.f32.mrb[0].mxu0
        %v7983 = vpop.f32.mrb[0].mxu0
        %7984 = vdwg.mxu0
        %7985 = vmatprep.subr.bf16.mxu0 %v4654
        %7986 = vmatpush1.bf16.msra.mxu0 %v4651
        %7987 = vmatprep.subr.bf16.mxu0 %v4846
        %7988 = vmatpush1.bf16.msra.mxu0 %v4843
        %7989 = vmatprep.subr.bf16.mxu0 %v5038
        %7990 = vmatpush1.bf16.msra.mxu0 %v5035
        %7991 = vmatprep.subr.bf16.mxu0 %v5230
        %7992 = vmatpush1.bf16.msra.mxu0 %v5227
        %7993 = vmatprep.subr.bf16.mxu0 %v5422
        %7994 = vmatpush1.bf16.msra.mxu0 %v5419
        %7995 = vmatprep.subr.bf16.mxu0 %v5614
        %7996 = vmatpush1.bf16.msra.mxu0 %v5611
        %7997 = vmatprep.subr.bf16.mxu0 %v5806
        %7998 = vmatpush1.bf16.msra.mxu0 %v5803
        %7999 = vmatprep.subr.bf16.mxu0 %v5998
        %8000 = vmatpush1.bf16.msra.mxu0 %v5995
        %8001 = vmatprep.subr.bf16.mxu0 %v6190
        %8002 = vmatpush1.bf16.msra.mxu0 %v6187
        %8003 = vmatprep.subr.bf16.mxu0 0
        %8004 = vmatpush1.bf16.msra.mxu0 0
        %8005 = vmatprep.subr.bf16.mxu0 0
        %8006 = vmatpush1.bf16.msra.mxu0 0
        %8007 = vmatprep.subr.bf16.mxu0 0
        %8008 = vmatpush1.bf16.msra.mxu0 0
        %8009 = vmatprep.subr.bf16.mxu0 0
        %8010 = vmatpush1.bf16.msra.mxu0 0
        %8011 = vmatprep.subr.bf16.mxu0 0
        %8012 = vmatpush1.bf16.msra.mxu0 0
        %8013 = vmatprep.subr.bf16.mxu0 0
        %8014 = vmatpush1.bf16.msra.mxu0 0
        %8015 = vmatprep.subr.bf16.mxu0 0
        %8016 = vmatpush1.bf16.msra.mxu0 0
        %8017 = vmatprep.mubr.bf16.mxu0 %v6835
        %8018 = vmatmul.mubr.bf16.gmra.mrb[0].mxu0 %v6830
        %v8019 = vpop.f32.mrb[0].mxu0
        %v8020 = vadd.f32 %v6798, %v8019
        %v8021 = vpop.f32.mrb[0].mxu0
        %v8022 = vadd.f32 %v6802, %v8021
        %v8023 = vpop.f32.mrb[0].mxu0
        %v8024 = vpop.f32.mrb[0].mxu0
        %8025 = vdwg.mxu0
        %8026 = vmatprep.subr.bf16.mxu0 %v4660
        %8027 = vmatpush1.bf16.msra.mxu0 %v4657
        %8028 = vmatprep.subr.bf16.mxu0 %v4852
        %8029 = vmatpush1.bf16.msra.mxu0 %v4849
        %8030 = vmatprep.subr.bf16.mxu0 %v5044
        %8031 = vmatpush1.bf16.msra.mxu0 %v5041
        %8032 = vmatprep.subr.bf16.mxu0 %v5236
        %8033 = vmatpush1.bf16.msra.mxu0 %v5233
        %8034 = vmatprep.subr.bf16.mxu0 %v5428
        %8035 = vmatpush1.bf16.msra.mxu0 %v5425
        %8036 = vmatprep.subr.bf16.mxu0 %v5620
        %8037 = vmatpush1.bf16.msra.mxu0 %v5617
        %8038 = vmatprep.subr.bf16.mxu0 %v5812
        %8039 = vmatpush1.bf16.msra.mxu0 %v5809
        %8040 = vmatprep.subr.bf16.mxu0 %v6004
        %8041 = vmatpush1.bf16.msra.mxu0 %v6001
        %8042 = vmatprep.subr.bf16.mxu0 %v6196
        %8043 = vmatpush1.bf16.msra.mxu0 %v6193
        %8044 = vmatprep.subr.bf16.mxu0 0
        %8045 = vmatpush1.bf16.msra.mxu0 0
        %8046 = vmatprep.subr.bf16.mxu0 0
        %8047 = vmatpush1.bf16.msra.mxu0 0
        %8048 = vmatprep.subr.bf16.mxu0 0
        %8049 = vmatpush1.bf16.msra.mxu0 0
        %8050 = vmatprep.subr.bf16.mxu0 0
        %8051 = vmatpush1.bf16.msra.mxu0 0
        %8052 = vmatprep.subr.bf16.mxu0 0
        %8053 = vmatpush1.bf16.msra.mxu0 0
        %8054 = vmatprep.subr.bf16.mxu0 0
        %8055 = vmatpush1.bf16.msra.mxu0 0
        %8056 = vmatprep.subr.bf16.mxu0 0
        %8057 = vmatpush1.bf16.msra.mxu0 0
        %8058 = vmatprep.mubr.bf16.mxu0 %v6835
        %8059 = vmatmul.mubr.bf16.gmra.mrb[0].mxu0 %v6830
        %v8060 = vpop.f32.mrb[0].mxu0
        %v8061 = vadd.f32 %v6806, %v8060
        %v8062 = vpop.f32.mrb[0].mxu0
        %v8063 = vadd.f32 %v6810, %v8062
        %v8064 = vpop.f32.mrb[0].mxu0
        %v8065 = vpop.f32.mrb[0].mxu0
        %8066 = vdwg.mxu0
        %8067 = vmatprep.subr.bf16.mxu0 %v4666
        %8068 = vmatpush1.bf16.msra.mxu0 %v4663
        %8069 = vmatprep.subr.bf16.mxu0 %v4858
        %8070 = vmatpush1.bf16.msra.mxu0 %v4855
        %8071 = vmatprep.subr.bf16.mxu0 %v5050
        %8072 = vmatpush1.bf16.msra.mxu0 %v5047
        %8073 = vmatprep.subr.bf16.mxu0 %v5242
        %8074 = vmatpush1.bf16.msra.mxu0 %v5239
        %8075 = vmatprep.subr.bf16.mxu0 %v5434
        %8076 = vmatpush1.bf16.msra.mxu0 %v5431
        %8077 = vmatprep.subr.bf16.mxu0 %v5626
        %8078 = vmatpush1.bf16.msra.mxu0 %v5623
        %8079 = vmatprep.subr.bf16.mxu0 %v5818
        %8080 = vmatpush1.bf16.msra.mxu0 %v5815
        %8081 = vmatprep.subr.bf16.mxu0 %v6010
        %8082 = vmatpush1.bf16.msra.mxu0 %v6007
        %8083 = vmatprep.subr.bf16.mxu0 %v6202
        %8084 = vmatpush1.bf16.msra.mxu0 %v6199
        %8085 = vmatprep.subr.bf16.mxu0 0
        %8086 = vmatpush1.bf16.msra.mxu0 0
        %8087 = vmatprep.subr.bf16.mxu0 0
        %8088 = vmatpush1.bf16.msra.mxu0 0
        %8089 = vmatprep.subr.bf16.mxu0 0
        %8090 = vmatpush1.bf16.msra.mxu0 0
        %8091 = vmatprep.subr.bf16.mxu0 0
        %8092 = vmatpush1.bf16.msra.mxu0 0
        %8093 = vmatprep.subr.bf16.mxu0 0
        %8094 = vmatpush1.bf16.msra.mxu0 0
        %8095 = vmatprep.subr.bf16.mxu0 0
        %8096 = vmatpush1.bf16.msra.mxu0 0
        %8097 = vmatprep.subr.bf16.mxu0 0
        %8098 = vmatpush1.bf16.msra.mxu0 0
        %8099 = vmatprep.mubr.bf16.mxu0 %v6835
        %8100 = vmatmul.mubr.bf16.gmra.mrb[0].mxu0 %v6830
        %v8101 = vpop.f32.mrb[0].mxu0
        %v8102 = vadd.f32 %v6814, %v8101
        %v8103 = vpop.f32.mrb[0].mxu0
        %v8104 = vadd.f32 %v6818, %v8103
        %v8105 = vpop.f32.mrb[0].mxu0
        %v8106 = vpop.f32.mrb[0].mxu0
        %8107 = vdwg.mxu0
        %8108 = vmatprep.subr.bf16.mxu0 %v4672
        %8109 = vmatpush1.bf16.msra.mxu0 %v4669
        %8110 = vmatprep.subr.bf16.mxu0 %v4864
        %8111 = vmatpush1.bf16.msra.mxu0 %v4861
        %8112 = vmatprep.subr.bf16.mxu0 %v5056
        %8113 = vmatpush1.bf16.msra.mxu0 %v5053
        %8114 = vmatprep.subr.bf16.mxu0 %v5248
        %8115 = vmatpush1.bf16.msra.mxu0 %v5245
        %8116 = vmatprep.subr.bf16.mxu0 %v5440
        %8117 = vmatpush1.bf16.msra.mxu0 %v5437
        %8118 = vmatprep.subr.bf16.mxu0 %v5632
        %8119 = vmatpush1.bf16.msra.mxu0 %v5629
        %8120 = vmatprep.subr.bf16.mxu0 %v5824
        %8121 = vmatpush1.bf16.msra.mxu0 %v5821
        %8122 = vmatprep.subr.bf16.mxu0 %v6016
        %8123 = vmatpush1.bf16.msra.mxu0 %v6013
        %8124 = vmatprep.subr.bf16.mxu0 %v6208
        %8125 = vmatpush1.bf16.msra.mxu0 %v6205
        %8126 = vmatprep.subr.bf16.mxu0 0
        %8127 = vmatpush1.bf16.msra.mxu0 0
        %8128 = vmatprep.subr.bf16.mxu0 0
        %8129 = vmatpush1.bf16.msra.mxu0 0
        %8130 = vmatprep.subr.bf16.mxu0 0
        %8131 = vmatpush1.bf16.msra.mxu0 0
        %8132 = vmatprep.subr.bf16.mxu0 0
        %8133 = vmatpush1.bf16.msra.mxu0 0
        %8134 = vmatprep.subr.bf16.mxu0 0
        %8135 = vmatpush1.bf16.msra.mxu0 0
        %8136 = vmatprep.subr.bf16.mxu0 0
        %8137 = vmatpush1.bf16.msra.mxu0 0
        %8138 = vmatprep.subr.bf16.mxu0 0
        %8139 = vmatpush1.bf16.msra.mxu0 0
        %8140 = vmatprep.mubr.bf16.mxu0 %v6835
        %8141 = vmatmul.mubr.bf16.gmra.mrb[0].mxu0 %v6830
        %v8142 = vpop.f32.mrb[0].mxu0
        %v8143 = vadd.f32 %v6822, %v8142
        %v8144 = vpop.f32.mrb[0].mxu0
        %v8145 = vadd.f32 %v6826, %v8144
        %v8146 = vpop.f32.mrb[0].mxu0
        %v8147 = vpop.f32.mrb[0].mxu0
        %8148 = vdwg.mxu0
        %v8149 = vadd.f32 %v6872, %v6874
        %v8150 = vadd.f32 %v8149, %v6913
        %v8151 = vadd.f32 %v8150, %v6915
        %v8152 = vadd.f32 %v8151, %v6954
        %v8153 = vadd.f32 %v8152, %v6956
        %v8154 = vadd.f32 %v8153, %v6995
        %v8155 = vadd.f32 %v8154, %v6997
        %v8156 = vadd.f32 %v8155, %v7036
        %v8157 = vadd.f32 %v8156, %v7038
        %v8158 = vadd.f32 %v8157, %v7077
        %v8159 = vadd.f32 %v8158, %v7079
        %v8160 = vadd.f32 %v8159, %v7118
        %v8161 = vadd.f32 %v8160, %v7120
        %v8162 = vadd.f32 %v8161, %v7159
        %v8163 = vadd.f32 %v8162, %v7161
        %v8164 = vadd.f32 %v8163, %v7200
        %v8165 = vadd.f32 %v8164, %v7202
        %v8166 = vadd.f32 %v8165, %v7241
        %v8167 = vadd.f32 %v8166, %v7243
        %v8168 = vadd.f32 %v8167, %v7282
        %v8169 = vadd.f32 %v8168, %v7284
        %v8170 = vadd.f32 %v8169, %v7323
        %v8171 = vadd.f32 %v8170, %v7325
        %v8172 = vadd.f32 %v8171, %v7364
        %v8173 = vadd.f32 %v8172, %v7366
        %v8174 = vadd.f32 %v8173, %v7405
        %v8175 = vadd.f32 %v8174, %v7407
        %v8176 = vadd.f32 %v8175, %v7446
        %v8177 = vadd.f32 %v8176, %v7448
        %v8178 = vadd.f32 %v8177, %v7487
        %v8179 = vadd.f32 %v8178, %v7489
        %v8180 = vadd.f32 %v8179, %v7528
        %v8181 = vadd.f32 %v8180, %v7530
        %v8182 = vadd.f32 %v8181, %v7569
        %v8183 = vadd.f32 %v8182, %v7571
        %v8184 = vadd.f32 %v8183, %v7610
        %v8185 = vadd.f32 %v8184, %v7612
        %v8186 = vadd.f32 %v8185, %v7651
        %v8187 = vadd.f32 %v8186, %v7653
        %v8188 = vadd.f32 %v8187, %v7692
        %v8189 = vadd.f32 %v8188, %v7694
        %v8190 = vadd.f32 %v8189, %v7733
        %v8191 = vadd.f32 %v8190, %v7735
        %v8192 = vadd.f32 %v8191, %v7774
        %v8193 = vadd.f32 %v8192, %v7776
        %v8194 = vadd.f32 %v8193, %v7815
        %v8195 = vadd.f32 %v8194, %v7817
        %v8196 = vadd.f32 %v8195, %v7856
        %v8197 = vadd.f32 %v8196, %v7858
        %v8198 = vadd.f32 %v8197, %v7897
        %v8199 = vadd.f32 %v8198, %v7899
        %v8200 = vadd.f32 %v8199, %v7938
        %v8201 = vadd.f32 %v8200, %v7940
        %v8202 = vadd.f32 %v8201, %v7979
        %v8203 = vadd.f32 %v8202, %v7981
        %v8204 = vadd.f32 %v8203, %v8020
        %v8205 = vadd.f32 %v8204, %v8022
        %v8206 = vadd.f32 %v8205, %v8061
        %v8207 = vadd.f32 %v8206, %v8063
        %v8208 = vadd.f32 %v8207, %v8102
        %v8209 = vadd.f32 %v8208, %v8104
        %v8210 = vadd.f32 %v8209, %v8143
        %v8211 = vadd.f32 %v8210, %v8145
        %8212 = vadd.xlane.f32.xlu0 %v8211
        %v8213 = vpop.xlane.xlu0 %8212
        %v8214 = vmul.f32 %v8213, 0.00012207031
        %v8215 = vsub.f32 %v6872, %v8214
        %v8216 = vsub.f32 %v6874, %v8214
        %v8217 = vsub.f32 %v6913, %v8214
        %v8218 = vsub.f32 %v6915, %v8214
        %v8219 = vsub.f32 %v6954, %v8214
        %v8220 = vsub.f32 %v6956, %v8214
        %v8221 = vsub.f32 %v6995, %v8214
        %v8222 = vsub.f32 %v6997, %v8214
        %v8223 = vsub.f32 %v7036, %v8214
        %v8224 = vsub.f32 %v7038, %v8214
        %v8225 = vsub.f32 %v7077, %v8214
        %v8226 = vsub.f32 %v7079, %v8214
        %v8227 = vsub.f32 %v7118, %v8214
        %v8228 = vsub.f32 %v7120, %v8214
        %v8229 = vsub.f32 %v7159, %v8214
        %v8230 = vsub.f32 %v7161, %v8214
        %v8231 = vsub.f32 %v7200, %v8214
        %v8232 = vsub.f32 %v7202, %v8214
        %v8233 = vsub.f32 %v7241, %v8214
        %v8234 = vsub.f32 %v7243, %v8214
        %v8235 = vsub.f32 %v7282, %v8214
        %v8236 = vsub.f32 %v7284, %v8214
        %v8237 = vsub.f32 %v7323, %v8214
        %v8238 = vsub.f32 %v7325, %v8214
        %v8239 = vsub.f32 %v7364, %v8214
        %v8240 = vsub.f32 %v7366, %v8214
        %v8241 = vsub.f32 %v7405, %v8214
        %v8242 = vsub.f32 %v7407, %v8214
        %v8243 = vsub.f32 %v7446, %v8214
        %v8244 = vsub.f32 %v7448, %v8214
        %v8245 = vsub.f32 %v7487, %v8214
        %v8246 = vsub.f32 %v7489, %v8214
        %v8247 = vsub.f32 %v7528, %v8214
        %v8248 = vsub.f32 %v7530, %v8214
        %v8249 = vsub.f32 %v7569, %v8214
        %v8250 = vsub.f32 %v7571, %v8214
        %v8251 = vsub.f32 %v7610, %v8214
        %v8252 = vsub.f32 %v7612, %v8214
        %v8253 = vsub.f32 %v7651, %v8214
        %v8254 = vsub.f32 %v7653, %v8214
        %v8255 = vsub.f32 %v7692, %v8214
        %v8256 = vsub.f32 %v7694, %v8214
        %v8257 = vsub.f32 %v7733, %v8214
        %v8258 = vsub.f32 %v7735, %v8214
        %v8259 = vsub.f32 %v7774, %v8214
        %v8260 = vsub.f32 %v7776, %v8214
        %v8261 = vsub.f32 %v7815, %v8214
        %v8262 = vsub.f32 %v7817, %v8214
        %v8263 = vsub.f32 %v7856, %v8214
        %v8264 = vsub.f32 %v7858, %v8214
        %v8265 = vsub.f32 %v7897, %v8214
        %v8266 = vsub.f32 %v7899, %v8214
        %v8267 = vsub.f32 %v7938, %v8214
        %v8268 = vsub.f32 %v7940, %v8214
        %v8269 = vsub.f32 %v7979, %v8214
        %v8270 = vsub.f32 %v7981, %v8214
        %v8271 = vsub.f32 %v8020, %v8214
        %v8272 = vsub.f32 %v8022, %v8214
        %v8273 = vsub.f32 %v8061, %v8214
        %v8274 = vsub.f32 %v8063, %v8214
        %v8275 = vsub.f32 %v8102, %v8214
        %v8276 = vsub.f32 %v8104, %v8214
        %v8277 = vsub.f32 %v8143, %v8214
        %v8278 = vsub.f32 %v8145, %v8214
        %8279 = vst.msk [vmem:[%s324] sm:$0xff] %vm1157, %v8214
        %v8280 = vmul.f32 %v8215, %v8215
        %v8281 = vmul.f32 %v8216, %v8216
        %v8282 = vmul.f32 %v8217, %v8217
        %v8283 = vmul.f32 %v8218, %v8218
        %v8284 = vmul.f32 %v8219, %v8219
        %v8285 = vmul.f32 %v8220, %v8220
        %v8286 = vmul.f32 %v8221, %v8221
        %v8287 = vmul.f32 %v8222, %v8222
        %v8288 = vmul.f32 %v8223, %v8223
        %v8289 = vmul.f32 %v8224, %v8224
        %v8290 = vmul.f32 %v8225, %v8225
        %v8291 = vmul.f32 %v8226, %v8226
        %v8292 = vmul.f32 %v8227, %v8227
        %v8293 = vmul.f32 %v8228, %v8228
        %v8294 = vmul.f32 %v8229, %v8229
        %v8295 = vmul.f32 %v8230, %v8230
        %v8296 = vmul.f32 %v8231, %v8231
        %v8297 = vmul.f32 %v8232, %v8232
        %v8298 = vmul.f32 %v8233, %v8233
        %v8299 = vmul.f32 %v8234, %v8234
        %v8300 = vmul.f32 %v8235, %v8235
        %v8301 = vmul.f32 %v8236, %v8236
        %v8302 = vmul.f32 %v8237, %v8237
        %v8303 = vmul.f32 %v8238, %v8238
        %v8304 = vmul.f32 %v8239, %v8239
        %v8305 = vmul.f32 %v8240, %v8240
        %v8306 = vmul.f32 %v8241, %v8241
        %v8307 = vmul.f32 %v8242, %v8242
        %v8308 = vmul.f32 %v8243, %v8243
        %v8309 = vmul.f32 %v8244, %v8244
        %v8310 = vmul.f32 %v8245, %v8245
        %v8311 = vmul.f32 %v8246, %v8246
        %v8312 = vmul.f32 %v8247, %v8247
        %v8313 = vmul.f32 %v8248, %v8248
        %v8314 = vmul.f32 %v8249, %v8249
        %v8315 = vmul.f32 %v8250, %v8250
        %v8316 = vmul.f32 %v8251, %v8251
        %v8317 = vmul.f32 %v8252, %v8252
        %v8318 = vmul.f32 %v8253, %v8253
        %v8319 = vmul.f32 %v8254, %v8254
        %v8320 = vmul.f32 %v8255, %v8255
        %v8321 = vmul.f32 %v8256, %v8256
        %v8322 = vmul.f32 %v8257, %v8257
        %v8323 = vmul.f32 %v8258, %v8258
        %v8324 = vmul.f32 %v8259, %v8259
        %v8325 = vmul.f32 %v8260, %v8260
        %v8326 = vmul.f32 %v8261, %v8261
        %v8327 = vmul.f32 %v8262, %v8262
        %v8328 = vmul.f32 %v8263, %v8263
        %v8329 = vmul.f32 %v8264, %v8264
        %v8330 = vmul.f32 %v8265, %v8265
        %v8331 = vmul.f32 %v8266, %v8266
        %v8332 = vmul.f32 %v8267, %v8267
        %v8333 = vmul.f32 %v8268, %v8268
        %v8334 = vmul.f32 %v8269, %v8269
        %v8335 = vmul.f32 %v8270, %v8270
        %v8336 = vmul.f32 %v8271, %v8271
        %v8337 = vmul.f32 %v8272, %v8272
        %v8338 = vmul.f32 %v8273, %v8273
        %v8339 = vmul.f32 %v8274, %v8274
        %v8340 = vmul.f32 %v8275, %v8275
        %v8341 = vmul.f32 %v8276, %v8276
        %v8342 = vmul.f32 %v8277, %v8277
        %v8343 = vmul.f32 %v8278, %v8278
        %v8344 = vadd.f32 %v8280, %v8281
        %v8345 = vadd.f32 %v8344, %v8282
        %v8346 = vadd.f32 %v8345, %v8283
        %v8347 = vadd.f32 %v8346, %v8284
        %v8348 = vadd.f32 %v8347, %v8285
        %v8349 = vadd.f32 %v8348, %v8286
        %v8350 = vadd.f32 %v8349, %v8287
        %v8351 = vadd.f32 %v8350, %v8288
        %v8352 = vadd.f32 %v8351, %v8289
        %v8353 = vadd.f32 %v8352, %v8290
        %v8354 = vadd.f32 %v8353, %v8291
        %v8355 = vadd.f32 %v8354, %v8292
        %v8356 = vadd.f32 %v8355, %v8293
        %v8357 = vadd.f32 %v8356, %v8294
        %v8358 = vadd.f32 %v8357, %v8295
        %v8359 = vadd.f32 %v8358, %v8296
        %v8360 = vadd.f32 %v8359, %v8297
        %v8361 = vadd.f32 %v8360, %v8298
        %v8362 = vadd.f32 %v8361, %v8299
        %v8363 = vadd.f32 %v8362, %v8300
        %v8364 = vadd.f32 %v8363, %v8301
        %v8365 = vadd.f32 %v8364, %v8302
        %v8366 = vadd.f32 %v8365, %v8303
        %v8367 = vadd.f32 %v8366, %v8304
        %v8368 = vadd.f32 %v8367, %v8305
        %v8369 = vadd.f32 %v8368, %v8306
        %v8370 = vadd.f32 %v8369, %v8307
        %v8371 = vadd.f32 %v8370, %v8308
        %v8372 = vadd.f32 %v8371, %v8309
        %v8373 = vadd.f32 %v8372, %v8310
        %v8374 = vadd.f32 %v8373, %v8311
        %v8375 = vadd.f32 %v8374, %v8312
        %v8376 = vadd.f32 %v8375, %v8313
        %v8377 = vadd.f32 %v8376, %v8314
        %v8378 = vadd.f32 %v8377, %v8315
        %v8379 = vadd.f32 %v8378, %v8316
        %v8380 = vadd.f32 %v8379, %v8317
        %v8381 = vadd.f32 %v8380, %v8318
        %v8382 = vadd.f32 %v8381, %v8319
        %v8383 = vadd.f32 %v8382, %v8320
        %v8384 = vadd.f32 %v8383, %v8321
        %v8385 = vadd.f32 %v8384, %v8322
        %v8386 = vadd.f32 %v8385, %v8323
        %v8387 = vadd.f32 %v8386, %v8324
        %v8388 = vadd.f32 %v8387, %v8325
        %v8389 = vadd.f32 %v8388, %v8326
        %v8390 = vadd.f32 %v8389, %v8327
        %v8391 = vadd.f32 %v8390, %v8328
        %v8392 = vadd.f32 %v8391, %v8329
        %v8393 = vadd.f32 %v8392, %v8330
        %v8394 = vadd.f32 %v8393, %v8331
        %v8395 = vadd.f32 %v8394, %v8332
        %v8396 = vadd.f32 %v8395, %v8333
        %v8397 = vadd.f32 %v8396, %v8334
        %v8398 = vadd.f32 %v8397, %v8335
        %v8399 = vadd.f32 %v8398, %v8336
        %v8400 = vadd.f32 %v8399, %v8337
        %v8401 = vadd.f32 %v8400, %v8338
        %v8402 = vadd.f32 %v8401, %v8339
        %v8403 = vadd.f32 %v8402, %v8340
        %v8404 = vadd.f32 %v8403, %v8341
        %v8405 = vadd.f32 %v8404, %v8342
        %v8406 = vadd.f32 %v8405, %v8343
        %8407 = vadd.xlane.f32.xlu0 %v8406
        %v8408 = vpop.xlane.xlu0 %8407
        %8409 = vst.msk [vmem:[%s332] sm:$0xff] %vm1157, %v8408
        %8410 = vst [vmem:[%s294] sm:$0xff] %v6872
        %8411 = vst [vmem:[%s294 + $0x8] sm:$0xff] %v6874
        %8412 = vst [vmem:[%s294 + $0x10] sm:$0xff] %v6913
        %8413 = vst [vmem:[%s294 + $0x18] sm:$0xff] %v6915
        %8414 = vst [vmem:[%s294 + $0x20] sm:$0xff] %v6954
        %8415 = vst [vmem:[%s294 + $0x28] sm:$0xff] %v6956
        %8416 = vst [vmem:[%s294 + $0x30] sm:$0xff] %v6995
        %8417 = vst [vmem:[%s294 + $0x38] sm:$0xff] %v6997
        %8418 = vst [vmem:[%s294 + $0x40] sm:$0xff] %v7036
        %8419 = vst [vmem:[%s294 + $0x48] sm:$0xff] %v7038
        %8420 = vst [vmem:[%s294 + $0x50] sm:$0xff] %v7077
        %8421 = vst [vmem:[%s294 + $0x58] sm:$0xff] %v7079
        %8422 = vst [vmem:[%s294 + $0x60] sm:$0xff] %v7118
        %8423 = vst [vmem:[%s294 + $0x68] sm:$0xff] %v7120
        %8424 = vst [vmem:[%s294 + $0x70] sm:$0xff] %v7159
        %8425 = vst [vmem:[%s294 + $0x78] sm:$0xff] %v7161
        %8426 = vst [vmem:[%s294 + $0x80] sm:$0xff] %v7200
        %8427 = vst [vmem:[%s294 + $0x88] sm:$0xff] %v7202
        %8428 = vst [vmem:[%s294 + $0x90] sm:$0xff] %v7241
        %8429 = vst [vmem:[%s294 + $0x98] sm:$0xff] %v7243
        %8430 = vst [vmem:[%s294 + $0xa0] sm:$0xff] %v7282
        %8431 = vst [vmem:[%s294 + $0xa8] sm:$0xff] %v7284
        %8432 = vst [vmem:[%s294 + $0xb0] sm:$0xff] %v7323
        %8433 = vst [vmem:[%s294 + $0xb8] sm:$0xff] %v7325
        %8434 = vst [vmem:[%s294 + $0xc0] sm:$0xff] %v7364
        %8435 = vst [vmem:[%s294 + $0xc8] sm:$0xff] %v7366
        %8436 = vst [vmem:[%s294 + $0xd0] sm:$0xff] %v7405
        %8437 = vst [vmem:[%s294 + $0xd8] sm:$0xff] %v7407
        %8438 = vst [vmem:[%s294 + $0xe0] sm:$0xff] %v7446
        %8439 = vst [vmem:[%s294 + $0xe8] sm:$0xff] %v7448
        %8440 = vst [vmem:[%s294 + $0xf0] sm:$0xff] %v7487
        %8441 = vst [vmem:[%s294 + $0xf8] sm:$0xff] %v7489
        %8442 = vst [vmem:[%s294 + $0x100] sm:$0xff] %v7528
        %8443 = vst [vmem:[%s294 + $0x108] sm:$0xff] %v7530
        %8444 = vst [vmem:[%s294 + $0x110] sm:$0xff] %v7569
        %8445 = vst [vmem:[%s294 + $0x118] sm:$0xff] %v7571
        %8446 = vst [vmem:[%s294 + $0x120] sm:$0xff] %v7610
        %8447 = vst [vmem:[%s294 + $0x128] sm:$0xff] %v7612
        %8448 = vst [vmem:[%s294 + $0x130] sm:$0xff] %v7651
        %8449 = vst [vmem:[%s294 + $0x138] sm:$0xff] %v7653
        %8450 = vst [vmem:[%s294 + $0x140] sm:$0xff] %v7692
        %8451 = vst [vmem:[%s294 + $0x148] sm:$0xff] %v7694
        %8452 = vst [vmem:[%s294 + $0x150] sm:$0xff] %v7733
        %8453 = vst [vmem:[%s294 + $0x158] sm:$0xff] %v7735
        %8454 = vst [vmem:[%s294 + $0x160] sm:$0xff] %v7774
        %8455 = vst [vmem:[%s294 + $0x168] sm:$0xff] %v7776
        %8456 = vst [vmem:[%s294 + $0x170] sm:$0xff] %v7815
        %8457 = vst [vmem:[%s294 + $0x178] sm:$0xff] %v7817
        %8458 = vst [vmem:[%s294 + $0x180] sm:$0xff] %v7856
        %8459 = vst [vmem:[%s294 + $0x188] sm:$0xff] %v7858
        %8460 = vst [vmem:[%s294 + $0x190] sm:$0xff] %v7897
        %8461 = vst [vmem:[%s294 + $0x198] sm:$0xff] %v7899
        %8462 = vst [vmem:[%s294 + $0x1a0] sm:$0xff] %v7938
        %8463 = vst [vmem:[%s294 + $0x1a8] sm:$0xff] %v7940
        %8464 = vst [vmem:[%s294 + $0x1b0] sm:$0xff] %v7979
        %8465 = vst [vmem:[%s294 + $0x1b8] sm:$0xff] %v7981
        %8466 = vst [vmem:[%s294 + $0x1c0] sm:$0xff] %v8020
        %8467 = vst [vmem:[%s294 + $0x1c8] sm:$0xff] %v8022
        %8468 = vst [vmem:[%s294 + $0x1d0] sm:$0xff] %v8061
        %8469 = vst [vmem:[%s294 + $0x1d8] sm:$0xff] %v8063
        %8470 = vst [vmem:[%s294 + $0x1e0] sm:$0xff] %v8102
        %8471 = vst [vmem:[%s294 + $0x1e8] sm:$0xff] %v8104
        %8472 = vst [vmem:[%s294 + $0x1f0] sm:$0xff] %v8143
        %8473 = vst [vmem:[%s294 + $0x1f8] sm:$0xff] %v8145
        %s8474 = sand.u32 %s119, 1
        %s8475 = scalar_lea.sflag [#allocation4], %s8474
        %s8476 = sand.u32 %s119, 1
        %s8477 = smul.addr %s8476, 512
        %s8478 = scalar_lea.vmem [#allocation8], %s8477
        %p8479 = scmp.lt.s32.totalorder %s26, 0
        %s8480 = scalar_select %p8479, %s26, 0
        %p8481 = scmp.lt.s32.totalorder %s27, 1
        %s8482 = scalar_select %p8481, %s27, 1
        %s8483 = smul.addr %s8480, 2
        %s8484 = sadd.s32 %s8482, %s8483
        %s8485 = smul.addr %s8484, 8
        %s8486 = scalar_lea.vmem %s4, %s8485
        %p8487 = scmp.lt.s32.totalorder %s26, 0
        %s8488 = scalar_select %p8487, %s26, 0
        %p8489 = scmp.lt.s32.totalorder %s27, 1
        %s8490 = scalar_select %p8489, %s27, 1
        %s8491 = smul.addr %s8488, 2
        %s8492 = sadd.s32 %s8490, %s8491
        %s8493 = smul.addr %s8492, 8
        %s8494 = scalar_lea.vmem %s5, %s8493
        // Predicated region
        $region45: #{tpu_custom_call.1} parent=31 // pred_check
          %p8495 = pneg %p129
        $region46: #{tpu_custom_call.1} parent=31 // pred_check_branch
          %8497 = sbr.rel (%p8495) target = $region48
        $region47: #{tpu_custom_call.1} parent=31 // pred_region
          %s8498 = smul.u32 64, %s27
          %s8500 = ssub.s32 8192, 8192
          %8501 = vsyncadd %s8475, %s8500
          %s8502 = smul.addr %s26, 128
          %s8503 = sadd.s32 %s8498, %s8502
          %s8504 = smul.addr %s8503, 128
          %s8505 = scalar_lea.hbm %s3, %s8504
          %s8507 = sshll.u32 %s8478, 4
          %s8508 = int_to_ptr.vmem [resolvable:$true] %s8507
          %8510 = dma.vmem_to_hbm [thread:$0]  %s8508, 8192, %s8505, %s8475
        $region48: #{tpu_custom_call.1} parent=31 // pred_fallthru
          _
        // Predicated region
        $region49: #{tpu_custom_call.1} parent=31 // pred_check
          %p8511 = pneg %p157
        $region50: #{tpu_custom_call.1} parent=31 // pred_check_branch
          %8513 = sbr.rel (%p8511) target = $region52
        $region51: #{tpu_custom_call.1} parent=31 // pred_region
          _
        $region52: #{tpu_custom_call.1} parent=31 // pred_fallthru
          _
        // Predicated region
        $region53: #{tpu_custom_call.1} parent=31 // pred_check
          %p8514 = pneg %p185
        $region54: #{tpu_custom_call.1} parent=31 // pred_check_branch
          %8516 = sbr.rel (%p8514) target = $region56
        $region55: #{tpu_custom_call.1} parent=31 // pred_region
          _
        $region56: #{tpu_custom_call.1} parent=31 // pred_fallthru
          _
      $region32: #{tpu_custom_call.1} parent=5 // pred_fallthru
        _
      %p8517 = scmp.le.s32.totalorder 2, %s17
      // Predicated region
      $region57: #{tpu_custom_call.1} parent=5 // pred_check
        %p8518 = pneg %p8517
      $region58: #{tpu_custom_call.1} parent=5 // pred_check_branch
        %8520 = sbr.rel (%p8518) target = $region60
      $region59: #{tpu_custom_call.1} parent=5 // pred_region
        %s8521 = ssub.s32 %s17, 2
        // Predicated region
        $region61: #{tpu_custom_call.1} parent=59 // pred_check
          %p8522 = pneg %p135
        $region62: #{tpu_custom_call.1} parent=59 // pred_check_branch
          %8524 = sbr.rel (%p8522) target = $region64
        $region63: #{tpu_custom_call.1} parent=59 // pred_region
          %s8525 = sand.u32 %s120, 1
          %s8526 = scalar_lea.sflag [#allocation4], %s8525
          %s8527 = sand.u32 %s120, 1
          %s8528 = smul.addr %s8527, 512
          %s8529 = scalar_lea.vmem [#allocation8], %s8528
          %8530 = dma.done %s8526, 8192
        $region64: #{tpu_custom_call.1} parent=59 // pred_fallthru
          _
        // Predicated region
        $region65: #{tpu_custom_call.1} parent=59 // pred_check
          %p8531 = pneg %p163
        $region66: #{tpu_custom_call.1} parent=59 // pred_check_branch
          %8533 = sbr.rel (%p8531) target = $region68
        $region67: #{tpu_custom_call.1} parent=59 // pred_region
          %p8534 = scmp.lt.s32.totalorder %s28, 0
          %s8535 = scalar_select %p8534, %s28, 0
          %p8536 = scmp.lt.s32.totalorder %s29, 1
          %s8537 = scalar_select %p8536, %s29, 1
          %s8538 = smul.addr %s8535, 2
          %s8539 = sadd.s32 %s8537, %s8538
          %s8540 = smul.addr %s8539, 8
          %s8541 = scalar_lea.vmem %s4, %s8540
        $region68: #{tpu_custom_call.1} parent=59 // pred_fallthru
          _
        // Predicated region
        $region69: #{tpu_custom_call.1} parent=59 // pred_check
          %p8542 = pneg %p191
        $region70: #{tpu_custom_call.1} parent=59 // pred_check_branch
          %8544 = sbr.rel (%p8542) target = $region72
        $region71: #{tpu_custom_call.1} parent=59 // pred_region
          %p8545 = scmp.lt.s32.totalorder %s28, 0
          %s8546 = scalar_select %p8545, %s28, 0
          %p8547 = scmp.lt.s32.totalorder %s29, 1
          %s8548 = scalar_select %p8547, %s29, 1
          %s8549 = smul.addr %s8546, 2
          %s8550 = sadd.s32 %s8548, %s8549
          %s8551 = smul.addr %s8550, 8
          %s8552 = scalar_lea.vmem %s5, %s8551
        $region72: #{tpu_custom_call.1} parent=59 // pred_fallthru
          _
      $region60: #{tpu_custom_call.1} parent=5 // pred_fallthru
        _
    $region6: #{tpu_custom_call.1} parent=1 // loop_footer
      %s21 = sadd.s32 1, %s17
    $region7: #{tpu_custom_call.1} parent=1 // loop_footer_branch
      %16 = sbr.rel target = $region3
    $region8: #{tpu_custom_call.1} parent=1 // loop_exit
      _
    %8553 = vsyncpa [#allocation3], 1
    %s8554 = scalar_lea.sflag [#allocation3], 1
    %8555 = vsyncpa %s8554, 1
    %8556 = vsyncpa [#allocation6], 1
    %8557 = vsyncpa [#allocation4], 1
    %s8558 = scalar_lea.sflag [#allocation4], 1
    %8559 = vsyncpa %s8558, 1

</llo_original>
